<compile_context>
chip_gen: v7x
topology: tpu7x:2x2x1
jax: 0.10.0
libtpu: 0.0.40
codegen_flags: <defaults>
</compile_context>

<pallas_src>
import jax
import jax.numpy as jnp
from jax import lax
from jax.experimental import pallas as pl
from jax.experimental.pallas import tpu as pltpu


# --------------------------------------------------------------------------- #
# Pallas plumbing: single-program call, every operand fully resident in VMEM.  #
# (No grid / no Buffered pipelining on purpose: operands are a few vregs each, #
# extra grid steps would be pure overhead.)                                    #
# --------------------------------------------------------------------------- #
def _vmem_call(kernel, out_shape, *inputs):
    if isinstance(out_shape, (tuple, list)):
        out_shape = tuple(out_shape)
        out_specs = tuple(
            pl.BlockSpec(memory_space=pltpu.MemorySpace.VMEM) for _ in out_shape)
    else:
        out_specs = pl.BlockSpec(memory_space=pltpu.MemorySpace.VMEM)
    return pl.pallas_call(
        kernel,
        out_shape=out_shape,
        in_specs=[pl.BlockSpec(memory_space=pltpu.MemorySpace.VMEM) for _ in inputs],
        out_specs=out_specs,
    )(*inputs)


def _diag_mask(n):
    r = lax.broadcasted_iota(jnp.int32, (n, n), 0)
    c = lax.broadcasted_iota(jnp.int32, (n, n), 1)
    return r == c


def _mm(a, b):
    return jnp.dot(a, b, preferred_element_type=jnp.float32)


def _mm_t(a, b):
    # a @ b.T expressed as a contraction (no explicit relayout).
    return lax.dot_general(a, b, (((1,), (1,)), ((), ())),
                           preferred_element_type=jnp.float32)


# --------------------------------------------------------------------------- #
# In-kernel building blocks                                                    #
# --------------------------------------------------------------------------- #
def _gat(A, h, a_src, a_dst):
    """Dense single-head GAT: ELU(row_softmax(mask(LeakyReLU(e))) @ h)."""
    e_src = jnp.sum(h * a_src, axis=1, keepdims=True)             # (N, 1)
    e_dst = _mm_t(a_dst, h)                                       # (1, N)
    e = e_src + e_dst                                             # (N, N)
    e = jnp.where(e > 0, e, 0.2 * e)                              # LeakyReLU(0.2)
    e = jnp.where(A > 0, e, -9e15)                                # mask non-edges
    e = e - jnp.max(e, axis=1, keepdims=True)                     # stable softmax
    p = jnp.exp(e)
    p = p * pl.reciprocal(jnp.sum(p, axis=1, keepdims=True), approx=True)
    hp = _mm(p, h)
    return jnp.where(hp > 0, hp, jnp.exp(jnp.minimum(hp, 0.0)) - 1.0)   # ELU


def _topk_select(z_col, n_keep):
    """Top-k selection matrices via an unrolled argmax-and-mask loop.

    Returns S (n_keep, n) and T == S^T (n, n_keep); row r of S / column r of T
    is the one-hot indicator of the node with the r-th largest score (ties
    broken toward the smaller index, matching torch.topk / jax.lax.top_k).
    Gather / scatter / unpool then become plain matmuls, so the pooled
    sub-graph never leaves VMEM.
    """
    n = z_col.shape[0]
    row_f = lax.broadcasted_iota(jnp.int32, (n, 1), 0).astype(jnp.float32)
    lane_f = lax.broadcasted_iota(jnp.int32, (1, n), 1).astype(jnp.float32)
    s_rows = lax.broadcasted_iota(jnp.int32, (n_keep, n), 0)
    t_cols = lax.broadcasted_iota(jnp.int32, (n, n_keep), 1)
    S = jnp.zeros((n_keep, n), jnp.float32)
    T = jnp.zeros((n, n_keep), jnp.float32)
    remaining = z_col
    for r in range(n_keep):
        m = jnp.max(remaining, axis=0, keepdims=True)              # (1, 1)
        cand = jnp.where(remaining == m, row_f, jnp.float32(n))
        sel = jnp.min(cand, axis=0, keepdims=True)                 # argmax index
        S = jnp.where((lane_f == sel) & (s_rows == r), 1.0, S)
        T = jnp.where((row_f == sel) & (t_cols == r), 1.0, T)
        remaining = jnp.where(row_f == sel, -1e30, remaining)
    return S, T


# --------------------------------------------------------------------------- #
# Kernel 1: normalize_adj + full stacked Graph-U-Net (two passes), fully fused #
# --------------------------------------------------------------------------- #
def make_unet_kernel(ks, n0, dim, hr_dim):
    l_n = len(ks)
    sizes = [n0]
    for k in ks:
        sizes.append(int(k * sizes[-1]))

    def kernel(*refs):
        it = iter(refs)

        def take(m):
            return [next(it)[...] for _ in range(m)]

        (lr,) = take(1)
        sg_w, sg_s, sg_d = take(3)                     # start GAT
        bg_w, bg_s, bg_d = take(3)                     # bottom GAT
        eg_w, eg_s, eg_d = take(3)                     # end GAT
        lv = [take(6) for _ in range(l_n)]             # down gcn w/b, pool w/b, up gcn w/b
        a_out = next(it)
        x_out = next(it)
        s_out = next(it)

        # --- normalize_adj_torch: out[i,j] = lr[j,i] * r[i] * r[j] ---------
        eye_n = jnp.where(_diag_mask(n0), 1.0, 0.0).astype(jnp.float32)
        rs = jnp.sum(lr, axis=1, keepdims=True)
        r = jnp.where(rs > 0.0, lax.rsqrt(rs), 0.0)    # D^-1/2, inf -> 0
        # diag-scaling is two VPU broadcast multiplies; the transpose is an
        # identity contraction on the otherwise idle MXU.
        A0 = r * _mm_t(eye_n, lr * r)
        a_out[...] = A0

        # --- start GAT (input features are the identity => h = I @ W = W) --
        X = _gat(A0, sg_w, sg_s, sg_d)
        s_out[...] = X
        org_X = X

        adj_ms, down_outs, sels = [], [], []
        A = A0
        # Two stacked U-Net passes; pass 2 deliberately re-reads the pass-1
        # saved adjacencies / selections (the reference never resets the lists).
        for _ in range(2):
            # ----- down path: GCN + GraphPool (in-kernel top-k) -----
            for i in range(l_n):
                gw, gb, pw, pb, _, _ = lv[i]
                n_keep = sizes[i + 1]
                X = _mm(_mm(A, X), gw) + gb                          # GCN (dropout p=0)
                adj_ms.append(A)
                down_outs.append(X)
                z = (_mm(X, pw) + pb) * 0.01                         # proj(X) / 100
                S, T = _topk_select(z, n_keep)
                vals = _mm(S, pl.reciprocal(1.0 + jnp.exp(-z), approx=True))
                X = _mm(S, X) * vals                                 # X[idx] * values
                A = _mm(S, _mm_t(A, S))                              # A[idx][:, idx]
                sels.append(T)
            # ----- bottom GAT -----
            X = _gat(A, _mm(X, bg_w), bg_s, bg_d)
            # ----- up path: unpool + GCN + skip -----
            for i in range(l_n):
                up_idx = l_n - i - 1
                A, T = adj_ms[up_idx], sels[up_idx]
                uw, ub = lv[i][4], lv[i][5]
                Xu = _mm(T, X)                                       # S^T @ X (scatter)
                X = _mm(_mm(A, Xu), uw) + ub + down_outs[up_idx]
            # ----- concat([X, org_X], 1) folded into the end-GAT projection -----
            h = _mm(X, eg_w[:dim, :]) + _mm(org_X, eg_w[dim:, :])
            X = _gat(A, h, eg_s, eg_d)
        x_out[...] = X

    return kernel


# --------------------------------------------------------------------------- #
# Kernel 2: post-eigh tail (GSRLayer -> gc1 -> gc2 -> GIN -> symmetrize)       #
# --------------------------------------------------------------------------- #
def make_tail_kernel(lr_dim):
    def kernel(w_ref, u_ref, f_ref, w1_ref, w2_ref,
               gw1_ref, gb1_ref, gw2_ref, gb2_ref, z_ref):
        hr = z_ref.shape[0]
        diag = _diag_mask(hr)
        eye_hr = jnp.where(diag, 1.0, 0.0).astype(jnp.float32)
        # GSRLayer: s_d = [[I],[I]] built from iotas, a = W @ s_d (in-kernel,
        # so gsr_w is loaded into VMEM once and never touches XLA).
        rr = lax.broadcasted_iota(jnp.int32, (hr, lr_dim), 0)
        cc = lax.broadcasted_iota(jnp.int32, (hr, lr_dim), 1)
        s_d = jnp.where((rr == cc) | (rr == cc + lr_dim), 1.0, 0.0).astype(jnp.float32)
        a = _mm(w_ref[...], s_d)                                   # (hr, lr)
        b = _mm_t(a, u_ref[...])                                   # a @ U^T
        f_d = jnp.abs(_mm(b, f_ref[...]))                          # (hr, hr)
        adj = jnp.where(diag, 1.0, f_d)                            # fill_diagonal_(1)
        zz = _mm_t(adj, adj)                                       # adj @ adj^T (symmetric)
        Z = jnp.abs(jnp.where(diag, 1.0, zz))
        # gc1 / gc2: relu(adj @ (X @ W))   (args.dropout = 0)
        h1 = jnp.maximum(_mm(adj, _mm(Z, w1_ref[...])), 0.0)
        h2 = jnp.maximum(_mm(adj, _mm(h1, w2_ref[...])), 0.0)
        # GIN (eps = 0): MLP(X + A @ X), MLP = Linear -> ReLU -> Linear
        g = h2 + _mm(adj, h2)
        g = jnp.maximum(_mm(g, gw1_ref[...]) + gb1_ref[...], 0.0)
        zr = _mm(g, gw2_ref[...]) + gb2_ref[...]
        # z = (z + z^T)/2 ; fill_diagonal_(1) ; |z|   (z^T via identity contraction)
        zt = _mm_t(eye_hr, zr)
        z_ref[...] = jnp.abs(jnp.where(diag, 1.0, (zr + zt) * 0.5))
    return kernel


# --------------------------------------------------------------------------- #
# Forward (JAX glue: exactly 2 pallas_calls + one tiny eigh)                   #
# --------------------------------------------------------------------------- #
def iwas_agsrnet_forward(params, lr, ks):
    lr_dim = lr.shape[0]
    net = params["net"]
    dim = net["start_gat"]["w"].shape[1]
    hr_dim = params["gsr_w"].shape[0]

    inputs = [lr,
              net["start_gat"]["w"], net["start_gat"]["a_src"], net["start_gat"]["a_dst"],
              net["bottom_gat"]["w"], net["bottom_gat"]["a_src"], net["bottom_gat"]["a_dst"],
              net["end_gat"]["w"], net["end_gat"]["a_src"], net["end_gat"]["a_dst"]]
    for i in range(len(ks)):
        inputs += [net["down_gcns"][i]["w"], net["down_gcns"][i]["b"],
                   net["pools"][i]["w"], net["pools"][i]["b"],
                   net["up_gcns"][i]["w"], net["up_gcns"][i]["b"]]

    A, unet_outs, start_gat_outs = _vmem_call(
        make_unet_kernel(ks, lr_dim, dim, hr_dim),
        (jax.ShapeDtypeStruct((lr_dim, lr_dim), jnp.float32),   # normalized adj
         jax.ShapeDtypeStruct((lr_dim, hr_dim), jnp.float32),   # U-Net output
         jax.ShapeDtypeStruct((lr_dim, dim), jnp.float32)),     # start-GAT output
        *inputs)

    # TODO(synk): torch.linalg.eigh has no Pallas equivalent; the 16x16
    # eigendecomposition stays in (jitted) XLA glue between the two kernels.
    _, U = jnp.linalg.eigh(A, UPLO="U")

    z = _vmem_call(
        make_tail_kernel(lr_dim),
        jax.ShapeDtypeStruct((hr_dim, hr_dim), jnp.float32),
        params["gsr_w"], U, unet_outs,
        params["gc1_w"], params["gc2_w"],
        params["gin_w1"], params["gin_b1"],
        params["gin_w2"], params["gin_b2"])
    return z, unet_outs, start_gat_outs


iwas_agsrnet_forward_jit = jax.jit(iwas_agsrnet_forward, static_argnames=("ks",))


# --------------------------------------------------------------------------- #
# Deterministic parameter initialization                                       #
# --------------------------------------------------------------------------- #
def _glorot(key, shape):
    fan_in, fan_out = shape[0], shape[-1]
    lim = (6.0 / (fan_in + fan_out)) ** 0.5
    return jax.random.uniform(key, shape, jnp.float32, -lim, lim)


def init_params(seed, lr_dim, hr_dim, hidden_dim, dim, ks):
    key = jax.random.PRNGKey(seed)
    ctr = [0]

    def nk():
        ctr[0] += 1
        return jax.random.fold_in(key, ctr[0])

    def gat(in_dim, out_dim):
        return {"w": _glorot(nk(), (in_dim, out_dim)),
                "a_src": _glorot(nk(), (1, out_dim)),
                "a_dst": _glorot(nk(), (1, out_dim))}

    def gcn(in_dim, out_dim):
        return {"w": _glorot(nk(), (in_dim, out_dim)),
                "b": jnp.zeros((1, out_dim), jnp.float32)}

    l_n = len(ks)
    net = {
        "start_gat": gat(lr_dim, dim),
        "bottom_gat": gat(dim, dim),
        "end_gat": gat(2 * dim, hr_dim),
        "down_gcns": [gcn(dim, dim) for _ in range(l_n)],
        "up_gcns": [gcn(dim, dim) for _ in range(l_n)],
        "pools": [{"w": _glorot(nk(), (dim, 1)),
                   "b": jnp.zeros((1, 1), jnp.float32)}
                  for _ in range(l_n)],
    }
    return {
        "net": net,
        "gsr_w": _glorot(nk(), (hr_dim, hr_dim)),     # weight_variable_glorot(hr_dim)
        "gc1_w": _glorot(nk(), (hr_dim, hidden_dim)),
        "gc2_w": _glorot(nk(), (hidden_dim, hr_dim)),
        "gin_w1": _glorot(nk(), (hr_dim, hr_dim)),
        "gin_b1": jnp.zeros((1, hr_dim), jnp.float32),
        "gin_w2": _glorot(nk(), (hr_dim, hr_dim)),
        "gin_b2": jnp.zeros((1, hr_dim), jnp.float32),
    }


# --------------------------------------------------------------------------- #
if __name__ == "__main__":
    LR_DIM = 16
    HR_DIM = 32          # GSRLayer requires hr_dim == 2 * lr_dim
    HIDDEN_DIM = 16
    DIM = 32             # U-Net hidden dim must equal hr_dim for the 2nd pass
    KS = (0.5,)          # static for jit

    params = init_params(0, LR_DIM, HR_DIM, HIDDEN_DIM, DIM, KS)

    key = jax.random.PRNGKey(0)
    lr = jax.random.uniform(key, (LR_DIM, LR_DIM), jnp.float32)
    lr = (lr + lr.T) / 2.0       # symmetric non-negative LR adjacency

    z, unet_outs, start_gat_outs = iwas_agsrnet_forward_jit(params, lr, KS)
    jax.block_until_ready((z, unet_outs, start_gat_outs))

    assert z.shape == (HR_DIM, HR_DIM)
    assert unet_outs.shape == (LR_DIM, HR_DIM)
    assert start_gat_outs.shape == (LR_DIM, DIM)
    assert bool(jnp.all(jnp.isfinite(z)))
    print("KERNEL_OK")
</pallas_src>

<mosaic_0001>
module attributes {stable_mosaic.version = 11 : i64} {
  func.func @kernel(%arg0: memref<16x16xf32, #tpu.memory_space<vmem>>, %arg1: memref<16x32xf32, #tpu.memory_space<vmem>>, %arg2: memref<1x32xf32, #tpu.memory_space<vmem>>, %arg3: memref<1x32xf32, #tpu.memory_space<vmem>>, %arg4: memref<32x32xf32, #tpu.memory_space<vmem>>, %arg5: memref<1x32xf32, #tpu.memory_space<vmem>>, %arg6: memref<1x32xf32, #tpu.memory_space<vmem>>, %arg7: memref<64x32xf32, #tpu.memory_space<vmem>>, %arg8: memref<1x32xf32, #tpu.memory_space<vmem>>, %arg9: memref<1x32xf32, #tpu.memory_space<vmem>>, %arg10: memref<32x32xf32, #tpu.memory_space<vmem>>, %arg11: memref<1x32xf32, #tpu.memory_space<vmem>>, %arg12: memref<32x1xf32, #tpu.memory_space<vmem>>, %arg13: memref<1x1xf32, #tpu.memory_space<vmem>>, %arg14: memref<32x32xf32, #tpu.memory_space<vmem>>, %arg15: memref<1x32xf32, #tpu.memory_space<vmem>>, %arg16: memref<16x16xf32, #tpu.memory_space<vmem>>, %arg17: memref<16x32xf32, #tpu.memory_space<vmem>>, %arg18: memref<16x32xf32, #tpu.memory_space<vmem>>) attributes {dimension_semantics = [], scalar_prefetch = 0 : i64, scratch_operands = 0 : i64, tpu.core_type = #tpu.core_type<tc>} {
    %c0 = arith.constant 0 : index
    %c0_0 = arith.constant 0 : index
    %0 = vector.load %arg0[%c0, %c0_0] : memref<16x16xf32, #tpu.memory_space<vmem>>, vector<16x16xf32>
    %c0_1 = arith.constant 0 : index
    %c0_2 = arith.constant 0 : index
    %1 = vector.load %arg1[%c0_1, %c0_2] : memref<16x32xf32, #tpu.memory_space<vmem>>, vector<16x32xf32>
    %c0_3 = arith.constant 0 : index
    %c0_4 = arith.constant 0 : index
    %2 = vector.load %arg2[%c0_3, %c0_4] : memref<1x32xf32, #tpu.memory_space<vmem>>, vector<1x32xf32>
    %c0_5 = arith.constant 0 : index
    %c0_6 = arith.constant 0 : index
    %3 = vector.load %arg3[%c0_5, %c0_6] : memref<1x32xf32, #tpu.memory_space<vmem>>, vector<1x32xf32>
    %c0_7 = arith.constant 0 : index
    %c0_8 = arith.constant 0 : index
    %4 = vector.load %arg4[%c0_7, %c0_8] : memref<32x32xf32, #tpu.memory_space<vmem>>, vector<32x32xf32>
    %c0_9 = arith.constant 0 : index
    %c0_10 = arith.constant 0 : index
    %5 = vector.load %arg5[%c0_9, %c0_10] : memref<1x32xf32, #tpu.memory_space<vmem>>, vector<1x32xf32>
    %c0_11 = arith.constant 0 : index
    %c0_12 = arith.constant 0 : index
    %6 = vector.load %arg6[%c0_11, %c0_12] : memref<1x32xf32, #tpu.memory_space<vmem>>, vector<1x32xf32>
    %c0_13 = arith.constant 0 : index
    %c0_14 = arith.constant 0 : index
    %7 = vector.load %arg7[%c0_13, %c0_14] : memref<64x32xf32, #tpu.memory_space<vmem>>, vector<64x32xf32>
    %c0_15 = arith.constant 0 : index
    %c0_16 = arith.constant 0 : index
    %8 = vector.load %arg8[%c0_15, %c0_16] : memref<1x32xf32, #tpu.memory_space<vmem>>, vector<1x32xf32>
    %c0_17 = arith.constant 0 : index
    %c0_18 = arith.constant 0 : index
    %9 = vector.load %arg9[%c0_17, %c0_18] : memref<1x32xf32, #tpu.memory_space<vmem>>, vector<1x32xf32>
    %c0_19 = arith.constant 0 : index
    %c0_20 = arith.constant 0 : index
    %10 = vector.load %arg10[%c0_19, %c0_20] : memref<32x32xf32, #tpu.memory_space<vmem>>, vector<32x32xf32>
    %c0_21 = arith.constant 0 : index
    %c0_22 = arith.constant 0 : index
    %11 = vector.load %arg11[%c0_21, %c0_22] : memref<1x32xf32, #tpu.memory_space<vmem>>, vector<1x32xf32>
    %c0_23 = arith.constant 0 : index
    %c0_24 = arith.constant 0 : index
    %12 = vector.load %arg12[%c0_23, %c0_24] : memref<32x1xf32, #tpu.memory_space<vmem>>, vector<32x1xf32>
    %c0_25 = arith.constant 0 : index
    %c0_26 = arith.constant 0 : index
    %13 = vector.load %arg13[%c0_25, %c0_26] : memref<1x1xf32, #tpu.memory_space<vmem>>, vector<1x1xf32>
    %c0_27 = arith.constant 0 : index
    %c0_28 = arith.constant 0 : index
    %14 = vector.load %arg14[%c0_27, %c0_28] : memref<32x32xf32, #tpu.memory_space<vmem>>, vector<32x32xf32>
    %c0_29 = arith.constant 0 : index
    %c0_30 = arith.constant 0 : index
    %15 = vector.load %arg15[%c0_29, %c0_30] : memref<1x32xf32, #tpu.memory_space<vmem>>, vector<1x32xf32>
    %16 = tpu.iota {dimensions = array<i32: 0>} : vector<16x16xi32>
    %17 = tpu.iota {dimensions = array<i32: 1>} : vector<16x16xi32>
    %18 = arith.cmpi eq, %16, %17 : vector<16x16xi32>
    %cst = arith.constant 1.000000e+00 : f32
    %cst_31 = arith.constant 0.000000e+00 : f32
    %19 = vector.broadcast %cst : f32 to vector<16x16xf32>
    %20 = vector.broadcast %cst_31 : f32 to vector<16x16xf32>
    %21 = arith.select %18, %19, %20 : vector<16x16xi1>, vector<16x16xf32>
    %cst_32 = arith.constant dense<0.000000e+00> : vector<16xf32>
    %22 = vector.multi_reduction <add>, %0, %cst_32 [1] : vector<16x16xf32> to vector<16xf32>
    %23 = vector.shape_cast %22 : vector<16xf32> to vector<16x1xf32>
    %cst_33 = arith.constant 0.000000e+00 : f32
    %24 = vector.broadcast %cst_33 : f32 to vector<16x1xf32>
    %25 = arith.cmpf ogt, %23, %24 : vector<16x1xf32>
    %26 = math.rsqrt %23 : vector<16x1xf32>
    %cst_34 = arith.constant 0.000000e+00 : f32
    %27 = vector.broadcast %cst_34 : f32 to vector<16x1xf32>
    %28 = arith.select %25, %26, %27 : vector<16x1xi1>, vector<16x1xf32>
    %29 = vector.broadcast %28 : vector<16x1xf32> to vector<16x16xf32>
    %30 = arith.mulf %0, %29 : vector<16x16xf32>
    %cst_35 = arith.constant dense<0.000000e+00> : vector<16x16xf32>
    %31 = tpu.matmul %21, %30, %cst_35 {dimension_numbers = #tpu.dot_dimension_numbers<[1], [1], [0], [0], [0, 0, 1, 0], [], []>} : vector<16x16xf32>, vector<16x16xf32>, vector<16x16xf32> -> vector<16x16xf32>
    %32 = vector.broadcast %28 : vector<16x1xf32> to vector<16x16xf32>
    %33 = arith.mulf %32, %31 : vector<16x16xf32>
    %c0_36 = arith.constant 0 : index
    %c0_37 = arith.constant 0 : index
    %34 = vector.load %arg16[%c0_36, %c0_37] : memref<16x16xf32, #tpu.memory_space<vmem>>, vector<16x16xf32>
    tpu.vector_store %arg16[%c0_36, %c0_37], %33 {strides = array<i32>} : memref<16x16xf32, #tpu.memory_space<vmem>>, vector<16x16xf32>,
    %35 = vector.broadcast %2 : vector<1x32xf32> to vector<16x32xf32>
    %36 = arith.mulf %1, %35 : vector<16x32xf32>
    %cst_38 = arith.constant dense<0.000000e+00> : vector<16xf32>
    %37 = vector.multi_reduction <add>, %36, %cst_38 [1] : vector<16x32xf32> to vector<16xf32>
    %38 = vector.shape_cast %37 : vector<16xf32> to vector<16x1xf32>
    %cst_39 = arith.constant dense<0.000000e+00> : vector<1x16xf32>
    %39 = tpu.matmul %3, %1, %cst_39 {dimension_numbers = #tpu.dot_dimension_numbers<[1], [1], [0], [0], [0, 0, 1, 0], [], []>} : vector<1x32xf32>, vector<16x32xf32>, vector<1x16xf32> -> vector<1x16xf32>
    %40 = vector.broadcast %38 : vector<16x1xf32> to vector<16x16xf32>
    %41 = vector.broadcast %39 : vector<1x16xf32> to vector<16x16xf32>
    %42 = arith.addf %40, %41 : vector<16x16xf32>
    %cst_40 = arith.constant 0.000000e+00 : f32
    %43 = vector.broadcast %cst_40 : f32 to vector<16x16xf32>
    %44 = arith.cmpf ogt, %42, %43 : vector<16x16xf32>
    %cst_41 = arith.constant 2.000000e-01 : f32
    %45 = vector.broadcast %cst_41 : f32 to vector<16x16xf32>
    %46 = arith.mulf %45, %42 : vector<16x16xf32>
    %47 = arith.select %44, %42, %46 : vector<16x16xi1>, vector<16x16xf32>
    %cst_42 = arith.constant 0.000000e+00 : f32
    %48 = vector.broadcast %cst_42 : f32 to vector<16x16xf32>
    %49 = arith.cmpf ogt, %33, %48 : vector<16x16xf32>
    %cst_43 = arith.constant -9.000000e+15 : f32
    %50 = vector.broadcast %cst_43 : f32 to vector<16x16xf32>
    %51 = arith.select %49, %47, %50 : vector<16x16xi1>, vector<16x16xf32>
    %cst_44 = arith.constant dense<0xFF800000> : vector<16xf32>
    %52 = vector.multi_reduction <maximumf>, %51, %cst_44 [1] : vector<16x16xf32> to vector<16xf32>
    %53 = vector.shape_cast %52 : vector<16xf32> to vector<16x1xf32>
    %54 = vector.broadcast %53 : vector<16x1xf32> to vector<16x16xf32>
    %55 = arith.subf %51, %54 : vector<16x16xf32>
    %56 = math.exp %55 : vector<16x16xf32>
    %cst_45 = arith.constant dense<0.000000e+00> : vector<16xf32>
    %57 = vector.multi_reduction <add>, %56, %cst_45 [1] : vector<16x16xf32> to vector<16xf32>
    %58 = vector.shape_cast %57 : vector<16xf32> to vector<16x1xf32>
    %59 = tpu.reciprocal %58 {approx = true} : vector<16x1xf32> -> vector<16x1xf32>
    %60 = vector.broadcast %59 : vector<16x1xf32> to vector<16x16xf32>
    %61 = arith.mulf %56, %60 : vector<16x16xf32>
    %cst_46 = arith.constant dense<0.000000e+00> : vector<16x32xf32>
    %62 = tpu.matmul %61, %1, %cst_46 {dimension_numbers = #tpu.dot_dimension_numbers<[1], [0], [0], [1], [0, 0, 1, 1], [], []>} : vector<16x16xf32>, vector<16x32xf32>, vector<16x32xf32> -> vector<16x32xf32>
    %cst_47 = arith.constant 0.000000e+00 : f32
    %63 = vector.broadcast %cst_47 : f32 to vector<16x32xf32>
    %64 = arith.cmpf ogt, %62, %63 : vector<16x32xf32>
    %cst_48 = arith.constant 0.000000e+00 : f32
    %65 = vector.broadcast %cst_48 : f32 to vector<16x32xf32>
    %66 = arith.minimumf %62, %65 : vector<16x32xf32>
    %67 = math.exp %66 : vector<16x32xf32>
    %cst_49 = arith.constant 1.000000e+00 : f32
    %68 = vector.broadcast %cst_49 : f32 to vector<16x32xf32>
    %69 = arith.subf %67, %68 : vector<16x32xf32>
    %70 = arith.select %64, %62, %69 : vector<16x32xi1>, vector<16x32xf32>
    %c0_50 = arith.constant 0 : index
    %c0_51 = arith.constant 0 : index
    %71 = vector.load %arg18[%c0_50, %c0_51] : memref<16x32xf32, #tpu.memory_space<vmem>>, vector<16x32xf32>
    tpu.vector_store %arg18[%c0_50, %c0_51], %70 {strides = array<i32>} : memref<16x32xf32, #tpu.memory_space<vmem>>, vector<16x32xf32>,
    %cst_52 = arith.constant dense<0.000000e+00> : vector<16x32xf32>
    %72 = tpu.matmul %33, %70, %cst_52 {dimension_numbers = #tpu.dot_dimension_numbers<[1], [0], [0], [1], [0, 0, 1, 1], [], []>} : vector<16x16xf32>, vector<16x32xf32>, vector<16x32xf32> -> vector<16x32xf32>
    %cst_53 = arith.constant dense<0.000000e+00> : vector<16x32xf32>
    %73 = tpu.matmul %72, %10, %cst_53 {dimension_numbers = #tpu.dot_dimension_numbers<[1], [0], [0], [1], [0, 0, 1, 1], [], []>} : vector<16x32xf32>, vector<32x32xf32>, vector<16x32xf32> -> vector<16x32xf32>
    %74 = vector.broadcast %11 : vector<1x32xf32> to vector<16x32xf32>
    %75 = arith.addf %73, %74 : vector<16x32xf32>
    %cst_54 = arith.constant dense<0.000000e+00> : vector<16x1xf32>
    %76 = tpu.matmul %75, %12, %cst_54 {dimension_numbers = #tpu.dot_dimension_numbers<[1], [0], [0], [1], [0, 0, 1, 1], [], []>} : vector<16x32xf32>, vector<32x1xf32>, vector<16x1xf32> -> vector<16x1xf32>
    %77 = vector.broadcast %13 : vector<1x1xf32> to vector<16x1xf32>
    %78 = arith.addf %76, %77 : vector<16x1xf32>
    %cst_55 = arith.constant 0.00999999977 : f32
    %79 = vector.broadcast %cst_55 : f32 to vector<16x1xf32>
    %80 = arith.mulf %78, %79 : vector<16x1xf32>
    %81 = tpu.iota {dimensions = array<i32: 0>} : vector<16x1xi32>
    %82 = arith.sitofp %81 : vector<16x1xi32> to vector<16x1xf32>
    %83 = tpu.iota {dimensions = array<i32: 1>} : vector<1x16xi32>
    %84 = arith.sitofp %83 : vector<1x16xi32> to vector<1x16xf32>
    %85 = tpu.iota {dimensions = array<i32: 0>} : vector<8x16xi32>
    %86 = tpu.iota {dimensions = array<i32: 1>} : vector<16x8xi32>
    %cst_56 = arith.constant 0.000000e+00 : f32
    %87 = vector.broadcast %cst_56 : f32 to vector<8x16xf32>
    %cst_57 = arith.constant 0.000000e+00 : f32
    %88 = vector.broadcast %cst_57 : f32 to vector<16x8xf32>
    %cst_58 = arith.constant dense<0xFF800000> : vector<1xf32>
    %89 = vector.multi_reduction <maximumf>, %80, %cst_58 [0] : vector<16x1xf32> to vector<1xf32>
    %90 = vector.shape_cast %89 : vector<1xf32> to vector<1x1xf32>
    %91 = vector.broadcast %90 : vector<1x1xf32> to vector<16x1xf32>
    %92 = arith.cmpf oeq, %80, %91 : vector<16x1xf32>
    %cst_59 = arith.constant 1.600000e+01 : f32
    %93 = vector.broadcast %cst_59 : f32 to vector<16x1xf32>
    %94 = arith.select %92, %82, %93 : vector<16x1xi1>, vector<16x1xf32>
    %cst_60 = arith.constant dense<0x7F800000> : vector<1xf32>
    %95 = vector.multi_reduction <minimumf>, %94, %cst_60 [0] : vector<16x1xf32> to vector<1xf32>
    %96 = vector.shape_cast %95 : vector<1xf32> to vector<1x1xf32>
    %97 = vector.broadcast %96 : vector<1x1xf32> to vector<1x16xf32>
    %98 = arith.cmpf oeq, %84, %97 : vector<1x16xf32>
    %c0_i32 = arith.constant 0 : i32
    %99 = vector.broadcast %c0_i32 : i32 to vector<8x16xi32>
    %100 = arith.cmpi eq, %85, %99 : vector<8x16xi32>
    %101 = vector.broadcast %98 : vector<1x16xi1> to vector<8x16xi1>
    %102 = arith.andi %101, %100 : vector<8x16xi1>
    %cst_61 = arith.constant 1.000000e+00 : f32
    %103 = vector.broadcast %cst_61 : f32 to vector<8x16xf32>
    %104 = arith.select %102, %103, %87 : vector<8x16xi1>, vector<8x16xf32>
    %105 = vector.broadcast %96 : vector<1x1xf32> to vector<16x1xf32>
    %106 = arith.cmpf oeq, %82, %105 : vector<16x1xf32>
    %c0_i32_62 = arith.constant 0 : i32
    %107 = vector.broadcast %c0_i32_62 : i32 to vector<16x8xi32>
    %108 = arith.cmpi eq, %86, %107 : vector<16x8xi32>
    %109 = vector.broadcast %106 : vector<16x1xi1> to vector<16x8xi1>
    %110 = arith.andi %109, %108 : vector<16x8xi1>
    %cst_63 = arith.constant 1.000000e+00 : f32
    %111 = vector.broadcast %cst_63 : f32 to vector<16x8xf32>
    %112 = arith.select %110, %111, %88 : vector<16x8xi1>, vector<16x8xf32>
    %113 = vector.broadcast %96 : vector<1x1xf32> to vector<16x1xf32>
    %114 = arith.cmpf oeq, %82, %113 : vector<16x1xf32>
    %cst_64 = arith.constant -1.000000e+30 : f32
    %115 = vector.broadcast %cst_64 : f32 to vector<16x1xf32>
    %116 = arith.select %114, %115, %80 : vector<16x1xi1>, vector<16x1xf32>
    %cst_65 = arith.constant dense<0xFF800000> : vector<1xf32>
    %117 = vector.multi_reduction <maximumf>, %116, %cst_65 [0] : vector<16x1xf32> to vector<1xf32>
    %118 = vector.shape_cast %117 : vector<1xf32> to vector<1x1xf32>
    %119 = vector.broadcast %118 : vector<1x1xf32> to vector<16x1xf32>
    %120 = arith.cmpf oeq, %116, %119 : vector<16x1xf32>
    %cst_66 = arith.constant 1.600000e+01 : f32
    %121 = vector.broadcast %cst_66 : f32 to vector<16x1xf32>
    %122 = arith.select %120, %82, %121 : vector<16x1xi1>, vector<16x1xf32>
    %cst_67 = arith.constant dense<0x7F800000> : vector<1xf32>
    %123 = vector.multi_reduction <minimumf>, %122, %cst_67 [0] : vector<16x1xf32> to vector<1xf32>
    %124 = vector.shape_cast %123 : vector<1xf32> to vector<1x1xf32>
    %125 = vector.broadcast %124 : vector<1x1xf32> to vector<1x16xf32>
    %126 = arith.cmpf oeq, %84, %125 : vector<1x16xf32>
    %c1_i32 = arith.constant 1 : i32
    %127 = vector.broadcast %c1_i32 : i32 to vector<8x16xi32>
    %128 = arith.cmpi eq, %85, %127 : vector<8x16xi32>
    %129 = vector.broadcast %126 : vector<1x16xi1> to vector<8x16xi1>
    %130 = arith.andi %129, %128 : vector<8x16xi1>
    %cst_68 = arith.constant 1.000000e+00 : f32
    %131 = vector.broadcast %cst_68 : f32 to vector<8x16xf32>
    %132 = arith.select %130, %131, %104 : vector<8x16xi1>, vector<8x16xf32>
    %133 = vector.broadcast %124 : vector<1x1xf32> to vector<16x1xf32>
    %134 = arith.cmpf oeq, %82, %133 : vector<16x1xf32>
    %c1_i32_69 = arith.constant 1 : i32
    %135 = vector.broadcast %c1_i32_69 : i32 to vector<16x8xi32>
    %136 = arith.cmpi eq, %86, %135 : vector<16x8xi32>
    %137 = vector.broadcast %134 : vector<16x1xi1> to vector<16x8xi1>
    %138 = arith.andi %137, %136 : vector<16x8xi1>
    %cst_70 = arith.constant 1.000000e+00 : f32
    %139 = vector.broadcast %cst_70 : f32 to vector<16x8xf32>
    %140 = arith.select %138, %139, %112 : vector<16x8xi1>, vector<16x8xf32>
    %141 = vector.broadcast %124 : vector<1x1xf32> to vector<16x1xf32>
    %142 = arith.cmpf oeq, %82, %141 : vector<16x1xf32>
    %cst_71 = arith.constant -1.000000e+30 : f32
    %143 = vector.broadcast %cst_71 : f32 to vector<16x1xf32>
    %144 = arith.select %142, %143, %116 : vector<16x1xi1>, vector<16x1xf32>
    %cst_72 = arith.constant dense<0xFF800000> : vector<1xf32>
    %145 = vector.multi_reduction <maximumf>, %144, %cst_72 [0] : vector<16x1xf32> to vector<1xf32>
    %146 = vector.shape_cast %145 : vector<1xf32> to vector<1x1xf32>
    %147 = vector.broadcast %146 : vector<1x1xf32> to vector<16x1xf32>
    %148 = arith.cmpf oeq, %144, %147 : vector<16x1xf32>
    %cst_73 = arith.constant 1.600000e+01 : f32
    %149 = vector.broadcast %cst_73 : f32 to vector<16x1xf32>
    %150 = arith.select %148, %82, %149 : vector<16x1xi1>, vector<16x1xf32>
    %cst_74 = arith.constant dense<0x7F800000> : vector<1xf32>
    %151 = vector.multi_reduction <minimumf>, %150, %cst_74 [0] : vector<16x1xf32> to vector<1xf32>
    %152 = vector.shape_cast %151 : vector<1xf32> to vector<1x1xf32>
    %153 = vector.broadcast %152 : vector<1x1xf32> to vector<1x16xf32>
    %154 = arith.cmpf oeq, %84, %153 : vector<1x16xf32>
    %c2_i32 = arith.constant 2 : i32
    %155 = vector.broadcast %c2_i32 : i32 to vector<8x16xi32>
    %156 = arith.cmpi eq, %85, %155 : vector<8x16xi32>
    %157 = vector.broadcast %154 : vector<1x16xi1> to vector<8x16xi1>
    %158 = arith.andi %157, %156 : vector<8x16xi1>
    %cst_75 = arith.constant 1.000000e+00 : f32
    %159 = vector.broadcast %cst_75 : f32 to vector<8x16xf32>
    %160 = arith.select %158, %159, %132 : vector<8x16xi1>, vector<8x16xf32>
    %161 = vector.broadcast %152 : vector<1x1xf32> to vector<16x1xf32>
    %162 = arith.cmpf oeq, %82, %161 : vector<16x1xf32>
    %c2_i32_76 = arith.constant 2 : i32
    %163 = vector.broadcast %c2_i32_76 : i32 to vector<16x8xi32>
    %164 = arith.cmpi eq, %86, %163 : vector<16x8xi32>
    %165 = vector.broadcast %162 : vector<16x1xi1> to vector<16x8xi1>
    %166 = arith.andi %165, %164 : vector<16x8xi1>
    %cst_77 = arith.constant 1.000000e+00 : f32
    %167 = vector.broadcast %cst_77 : f32 to vector<16x8xf32>
    %168 = arith.select %166, %167, %140 : vector<16x8xi1>, vector<16x8xf32>
    %169 = vector.broadcast %152 : vector<1x1xf32> to vector<16x1xf32>
    %170 = arith.cmpf oeq, %82, %169 : vector<16x1xf32>
    %cst_78 = arith.constant -1.000000e+30 : f32
    %171 = vector.broadcast %cst_78 : f32 to vector<16x1xf32>
    %172 = arith.select %170, %171, %144 : vector<16x1xi1>, vector<16x1xf32>
    %cst_79 = arith.constant dense<0xFF800000> : vector<1xf32>
    %173 = vector.multi_reduction <maximumf>, %172, %cst_79 [0] : vector<16x1xf32> to vector<1xf32>
    %174 = vector.shape_cast %173 : vector<1xf32> to vector<1x1xf32>
    %175 = vector.broadcast %174 : vector<1x1xf32> to vector<16x1xf32>
    %176 = arith.cmpf oeq, %172, %175 : vector<16x1xf32>
    %cst_80 = arith.constant 1.600000e+01 : f32
    %177 = vector.broadcast %cst_80 : f32 to vector<16x1xf32>
    %178 = arith.select %176, %82, %177 : vector<16x1xi1>, vector<16x1xf32>
    %cst_81 = arith.constant dense<0x7F800000> : vector<1xf32>
    %179 = vector.multi_reduction <minimumf>, %178, %cst_81 [0] : vector<16x1xf32> to vector<1xf32>
    %180 = vector.shape_cast %179 : vector<1xf32> to vector<1x1xf32>
    %181 = vector.broadcast %180 : vector<1x1xf32> to vector<1x16xf32>
    %182 = arith.cmpf oeq, %84, %181 : vector<1x16xf32>
    %c3_i32 = arith.constant 3 : i32
    %183 = vector.broadcast %c3_i32 : i32 to vector<8x16xi32>
    %184 = arith.cmpi eq, %85, %183 : vector<8x16xi32>
    %185 = vector.broadcast %182 : vector<1x16xi1> to vector<8x16xi1>
    %186 = arith.andi %185, %184 : vector<8x16xi1>
    %cst_82 = arith.constant 1.000000e+00 : f32
    %187 = vector.broadcast %cst_82 : f32 to vector<8x16xf32>
    %188 = arith.select %186, %187, %160 : vector<8x16xi1>, vector<8x16xf32>
    %189 = vector.broadcast %180 : vector<1x1xf32> to vector<16x1xf32>
    %190 = arith.cmpf oeq, %82, %189 : vector<16x1xf32>
    %c3_i32_83 = arith.constant 3 : i32
    %191 = vector.broadcast %c3_i32_83 : i32 to vector<16x8xi32>
    %192 = arith.cmpi eq, %86, %191 : vector<16x8xi32>
    %193 = vector.broadcast %190 : vector<16x1xi1> to vector<16x8xi1>
    %194 = arith.andi %193, %192 : vector<16x8xi1>
    %cst_84 = arith.constant 1.000000e+00 : f32
    %195 = vector.broadcast %cst_84 : f32 to vector<16x8xf32>
    %196 = arith.select %194, %195, %168 : vector<16x8xi1>, vector<16x8xf32>
    %197 = vector.broadcast %180 : vector<1x1xf32> to vector<16x1xf32>
    %198 = arith.cmpf oeq, %82, %197 : vector<16x1xf32>
    %cst_85 = arith.constant -1.000000e+30 : f32
    %199 = vector.broadcast %cst_85 : f32 to vector<16x1xf32>
    %200 = arith.select %198, %199, %172 : vector<16x1xi1>, vector<16x1xf32>
    %cst_86 = arith.constant dense<0xFF800000> : vector<1xf32>
    %201 = vector.multi_reduction <maximumf>, %200, %cst_86 [0] : vector<16x1xf32> to vector<1xf32>
    %202 = vector.shape_cast %201 : vector<1xf32> to vector<1x1xf32>
    %203 = vector.broadcast %202 : vector<1x1xf32> to vector<16x1xf32>
    %204 = arith.cmpf oeq, %200, %203 : vector<16x1xf32>
    %cst_87 = arith.constant 1.600000e+01 : f32
    %205 = vector.broadcast %cst_87 : f32 to vector<16x1xf32>
    %206 = arith.select %204, %82, %205 : vector<16x1xi1>, vector<16x1xf32>
    %cst_88 = arith.constant dense<0x7F800000> : vector<1xf32>
    %207 = vector.multi_reduction <minimumf>, %206, %cst_88 [0] : vector<16x1xf32> to vector<1xf32>
    %208 = vector.shape_cast %207 : vector<1xf32> to vector<1x1xf32>
    %209 = vector.broadcast %208 : vector<1x1xf32> to vector<1x16xf32>
    %210 = arith.cmpf oeq, %84, %209 : vector<1x16xf32>
    %c4_i32 = arith.constant 4 : i32
    %211 = vector.broadcast %c4_i32 : i32 to vector<8x16xi32>
    %212 = arith.cmpi eq, %85, %211 : vector<8x16xi32>
    %213 = vector.broadcast %210 : vector<1x16xi1> to vector<8x16xi1>
    %214 = arith.andi %213, %212 : vector<8x16xi1>
    %cst_89 = arith.constant 1.000000e+00 : f32
    %215 = vector.broadcast %cst_89 : f32 to vector<8x16xf32>
    %216 = arith.select %214, %215, %188 : vector<8x16xi1>, vector<8x16xf32>
    %217 = vector.broadcast %208 : vector<1x1xf32> to vector<16x1xf32>
    %218 = arith.cmpf oeq, %82, %217 : vector<16x1xf32>
    %c4_i32_90 = arith.constant 4 : i32
    %219 = vector.broadcast %c4_i32_90 : i32 to vector<16x8xi32>
    %220 = arith.cmpi eq, %86, %219 : vector<16x8xi32>
    %221 = vector.broadcast %218 : vector<16x1xi1> to vector<16x8xi1>
    %222 = arith.andi %221, %220 : vector<16x8xi1>
    %cst_91 = arith.constant 1.000000e+00 : f32
    %223 = vector.broadcast %cst_91 : f32 to vector<16x8xf32>
    %224 = arith.select %222, %223, %196 : vector<16x8xi1>, vector<16x8xf32>
    %225 = vector.broadcast %208 : vector<1x1xf32> to vector<16x1xf32>
    %226 = arith.cmpf oeq, %82, %225 : vector<16x1xf32>
    %cst_92 = arith.constant -1.000000e+30 : f32
    %227 = vector.broadcast %cst_92 : f32 to vector<16x1xf32>
    %228 = arith.select %226, %227, %200 : vector<16x1xi1>, vector<16x1xf32>
    %cst_93 = arith.constant dense<0xFF800000> : vector<1xf32>
    %229 = vector.multi_reduction <maximumf>, %228, %cst_93 [0] : vector<16x1xf32> to vector<1xf32>
    %230 = vector.shape_cast %229 : vector<1xf32> to vector<1x1xf32>
    %231 = vector.broadcast %230 : vector<1x1xf32> to vector<16x1xf32>
    %232 = arith.cmpf oeq, %228, %231 : vector<16x1xf32>
    %cst_94 = arith.constant 1.600000e+01 : f32
    %233 = vector.broadcast %cst_94 : f32 to vector<16x1xf32>
    %234 = arith.select %232, %82, %233 : vector<16x1xi1>, vector<16x1xf32>
    %cst_95 = arith.constant dense<0x7F800000> : vector<1xf32>
    %235 = vector.multi_reduction <minimumf>, %234, %cst_95 [0] : vector<16x1xf32> to vector<1xf32>
    %236 = vector.shape_cast %235 : vector<1xf32> to vector<1x1xf32>
    %237 = vector.broadcast %236 : vector<1x1xf32> to vector<1x16xf32>
    %238 = arith.cmpf oeq, %84, %237 : vector<1x16xf32>
    %c5_i32 = arith.constant 5 : i32
    %239 = vector.broadcast %c5_i32 : i32 to vector<8x16xi32>
    %240 = arith.cmpi eq, %85, %239 : vector<8x16xi32>
    %241 = vector.broadcast %238 : vector<1x16xi1> to vector<8x16xi1>
    %242 = arith.andi %241, %240 : vector<8x16xi1>
    %cst_96 = arith.constant 1.000000e+00 : f32
    %243 = vector.broadcast %cst_96 : f32 to vector<8x16xf32>
    %244 = arith.select %242, %243, %216 : vector<8x16xi1>, vector<8x16xf32>
    %245 = vector.broadcast %236 : vector<1x1xf32> to vector<16x1xf32>
    %246 = arith.cmpf oeq, %82, %245 : vector<16x1xf32>
    %c5_i32_97 = arith.constant 5 : i32
    %247 = vector.broadcast %c5_i32_97 : i32 to vector<16x8xi32>
    %248 = arith.cmpi eq, %86, %247 : vector<16x8xi32>
    %249 = vector.broadcast %246 : vector<16x1xi1> to vector<16x8xi1>
    %250 = arith.andi %249, %248 : vector<16x8xi1>
    %cst_98 = arith.constant 1.000000e+00 : f32
    %251 = vector.broadcast %cst_98 : f32 to vector<16x8xf32>
    %252 = arith.select %250, %251, %224 : vector<16x8xi1>, vector<16x8xf32>
    %253 = vector.broadcast %236 : vector<1x1xf32> to vector<16x1xf32>
    %254 = arith.cmpf oeq, %82, %253 : vector<16x1xf32>
    %cst_99 = arith.constant -1.000000e+30 : f32
    %255 = vector.broadcast %cst_99 : f32 to vector<16x1xf32>
    %256 = arith.select %254, %255, %228 : vector<16x1xi1>, vector<16x1xf32>
    %cst_100 = arith.constant dense<0xFF800000> : vector<1xf32>
    %257 = vector.multi_reduction <maximumf>, %256, %cst_100 [0] : vector<16x1xf32> to vector<1xf32>
    %258 = vector.shape_cast %257 : vector<1xf32> to vector<1x1xf32>
    %259 = vector.broadcast %258 : vector<1x1xf32> to vector<16x1xf32>
    %260 = arith.cmpf oeq, %256, %259 : vector<16x1xf32>
    %cst_101 = arith.constant 1.600000e+01 : f32
    %261 = vector.broadcast %cst_101 : f32 to vector<16x1xf32>
    %262 = arith.select %260, %82, %261 : vector<16x1xi1>, vector<16x1xf32>
    %cst_102 = arith.constant dense<0x7F800000> : vector<1xf32>
    %263 = vector.multi_reduction <minimumf>, %262, %cst_102 [0] : vector<16x1xf32> to vector<1xf32>
    %264 = vector.shape_cast %263 : vector<1xf32> to vector<1x1xf32>
    %265 = vector.broadcast %264 : vector<1x1xf32> to vector<1x16xf32>
    %266 = arith.cmpf oeq, %84, %265 : vector<1x16xf32>
    %c6_i32 = arith.constant 6 : i32
    %267 = vector.broadcast %c6_i32 : i32 to vector<8x16xi32>
    %268 = arith.cmpi eq, %85, %267 : vector<8x16xi32>
    %269 = vector.broadcast %266 : vector<1x16xi1> to vector<8x16xi1>
    %270 = arith.andi %269, %268 : vector<8x16xi1>
    %cst_103 = arith.constant 1.000000e+00 : f32
    %271 = vector.broadcast %cst_103 : f32 to vector<8x16xf32>
    %272 = arith.select %270, %271, %244 : vector<8x16xi1>, vector<8x16xf32>
    %273 = vector.broadcast %264 : vector<1x1xf32> to vector<16x1xf32>
    %274 = arith.cmpf oeq, %82, %273 : vector<16x1xf32>
    %c6_i32_104 = arith.constant 6 : i32
    %275 = vector.broadcast %c6_i32_104 : i32 to vector<16x8xi32>
    %276 = arith.cmpi eq, %86, %275 : vector<16x8xi32>
    %277 = vector.broadcast %274 : vector<16x1xi1> to vector<16x8xi1>
    %278 = arith.andi %277, %276 : vector<16x8xi1>
    %cst_105 = arith.constant 1.000000e+00 : f32
    %279 = vector.broadcast %cst_105 : f32 to vector<16x8xf32>
    %280 = arith.select %278, %279, %252 : vector<16x8xi1>, vector<16x8xf32>
    %281 = vector.broadcast %264 : vector<1x1xf32> to vector<16x1xf32>
    %282 = arith.cmpf oeq, %82, %281 : vector<16x1xf32>
    %cst_106 = arith.constant -1.000000e+30 : f32
    %283 = vector.broadcast %cst_106 : f32 to vector<16x1xf32>
    %284 = arith.select %282, %283, %256 : vector<16x1xi1>, vector<16x1xf32>
    %cst_107 = arith.constant dense<0xFF800000> : vector<1xf32>
    %285 = vector.multi_reduction <maximumf>, %284, %cst_107 [0] : vector<16x1xf32> to vector<1xf32>
    %286 = vector.shape_cast %285 : vector<1xf32> to vector<1x1xf32>
    %287 = vector.broadcast %286 : vector<1x1xf32> to vector<16x1xf32>
    %288 = arith.cmpf oeq, %284, %287 : vector<16x1xf32>
    %cst_108 = arith.constant 1.600000e+01 : f32
    %289 = vector.broadcast %cst_108 : f32 to vector<16x1xf32>
    %290 = arith.select %288, %82, %289 : vector<16x1xi1>, vector<16x1xf32>
    %cst_109 = arith.constant dense<0x7F800000> : vector<1xf32>
    %291 = vector.multi_reduction <minimumf>, %290, %cst_109 [0] : vector<16x1xf32> to vector<1xf32>
    %292 = vector.shape_cast %291 : vector<1xf32> to vector<1x1xf32>
    %293 = vector.broadcast %292 : vector<1x1xf32> to vector<1x16xf32>
    %294 = arith.cmpf oeq, %84, %293 : vector<1x16xf32>
    %c7_i32 = arith.constant 7 : i32
    %295 = vector.broadcast %c7_i32 : i32 to vector<8x16xi32>
    %296 = arith.cmpi eq, %85, %295 : vector<8x16xi32>
    %297 = vector.broadcast %294 : vector<1x16xi1> to vector<8x16xi1>
    %298 = arith.andi %297, %296 : vector<8x16xi1>
    %cst_110 = arith.constant 1.000000e+00 : f32
    %299 = vector.broadcast %cst_110 : f32 to vector<8x16xf32>
    %300 = arith.select %298, %299, %272 : vector<8x16xi1>, vector<8x16xf32>
    %301 = vector.broadcast %292 : vector<1x1xf32> to vector<16x1xf32>
    %302 = arith.cmpf oeq, %82, %301 : vector<16x1xf32>
    %c7_i32_111 = arith.constant 7 : i32
    %303 = vector.broadcast %c7_i32_111 : i32 to vector<16x8xi32>
    %304 = arith.cmpi eq, %86, %303 : vector<16x8xi32>
    %305 = vector.broadcast %302 : vector<16x1xi1> to vector<16x8xi1>
    %306 = arith.andi %305, %304 : vector<16x8xi1>
    %cst_112 = arith.constant 1.000000e+00 : f32
    %307 = vector.broadcast %cst_112 : f32 to vector<16x8xf32>
    %308 = arith.select %306, %307, %280 : vector<16x8xi1>, vector<16x8xf32>
    %cst_113 = arith.constant 0.000000e+00 : f32
    %309 = vector.broadcast %cst_113 : f32 to vector<16x1xf32>
    %310 = arith.subf %309, %80 : vector<16x1xf32>
    %311 = math.exp %310 : vector<16x1xf32>
    %cst_114 = arith.constant 1.000000e+00 : f32
    %312 = vector.broadcast %cst_114 : f32 to vector<16x1xf32>
    %313 = arith.addf %312, %311 : vector<16x1xf32>
    %314 = tpu.reciprocal %313 {approx = true} : vector<16x1xf32> -> vector<16x1xf32>
    %cst_115 = arith.constant dense<0.000000e+00> : vector<8x1xf32>
    %315 = tpu.matmul %300, %314, %cst_115 {dimension_numbers = #tpu.dot_dimension_numbers<[1], [0], [0], [1], [0, 0, 1, 1], [], []>} : vector<8x16xf32>, vector<16x1xf32>, vector<8x1xf32> -> vector<8x1xf32>
    %cst_116 = arith.constant dense<0.000000e+00> : vector<8x32xf32>
    %316 = tpu.matmul %300, %75, %cst_116 {dimension_numbers = #tpu.dot_dimension_numbers<[1], [0], [0], [1], [0, 0, 1, 1], [], []>} : vector<8x16xf32>, vector<16x32xf32>, vector<8x32xf32> -> vector<8x32xf32>
    %317 = vector.broadcast %315 : vector<8x1xf32> to vector<8x32xf32>
    %318 = arith.mulf %316, %317 : vector<8x32xf32>
    %cst_117 = arith.constant dense<0.000000e+00> : vector<16x8xf32>
    %319 = tpu.matmul %33, %300, %cst_117 {dimension_numbers = #tpu.dot_dimension_numbers<[1], [1], [0], [0], [0, 0, 1, 0], [], []>} : vector<16x16xf32>, vector<8x16xf32>, vector<16x8xf32> -> vector<16x8xf32>
    %cst_118 = arith.constant dense<0.000000e+00> : vector<8x8xf32>
    %320 = tpu.matmul %300, %319, %cst_118 {dimension_numbers = #tpu.dot_dimension_numbers<[1], [0], [0], [1], [0, 0, 1, 1], [], []>} : vector<8x16xf32>, vector<16x8xf32>, vector<8x8xf32> -> vector<8x8xf32>
    %cst_119 = arith.constant dense<0.000000e+00> : vector<8x32xf32>
    %321 = tpu.matmul %318, %4, %cst_119 {dimension_numbers = #tpu.dot_dimension_numbers<[1], [0], [0], [1], [0, 0, 1, 1], [], []>} : vector<8x32xf32>, vector<32x32xf32>, vector<8x32xf32> -> vector<8x32xf32>
    %322 = vector.broadcast %5 : vector<1x32xf32> to vector<8x32xf32>
    %323 = arith.mulf %321, %322 : vector<8x32xf32>
    %cst_120 = arith.constant dense<0.000000e+00> : vector<8xf32>
    %324 = vector.multi_reduction <add>, %323, %cst_120 [1] : vector<8x32xf32> to vector<8xf32>
    %325 = vector.shape_cast %324 : vector<8xf32> to vector<8x1xf32>
    %cst_121 = arith.constant dense<0.000000e+00> : vector<1x8xf32>
    %326 = tpu.matmul %6, %321, %cst_121 {dimension_numbers = #tpu.dot_dimension_numbers<[1], [1], [0], [0], [0, 0, 1, 0], [], []>} : vector<1x32xf32>, vector<8x32xf32>, vector<1x8xf32> -> vector<1x8xf32>
    %327 = vector.broadcast %325 : vector<8x1xf32> to vector<8x8xf32>
    %328 = vector.broadcast %326 : vector<1x8xf32> to vector<8x8xf32>
    %329 = arith.addf %327, %328 : vector<8x8xf32>
    %cst_122 = arith.constant 0.000000e+00 : f32
    %330 = vector.broadcast %cst_122 : f32 to vector<8x8xf32>
    %331 = arith.cmpf ogt, %329, %330 : vector<8x8xf32>
    %cst_123 = arith.constant 2.000000e-01 : f32
    %332 = vector.broadcast %cst_123 : f32 to vector<8x8xf32>
    %333 = arith.mulf %332, %329 : vector<8x8xf32>
    %334 = arith.select %331, %329, %333 : vector<8x8xi1>, vector<8x8xf32>
    %cst_124 = arith.constant 0.000000e+00 : f32
    %335 = vector.broadcast %cst_124 : f32 to vector<8x8xf32>
    %336 = arith.cmpf ogt, %320, %335 : vector<8x8xf32>
    %cst_125 = arith.constant -9.000000e+15 : f32
    %337 = vector.broadcast %cst_125 : f32 to vector<8x8xf32>
    %338 = arith.select %336, %334, %337 : vector<8x8xi1>, vector<8x8xf32>
    %cst_126 = arith.constant dense<0xFF800000> : vector<8xf32>
    %339 = vector.multi_reduction <maximumf>, %338, %cst_126 [1] : vector<8x8xf32> to vector<8xf32>
    %340 = vector.shape_cast %339 : vector<8xf32> to vector<8x1xf32>
    %341 = vector.broadcast %340 : vector<8x1xf32> to vector<8x8xf32>
    %342 = arith.subf %338, %341 : vector<8x8xf32>
    %343 = math.exp %342 : vector<8x8xf32>
    %cst_127 = arith.constant dense<0.000000e+00> : vector<8xf32>
    %344 = vector.multi_reduction <add>, %343, %cst_127 [1] : vector<8x8xf32> to vector<8xf32>
    %345 = vector.shape_cast %344 : vector<8xf32> to vector<8x1xf32>
    %346 = tpu.reciprocal %345 {approx = true} : vector<8x1xf32> -> vector<8x1xf32>
    %347 = vector.broadcast %346 : vector<8x1xf32> to vector<8x8xf32>
    %348 = arith.mulf %343, %347 : vector<8x8xf32>
    %cst_128 = arith.constant dense<0.000000e+00> : vector<8x32xf32>
    %349 = tpu.matmul %348, %321, %cst_128 {dimension_numbers = #tpu.dot_dimension_numbers<[1], [0], [0], [1], [0, 0, 1, 1], [], []>} : vector<8x8xf32>, vector<8x32xf32>, vector<8x32xf32> -> vector<8x32xf32>
    %cst_129 = arith.constant 0.000000e+00 : f32
    %350 = vector.broadcast %cst_129 : f32 to vector<8x32xf32>
    %351 = arith.cmpf ogt, %349, %350 : vector<8x32xf32>
    %cst_130 = arith.constant 0.000000e+00 : f32
    %352 = vector.broadcast %cst_130 : f32 to vector<8x32xf32>
    %353 = arith.minimumf %349, %352 : vector<8x32xf32>
    %354 = math.exp %353 : vector<8x32xf32>
    %cst_131 = arith.constant 1.000000e+00 : f32
    %355 = vector.broadcast %cst_131 : f32 to vector<8x32xf32>
    %356 = arith.subf %354, %355 : vector<8x32xf32>
    %357 = arith.select %351, %349, %356 : vector<8x32xi1>, vector<8x32xf32>
    %cst_132 = arith.constant dense<0.000000e+00> : vector<16x32xf32>
    %358 = tpu.matmul %308, %357, %cst_132 {dimension_numbers = #tpu.dot_dimension_numbers<[1], [0], [0], [1], [0, 0, 1, 1], [], []>} : vector<16x8xf32>, vector<8x32xf32>, vector<16x32xf32> -> vector<16x32xf32>
    %cst_133 = arith.constant dense<0.000000e+00> : vector<16x32xf32>
    %359 = tpu.matmul %33, %358, %cst_133 {dimension_numbers = #tpu.dot_dimension_numbers<[1], [0], [0], [1], [0, 0, 1, 1], [], []>} : vector<16x16xf32>, vector<16x32xf32>, vector<16x32xf32> -> vector<16x32xf32>
    %cst_134 = arith.constant dense<0.000000e+00> : vector<16x32xf32>
    %360 = tpu.matmul %359, %14, %cst_134 {dimension_numbers = #tpu.dot_dimension_numbers<[1], [0], [0], [1], [0, 0, 1, 1], [], []>} : vector<16x32xf32>, vector<32x32xf32>, vector<16x32xf32> -> vector<16x32xf32>
    %361 = vector.broadcast %15 : vector<1x32xf32> to vector<16x32xf32>
    %362 = arith.addf %360, %361 : vector<16x32xf32>
    %363 = arith.addf %362, %75 : vector<16x32xf32>
    %364 = vector.extract_strided_slice %7 {offsets = [0, 0], sizes = [32, 32], strides = [1, 1]} : vector<64x32xf32> to vector<32x32xf32>
    %cst_135 = arith.constant dense<0.000000e+00> : vector<16x32xf32>
    %365 = tpu.matmul %363, %364, %cst_135 {dimension_numbers = #tpu.dot_dimension_numbers<[1], [0], [0], [1], [0, 0, 1, 1], [], []>} : vector<16x32xf32>, vector<32x32xf32>, vector<16x32xf32> -> vector<16x32xf32>
    %366 = vector.extract_strided_slice %7 {offsets = [32, 0], sizes = [32, 32], strides = [1, 1]} : vector<64x32xf32> to vector<32x32xf32>
    %cst_136 = arith.constant dense<0.000000e+00> : vector<16x32xf32>
    %367 = tpu.matmul %70, %366, %cst_136 {dimension_numbers = #tpu.dot_dimension_numbers<[1], [0], [0], [1], [0, 0, 1, 1], [], []>} : vector<16x32xf32>, vector<32x32xf32>, vector<16x32xf32> -> vector<16x32xf32>
    %368 = arith.addf %365, %367 : vector<16x32xf32>
    %369 = vector.broadcast %8 : vector<1x32xf32> to vector<16x32xf32>
    %370 = arith.mulf %368, %369 : vector<16x32xf32>
    %cst_137 = arith.constant dense<0.000000e+00> : vector<16xf32>
    %371 = vector.multi_reduction <add>, %370, %cst_137 [1] : vector<16x32xf32> to vector<16xf32>
    %372 = vector.shape_cast %371 : vector<16xf32> to vector<16x1xf32>
    %cst_138 = arith.constant dense<0.000000e+00> : vector<1x16xf32>
    %373 = tpu.matmul %9, %368, %cst_138 {dimension_numbers = #tpu.dot_dimension_numbers<[1], [1], [0], [0], [0, 0, 1, 0], [], []>} : vector<1x32xf32>, vector<16x32xf32>, vector<1x16xf32> -> vector<1x16xf32>
    %374 = vector.broadcast %372 : vector<16x1xf32> to vector<16x16xf32>
    %375 = vector.broadcast %373 : vector<1x16xf32> to vector<16x16xf32>
    %376 = arith.addf %374, %375 : vector<16x16xf32>
    %cst_139 = arith.constant 0.000000e+00 : f32
    %377 = vector.broadcast %cst_139 : f32 to vector<16x16xf32>
    %378 = arith.cmpf ogt, %376, %377 : vector<16x16xf32>
    %cst_140 = arith.constant 2.000000e-01 : f32
    %379 = vector.broadcast %cst_140 : f32 to vector<16x16xf32>
    %380 = arith.mulf %379, %376 : vector<16x16xf32>
    %381 = arith.select %378, %376, %380 : vector<16x16xi1>, vector<16x16xf32>
    %cst_141 = arith.constant 0.000000e+00 : f32
    %382 = vector.broadcast %cst_141 : f32 to vector<16x16xf32>
    %383 = arith.cmpf ogt, %33, %382 : vector<16x16xf32>
    %cst_142 = arith.constant -9.000000e+15 : f32
    %384 = vector.broadcast %cst_142 : f32 to vector<16x16xf32>
    %385 = arith.select %383, %381, %384 : vector<16x16xi1>, vector<16x16xf32>
    %cst_143 = arith.constant dense<0xFF800000> : vector<16xf32>
    %386 = vector.multi_reduction <maximumf>, %385, %cst_143 [1] : vector<16x16xf32> to vector<16xf32>
    %387 = vector.shape_cast %386 : vector<16xf32> to vector<16x1xf32>
    %388 = vector.broadcast %387 : vector<16x1xf32> to vector<16x16xf32>
    %389 = arith.subf %385, %388 : vector<16x16xf32>
    %390 = math.exp %389 : vector<16x16xf32>
    %cst_144 = arith.constant dense<0.000000e+00> : vector<16xf32>
    %391 = vector.multi_reduction <add>, %390, %cst_144 [1] : vector<16x16xf32> to vector<16xf32>
    %392 = vector.shape_cast %391 : vector<16xf32> to vector<16x1xf32>
    %393 = tpu.reciprocal %392 {approx = true} : vector<16x1xf32> -> vector<16x1xf32>
    %394 = vector.broadcast %393 : vector<16x1xf32> to vector<16x16xf32>
    %395 = arith.mulf %390, %394 : vector<16x16xf32>
    %cst_145 = arith.constant dense<0.000000e+00> : vector<16x32xf32>
    %396 = tpu.matmul %395, %368, %cst_145 {dimension_numbers = #tpu.dot_dimension_numbers<[1], [0], [0], [1], [0, 0, 1, 1], [], []>} : vector<16x16xf32>, vector<16x32xf32>, vector<16x32xf32> -> vector<16x32xf32>
    %cst_146 = arith.constant 0.000000e+00 : f32
    %397 = vector.broadcast %cst_146 : f32 to vector<16x32xf32>
    %398 = arith.cmpf ogt, %396, %397 : vector<16x32xf32>
    %cst_147 = arith.constant 0.000000e+00 : f32
    %399 = vector.broadcast %cst_147 : f32 to vector<16x32xf32>
    %400 = arith.minimumf %396, %399 : vector<16x32xf32>
    %401 = math.exp %400 : vector<16x32xf32>
    %cst_148 = arith.constant 1.000000e+00 : f32
    %402 = vector.broadcast %cst_148 : f32 to vector<16x32xf32>
    %403 = arith.subf %401, %402 : vector<16x32xf32>
    %404 = arith.select %398, %396, %403 : vector<16x32xi1>, vector<16x32xf32>
    %cst_149 = arith.constant dense<0.000000e+00> : vector<16x32xf32>
    %405 = tpu.matmul %33, %404, %cst_149 {dimension_numbers = #tpu.dot_dimension_numbers<[1], [0], [0], [1], [0, 0, 1, 1], [], []>} : vector<16x16xf32>, vector<16x32xf32>, vector<16x32xf32> -> vector<16x32xf32>
    %cst_150 = arith.constant dense<0.000000e+00> : vector<16x32xf32>
    %406 = tpu.matmul %405, %10, %cst_150 {dimension_numbers = #tpu.dot_dimension_numbers<[1], [0], [0], [1], [0, 0, 1, 1], [], []>} : vector<16x32xf32>, vector<32x32xf32>, vector<16x32xf32> -> vector<16x32xf32>
    %407 = vector.broadcast %11 : vector<1x32xf32> to vector<16x32xf32>
    %408 = arith.addf %406, %407 : vector<16x32xf32>
    %cst_151 = arith.constant dense<0.000000e+00> : vector<16x1xf32>
    %409 = tpu.matmul %408, %12, %cst_151 {dimension_numbers = #tpu.dot_dimension_numbers<[1], [0], [0], [1], [0, 0, 1, 1], [], []>} : vector<16x32xf32>, vector<32x1xf32>, vector<16x1xf32> -> vector<16x1xf32>
    %410 = vector.broadcast %13 : vector<1x1xf32> to vector<16x1xf32>
    %411 = arith.addf %409, %410 : vector<16x1xf32>
    %cst_152 = arith.constant 0.00999999977 : f32
    %412 = vector.broadcast %cst_152 : f32 to vector<16x1xf32>
    %413 = arith.mulf %411, %412 : vector<16x1xf32>
    %414 = tpu.iota {dimensions = array<i32: 0>} : vector<16x1xi32>
    %415 = arith.sitofp %414 : vector<16x1xi32> to vector<16x1xf32>
    %416 = tpu.iota {dimensions = array<i32: 1>} : vector<1x16xi32>
    %417 = arith.sitofp %416 : vector<1x16xi32> to vector<1x16xf32>
    %418 = tpu.iota {dimensions = array<i32: 0>} : vector<8x16xi32>
    %cst_153 = arith.constant 0.000000e+00 : f32
    %419 = vector.broadcast %cst_153 : f32 to vector<8x16xf32>
    %cst_154 = arith.constant dense<0xFF800000> : vector<1xf32>
    %420 = vector.multi_reduction <maximumf>, %413, %cst_154 [0] : vector<16x1xf32> to vector<1xf32>
    %421 = vector.shape_cast %420 : vector<1xf32> to vector<1x1xf32>
    %422 = vector.broadcast %421 : vector<1x1xf32> to vector<16x1xf32>
    %423 = arith.cmpf oeq, %413, %422 : vector<16x1xf32>
    %cst_155 = arith.constant 1.600000e+01 : f32
    %424 = vector.broadcast %cst_155 : f32 to vector<16x1xf32>
    %425 = arith.select %423, %415, %424 : vector<16x1xi1>, vector<16x1xf32>
    %cst_156 = arith.constant dense<0x7F800000> : vector<1xf32>
    %426 = vector.multi_reduction <minimumf>, %425, %cst_156 [0] : vector<16x1xf32> to vector<1xf32>
    %427 = vector.shape_cast %426 : vector<1xf32> to vector<1x1xf32>
    %428 = vector.broadcast %427 : vector<1x1xf32> to vector<1x16xf32>
    %429 = arith.cmpf oeq, %417, %428 : vector<1x16xf32>
    %c0_i32_157 = arith.constant 0 : i32
    %430 = vector.broadcast %c0_i32_157 : i32 to vector<8x16xi32>
    %431 = arith.cmpi eq, %418, %430 : vector<8x16xi32>
    %432 = vector.broadcast %429 : vector<1x16xi1> to vector<8x16xi1>
    %433 = arith.andi %432, %431 : vector<8x16xi1>
    %cst_158 = arith.constant 1.000000e+00 : f32
    %434 = vector.broadcast %cst_158 : f32 to vector<8x16xf32>
    %435 = arith.select %433, %434, %419 : vector<8x16xi1>, vector<8x16xf32>
    %436 = vector.broadcast %427 : vector<1x1xf32> to vector<16x1xf32>
    %437 = arith.cmpf oeq, %415, %436 : vector<16x1xf32>
    %cst_159 = arith.constant -1.000000e+30 : f32
    %438 = vector.broadcast %cst_159 : f32 to vector<16x1xf32>
    %439 = arith.select %437, %438, %413 : vector<16x1xi1>, vector<16x1xf32>
    %cst_160 = arith.constant dense<0xFF800000> : vector<1xf32>
    %440 = vector.multi_reduction <maximumf>, %439, %cst_160 [0] : vector<16x1xf32> to vector<1xf32>
    %441 = vector.shape_cast %440 : vector<1xf32> to vector<1x1xf32>
    %442 = vector.broadcast %441 : vector<1x1xf32> to vector<16x1xf32>
    %443 = arith.cmpf oeq, %439, %442 : vector<16x1xf32>
    %cst_161 = arith.constant 1.600000e+01 : f32
    %444 = vector.broadcast %cst_161 : f32 to vector<16x1xf32>
    %445 = arith.select %443, %415, %444 : vector<16x1xi1>, vector<16x1xf32>
    %cst_162 = arith.constant dense<0x7F800000> : vector<1xf32>
    %446 = vector.multi_reduction <minimumf>, %445, %cst_162 [0] : vector<16x1xf32> to vector<1xf32>
    %447 = vector.shape_cast %446 : vector<1xf32> to vector<1x1xf32>
    %448 = vector.broadcast %447 : vector<1x1xf32> to vector<1x16xf32>
    %449 = arith.cmpf oeq, %417, %448 : vector<1x16xf32>
    %c1_i32_163 = arith.constant 1 : i32
    %450 = vector.broadcast %c1_i32_163 : i32 to vector<8x16xi32>
    %451 = arith.cmpi eq, %418, %450 : vector<8x16xi32>
    %452 = vector.broadcast %449 : vector<1x16xi1> to vector<8x16xi1>
    %453 = arith.andi %452, %451 : vector<8x16xi1>
    %cst_164 = arith.constant 1.000000e+00 : f32
    %454 = vector.broadcast %cst_164 : f32 to vector<8x16xf32>
    %455 = arith.select %453, %454, %435 : vector<8x16xi1>, vector<8x16xf32>
    %456 = vector.broadcast %447 : vector<1x1xf32> to vector<16x1xf32>
    %457 = arith.cmpf oeq, %415, %456 : vector<16x1xf32>
    %cst_165 = arith.constant -1.000000e+30 : f32
    %458 = vector.broadcast %cst_165 : f32 to vector<16x1xf32>
    %459 = arith.select %457, %458, %439 : vector<16x1xi1>, vector<16x1xf32>
    %cst_166 = arith.constant dense<0xFF800000> : vector<1xf32>
    %460 = vector.multi_reduction <maximumf>, %459, %cst_166 [0] : vector<16x1xf32> to vector<1xf32>
    %461 = vector.shape_cast %460 : vector<1xf32> to vector<1x1xf32>
    %462 = vector.broadcast %461 : vector<1x1xf32> to vector<16x1xf32>
    %463 = arith.cmpf oeq, %459, %462 : vector<16x1xf32>
    %cst_167 = arith.constant 1.600000e+01 : f32
    %464 = vector.broadcast %cst_167 : f32 to vector<16x1xf32>
    %465 = arith.select %463, %415, %464 : vector<16x1xi1>, vector<16x1xf32>
    %cst_168 = arith.constant dense<0x7F800000> : vector<1xf32>
    %466 = vector.multi_reduction <minimumf>, %465, %cst_168 [0] : vector<16x1xf32> to vector<1xf32>
    %467 = vector.shape_cast %466 : vector<1xf32> to vector<1x1xf32>
    %468 = vector.broadcast %467 : vector<1x1xf32> to vector<1x16xf32>
    %469 = arith.cmpf oeq, %417, %468 : vector<1x16xf32>
    %c2_i32_169 = arith.constant 2 : i32
    %470 = vector.broadcast %c2_i32_169 : i32 to vector<8x16xi32>
    %471 = arith.cmpi eq, %418, %470 : vector<8x16xi32>
    %472 = vector.broadcast %469 : vector<1x16xi1> to vector<8x16xi1>
    %473 = arith.andi %472, %471 : vector<8x16xi1>
    %cst_170 = arith.constant 1.000000e+00 : f32
    %474 = vector.broadcast %cst_170 : f32 to vector<8x16xf32>
    %475 = arith.select %473, %474, %455 : vector<8x16xi1>, vector<8x16xf32>
    %476 = vector.broadcast %467 : vector<1x1xf32> to vector<16x1xf32>
    %477 = arith.cmpf oeq, %415, %476 : vector<16x1xf32>
    %cst_171 = arith.constant -1.000000e+30 : f32
    %478 = vector.broadcast %cst_171 : f32 to vector<16x1xf32>
    %479 = arith.select %477, %478, %459 : vector<16x1xi1>, vector<16x1xf32>
    %cst_172 = arith.constant dense<0xFF800000> : vector<1xf32>
    %480 = vector.multi_reduction <maximumf>, %479, %cst_172 [0] : vector<16x1xf32> to vector<1xf32>
    %481 = vector.shape_cast %480 : vector<1xf32> to vector<1x1xf32>
    %482 = vector.broadcast %481 : vector<1x1xf32> to vector<16x1xf32>
    %483 = arith.cmpf oeq, %479, %482 : vector<16x1xf32>
    %cst_173 = arith.constant 1.600000e+01 : f32
    %484 = vector.broadcast %cst_173 : f32 to vector<16x1xf32>
    %485 = arith.select %483, %415, %484 : vector<16x1xi1>, vector<16x1xf32>
    %cst_174 = arith.constant dense<0x7F800000> : vector<1xf32>
    %486 = vector.multi_reduction <minimumf>, %485, %cst_174 [0] : vector<16x1xf32> to vector<1xf32>
    %487 = vector.shape_cast %486 : vector<1xf32> to vector<1x1xf32>
    %488 = vector.broadcast %487 : vector<1x1xf32> to vector<1x16xf32>
    %489 = arith.cmpf oeq, %417, %488 : vector<1x16xf32>
    %c3_i32_175 = arith.constant 3 : i32
    %490 = vector.broadcast %c3_i32_175 : i32 to vector<8x16xi32>
    %491 = arith.cmpi eq, %418, %490 : vector<8x16xi32>
    %492 = vector.broadcast %489 : vector<1x16xi1> to vector<8x16xi1>
    %493 = arith.andi %492, %491 : vector<8x16xi1>
    %cst_176 = arith.constant 1.000000e+00 : f32
    %494 = vector.broadcast %cst_176 : f32 to vector<8x16xf32>
    %495 = arith.select %493, %494, %475 : vector<8x16xi1>, vector<8x16xf32>
    %496 = vector.broadcast %487 : vector<1x1xf32> to vector<16x1xf32>
    %497 = arith.cmpf oeq, %415, %496 : vector<16x1xf32>
    %cst_177 = arith.constant -1.000000e+30 : f32
    %498 = vector.broadcast %cst_177 : f32 to vector<16x1xf32>
    %499 = arith.select %497, %498, %479 : vector<16x1xi1>, vector<16x1xf32>
    %cst_178 = arith.constant dense<0xFF800000> : vector<1xf32>
    %500 = vector.multi_reduction <maximumf>, %499, %cst_178 [0] : vector<16x1xf32> to vector<1xf32>
    %501 = vector.shape_cast %500 : vector<1xf32> to vector<1x1xf32>
    %502 = vector.broadcast %501 : vector<1x1xf32> to vector<16x1xf32>
    %503 = arith.cmpf oeq, %499, %502 : vector<16x1xf32>
    %cst_179 = arith.constant 1.600000e+01 : f32
    %504 = vector.broadcast %cst_179 : f32 to vector<16x1xf32>
    %505 = arith.select %503, %415, %504 : vector<16x1xi1>, vector<16x1xf32>
    %cst_180 = arith.constant dense<0x7F800000> : vector<1xf32>
    %506 = vector.multi_reduction <minimumf>, %505, %cst_180 [0] : vector<16x1xf32> to vector<1xf32>
    %507 = vector.shape_cast %506 : vector<1xf32> to vector<1x1xf32>
    %508 = vector.broadcast %507 : vector<1x1xf32> to vector<1x16xf32>
    %509 = arith.cmpf oeq, %417, %508 : vector<1x16xf32>
    %c4_i32_181 = arith.constant 4 : i32
    %510 = vector.broadcast %c4_i32_181 : i32 to vector<8x16xi32>
    %511 = arith.cmpi eq, %418, %510 : vector<8x16xi32>
    %512 = vector.broadcast %509 : vector<1x16xi1> to vector<8x16xi1>
    %513 = arith.andi %512, %511 : vector<8x16xi1>
    %cst_182 = arith.constant 1.000000e+00 : f32
    %514 = vector.broadcast %cst_182 : f32 to vector<8x16xf32>
    %515 = arith.select %513, %514, %495 : vector<8x16xi1>, vector<8x16xf32>
    %516 = vector.broadcast %507 : vector<1x1xf32> to vector<16x1xf32>
    %517 = arith.cmpf oeq, %415, %516 : vector<16x1xf32>
    %cst_183 = arith.constant -1.000000e+30 : f32
    %518 = vector.broadcast %cst_183 : f32 to vector<16x1xf32>
    %519 = arith.select %517, %518, %499 : vector<16x1xi1>, vector<16x1xf32>
    %cst_184 = arith.constant dense<0xFF800000> : vector<1xf32>
    %520 = vector.multi_reduction <maximumf>, %519, %cst_184 [0] : vector<16x1xf32> to vector<1xf32>
    %521 = vector.shape_cast %520 : vector<1xf32> to vector<1x1xf32>
    %522 = vector.broadcast %521 : vector<1x1xf32> to vector<16x1xf32>
    %523 = arith.cmpf oeq, %519, %522 : vector<16x1xf32>
    %cst_185 = arith.constant 1.600000e+01 : f32
    %524 = vector.broadcast %cst_185 : f32 to vector<16x1xf32>
    %525 = arith.select %523, %415, %524 : vector<16x1xi1>, vector<16x1xf32>
    %cst_186 = arith.constant dense<0x7F800000> : vector<1xf32>
    %526 = vector.multi_reduction <minimumf>, %525, %cst_186 [0] : vector<16x1xf32> to vector<1xf32>
    %527 = vector.shape_cast %526 : vector<1xf32> to vector<1x1xf32>
    %528 = vector.broadcast %527 : vector<1x1xf32> to vector<1x16xf32>
    %529 = arith.cmpf oeq, %417, %528 : vector<1x16xf32>
    %c5_i32_187 = arith.constant 5 : i32
    %530 = vector.broadcast %c5_i32_187 : i32 to vector<8x16xi32>
    %531 = arith.cmpi eq, %418, %530 : vector<8x16xi32>
    %532 = vector.broadcast %529 : vector<1x16xi1> to vector<8x16xi1>
    %533 = arith.andi %532, %531 : vector<8x16xi1>
    %cst_188 = arith.constant 1.000000e+00 : f32
    %534 = vector.broadcast %cst_188 : f32 to vector<8x16xf32>
    %535 = arith.select %533, %534, %515 : vector<8x16xi1>, vector<8x16xf32>
    %536 = vector.broadcast %527 : vector<1x1xf32> to vector<16x1xf32>
    %537 = arith.cmpf oeq, %415, %536 : vector<16x1xf32>
    %cst_189 = arith.constant -1.000000e+30 : f32
    %538 = vector.broadcast %cst_189 : f32 to vector<16x1xf32>
    %539 = arith.select %537, %538, %519 : vector<16x1xi1>, vector<16x1xf32>
    %cst_190 = arith.constant dense<0xFF800000> : vector<1xf32>
    %540 = vector.multi_reduction <maximumf>, %539, %cst_190 [0] : vector<16x1xf32> to vector<1xf32>
    %541 = vector.shape_cast %540 : vector<1xf32> to vector<1x1xf32>
    %542 = vector.broadcast %541 : vector<1x1xf32> to vector<16x1xf32>
    %543 = arith.cmpf oeq, %539, %542 : vector<16x1xf32>
    %cst_191 = arith.constant 1.600000e+01 : f32
    %544 = vector.broadcast %cst_191 : f32 to vector<16x1xf32>
    %545 = arith.select %543, %415, %544 : vector<16x1xi1>, vector<16x1xf32>
    %cst_192 = arith.constant dense<0x7F800000> : vector<1xf32>
    %546 = vector.multi_reduction <minimumf>, %545, %cst_192 [0] : vector<16x1xf32> to vector<1xf32>
    %547 = vector.shape_cast %546 : vector<1xf32> to vector<1x1xf32>
    %548 = vector.broadcast %547 : vector<1x1xf32> to vector<1x16xf32>
    %549 = arith.cmpf oeq, %417, %548 : vector<1x16xf32>
    %c6_i32_193 = arith.constant 6 : i32
    %550 = vector.broadcast %c6_i32_193 : i32 to vector<8x16xi32>
    %551 = arith.cmpi eq, %418, %550 : vector<8x16xi32>
    %552 = vector.broadcast %549 : vector<1x16xi1> to vector<8x16xi1>
    %553 = arith.andi %552, %551 : vector<8x16xi1>
    %cst_194 = arith.constant 1.000000e+00 : f32
    %554 = vector.broadcast %cst_194 : f32 to vector<8x16xf32>
    %555 = arith.select %553, %554, %535 : vector<8x16xi1>, vector<8x16xf32>
    %556 = vector.broadcast %547 : vector<1x1xf32> to vector<16x1xf32>
    %557 = arith.cmpf oeq, %415, %556 : vector<16x1xf32>
    %cst_195 = arith.constant -1.000000e+30 : f32
    %558 = vector.broadcast %cst_195 : f32 to vector<16x1xf32>
    %559 = arith.select %557, %558, %539 : vector<16x1xi1>, vector<16x1xf32>
    %cst_196 = arith.constant dense<0xFF800000> : vector<1xf32>
    %560 = vector.multi_reduction <maximumf>, %559, %cst_196 [0] : vector<16x1xf32> to vector<1xf32>
    %561 = vector.shape_cast %560 : vector<1xf32> to vector<1x1xf32>
    %562 = vector.broadcast %561 : vector<1x1xf32> to vector<16x1xf32>
    %563 = arith.cmpf oeq, %559, %562 : vector<16x1xf32>
    %cst_197 = arith.constant 1.600000e+01 : f32
    %564 = vector.broadcast %cst_197 : f32 to vector<16x1xf32>
    %565 = arith.select %563, %415, %564 : vector<16x1xi1>, vector<16x1xf32>
    %cst_198 = arith.constant dense<0x7F800000> : vector<1xf32>
    %566 = vector.multi_reduction <minimumf>, %565, %cst_198 [0] : vector<16x1xf32> to vector<1xf32>
    %567 = vector.shape_cast %566 : vector<1xf32> to vector<1x1xf32>
    %568 = vector.broadcast %567 : vector<1x1xf32> to vector<1x16xf32>
    %569 = arith.cmpf oeq, %417, %568 : vector<1x16xf32>
    %c7_i32_199 = arith.constant 7 : i32
    %570 = vector.broadcast %c7_i32_199 : i32 to vector<8x16xi32>
    %571 = arith.cmpi eq, %418, %570 : vector<8x16xi32>
    %572 = vector.broadcast %569 : vector<1x16xi1> to vector<8x16xi1>
    %573 = arith.andi %572, %571 : vector<8x16xi1>
    %cst_200 = arith.constant 1.000000e+00 : f32
    %574 = vector.broadcast %cst_200 : f32 to vector<8x16xf32>
    %575 = arith.select %573, %574, %555 : vector<8x16xi1>, vector<8x16xf32>
    %cst_201 = arith.constant 0.000000e+00 : f32
    %576 = vector.broadcast %cst_201 : f32 to vector<16x1xf32>
    %577 = arith.subf %576, %413 : vector<16x1xf32>
    %578 = math.exp %577 : vector<16x1xf32>
    %cst_202 = arith.constant 1.000000e+00 : f32
    %579 = vector.broadcast %cst_202 : f32 to vector<16x1xf32>
    %580 = arith.addf %579, %578 : vector<16x1xf32>
    %581 = tpu.reciprocal %580 {approx = true} : vector<16x1xf32> -> vector<16x1xf32>
    %cst_203 = arith.constant dense<0.000000e+00> : vector<8x1xf32>
    %582 = tpu.matmul %575, %581, %cst_203 {dimension_numbers = #tpu.dot_dimension_numbers<[1], [0], [0], [1], [0, 0, 1, 1], [], []>} : vector<8x16xf32>, vector<16x1xf32>, vector<8x1xf32> -> vector<8x1xf32>
    %cst_204 = arith.constant dense<0.000000e+00> : vector<8x32xf32>
    %583 = tpu.matmul %575, %408, %cst_204 {dimension_numbers = #tpu.dot_dimension_numbers<[1], [0], [0], [1], [0, 0, 1, 1], [], []>} : vector<8x16xf32>, vector<16x32xf32>, vector<8x32xf32> -> vector<8x32xf32>
    %584 = vector.broadcast %582 : vector<8x1xf32> to vector<8x32xf32>
    %585 = arith.mulf %583, %584 : vector<8x32xf32>
    %cst_205 = arith.constant dense<0.000000e+00> : vector<16x8xf32>
    %586 = tpu.matmul %33, %575, %cst_205 {dimension_numbers = #tpu.dot_dimension_numbers<[1], [1], [0], [0], [0, 0, 1, 0], [], []>} : vector<16x16xf32>, vector<8x16xf32>, vector<16x8xf32> -> vector<16x8xf32>
    %cst_206 = arith.constant dense<0.000000e+00> : vector<8x8xf32>
    %587 = tpu.matmul %575, %586, %cst_206 {dimension_numbers = #tpu.dot_dimension_numbers<[1], [0], [0], [1], [0, 0, 1, 1], [], []>} : vector<8x16xf32>, vector<16x8xf32>, vector<8x8xf32> -> vector<8x8xf32>
    %cst_207 = arith.constant dense<0.000000e+00> : vector<8x32xf32>
    %588 = tpu.matmul %585, %4, %cst_207 {dimension_numbers = #tpu.dot_dimension_numbers<[1], [0], [0], [1], [0, 0, 1, 1], [], []>} : vector<8x32xf32>, vector<32x32xf32>, vector<8x32xf32> -> vector<8x32xf32>
    %589 = vector.broadcast %5 : vector<1x32xf32> to vector<8x32xf32>
    %590 = arith.mulf %588, %589 : vector<8x32xf32>
    %cst_208 = arith.constant dense<0.000000e+00> : vector<8xf32>
    %591 = vector.multi_reduction <add>, %590, %cst_208 [1] : vector<8x32xf32> to vector<8xf32>
    %592 = vector.shape_cast %591 : vector<8xf32> to vector<8x1xf32>
    %cst_209 = arith.constant dense<0.000000e+00> : vector<1x8xf32>
    %593 = tpu.matmul %6, %588, %cst_209 {dimension_numbers = #tpu.dot_dimension_numbers<[1], [1], [0], [0], [0, 0, 1, 0], [], []>} : vector<1x32xf32>, vector<8x32xf32>, vector<1x8xf32> -> vector<1x8xf32>
    %594 = vector.broadcast %592 : vector<8x1xf32> to vector<8x8xf32>
    %595 = vector.broadcast %593 : vector<1x8xf32> to vector<8x8xf32>
    %596 = arith.addf %594, %595 : vector<8x8xf32>
    %cst_210 = arith.constant 0.000000e+00 : f32
    %597 = vector.broadcast %cst_210 : f32 to vector<8x8xf32>
    %598 = arith.cmpf ogt, %596, %597 : vector<8x8xf32>
    %cst_211 = arith.constant 2.000000e-01 : f32
    %599 = vector.broadcast %cst_211 : f32 to vector<8x8xf32>
    %600 = arith.mulf %599, %596 : vector<8x8xf32>
    %601 = arith.select %598, %596, %600 : vector<8x8xi1>, vector<8x8xf32>
    %cst_212 = arith.constant 0.000000e+00 : f32
    %602 = vector.broadcast %cst_212 : f32 to vector<8x8xf32>
    %603 = arith.cmpf ogt, %587, %602 : vector<8x8xf32>
    %cst_213 = arith.constant -9.000000e+15 : f32
    %604 = vector.broadcast %cst_213 : f32 to vector<8x8xf32>
    %605 = arith.select %603, %601, %604 : vector<8x8xi1>, vector<8x8xf32>
    %cst_214 = arith.constant dense<0xFF800000> : vector<8xf32>
    %606 = vector.multi_reduction <maximumf>, %605, %cst_214 [1] : vector<8x8xf32> to vector<8xf32>
    %607 = vector.shape_cast %606 : vector<8xf32> to vector<8x1xf32>
    %608 = vector.broadcast %607 : vector<8x1xf32> to vector<8x8xf32>
    %609 = arith.subf %605, %608 : vector<8x8xf32>
    %610 = math.exp %609 : vector<8x8xf32>
    %cst_215 = arith.constant dense<0.000000e+00> : vector<8xf32>
    %611 = vector.multi_reduction <add>, %610, %cst_215 [1] : vector<8x8xf32> to vector<8xf32>
    %612 = vector.shape_cast %611 : vector<8xf32> to vector<8x1xf32>
    %613 = tpu.reciprocal %612 {approx = true} : vector<8x1xf32> -> vector<8x1xf32>
    %614 = vector.broadcast %613 : vector<8x1xf32> to vector<8x8xf32>
    %615 = arith.mulf %610, %614 : vector<8x8xf32>
    %cst_216 = arith.constant dense<0.000000e+00> : vector<8x32xf32>
    %616 = tpu.matmul %615, %588, %cst_216 {dimension_numbers = #tpu.dot_dimension_numbers<[1], [0], [0], [1], [0, 0, 1, 1], [], []>} : vector<8x8xf32>, vector<8x32xf32>, vector<8x32xf32> -> vector<8x32xf32>
    %cst_217 = arith.constant 0.000000e+00 : f32
    %617 = vector.broadcast %cst_217 : f32 to vector<8x32xf32>
    %618 = arith.cmpf ogt, %616, %617 : vector<8x32xf32>
    %cst_218 = arith.constant 0.000000e+00 : f32
    %619 = vector.broadcast %cst_218 : f32 to vector<8x32xf32>
    %620 = arith.minimumf %616, %619 : vector<8x32xf32>
    %621 = math.exp %620 : vector<8x32xf32>
    %cst_219 = arith.constant 1.000000e+00 : f32
    %622 = vector.broadcast %cst_219 : f32 to vector<8x32xf32>
    %623 = arith.subf %621, %622 : vector<8x32xf32>
    %624 = arith.select %618, %616, %623 : vector<8x32xi1>, vector<8x32xf32>
    %cst_220 = arith.constant dense<0.000000e+00> : vector<16x32xf32>
    %625 = tpu.matmul %308, %624, %cst_220 {dimension_numbers = #tpu.dot_dimension_numbers<[1], [0], [0], [1], [0, 0, 1, 1], [], []>} : vector<16x8xf32>, vector<8x32xf32>, vector<16x32xf32> -> vector<16x32xf32>
    %cst_221 = arith.constant dense<0.000000e+00> : vector<16x32xf32>
    %626 = tpu.matmul %33, %625, %cst_221 {dimension_numbers = #tpu.dot_dimension_numbers<[1], [0], [0], [1], [0, 0, 1, 1], [], []>} : vector<16x16xf32>, vector<16x32xf32>, vector<16x32xf32> -> vector<16x32xf32>
    %cst_222 = arith.constant dense<0.000000e+00> : vector<16x32xf32>
    %627 = tpu.matmul %626, %14, %cst_222 {dimension_numbers = #tpu.dot_dimension_numbers<[1], [0], [0], [1], [0, 0, 1, 1], [], []>} : vector<16x32xf32>, vector<32x32xf32>, vector<16x32xf32> -> vector<16x32xf32>
    %628 = vector.broadcast %15 : vector<1x32xf32> to vector<16x32xf32>
    %629 = arith.addf %627, %628 : vector<16x32xf32>
    %630 = arith.addf %629, %75 : vector<16x32xf32>
    %631 = vector.extract_strided_slice %7 {offsets = [0, 0], sizes = [32, 32], strides = [1, 1]} : vector<64x32xf32> to vector<32x32xf32>
    %cst_223 = arith.constant dense<0.000000e+00> : vector<16x32xf32>
    %632 = tpu.matmul %630, %631, %cst_223 {dimension_numbers = #tpu.dot_dimension_numbers<[1], [0], [0], [1], [0, 0, 1, 1], [], []>} : vector<16x32xf32>, vector<32x32xf32>, vector<16x32xf32> -> vector<16x32xf32>
    %633 = vector.extract_strided_slice %7 {offsets = [32, 0], sizes = [32, 32], strides = [1, 1]} : vector<64x32xf32> to vector<32x32xf32>
    %cst_224 = arith.constant dense<0.000000e+00> : vector<16x32xf32>
    %634 = tpu.matmul %70, %633, %cst_224 {dimension_numbers = #tpu.dot_dimension_numbers<[1], [0], [0], [1], [0, 0, 1, 1], [], []>} : vector<16x32xf32>, vector<32x32xf32>, vector<16x32xf32> -> vector<16x32xf32>
    %635 = arith.addf %632, %634 : vector<16x32xf32>
    %636 = vector.broadcast %8 : vector<1x32xf32> to vector<16x32xf32>
    %637 = arith.mulf %635, %636 : vector<16x32xf32>
    %cst_225 = arith.constant dense<0.000000e+00> : vector<16xf32>
    %638 = vector.multi_reduction <add>, %637, %cst_225 [1] : vector<16x32xf32> to vector<16xf32>
    %639 = vector.shape_cast %638 : vector<16xf32> to vector<16x1xf32>
    %cst_226 = arith.constant dense<0.000000e+00> : vector<1x16xf32>
    %640 = tpu.matmul %9, %635, %cst_226 {dimension_numbers = #tpu.dot_dimension_numbers<[1], [1], [0], [0], [0, 0, 1, 0], [], []>} : vector<1x32xf32>, vector<16x32xf32>, vector<1x16xf32> -> vector<1x16xf32>
    %641 = vector.broadcast %639 : vector<16x1xf32> to vector<16x16xf32>
    %642 = vector.broadcast %640 : vector<1x16xf32> to vector<16x16xf32>
    %643 = arith.addf %641, %642 : vector<16x16xf32>
    %cst_227 = arith.constant 0.000000e+00 : f32
    %644 = vector.broadcast %cst_227 : f32 to vector<16x16xf32>
    %645 = arith.cmpf ogt, %643, %644 : vector<16x16xf32>
    %cst_228 = arith.constant 2.000000e-01 : f32
    %646 = vector.broadcast %cst_228 : f32 to vector<16x16xf32>
    %647 = arith.mulf %646, %643 : vector<16x16xf32>
    %648 = arith.select %645, %643, %647 : vector<16x16xi1>, vector<16x16xf32>
    %cst_229 = arith.constant 0.000000e+00 : f32
    %649 = vector.broadcast %cst_229 : f32 to vector<16x16xf32>
    %650 = arith.cmpf ogt, %33, %649 : vector<16x16xf32>
    %cst_230 = arith.constant -9.000000e+15 : f32
    %651 = vector.broadcast %cst_230 : f32 to vector<16x16xf32>
    %652 = arith.select %650, %648, %651 : vector<16x16xi1>, vector<16x16xf32>
    %cst_231 = arith.constant dense<0xFF800000> : vector<16xf32>
    %653 = vector.multi_reduction <maximumf>, %652, %cst_231 [1] : vector<16x16xf32> to vector<16xf32>
    %654 = vector.shape_cast %653 : vector<16xf32> to vector<16x1xf32>
    %655 = vector.broadcast %654 : vector<16x1xf32> to vector<16x16xf32>
    %656 = arith.subf %652, %655 : vector<16x16xf32>
    %657 = math.exp %656 : vector<16x16xf32>
    %cst_232 = arith.constant dense<0.000000e+00> : vector<16xf32>
    %658 = vector.multi_reduction <add>, %657, %cst_232 [1] : vector<16x16xf32> to vector<16xf32>
    %659 = vector.shape_cast %658 : vector<16xf32> to vector<16x1xf32>
    %660 = tpu.reciprocal %659 {approx = true} : vector<16x1xf32> -> vector<16x1xf32>
    %661 = vector.broadcast %660 : vector<16x1xf32> to vector<16x16xf32>
    %662 = arith.mulf %657, %661 : vector<16x16xf32>
    %cst_233 = arith.constant dense<0.000000e+00> : vector<16x32xf32>
    %663 = tpu.matmul %662, %635, %cst_233 {dimension_numbers = #tpu.dot_dimension_numbers<[1], [0], [0], [1], [0, 0, 1, 1], [], []>} : vector<16x16xf32>, vector<16x32xf32>, vector<16x32xf32> -> vector<16x32xf32>
    %cst_234 = arith.constant 0.000000e+00 : f32
    %664 = vector.broadcast %cst_234 : f32 to vector<16x32xf32>
    %665 = arith.cmpf ogt, %663, %664 : vector<16x32xf32>
    %cst_235 = arith.constant 0.000000e+00 : f32
    %666 = vector.broadcast %cst_235 : f32 to vector<16x32xf32>
    %667 = arith.minimumf %663, %666 : vector<16x32xf32>
    %668 = math.exp %667 : vector<16x32xf32>
    %cst_236 = arith.constant 1.000000e+00 : f32
    %669 = vector.broadcast %cst_236 : f32 to vector<16x32xf32>
    %670 = arith.subf %668, %669 : vector<16x32xf32>
    %671 = arith.select %665, %663, %670 : vector<16x32xi1>, vector<16x32xf32>
    %c0_237 = arith.constant 0 : index
    %c0_238 = arith.constant 0 : index
    %672 = vector.load %arg17[%c0_237, %c0_238] : memref<16x32xf32, #tpu.memory_space<vmem>>, vector<16x32xf32>
    tpu.vector_store %arg17[%c0_237, %c0_238], %671 {strides = array<i32>} : memref<16x32xf32, #tpu.memory_space<vmem>>, vector<16x32xf32>,
    return
  }
}

module attributes {stable_mosaic.version = 11 : i64} {
  func.func @kernel(%arg0: memref<32x32xf32, #tpu.memory_space<vmem>>, %arg1: memref<16x16xf32, #tpu.memory_space<vmem>>, %arg2: memref<16x32xf32, #tpu.memory_space<vmem>>, %arg3: memref<32x16xf32, #tpu.memory_space<vmem>>, %arg4: memref<16x32xf32, #tpu.memory_space<vmem>>, %arg5: memref<32x32xf32, #tpu.memory_space<vmem>>, %arg6: memref<1x32xf32, #tpu.memory_space<vmem>>, %arg7: memref<32x32xf32, #tpu.memory_space<vmem>>, %arg8: memref<1x32xf32, #tpu.memory_space<vmem>>, %arg9: memref<32x32xf32, #tpu.memory_space<vmem>>) attributes {dimension_semantics = [], scalar_prefetch = 0 : i64, scratch_operands = 0 : i64, tpu.core_type = #tpu.core_type<tc>} {
    %0 = tpu.iota {dimensions = array<i32: 0>} : vector<32x32xi32>
    %1 = tpu.iota {dimensions = array<i32: 1>} : vector<32x32xi32>
    %2 = arith.cmpi eq, %0, %1 : vector<32x32xi32>
    %cst = arith.constant 1.000000e+00 : f32
    %cst_0 = arith.constant 0.000000e+00 : f32
    %3 = vector.broadcast %cst : f32 to vector<32x32xf32>
    %4 = vector.broadcast %cst_0 : f32 to vector<32x32xf32>
    %5 = arith.select %2, %3, %4 : vector<32x32xi1>, vector<32x32xf32>
    %6 = tpu.iota {dimensions = array<i32: 0>} : vector<32x16xi32>
    %7 = tpu.iota {dimensions = array<i32: 1>} : vector<32x16xi32>
    %8 = arith.cmpi eq, %6, %7 : vector<32x16xi32>
    %c16_i32 = arith.constant 16 : i32
    %9 = vector.broadcast %c16_i32 : i32 to vector<32x16xi32>
    %10 = arith.addi %7, %9 : vector<32x16xi32>
    %11 = arith.cmpi eq, %6, %10 : vector<32x16xi32>
    %12 = arith.ori %8, %11 : vector<32x16xi1>
    %cst_1 = arith.constant 1.000000e+00 : f32
    %cst_2 = arith.constant 0.000000e+00 : f32
    %13 = vector.broadcast %cst_1 : f32 to vector<32x16xf32>
    %14 = vector.broadcast %cst_2 : f32 to vector<32x16xf32>
    %15 = arith.select %12, %13, %14 : vector<32x16xi1>, vector<32x16xf32>
    %c0 = arith.constant 0 : index
    %c0_3 = arith.constant 0 : index
    %16 = vector.load %arg0[%c0, %c0_3] : memref<32x32xf32, #tpu.memory_space<vmem>>, vector<32x32xf32>
    %cst_4 = arith.constant dense<0.000000e+00> : vector<32x16xf32>
    %17 = tpu.matmul %16, %15, %cst_4 {dimension_numbers = #tpu.dot_dimension_numbers<[1], [0], [0], [1], [0, 0, 1, 1], [], []>} : vector<32x32xf32>, vector<32x16xf32>, vector<32x16xf32> -> vector<32x16xf32>
    %c0_5 = arith.constant 0 : index
    %c0_6 = arith.constant 0 : index
    %18 = vector.load %arg1[%c0_5, %c0_6] : memref<16x16xf32, #tpu.memory_space<vmem>>, vector<16x16xf32>
    %cst_7 = arith.constant dense<0.000000e+00> : vector<32x16xf32>
    %19 = tpu.matmul %17, %18, %cst_7 {dimension_numbers = #tpu.dot_dimension_numbers<[1], [1], [0], [0], [0, 0, 1, 0], [], []>} : vector<32x16xf32>, vector<16x16xf32>, vector<32x16xf32> -> vector<32x16xf32>
    %c0_8 = arith.constant 0 : index
    %c0_9 = arith.constant 0 : index
    %20 = vector.load %arg2[%c0_8, %c0_9] : memref<16x32xf32, #tpu.memory_space<vmem>>, vector<16x32xf32>
    %cst_10 = arith.constant dense<0.000000e+00> : vector<32x32xf32>
    %21 = tpu.matmul %19, %20, %cst_10 {dimension_numbers = #tpu.dot_dimension_numbers<[1], [0], [0], [1], [0, 0, 1, 1], [], []>} : vector<32x16xf32>, vector<16x32xf32>, vector<32x32xf32> -> vector<32x32xf32>
    %22 = math.absf %21 : vector<32x32xf32>
    %cst_11 = arith.constant 1.000000e+00 : f32
    %23 = vector.broadcast %cst_11 : f32 to vector<32x32xf32>
    %24 = arith.select %2, %23, %22 : vector<32x32xi1>, vector<32x32xf32>
    %cst_12 = arith.constant dense<0.000000e+00> : vector<32x32xf32>
    %25 = tpu.matmul %24, %24, %cst_12 {dimension_numbers = #tpu.dot_dimension_numbers<[1], [1], [0], [0], [0, 0, 1, 0], [], []>} : vector<32x32xf32>, vector<32x32xf32>, vector<32x32xf32> -> vector<32x32xf32>
    %cst_13 = arith.constant 1.000000e+00 : f32
    %26 = vector.broadcast %cst_13 : f32 to vector<32x32xf32>
    %27 = arith.select %2, %26, %25 : vector<32x32xi1>, vector<32x32xf32>
    %28 = math.absf %27 : vector<32x32xf32>
    %c0_14 = arith.constant 0 : index
    %c0_15 = arith.constant 0 : index
    %29 = vector.load %arg3[%c0_14, %c0_15] : memref<32x16xf32, #tpu.memory_space<vmem>>, vector<32x16xf32>
    %cst_16 = arith.constant dense<0.000000e+00> : vector<32x16xf32>
    %30 = tpu.matmul %28, %29, %cst_16 {dimension_numbers = #tpu.dot_dimension_numbers<[1], [0], [0], [1], [0, 0, 1, 1], [], []>} : vector<32x32xf32>, vector<32x16xf32>, vector<32x16xf32> -> vector<32x16xf32>
    %cst_17 = arith.constant dense<0.000000e+00> : vector<32x16xf32>
    %31 = tpu.matmul %24, %30, %cst_17 {dimension_numbers = #tpu.dot_dimension_numbers<[1], [0], [0], [1], [0, 0, 1, 1], [], []>} : vector<32x32xf32>, vector<32x16xf32>, vector<32x16xf32> -> vector<32x16xf32>
    %cst_18 = arith.constant 0.000000e+00 : f32
    %32 = vector.broadcast %cst_18 : f32 to vector<32x16xf32>
    %33 = arith.maximumf %31, %32 : vector<32x16xf32>
    %c0_19 = arith.constant 0 : index
    %c0_20 = arith.constant 0 : index
    %34 = vector.load %arg4[%c0_19, %c0_20] : memref<16x32xf32, #tpu.memory_space<vmem>>, vector<16x32xf32>
    %cst_21 = arith.constant dense<0.000000e+00> : vector<32x32xf32>
    %35 = tpu.matmul %33, %34, %cst_21 {dimension_numbers = #tpu.dot_dimension_numbers<[1], [0], [0], [1], [0, 0, 1, 1], [], []>} : vector<32x16xf32>, vector<16x32xf32>, vector<32x32xf32> -> vector<32x32xf32>
    %cst_22 = arith.constant dense<0.000000e+00> : vector<32x32xf32>
    %36 = tpu.matmul %24, %35, %cst_22 {dimension_numbers = #tpu.dot_dimension_numbers<[1], [0], [0], [1], [0, 0, 1, 1], [], []>} : vector<32x32xf32>, vector<32x32xf32>, vector<32x32xf32> -> vector<32x32xf32>
    %cst_23 = arith.constant 0.000000e+00 : f32
    %37 = vector.broadcast %cst_23 : f32 to vector<32x32xf32>
    %38 = arith.maximumf %36, %37 : vector<32x32xf32>
    %cst_24 = arith.constant dense<0.000000e+00> : vector<32x32xf32>
    %39 = tpu.matmul %24, %38, %cst_24 {dimension_numbers = #tpu.dot_dimension_numbers<[1], [0], [0], [1], [0, 0, 1, 1], [], []>} : vector<32x32xf32>, vector<32x32xf32>, vector<32x32xf32> -> vector<32x32xf32>
    %40 = arith.addf %38, %39 : vector<32x32xf32>
    %c0_25 = arith.constant 0 : index
    %c0_26 = arith.constant 0 : index
    %41 = vector.load %arg5[%c0_25, %c0_26] : memref<32x32xf32, #tpu.memory_space<vmem>>, vector<32x32xf32>
    %cst_27 = arith.constant dense<0.000000e+00> : vector<32x32xf32>
    %42 = tpu.matmul %40, %41, %cst_27 {dimension_numbers = #tpu.dot_dimension_numbers<[1], [0], [0], [1], [0, 0, 1, 1], [], []>} : vector<32x32xf32>, vector<32x32xf32>, vector<32x32xf32> -> vector<32x32xf32>
    %c0_28 = arith.constant 0 : index
    %c0_29 = arith.constant 0 : index
    %43 = vector.load %arg6[%c0_28, %c0_29] : memref<1x32xf32, #tpu.memory_space<vmem>>, vector<1x32xf32>
    %44 = vector.broadcast %43 : vector<1x32xf32> to vector<32x32xf32>
    %45 = arith.addf %42, %44 : vector<32x32xf32>
    %cst_30 = arith.constant 0.000000e+00 : f32
    %46 = vector.broadcast %cst_30 : f32 to vector<32x32xf32>
    %47 = arith.maximumf %45, %46 : vector<32x32xf32>
    %c0_31 = arith.constant 0 : index
    %c0_32 = arith.constant 0 : index
    %48 = vector.load %arg7[%c0_31, %c0_32] : memref<32x32xf32, #tpu.memory_space<vmem>>, vector<32x32xf32>
    %cst_33 = arith.constant dense<0.000000e+00> : vector<32x32xf32>
    %49 = tpu.matmul %47, %48, %cst_33 {dimension_numbers = #tpu.dot_dimension_numbers<[1], [0], [0], [1], [0, 0, 1, 1], [], []>} : vector<32x32xf32>, vector<32x32xf32>, vector<32x32xf32> -> vector<32x32xf32>
    %c0_34 = arith.constant 0 : index
    %c0_35 = arith.constant 0 : index
    %50 = vector.load %arg8[%c0_34, %c0_35] : memref<1x32xf32, #tpu.memory_space<vmem>>, vector<1x32xf32>
    %51 = vector.broadcast %50 : vector<1x32xf32> to vector<32x32xf32>
    %52 = arith.addf %49, %51 : vector<32x32xf32>
    %cst_36 = arith.constant dense<0.000000e+00> : vector<32x32xf32>
    %53 = tpu.matmul %5, %52, %cst_36 {dimension_numbers = #tpu.dot_dimension_numbers<[1], [1], [0], [0], [0, 0, 1, 0], [], []>} : vector<32x32xf32>, vector<32x32xf32>, vector<32x32xf32> -> vector<32x32xf32>
    %54 = arith.addf %52, %53 : vector<32x32xf32>
    %cst_37 = arith.constant 5.000000e-01 : f32
    %55 = vector.broadcast %cst_37 : f32 to vector<32x32xf32>
    %56 = arith.mulf %54, %55 : vector<32x32xf32>
    %cst_38 = arith.constant 1.000000e+00 : f32
    %57 = vector.broadcast %cst_38 : f32 to vector<32x32xf32>
    %58 = arith.select %2, %57, %56 : vector<32x32xi1>, vector<32x32xf32>
    %59 = math.absf %58 : vector<32x32xf32>
    %c0_39 = arith.constant 0 : index
    %c0_40 = arith.constant 0 : index
    %60 = vector.load %arg9[%c0_39, %c0_40] : memref<32x32xf32, #tpu.memory_space<vmem>>, vector<32x32xf32>
    tpu.vector_store %arg9[%c0_39, %c0_40], %59 {strides = array<i32>} : memref<32x32xf32, #tpu.memory_space<vmem>>, vector<32x32xf32>,
    return
  }
}

</mosaic_0001>

<llo_original>
// kernel: custom-call.2
$region0: #{custom-call.2}
  %s0 = inlined_call_operand.vmem [shape: f32[8,8], index: 0, kind: input, shape index: {}]
  %s1 = inlined_call_operand.vmem [shape: f32[8,8], index: 1, kind: input, shape index: {}]
  %s2 = inlined_call_operand.vmem [shape: f32[8,8], index: 2, kind: input, shape index: {}]
  %s3 = inlined_call_operand.vmem [shape: f32[8,8], index: 3, kind: input, shape index: {}]
  %s4 = inlined_call_operand.vmem [shape: f32[8], index: 4, kind: output, shape index: {0}]
  %s5 = inlined_call_operand.vmem [shape: f32[8], index: 5, kind: output, shape index: {1}]
  %s6 = inlined_call_operand.vmem [shape: f32[8,8], index: 6, kind: output, shape index: {2}]
  %s7 = inlined_call_operand.vmem [shape: f32[8,8], index: 7, kind: output, shape index: {3}]
  %s8 = inlined_call_operand.vmem [shape: f32[8,8], index: 8, kind: output, shape index: {4}]
  %s9 = inlined_call_operand.vmem [shape: f32[8,8], index: 9, kind: output, shape index: {5}]
  %10 = xla_tuple %s4, %s5, %s6, %s7, %s8, %s9
  $region1: #{custom-call.2} parent=0
    #allocation0 [shape = 'u8[4096]{0}', space=vmem, size = 0x1000, scoped, tag = 'operand span for operand 0']
    #allocation1 [shape = 'u8[4096]{0}', space=vmem, size = 0x1000, scoped, tag = 'operand span for operand 1']
    #allocation2 [shape = 'u8[4096]{0}', space=vmem, size = 0x1000, scoped, tag = 'operand span for operand 2']
    #allocation3 [shape = 'u8[4096]{0}', space=vmem, size = 0x1000, scoped, tag = 'operand span for operand 3']
    #allocation4 [shape = 'u8[4096]{0}', space=vmem, size = 0x1000, scoped, tag = 'operand span for operand 4']
    #allocation5 [shape = 'u8[512]{0}', space=vmem, size = 0x400, scoped, tag = 'packed  for operand 4']
    #allocation6 [shape = 'u8[4096]{0}', space=vmem, size = 0x1000, scoped, tag = 'operand span for operand 5']
    #allocation7 [shape = 'u8[512]{0}', space=vmem, size = 0x400, scoped, tag = 'packed  for operand 5']
    #allocation8 [shape = 'u8[4096]{0}', space=vmem, size = 0x1000, scoped, tag = 'operand span for operand 6']
    #allocation9 [shape = 'u8[4096]{0}', space=vmem, size = 0x1000, scoped, tag = 'operand span for operand 7']
    #allocation10 [shape = 'u8[4096]{0}', space=vmem, size = 0x1000, scoped, tag = 'operand span for operand 8']
    #allocation11 [shape = 'u8[4096]{0}', space=vmem, size = 0x1000, scoped, tag = 'operand span for operand 9']
    #allocation12 [shape = 'f32[8,8]{1,0}', space=vmem, size = 0x1000, scoped, tag = 'a top-left matrix']
    #allocation13 [shape = 'f32[8,8]{1,0}', space=vmem, size = 0x1000, scoped, tag = 'a top-right matrix']
    #allocation14 [shape = 'f32[8,8]{1,0}', space=vmem, size = 0x1000, scoped, tag = 'a bottom-left matrix']
    #allocation15 [shape = 'f32[8,8]{1,0}', space=vmem, size = 0x1000, scoped, tag = 'a bottom-right matrix']
    %p12 = scmp.gt.s32.totalorder 8, 0
    // Predicated region
    $region2: #{custom-call.2} parent=1 // pred_check
      %p13 = pneg %p12
    $region3: #{custom-call.2} parent=1 // pred_check_branch
      %15 = sbr.rel (%p13) target = $region5
    $region4: #{custom-call.2} parent=1 // pred_region
      %s16 = sshra.s32 8, 3
      %p17 = scmp.gt.s32.totalorder %s16, 0
      // Predicated region
      $region6: #{custom-call.2} parent=4 // pred_check
        %p18 = pneg %p17
      $region7: #{custom-call.2} parent=4 // pred_check_branch
        %20 = sbr.rel (%p18) target = $region9
      $region8: #{custom-call.2} parent=4 // pred_region
        %s21 = ssub.s32 %s16, 1
        %s22 = smul.u32 %s21, 128
        %s23 = sshra.s32 %s22, 4
        %s24 = scalar_lea.vmem %s0, %s23
        %v25 = vld [vmem:[%s0] sm:$0xff]
        // While loop
        $region10: #{custom-call.2} parent=8 // loop_pre_header
          _
        $region11: #{custom-call.2} parent=8 // loop_header
          %s26 = sphi %s0, %s48
          %s27 = sphi [#allocation0], %s49
          %v28 = vphi %v25, %v50
          %s29 = ssub.s32 %s24, 64
          %p30 = scmp.gt.s32.totalorder %s26, %s29
        $region12: #{custom-call.2} parent=8 // loop_header_branch
          %32 = sbr.rel (%p30) target = $region16
        $region13: #{custom-call.2} parent=8 // loop_body
          %33 = vst [vmem:[%s27] sm:$0xff] %v28
          %v34 = vld [vmem:[%s26 + $0x8] sm:$0xff]
          %35 = vst [vmem:[%s27 + $0x8] sm:$0xff] %v34
          %v36 = vld [vmem:[%s26 + $0x10] sm:$0xff]
          %37 = vst [vmem:[%s27 + $0x10] sm:$0xff] %v36
          %v38 = vld [vmem:[%s26 + $0x18] sm:$0xff]
          %39 = vst [vmem:[%s27 + $0x18] sm:$0xff] %v38
          %v40 = vld [vmem:[%s26 + $0x20] sm:$0xff]
          %41 = vst [vmem:[%s27 + $0x20] sm:$0xff] %v40
          %v42 = vld [vmem:[%s26 + $0x28] sm:$0xff]
          %43 = vst [vmem:[%s27 + $0x28] sm:$0xff] %v42
          %v44 = vld [vmem:[%s26 + $0x30] sm:$0xff]
          %45 = vst [vmem:[%s27 + $0x30] sm:$0xff] %v44
          %v46 = vld [vmem:[%s26 + $0x38] sm:$0xff]
          %47 = vst [vmem:[%s27 + $0x38] sm:$0xff] %v46
        $region14: #{custom-call.2} parent=8 // loop_footer
          %s48 = scalar_lea.vmem %s26, 64
          %s49 = scalar_lea.vmem %s27, 64
          %v50 = vld [vmem:[%s26 + $0x40] sm:$0xff]
        $region15: #{custom-call.2} parent=8 // loop_footer_branch
          %51 = sbr.rel target = $region11
        $region16: #{custom-call.2} parent=8 // loop_exit
          _
        // While loop
        $region17: #{custom-call.2} parent=8 // loop_pre_header
          _
        $region18: #{custom-call.2} parent=8 // loop_header
          %s52 = sphi %s26, %s60
          %s53 = sphi %s27, %s61
          %v54 = vphi %v28, %v54
          %p55 = scmp.gt.s32.totalorder %s52, %s24
        $region19: #{custom-call.2} parent=8 // loop_header_branch
          %57 = sbr.rel (%p55) target = $region23
        $region20: #{custom-call.2} parent=8 // loop_body
          %v58 = vld [vmem:[%s52] sm:$0xff]
          %59 = vst [vmem:[%s53] sm:$0xff] %v58
        $region21: #{custom-call.2} parent=8 // loop_footer
          %s60 = scalar_lea.vmem %s52, 8
          %s61 = scalar_lea.vmem %s53, 8
        $region22: #{custom-call.2} parent=8 // loop_footer_branch
          %62 = sbr.rel target = $region18
        $region23: #{custom-call.2} parent=8 // loop_exit
          _
      $region9: #{custom-call.2} parent=4 // pred_fallthru
        _
      %s63 = sand.u32 8, 7
      %s64 = sshllo.u32 0, %s63
      %s65 = smul.u32 %s16, 128
      %s66 = sshra.s32 %s65, 4
      %s67 = scalar_lea.vmem [#allocation0], %s66
      %s68 = smul.u32 %s16, 128
      %s69 = sshra.s32 %s68, 4
      %s70 = scalar_lea.vmem %s0, %s69
      %v71 = vld [vmem:[%s70] sm:%s64]
      %72 = vst [vmem:[%s67] sm:%s64] %v71
    $region5: #{custom-call.2} parent=1 // pred_fallthru
      _
    %p74 = scmp.gt.s32.totalorder 8, 0
    // Predicated region
    $region24: #{custom-call.2} parent=1 // pred_check
      %p75 = pneg %p74
    $region25: #{custom-call.2} parent=1 // pred_check_branch
      %77 = sbr.rel (%p75) target = $region27
    $region26: #{custom-call.2} parent=1 // pred_region
      %s78 = sshra.s32 8, 3
      %p79 = scmp.gt.s32.totalorder %s78, 0
      // Predicated region
      $region28: #{custom-call.2} parent=26 // pred_check
        %p80 = pneg %p79
      $region29: #{custom-call.2} parent=26 // pred_check_branch
        %82 = sbr.rel (%p80) target = $region31
      $region30: #{custom-call.2} parent=26 // pred_region
        %s83 = ssub.s32 %s78, 1
        %s84 = smul.u32 %s83, 128
        %s85 = sshra.s32 %s84, 4
        %s86 = scalar_lea.vmem %s1, %s85
        %v87 = vld [vmem:[%s1] sm:$0xff]
        // While loop
        $region32: #{custom-call.2} parent=30 // loop_pre_header
          _
        $region33: #{custom-call.2} parent=30 // loop_header
          %s88 = sphi %s1, %s110
          %s89 = sphi [#allocation1], %s111
          %v90 = vphi %v87, %v112
          %s91 = ssub.s32 %s86, 64
          %p92 = scmp.gt.s32.totalorder %s88, %s91
        $region34: #{custom-call.2} parent=30 // loop_header_branch
          %94 = sbr.rel (%p92) target = $region38
        $region35: #{custom-call.2} parent=30 // loop_body
          %95 = vst [vmem:[%s89] sm:$0xff] %v90
          %v96 = vld [vmem:[%s88 + $0x8] sm:$0xff]
          %97 = vst [vmem:[%s89 + $0x8] sm:$0xff] %v96
          %v98 = vld [vmem:[%s88 + $0x10] sm:$0xff]
          %99 = vst [vmem:[%s89 + $0x10] sm:$0xff] %v98
          %v100 = vld [vmem:[%s88 + $0x18] sm:$0xff]
          %101 = vst [vmem:[%s89 + $0x18] sm:$0xff] %v100
          %v102 = vld [vmem:[%s88 + $0x20] sm:$0xff]
          %103 = vst [vmem:[%s89 + $0x20] sm:$0xff] %v102
          %v104 = vld [vmem:[%s88 + $0x28] sm:$0xff]
          %105 = vst [vmem:[%s89 + $0x28] sm:$0xff] %v104
          %v106 = vld [vmem:[%s88 + $0x30] sm:$0xff]
          %107 = vst [vmem:[%s89 + $0x30] sm:$0xff] %v106
          %v108 = vld [vmem:[%s88 + $0x38] sm:$0xff]
          %109 = vst [vmem:[%s89 + $0x38] sm:$0xff] %v108
        $region36: #{custom-call.2} parent=30 // loop_footer
          %s110 = scalar_lea.vmem %s88, 64
          %s111 = scalar_lea.vmem %s89, 64
          %v112 = vld [vmem:[%s88 + $0x40] sm:$0xff]
        $region37: #{custom-call.2} parent=30 // loop_footer_branch
          %113 = sbr.rel target = $region33
        $region38: #{custom-call.2} parent=30 // loop_exit
          _
        // While loop
        $region39: #{custom-call.2} parent=30 // loop_pre_header
          _
        $region40: #{custom-call.2} parent=30 // loop_header
          %s114 = sphi %s88, %s122
          %s115 = sphi %s89, %s123
          %v116 = vphi %v90, %v116
          %p117 = scmp.gt.s32.totalorder %s114, %s86
        $region41: #{custom-call.2} parent=30 // loop_header_branch
          %119 = sbr.rel (%p117) target = $region45
        $region42: #{custom-call.2} parent=30 // loop_body
          %v120 = vld [vmem:[%s114] sm:$0xff]
          %121 = vst [vmem:[%s115] sm:$0xff] %v120
        $region43: #{custom-call.2} parent=30 // loop_footer
          %s122 = scalar_lea.vmem %s114, 8
          %s123 = scalar_lea.vmem %s115, 8
        $region44: #{custom-call.2} parent=30 // loop_footer_branch
          %124 = sbr.rel target = $region40
        $region45: #{custom-call.2} parent=30 // loop_exit
          _
      $region31: #{custom-call.2} parent=26 // pred_fallthru
        _
      %s125 = sand.u32 8, 7
      %s126 = sshllo.u32 0, %s125
      %s127 = smul.u32 %s78, 128
      %s128 = sshra.s32 %s127, 4
      %s129 = scalar_lea.vmem [#allocation1], %s128
      %s130 = smul.u32 %s78, 128
      %s131 = sshra.s32 %s130, 4
      %s132 = scalar_lea.vmem %s1, %s131
      %v133 = vld [vmem:[%s132] sm:%s126]
      %134 = vst [vmem:[%s129] sm:%s126] %v133
    $region27: #{custom-call.2} parent=1 // pred_fallthru
      _
    %p136 = scmp.gt.s32.totalorder 8, 0
    // Predicated region
    $region46: #{custom-call.2} parent=1 // pred_check
      %p137 = pneg %p136
    $region47: #{custom-call.2} parent=1 // pred_check_branch
      %139 = sbr.rel (%p137) target = $region49
    $region48: #{custom-call.2} parent=1 // pred_region
      %s140 = sshra.s32 8, 3
      %p141 = scmp.gt.s32.totalorder %s140, 0
      // Predicated region
      $region50: #{custom-call.2} parent=48 // pred_check
        %p142 = pneg %p141
      $region51: #{custom-call.2} parent=48 // pred_check_branch
        %144 = sbr.rel (%p142) target = $region53
      $region52: #{custom-call.2} parent=48 // pred_region
        %s145 = ssub.s32 %s140, 1
        %s146 = smul.u32 %s145, 128
        %s147 = sshra.s32 %s146, 4
        %s148 = scalar_lea.vmem %s2, %s147
        %v149 = vld [vmem:[%s2] sm:$0xff]
        // While loop
        $region54: #{custom-call.2} parent=52 // loop_pre_header
          _
        $region55: #{custom-call.2} parent=52 // loop_header
          %s150 = sphi %s2, %s172
          %s151 = sphi [#allocation2], %s173
          %v152 = vphi %v149, %v174
          %s153 = ssub.s32 %s148, 64
          %p154 = scmp.gt.s32.totalorder %s150, %s153
        $region56: #{custom-call.2} parent=52 // loop_header_branch
          %156 = sbr.rel (%p154) target = $region60
        $region57: #{custom-call.2} parent=52 // loop_body
          %157 = vst [vmem:[%s151] sm:$0xff] %v152
          %v158 = vld [vmem:[%s150 + $0x8] sm:$0xff]
          %159 = vst [vmem:[%s151 + $0x8] sm:$0xff] %v158
          %v160 = vld [vmem:[%s150 + $0x10] sm:$0xff]
          %161 = vst [vmem:[%s151 + $0x10] sm:$0xff] %v160
          %v162 = vld [vmem:[%s150 + $0x18] sm:$0xff]
          %163 = vst [vmem:[%s151 + $0x18] sm:$0xff] %v162
          %v164 = vld [vmem:[%s150 + $0x20] sm:$0xff]
          %165 = vst [vmem:[%s151 + $0x20] sm:$0xff] %v164
          %v166 = vld [vmem:[%s150 + $0x28] sm:$0xff]
          %167 = vst [vmem:[%s151 + $0x28] sm:$0xff] %v166
          %v168 = vld [vmem:[%s150 + $0x30] sm:$0xff]
          %169 = vst [vmem:[%s151 + $0x30] sm:$0xff] %v168
          %v170 = vld [vmem:[%s150 + $0x38] sm:$0xff]
          %171 = vst [vmem:[%s151 + $0x38] sm:$0xff] %v170
        $region58: #{custom-call.2} parent=52 // loop_footer
          %s172 = scalar_lea.vmem %s150, 64
          %s173 = scalar_lea.vmem %s151, 64
          %v174 = vld [vmem:[%s150 + $0x40] sm:$0xff]
        $region59: #{custom-call.2} parent=52 // loop_footer_branch
          %175 = sbr.rel target = $region55
        $region60: #{custom-call.2} parent=52 // loop_exit
          _
        // While loop
        $region61: #{custom-call.2} parent=52 // loop_pre_header
          _
        $region62: #{custom-call.2} parent=52 // loop_header
          %s176 = sphi %s150, %s184
          %s177 = sphi %s151, %s185
          %v178 = vphi %v152, %v178
          %p179 = scmp.gt.s32.totalorder %s176, %s148
        $region63: #{custom-call.2} parent=52 // loop_header_branch
          %181 = sbr.rel (%p179) target = $region67
        $region64: #{custom-call.2} parent=52 // loop_body
          %v182 = vld [vmem:[%s176] sm:$0xff]
          %183 = vst [vmem:[%s177] sm:$0xff] %v182
        $region65: #{custom-call.2} parent=52 // loop_footer
          %s184 = scalar_lea.vmem %s176, 8
          %s185 = scalar_lea.vmem %s177, 8
        $region66: #{custom-call.2} parent=52 // loop_footer_branch
          %186 = sbr.rel target = $region62
        $region67: #{custom-call.2} parent=52 // loop_exit
          _
      $region53: #{custom-call.2} parent=48 // pred_fallthru
        _
      %s187 = sand.u32 8, 7
      %s188 = sshllo.u32 0, %s187
      %s189 = smul.u32 %s140, 128
      %s190 = sshra.s32 %s189, 4
      %s191 = scalar_lea.vmem [#allocation2], %s190
      %s192 = smul.u32 %s140, 128
      %s193 = sshra.s32 %s192, 4
      %s194 = scalar_lea.vmem %s2, %s193
      %v195 = vld [vmem:[%s194] sm:%s188]
      %196 = vst [vmem:[%s191] sm:%s188] %v195
    $region49: #{custom-call.2} parent=1 // pred_fallthru
      _
    %p198 = scmp.gt.s32.totalorder 8, 0
    // Predicated region
    $region68: #{custom-call.2} parent=1 // pred_check
      %p199 = pneg %p198
    $region69: #{custom-call.2} parent=1 // pred_check_branch
      %201 = sbr.rel (%p199) target = $region71
    $region70: #{custom-call.2} parent=1 // pred_region
      %s202 = sshra.s32 8, 3
      %p203 = scmp.gt.s32.totalorder %s202, 0
      // Predicated region
      $region72: #{custom-call.2} parent=70 // pred_check
        %p204 = pneg %p203
      $region73: #{custom-call.2} parent=70 // pred_check_branch
        %206 = sbr.rel (%p204) target = $region75
      $region74: #{custom-call.2} parent=70 // pred_region
        %s207 = ssub.s32 %s202, 1
        %s208 = smul.u32 %s207, 128
        %s209 = sshra.s32 %s208, 4
        %s210 = scalar_lea.vmem %s3, %s209
        %v211 = vld [vmem:[%s3] sm:$0xff]
        // While loop
        $region76: #{custom-call.2} parent=74 // loop_pre_header
          _
        $region77: #{custom-call.2} parent=74 // loop_header
          %s212 = sphi %s3, %s234
          %s213 = sphi [#allocation3], %s235
          %v214 = vphi %v211, %v236
          %s215 = ssub.s32 %s210, 64
          %p216 = scmp.gt.s32.totalorder %s212, %s215
        $region78: #{custom-call.2} parent=74 // loop_header_branch
          %218 = sbr.rel (%p216) target = $region82
        $region79: #{custom-call.2} parent=74 // loop_body
          %219 = vst [vmem:[%s213] sm:$0xff] %v214
          %v220 = vld [vmem:[%s212 + $0x8] sm:$0xff]
          %221 = vst [vmem:[%s213 + $0x8] sm:$0xff] %v220
          %v222 = vld [vmem:[%s212 + $0x10] sm:$0xff]
          %223 = vst [vmem:[%s213 + $0x10] sm:$0xff] %v222
          %v224 = vld [vmem:[%s212 + $0x18] sm:$0xff]
          %225 = vst [vmem:[%s213 + $0x18] sm:$0xff] %v224
          %v226 = vld [vmem:[%s212 + $0x20] sm:$0xff]
          %227 = vst [vmem:[%s213 + $0x20] sm:$0xff] %v226
          %v228 = vld [vmem:[%s212 + $0x28] sm:$0xff]
          %229 = vst [vmem:[%s213 + $0x28] sm:$0xff] %v228
          %v230 = vld [vmem:[%s212 + $0x30] sm:$0xff]
          %231 = vst [vmem:[%s213 + $0x30] sm:$0xff] %v230
          %v232 = vld [vmem:[%s212 + $0x38] sm:$0xff]
          %233 = vst [vmem:[%s213 + $0x38] sm:$0xff] %v232
        $region80: #{custom-call.2} parent=74 // loop_footer
          %s234 = scalar_lea.vmem %s212, 64
          %s235 = scalar_lea.vmem %s213, 64
          %v236 = vld [vmem:[%s212 + $0x40] sm:$0xff]
        $region81: #{custom-call.2} parent=74 // loop_footer_branch
          %237 = sbr.rel target = $region77
        $region82: #{custom-call.2} parent=74 // loop_exit
          _
        // While loop
        $region83: #{custom-call.2} parent=74 // loop_pre_header
          _
        $region84: #{custom-call.2} parent=74 // loop_header
          %s238 = sphi %s212, %s246
          %s239 = sphi %s213, %s247
          %v240 = vphi %v214, %v240
          %p241 = scmp.gt.s32.totalorder %s238, %s210
        $region85: #{custom-call.2} parent=74 // loop_header_branch
          %243 = sbr.rel (%p241) target = $region89
        $region86: #{custom-call.2} parent=74 // loop_body
          %v244 = vld [vmem:[%s238] sm:$0xff]
          %245 = vst [vmem:[%s239] sm:$0xff] %v244
        $region87: #{custom-call.2} parent=74 // loop_footer
          %s246 = scalar_lea.vmem %s238, 8
          %s247 = scalar_lea.vmem %s239, 8
        $region88: #{custom-call.2} parent=74 // loop_footer_branch
          %248 = sbr.rel target = $region84
        $region89: #{custom-call.2} parent=74 // loop_exit
          _
      $region75: #{custom-call.2} parent=70 // pred_fallthru
        _
      %s249 = sand.u32 8, 7
      %s250 = sshllo.u32 0, %s249
      %s251 = smul.u32 %s202, 128
      %s252 = sshra.s32 %s251, 4
      %s253 = scalar_lea.vmem [#allocation3], %s252
      %s254 = smul.u32 %s202, 128
      %s255 = sshra.s32 %s254, 4
      %s256 = scalar_lea.vmem %s3, %s255
      %v257 = vld [vmem:[%s256] sm:%s250]
      %258 = vst [vmem:[%s253] sm:%s250] %v257
    $region71: #{custom-call.2} parent=1 // pred_fallthru
      _
    %s259 = smov [#allocation12]
    %v260 = vld [vmem:[#allocation0] sm:$0xff]
    %261 = vst [vmem:[%s259] sm:$0xff] %v260
    %s262 = smov [#allocation13]
    %v263 = vld [vmem:[#allocation1] sm:$0xff]
    %264 = vst [vmem:[%s262] sm:$0xff] %v263
    %s265 = smov [#allocation14]
    %v266 = vld [vmem:[#allocation2] sm:$0xff]
    %267 = vst [vmem:[%s265] sm:$0xff] %v266
    %s268 = smov [#allocation15]
    %v269 = vld [vmem:[#allocation3] sm:$0xff]
    %270 = vst [vmem:[%s268] sm:$0xff] %v269
    %271 = vst [vmem:[#allocation8] sm:$0xff] 0.0
    %272 = vst [vmem:[#allocation9] sm:$0xff] 0.0
    %273 = vst [vmem:[#allocation10] sm:$0xff] 0.0
    %274 = vst [vmem:[#allocation11] sm:$0xff] 0.0
    %s275 = smov [#allocation8]
    %v276 = vlaneseq
    %v277 = vand.u32 %v276, 127
    %v278 = vmov %v277
    %v279 = vlaneseq
    %v280 = vshrl.u32 %v279, 7
    %v281 = vmov %v280
    %v282 = vld [vmem:[%s275] sm:$0xff]
    %vm285 = vcmp.eq.s32.totalorder %v281, %v278
    %v286 = vsel %vm285, 1.0, %v282
    %287 = vst [vmem:[%s275] sm:$0xff] %v286
    %s288 = smov [#allocation11]
    %v289 = vlaneseq
    %v290 = vand.u32 %v289, 127
    %v291 = vmov %v290
    %v292 = vlaneseq
    %v293 = vshrl.u32 %v292, 7
    %v294 = vmov %v293
    %v295 = vld [vmem:[%s288] sm:$0xff]
    %vm298 = vcmp.eq.s32.totalorder %v294, %v291
    %v299 = vsel %vm298, 1.0, %v295
    %300 = vst [vmem:[%s288] sm:$0xff] %v299
    // While loop
    $region90: #{custom-call.2} parent=1 // loop_pre_header
      _
    $region91: #{custom-call.2} parent=1 // loop_header
      %s302 = sphi 0, %s844
      %v303 = vlaneseq
      %v304 = vand.u32 %v303, 127
      %v305 = vmov %v304
      %v306 = vlaneseq
      %v307 = vshrl.u32 %v306, 7
      %v308 = vmov %v307
      %s309 = smov [#allocation12]
      %v310 = vlaneseq
      %v311 = vand.u32 %v310, 127
      %vm312 = vcmp.ge.s32.totalorder %v311, 0
      %vm313 = vcmp.lt.s32.totalorder %v311, 8
      %vm314 = vmand %vm312, %vm313
      %v315 = vld [vmem:[%s309] sm:$0xff]
      %v316 = vsel %vm314, %v315, 0.0
      %v317 = vmul.f32 %v316, %v316
      %vm320 = vcmp.eq.s32.totalorder %v308, %v305
      %v321 = vsel %vm320, 0.0, %v317
      %v322 = vlaneseq
      %v323 = vand.u32 %v322, 127
      %v324 = vmov %v323
      %v325 = vlaneseq
      %v326 = vshrl.u32 %v325, 7
      %v327 = vmov %v326
      %s328 = smov [#allocation13]
      %v329 = vlaneseq
      %v330 = vand.u32 %v329, 127
      %vm331 = vcmp.ge.s32.totalorder %v330, 0
      %vm332 = vcmp.lt.s32.totalorder %v330, 8
      %vm333 = vmand %vm331, %vm332
      %v334 = vld [vmem:[%s328] sm:$0xff]
      %v335 = vsel %vm333, %v334, 0.0
      %v336 = vmul.f32 %v335, %v335
      %v337 = vadd.f32 %v321, %v336
      %v338 = vadd.f32 %v317, %v336
      %v339 = vlaneseq
      %v340 = vand.u32 %v339, 127
      %v341 = vmov %v340
      %v342 = vlaneseq
      %v343 = vshrl.u32 %v342, 7
      %v344 = vmov %v343
      %s345 = smov [#allocation14]
      %v346 = vlaneseq
      %v347 = vand.u32 %v346, 127
      %vm348 = vcmp.ge.s32.totalorder %v347, 0
      %vm349 = vcmp.lt.s32.totalorder %v347, 8
      %vm350 = vmand %vm348, %vm349
      %v351 = vld [vmem:[%s345] sm:$0xff]
      %v352 = vsel %vm350, %v351, 0.0
      %v353 = vmul.f32 %v352, %v352
      %v354 = vadd.f32 %v337, %v353
      %v355 = vadd.f32 %v338, %v353
      %v356 = vlaneseq
      %v357 = vand.u32 %v356, 127
      %v358 = vmov %v357
      %v359 = vlaneseq
      %v360 = vshrl.u32 %v359, 7
      %v361 = vmov %v360
      %s362 = smov [#allocation15]
      %v363 = vlaneseq
      %v364 = vand.u32 %v363, 127
      %vm365 = vcmp.ge.s32.totalorder %v364, 0
      %vm366 = vcmp.lt.s32.totalorder %v364, 8
      %vm367 = vmand %vm365, %vm366
      %v368 = vld [vmem:[%s362] sm:$0xff]
      %v369 = vsel %vm367, %v368, 0.0
      %v370 = vmul.f32 %v369, %v369
      %vm373 = vcmp.eq.s32.totalorder %v361, %v358
      %v374 = vsel %vm373, 0.0, %v370
      %v375 = vadd.f32 %v354, %v374
      %v376 = vadd.f32 %v355, %v370
      %377 = vadd.xlane.f32.xlu0 %v376
      %v378 = vpop.xlane.xlu0 %377
      %v379 = vrot.slane %v378, 4
      %v380 = vadd.f32 %v378, %v379
      %v381 = vrot.slane %v380, 2
      %v382 = vadd.f32 %v380, %v381
      %v383 = vrot.slane %v382, 1
      %v384 = vadd.f32 %v382, %v383
      %385 = vadd.xlane.f32.xlu0 %v375
      %v386 = vpop.xlane.xlu0 %385
      %v387 = vrot.slane %v386, 4
      %v388 = vadd.f32 %v386, %v387
      %v389 = vrot.slane %v388, 2
      %v390 = vadd.f32 %v388, %v389
      %v391 = vrot.slane %v390, 1
      %v392 = vadd.f32 %v390, %v391
      %s393 = vtos %v392
      %s394 = vtos %v384
      %s395 = smul.f32 1e-10, %s394
      %p396 = scmp.le.f32.partialorder %s393, %s395
      %p397 = scmp.ge.s32.totalorder %s302, 15
      %p398 = por %p396, %p397
    $region92: #{custom-call.2} parent=1 // loop_header_branch
      %846 = sbr.rel (%p398) target = $region96
    $region93: #{custom-call.2} parent=1 // loop_body
      loop: start=0, step=1, limit=15
      $region97: #{custom-call.2} parent=93 // loop_pre_header
        _
      $region98: #{custom-call.2} parent=93 // loop_header
        %s400 = sphi 0, %s404
        %p401 = scmp.ge.s32.totalorder %s400, 15
      $region99: #{custom-call.2} parent=93 // loop_header_branch
        %403 = sbr.rel (%p401) target = $region103
      $region100: #{custom-call.2} parent=93 // loop_body
        #allocation16 [shape = 'f32[1024]{0}', space=vmem, size = 0x1000, scoped, tag = 'a_tl_diag vmem']
        #allocation17 [shape = 'f32[1024]{0}', space=vmem, size = 0x1000, scoped, tag = 'a_tr_diag vmem']
        #allocation18 [shape = 'f32[1024]{0}', space=vmem, size = 0x1000, scoped, tag = 'a_br_diag vmem']
        #allocation19 [shape = 'f32[1024]{0}', space=vmem, size = 0x1000, scoped, tag = 'rt1 vmem']
        #allocation20 [shape = 'f32[1024]{0}', space=vmem, size = 0x1000, scoped, tag = 'rt2 vmem']
        #allocation21 [shape = 'f32[1024]{0}', space=vmem, size = 0x1000, scoped, tag = 'c vmem']
        #allocation22 [shape = 'f32[1024]{0}', space=vmem, size = 0x1000, scoped, tag = 's vmem']
        #allocation23 [shape = 'f32[4096]{0}', space=vmem, size = 0x4000, scoped, tag = 'c broadcast']
        #allocation24 [shape = 'f32[4096]{0}', space=vmem, size = 0x4000, scoped, tag = 's broadcast']
        %s405 = smov [#allocation12]
        %s406 = smov [#allocation16]
        %v407 = vlaneseq
        %v408 = vand.u32 %v407, 127
        %v409 = vmov %v408
        %v410 = vlaneseq
        %v411 = vshrl.u32 %v410, 7
        %v412 = vmov %v411
        %v413 = vld [vmem:[%s405] sm:$0xff]
        %vm416 = vcmp.eq.s32.totalorder %v412, %v409
        %v417 = vsel %vm416, %v413, 0.0
        %v418 = vrot.slane %v417, 4
        %v419 = vadd.f32 %v417, %v418
        %v420 = vrot.slane %v419, 2
        %v421 = vadd.f32 %v419, %v420
        %v422 = vrot.slane %v421, 1
        %v423 = vadd.f32 %v421, %v422
        %424 = vst [vmem:[%s406] sm:$0x1] %v423
        %s425 = smov [#allocation13]
        %s426 = smov [#allocation17]
        %v427 = vlaneseq
        %v428 = vand.u32 %v427, 127
        %v429 = vmov %v428
        %v430 = vlaneseq
        %v431 = vshrl.u32 %v430, 7
        %v432 = vmov %v431
        %v433 = vld [vmem:[%s425] sm:$0xff]
        %vm436 = vcmp.eq.s32.totalorder %v432, %v429
        %v437 = vsel %vm436, %v433, 0.0
        %v438 = vrot.slane %v437, 4
        %v439 = vadd.f32 %v437, %v438
        %v440 = vrot.slane %v439, 2
        %v441 = vadd.f32 %v439, %v440
        %v442 = vrot.slane %v441, 1
        %v443 = vadd.f32 %v441, %v442
        %444 = vst [vmem:[%s426] sm:$0x1] %v443
        %s445 = smov [#allocation15]
        %s446 = smov [#allocation18]
        %v447 = vlaneseq
        %v448 = vand.u32 %v447, 127
        %v449 = vmov %v448
        %v450 = vlaneseq
        %v451 = vshrl.u32 %v450, 7
        %v452 = vmov %v451
        %v453 = vld [vmem:[%s445] sm:$0xff]
        %vm456 = vcmp.eq.s32.totalorder %v452, %v449
        %v457 = vsel %vm456, %v453, 0.0
        %v458 = vrot.slane %v457, 4
        %v459 = vadd.f32 %v457, %v458
        %v460 = vrot.slane %v459, 2
        %v461 = vadd.f32 %v459, %v460
        %v462 = vrot.slane %v461, 1
        %v463 = vadd.f32 %v461, %v462
        %464 = vst [vmem:[%s446] sm:$0x1] %v463
        %s465 = smov [#allocation21]
        %s466 = smov [#allocation22]
        %s467 = smov [#allocation16]
        %v468 = vld [vmem:[%s467] sm:$0xff]
        %s469 = smov [#allocation17]
        %v470 = vld [vmem:[%s469] sm:$0xff]
        %s471 = smov [#allocation18]
        %v472 = vld [vmem:[%s471] sm:$0xff]
        %v473 = vsub.f32 %v472, %v468
        %v474 = vmul.f32 2.0, %v470
        %v475 = vrcp.pop %v474
        %v476 = vmul.f32 %v473, %v475
        %vm477 = vcmp.ge.f32.partialorder %v476, 0.0
        %v478 = vmul.f32 %v476, %v476
        %v479 = vadd.f32 1.0, %v478
        %v480 = vrsqrt.pop %v479
        %v481 = vmul.f32 %v479, %v480
        %vm482 = vcmp.eq.f32.partialorder %v479, inf
        %v483 = vsel %vm482, %v479, %v481
        %vm484 = vcmp.eq.f32.partialorder %v479, 0.0
        %v485 = vand.u32 %v479, 2147483648
        %v486 = vsel %vm484, %v485, %v483
        %v487 = vxor.u32 %v486, 2147483648
        %v488 = vsel %vm477, %v486, %v487
        %v489 = vadd.f32 %v476, %v488
        %v490 = vrcp.pop %v489
        %v491 = vand.u32 2147483647, %v468
        %v492 = vand.u32 2147483647, %v470
        %v493 = vand.u32 2147483647, %v472
        %v494 = vmin.f32 %v491, %v493
        %v495 = vmul.f32 1.1920929e-08, %v494
        %vm496 = vcmp.le.f32.partialorder %v492, %v495
        %v497 = vsel %vm496, 0.0, %v490
        %v498 = vmul.f32 %v497, %v497
        %v499 = vadd.f32 1.0, %v498
        %v500 = vrsqrt.pop %v499
        %v501 = vmul.f32 %v497, %v500
        %v502 = vmul.f32 %v497, %v470
        %v503 = vsub.f32 %v468, %v502
        %v504 = vmul.f32 %v497, %v470
        %v505 = vadd.f32 %v472, %v504
        %s506 = smov [#allocation19]
        %507 = vst [vmem:[%s506] sm:$0xff] %v503
        %s508 = smov [#allocation20]
        %509 = vst [vmem:[%s508] sm:$0xff] %v505
        %s510 = smov %s465
        %511 = vst [vmem:[%s510] sm:$0xff] %v500
        %s512 = smov %s466
        %513 = vst [vmem:[%s512] sm:$0xff] %v501
        %s514 = smov [#allocation21]
        %v515 = vld [vmem:[%s514] ss:$0 sm:$0xff]
        %v516 = vlaneseq
        %v517 = vand.u32 %v516, 127
        %v518 = vmov %v517
        %v519 = vlaneseq
        %v520 = vshrl.u32 %v519, 7
        %v521 = vmov %v520
        %vm523 = vcmp.eq.s32.totalorder %v521, %v518
        %v524 = vsel %vm523, %v515, 0.0
        %525 = vadd.xlane.f32.xlu0 %v524
        %v526 = vpop.xlane.xlu0 %525
        %s527 = smov [#allocation23]
        %528 = vst [vmem:[%s527] sm:$0xff] %v526
        %s529 = smov [#allocation22]
        %v530 = vld [vmem:[%s529] ss:$0 sm:$0xff]
        %v531 = vlaneseq
        %v532 = vand.u32 %v531, 127
        %v533 = vmov %v532
        %v534 = vlaneseq
        %v535 = vshrl.u32 %v534, 7
        %v536 = vmov %v535
        %vm538 = vcmp.eq.s32.totalorder %v536, %v533
        %v539 = vsel %vm538, %v530, 0.0
        %540 = vadd.xlane.f32.xlu0 %v539
        %v541 = vpop.xlane.xlu0 %540
        %s542 = smov [#allocation24]
        %543 = vst [vmem:[%s542] sm:$0xff] %v541
        %s544 = smov [#allocation23]
        %v545 = vld [vmem:[%s544] sm:$0xff]
        %s546 = smov [#allocation24]
        %v547 = vld [vmem:[%s546] sm:$0xff]
        %s548 = smov [#allocation12]
        %s549 = smov [#allocation13]
        %s550 = smov [#allocation14]
        %s551 = smov [#allocation15]
        %v552 = vld [vmem:[%s548] sm:$0xff]
        %v553 = vld [vmem:[%s549] sm:$0xff]
        %v554 = vld [vmem:[%s550] sm:$0xff]
        %v555 = vld [vmem:[%s551] sm:$0xff]
        %v556 = vmul.f32 %v545, %v552
        %v557 = vmul.f32 %v547, %v554
        %v558 = vsub.f32 %v556, %v557
        %v559 = vmul.f32 %v545, %v553
        %v560 = vmul.f32 %v547, %v555
        %v561 = vsub.f32 %v559, %v560
        %v562 = vmul.f32 %v547, %v552
        %v563 = vmul.f32 %v545, %v554
        %v564 = vadd.f32 %v562, %v563
        %v565 = vmul.f32 %v547, %v553
        %v566 = vmul.f32 %v545, %v555
        %v567 = vadd.f32 %v565, %v566
        %568 = vst [vmem:[%s548] sm:$0xff] %v558
        %569 = vst [vmem:[%s549] sm:$0xff] %v561
        %570 = vst [vmem:[%s550] sm:$0xff] %v564
        %571 = vst [vmem:[%s551] sm:$0xff] %v567
        %s572 = smov [#allocation21]
        %v573 = vld [vmem:[%s572] ss:$0 sm:$0xff]
        %s574 = smov [#allocation22]
        %v575 = vld [vmem:[%s574] ss:$0 sm:$0xff]
        %s576 = smov [#allocation12]
        %s577 = smov [#allocation13]
        %s578 = smov [#allocation14]
        %s579 = smov [#allocation15]
        %v580 = vld [vmem:[%s576] sm:$0xff]
        %v581 = vld [vmem:[%s577] sm:$0xff]
        %v582 = vld [vmem:[%s578] sm:$0xff]
        %v583 = vld [vmem:[%s579] sm:$0xff]
        %v584 = vmul.f32 %v573, %v580
        %v585 = vmul.f32 %v575, %v581
        %v586 = vsub.f32 %v584, %v585
        %v587 = vmul.f32 %v575, %v580
        %v588 = vmul.f32 %v573, %v581
        %v589 = vadd.f32 %v587, %v588
        %v590 = vmul.f32 %v573, %v582
        %v591 = vmul.f32 %v575, %v583
        %v592 = vsub.f32 %v590, %v591
        %v593 = vmul.f32 %v575, %v582
        %v594 = vmul.f32 %v573, %v583
        %v595 = vadd.f32 %v593, %v594
        %596 = vst [vmem:[%s576] sm:$0xff] %v586
        %597 = vst [vmem:[%s577] sm:$0xff] %v589
        %598 = vst [vmem:[%s578] sm:$0xff] %v592
        %599 = vst [vmem:[%s579] sm:$0xff] %v595
        %s600 = smov [#allocation12]
        %s601 = smov [#allocation19]
        %v602 = vlaneseq
        %v603 = vand.u32 %v602, 127
        %v604 = vmov %v603
        %v605 = vlaneseq
        %v606 = vshrl.u32 %v605, 7
        %v607 = vmov %v606
        %v608 = vld [vmem:[%s601] ss:$0 sm:$0xff]
        %v609 = vld [vmem:[%s600] sm:$0xff]
        %vm612 = vcmp.eq.s32.totalorder %v607, %v604
        %v613 = vsel %vm612, %v608, %v609
        %614 = vst [vmem:[%s600] sm:$0xff] %v613
        %s615 = smov [#allocation13]
        %v616 = vlaneseq
        %v617 = vand.u32 %v616, 127
        %v618 = vmov %v617
        %v619 = vlaneseq
        %v620 = vshrl.u32 %v619, 7
        %v621 = vmov %v620
        %v622 = vld [vmem:[%s615] sm:$0xff]
        %vm625 = vcmp.eq.s32.totalorder %v621, %v618
        %v626 = vsel %vm625, 0.0, %v622
        %627 = vst [vmem:[%s615] sm:$0xff] %v626
        %s628 = smov [#allocation14]
        %v629 = vlaneseq
        %v630 = vand.u32 %v629, 127
        %v631 = vmov %v630
        %v632 = vlaneseq
        %v633 = vshrl.u32 %v632, 7
        %v634 = vmov %v633
        %v635 = vld [vmem:[%s628] sm:$0xff]
        %vm638 = vcmp.eq.s32.totalorder %v634, %v631
        %v639 = vsel %vm638, 0.0, %v635
        %640 = vst [vmem:[%s628] sm:$0xff] %v639
        %s641 = smov [#allocation15]
        %s642 = smov [#allocation20]
        %v643 = vlaneseq
        %v644 = vand.u32 %v643, 127
        %v645 = vmov %v644
        %v646 = vlaneseq
        %v647 = vshrl.u32 %v646, 7
        %v648 = vmov %v647
        %v649 = vld [vmem:[%s642] ss:$0 sm:$0xff]
        %v650 = vld [vmem:[%s641] sm:$0xff]
        %vm653 = vcmp.eq.s32.totalorder %v648, %v645
        %v654 = vsel %vm653, %v649, %v650
        %655 = vst [vmem:[%s641] sm:$0xff] %v654
        %s656 = smov [#allocation12]
        %s657 = smov [#allocation13]
        %v658 = vld [vmem:[%s657] sm:$0xff]
        %659 = vrot.lane.b32.xlu0 %v658, 1
        %v660 = vpop.permute.xlu0 %659
        %v661 = vld [vmem:[%s656] sm:$0xff]
        %v662 = vld [vmem:[%s656] sm:$0xff]
        %663 = vrot.lane.b32.xlu0 %v662, 1
        %v664 = vpop.permute.xlu0 %663
        %v665 = vlaneseq
        %v666 = vand.u32 %v665, 127
        %vm667 = vcmp.eq.s32.totalorder %v666, 0
        %v668 = vsel %vm667, %v662, %v664
        %v669 = vlaneseq
        %v670 = vand.u32 %v669, 127
        %vm671 = vcmp.eq.s32.totalorder %v670, 1
        %v672 = vsel %vm671, %v660, %v668
        %v673 = vlaneseq
        %v674 = vand.u32 %v673, 127
        %vm675 = vcmp.ge.s32.totalorder %v674, 0
        %vm676 = vcmp.lt.s32.totalorder %v674, 8
        %vm677 = vmand %vm675, %vm676
        %v678 = vsel %vm677, %v672, 0.0
        %v679 = vld [vmem:[%s657] sm:$0xff]
        %680 = vrot.lane.b32.xlu0 %v679, 127
        %v681 = vpop.permute.xlu0 %680
        %v682 = vlaneseq
        %v683 = vand.u32 %v682, 127
        %vm684 = vcmp.eq.s32.totalorder %v683, 7
        %v685 = vsel %vm684, %v661, %v681
        %686 = vst [vmem:[%s656] sm:$0xff] %v678
        %687 = vst [vmem:[%s657] sm:$0xff] %v685
        %s688 = smov [#allocation14]
        %s689 = smov [#allocation15]
        %v690 = vld [vmem:[%s689] sm:$0xff]
        %691 = vrot.lane.b32.xlu0 %v690, 1
        %v692 = vpop.permute.xlu0 %691
        %v693 = vld [vmem:[%s688] sm:$0xff]
        %v694 = vld [vmem:[%s688] sm:$0xff]
        %695 = vrot.lane.b32.xlu0 %v694, 1
        %v696 = vpop.permute.xlu0 %695
        %v697 = vlaneseq
        %v698 = vand.u32 %v697, 127
        %vm699 = vcmp.eq.s32.totalorder %v698, 0
        %v700 = vsel %vm699, %v694, %v696
        %v701 = vlaneseq
        %v702 = vand.u32 %v701, 127
        %vm703 = vcmp.eq.s32.totalorder %v702, 1
        %v704 = vsel %vm703, %v692, %v700
        %v705 = vlaneseq
        %v706 = vand.u32 %v705, 127
        %vm707 = vcmp.ge.s32.totalorder %v706, 0
        %vm708 = vcmp.lt.s32.totalorder %v706, 8
        %vm709 = vmand %vm707, %vm708
        %v710 = vsel %vm709, %v704, 0.0
        %v711 = vld [vmem:[%s689] sm:$0xff]
        %712 = vrot.lane.b32.xlu0 %v711, 127
        %v713 = vpop.permute.xlu0 %712
        %v714 = vlaneseq
        %v715 = vand.u32 %v714, 127
        %vm716 = vcmp.eq.s32.totalorder %v715, 7
        %v717 = vsel %vm716, %v693, %v713
        %718 = vst [vmem:[%s688] sm:$0xff] %v710
        %719 = vst [vmem:[%s689] sm:$0xff] %v717
        %s720 = smov [#allocation12]
        %s721 = smov [#allocation14]
        %v722 = vld [vmem:[%s720] ss:$0 sm:$0xff]
        %s724 = scalar_lea.vmem %s720, 4294967295
        %v725 = vld [vmem:[%s724] sm:$0xfe]
        %v726 = vlaneseq
        %v727 = vshrl.u32 %v726, 7
        %vm728 = vcmp.eq.s32.totalorder %v727, 0
        %v729 = vsel %vm728, %v722, %v725
        %s730 = scalar_lea.vmem %s720, 7
        %v731 = vld [vmem:[%s730] ss:$0 sm:$0xff]
        %732 = vst [vmem:[%s720] sm:$0xff] %v729
        %v733 = vld [vmem:[%s721] ss:$0 sm:$0xff]
        %s734 = scalar_lea.vmem %s720, 1
        %735 = vst [vmem:[%s734] sm:$0x1] %v733
        %s736 = scalar_lea.vmem %s721, 1
        %v737 = vld [vmem:[%s736] sm:$0x7f]
        %v738 = vlaneseq
        %v739 = vshrl.u32 %v738, 7
        %vm740 = vcmp.eq.s32.totalorder %v739, 7
        %v741 = vsel %vm740, %v731, %v737
        %v742 = vld [vmem:[%s721] ss:$0 sm:$0xff]
        %743 = vst [vmem:[%s721] sm:$0xff] %v741
        %s744 = smov [#allocation13]
        %s745 = smov [#allocation15]
        %v746 = vld [vmem:[%s744] ss:$0 sm:$0xff]
        %s748 = scalar_lea.vmem %s744, 4294967295
        %v749 = vld [vmem:[%s748] sm:$0xfe]
        %v750 = vlaneseq
        %v751 = vshrl.u32 %v750, 7
        %vm752 = vcmp.eq.s32.totalorder %v751, 0
        %v753 = vsel %vm752, %v746, %v749
        %s754 = scalar_lea.vmem %s744, 7
        %v755 = vld [vmem:[%s754] ss:$0 sm:$0xff]
        %756 = vst [vmem:[%s744] sm:$0xff] %v753
        %v757 = vld [vmem:[%s745] ss:$0 sm:$0xff]
        %s758 = scalar_lea.vmem %s744, 1
        %759 = vst [vmem:[%s758] sm:$0x1] %v757
        %s760 = scalar_lea.vmem %s745, 1
        %v761 = vld [vmem:[%s760] sm:$0x7f]
        %v762 = vlaneseq
        %v763 = vshrl.u32 %v762, 7
        %vm764 = vcmp.eq.s32.totalorder %v763, 7
        %v765 = vsel %vm764, %v755, %v761
        %v766 = vld [vmem:[%s745] ss:$0 sm:$0xff]
        %767 = vst [vmem:[%s745] sm:$0xff] %v765
        %s768 = smov [#allocation23]
        %v769 = vld [vmem:[%s768] sm:$0xff]
        %s770 = smov [#allocation24]
        %v771 = vld [vmem:[%s770] sm:$0xff]
        %s772 = smov [#allocation8]
        %s773 = smov [#allocation9]
        %s774 = smov [#allocation10]
        %s775 = smov [#allocation11]
        %v776 = vld [vmem:[%s772] sm:$0xff]
        %v777 = vld [vmem:[%s773] sm:$0xff]
        %v778 = vld [vmem:[%s774] sm:$0xff]
        %v779 = vld [vmem:[%s775] sm:$0xff]
        %v780 = vmul.f32 %v769, %v776
        %v781 = vmul.f32 %v771, %v778
        %v782 = vsub.f32 %v780, %v781
        %v783 = vmul.f32 %v769, %v777
        %v784 = vmul.f32 %v771, %v779
        %v785 = vsub.f32 %v783, %v784
        %v786 = vmul.f32 %v771, %v776
        %v787 = vmul.f32 %v769, %v778
        %v788 = vadd.f32 %v786, %v787
        %v789 = vmul.f32 %v771, %v777
        %v790 = vmul.f32 %v769, %v779
        %v791 = vadd.f32 %v789, %v790
        %792 = vst [vmem:[%s772] sm:$0xff] %v782
        %793 = vst [vmem:[%s773] sm:$0xff] %v785
        %794 = vst [vmem:[%s774] sm:$0xff] %v788
        %795 = vst [vmem:[%s775] sm:$0xff] %v791
        %s796 = smov [#allocation8]
        %s797 = smov [#allocation10]
        %v798 = vld [vmem:[%s796] ss:$0 sm:$0xff]
        %s800 = scalar_lea.vmem %s796, 4294967295
        %v801 = vld [vmem:[%s800] sm:$0xfe]
        %v802 = vlaneseq
        %v803 = vshrl.u32 %v802, 7
        %vm804 = vcmp.eq.s32.totalorder %v803, 0
        %v805 = vsel %vm804, %v798, %v801
        %s806 = scalar_lea.vmem %s796, 7
        %v807 = vld [vmem:[%s806] ss:$0 sm:$0xff]
        %808 = vst [vmem:[%s796] sm:$0xff] %v805
        %v809 = vld [vmem:[%s797] ss:$0 sm:$0xff]
        %s810 = scalar_lea.vmem %s796, 1
        %811 = vst [vmem:[%s810] sm:$0x1] %v809
        %s812 = scalar_lea.vmem %s797, 1
        %v813 = vld [vmem:[%s812] sm:$0x7f]
        %v814 = vlaneseq
        %v815 = vshrl.u32 %v814, 7
        %vm816 = vcmp.eq.s32.totalorder %v815, 7
        %v817 = vsel %vm816, %v807, %v813
        %v818 = vld [vmem:[%s797] ss:$0 sm:$0xff]
        %819 = vst [vmem:[%s797] sm:$0xff] %v817
        %s820 = smov [#allocation9]
        %s821 = smov [#allocation11]
        %v822 = vld [vmem:[%s820] ss:$0 sm:$0xff]
        %s824 = scalar_lea.vmem %s820, 4294967295
        %v825 = vld [vmem:[%s824] sm:$0xfe]
        %v826 = vlaneseq
        %v827 = vshrl.u32 %v826, 7
        %vm828 = vcmp.eq.s32.totalorder %v827, 0
        %v829 = vsel %vm828, %v822, %v825
        %s830 = scalar_lea.vmem %s820, 7
        %v831 = vld [vmem:[%s830] ss:$0 sm:$0xff]
        %832 = vst [vmem:[%s820] sm:$0xff] %v829
        %v833 = vld [vmem:[%s821] ss:$0 sm:$0xff]
        %s834 = scalar_lea.vmem %s820, 1
        %835 = vst [vmem:[%s834] sm:$0x1] %v833
        %s836 = scalar_lea.vmem %s821, 1
        %v837 = vld [vmem:[%s836] sm:$0x7f]
        %v838 = vlaneseq
        %v839 = vshrl.u32 %v838, 7
        %vm840 = vcmp.eq.s32.totalorder %v839, 7
        %v841 = vsel %vm840, %v831, %v837
        %v842 = vld [vmem:[%s821] ss:$0 sm:$0xff]
        %843 = vst [vmem:[%s821] sm:$0xff] %v841
      $region101: #{custom-call.2} parent=93 // loop_footer
        %s404 = sadd.s32 1, %s400
      $region102: #{custom-call.2} parent=93 // loop_footer_branch
        %399 = sbr.rel target = $region98
      $region103: #{custom-call.2} parent=93 // loop_exit
        _
      %s844 = sadd.s32 %s302, 1
    $region94: #{custom-call.2} parent=1 // loop_footer
      _
    $region95: #{custom-call.2} parent=1 // loop_footer_branch
      %301 = sbr.rel target = $region91
    $region96: #{custom-call.2} parent=1 // loop_exit
      _
    %s847 = smov [#allocation12]
    %s848 = smov [#allocation4]
    %v849 = vlaneseq
    %v850 = vand.u32 %v849, 127
    %v851 = vmov %v850
    %v852 = vlaneseq
    %v853 = vshrl.u32 %v852, 7
    %v854 = vmov %v853
    %v855 = vld [vmem:[%s847] sm:$0xff]
    %vm858 = vcmp.eq.s32.totalorder %v854, %v851
    %v859 = vsel %vm858, %v855, 0.0
    %v860 = vrot.slane %v859, 4
    %v861 = vadd.f32 %v859, %v860
    %v862 = vrot.slane %v861, 2
    %v863 = vadd.f32 %v861, %v862
    %v864 = vrot.slane %v863, 1
    %v865 = vadd.f32 %v863, %v864
    %866 = vst [vmem:[%s848] sm:$0x1] %v865
    %s867 = smov [#allocation15]
    %s868 = smov [#allocation6]
    %v869 = vlaneseq
    %v870 = vand.u32 %v869, 127
    %v871 = vmov %v870
    %v872 = vlaneseq
    %v873 = vshrl.u32 %v872, 7
    %v874 = vmov %v873
    %v875 = vld [vmem:[%s867] sm:$0xff]
    %vm878 = vcmp.eq.s32.totalorder %v874, %v871
    %v879 = vsel %vm878, %v875, 0.0
    %v880 = vrot.slane %v879, 4
    %v881 = vadd.f32 %v879, %v880
    %v882 = vrot.slane %v881, 2
    %v883 = vadd.f32 %v881, %v882
    %v884 = vrot.slane %v883, 1
    %v885 = vadd.f32 %v883, %v884
    %886 = vst [vmem:[%s868] sm:$0x1] %v885
    %s888 = sshllo.u32 0, 1
    %v890 = vld [vmem:[#allocation4] sm:%s888]
    %s891 = sshllo.u32 0, 1
    %892 = vst [vmem:[#allocation5] sm:%s891] %v890
    %s894 = sshllo.u32 0, 1
    %v896 = vld [vmem:[#allocation6] sm:%s894]
    %s897 = sshllo.u32 0, 1
    %898 = vst [vmem:[#allocation7] sm:%s897] %v896
    // Predicated region
    $region104: #{custom-call.2} parent=1 // pred_check
      _
    $region105: #{custom-call.2} parent=1 // pred_check_branch
      %900 = sbr.rel (0) target = $region107
    $region106: #{custom-call.2} parent=1 // pred_region
      %p902 = scmp.gt.s32.totalorder 1, 0
      // Predicated region
      $region108: #{custom-call.2} parent=106 // pred_check
        %p903 = pneg %p902
      $region109: #{custom-call.2} parent=106 // pred_check_branch
        %905 = sbr.rel (%p903) target = $region111
      $region110: #{custom-call.2} parent=106 // pred_region
        %s906 = sshra.s32 1, 3
        %p907 = scmp.gt.s32.totalorder %s906, 0
        // Predicated region
        $region112: #{custom-call.2} parent=110 // pred_check
          %p908 = pneg %p907
        $region113: #{custom-call.2} parent=110 // pred_check_branch
          %910 = sbr.rel (%p908) target = $region115
        $region114: #{custom-call.2} parent=110 // pred_region
          %s911 = ssub.s32 %s906, 1
          %s912 = smul.u32 %s911, 128
          %s913 = sshra.s32 %s912, 4
          %s914 = scalar_lea.vmem [#allocation5], %s913
          %v915 = vld [vmem:[#allocation5] sm:$0xff]
          // While loop
          $region116: #{custom-call.2} parent=114 // loop_pre_header
            _
          $region117: #{custom-call.2} parent=114 // loop_header
            %s916 = sphi [#allocation5], %s938
            %s917 = sphi %s4, %s939
            %v918 = vphi %v915, %v940
            %s919 = ssub.s32 %s914, 64
            %p920 = scmp.gt.s32.totalorder %s916, %s919
          $region118: #{custom-call.2} parent=114 // loop_header_branch
            %922 = sbr.rel (%p920) target = $region122
          $region119: #{custom-call.2} parent=114 // loop_body
            %923 = vst [vmem:[%s917] sm:$0xff] %v918
            %v924 = vld [vmem:[%s916 + $0x8] sm:$0xff]
            %925 = vst [vmem:[%s917 + $0x8] sm:$0xff] %v924
            %v926 = vld [vmem:[%s916 + $0x10] sm:$0xff]
            %927 = vst [vmem:[%s917 + $0x10] sm:$0xff] %v926
            %v928 = vld [vmem:[%s916 + $0x18] sm:$0xff]
            %929 = vst [vmem:[%s917 + $0x18] sm:$0xff] %v928
            %v930 = vld [vmem:[%s916 + $0x20] sm:$0xff]
            %931 = vst [vmem:[%s917 + $0x20] sm:$0xff] %v930
            %v932 = vld [vmem:[%s916 + $0x28] sm:$0xff]
            %933 = vst [vmem:[%s917 + $0x28] sm:$0xff] %v932
            %v934 = vld [vmem:[%s916 + $0x30] sm:$0xff]
            %935 = vst [vmem:[%s917 + $0x30] sm:$0xff] %v934
            %v936 = vld [vmem:[%s916 + $0x38] sm:$0xff]
            %937 = vst [vmem:[%s917 + $0x38] sm:$0xff] %v936
          $region120: #{custom-call.2} parent=114 // loop_footer
            %s938 = scalar_lea.vmem %s916, 64
            %s939 = scalar_lea.vmem %s917, 64
            %v940 = vld [vmem:[%s916 + $0x40] sm:$0xff]
          $region121: #{custom-call.2} parent=114 // loop_footer_branch
            %941 = sbr.rel target = $region117
          $region122: #{custom-call.2} parent=114 // loop_exit
            _
          // While loop
          $region123: #{custom-call.2} parent=114 // loop_pre_header
            _
          $region124: #{custom-call.2} parent=114 // loop_header
            %s942 = sphi %s916, %s950
            %s943 = sphi %s917, %s951
            %v944 = vphi %v918, %v944
            %p945 = scmp.gt.s32.totalorder %s942, %s914
          $region125: #{custom-call.2} parent=114 // loop_header_branch
            %947 = sbr.rel (%p945) target = $region129
          $region126: #{custom-call.2} parent=114 // loop_body
            %v948 = vld [vmem:[%s942] sm:$0xff]
            %949 = vst [vmem:[%s943] sm:$0xff] %v948
          $region127: #{custom-call.2} parent=114 // loop_footer
            %s950 = scalar_lea.vmem %s942, 8
            %s951 = scalar_lea.vmem %s943, 8
          $region128: #{custom-call.2} parent=114 // loop_footer_branch
            %952 = sbr.rel target = $region124
          $region129: #{custom-call.2} parent=114 // loop_exit
            _
        $region115: #{custom-call.2} parent=110 // pred_fallthru
          _
        %s953 = sand.u32 1, 7
        %s954 = sshllo.u32 0, %s953
        %s955 = smul.u32 %s906, 128
        %s956 = sshra.s32 %s955, 4
        %s957 = scalar_lea.vmem %s4, %s956
        %s958 = smul.u32 %s906, 128
        %s959 = sshra.s32 %s958, 4
        %s960 = scalar_lea.vmem [#allocation5], %s959
        %v961 = vld [vmem:[%s960] sm:%s954]
        %962 = vst [vmem:[%s957] sm:%s954] %v961
      $region111: #{custom-call.2} parent=106 // pred_fallthru
        _
    $region107: #{custom-call.2} parent=1 // pred_fallthru
      _
    // Predicated region
    $region130: #{custom-call.2} parent=1 // pred_check
      _
    $region131: #{custom-call.2} parent=1 // pred_check_branch
      %964 = sbr.rel (0) target = $region133
    $region132: #{custom-call.2} parent=1 // pred_region
      %p966 = scmp.gt.s32.totalorder 1, 0
      // Predicated region
      $region134: #{custom-call.2} parent=132 // pred_check
        %p967 = pneg %p966
      $region135: #{custom-call.2} parent=132 // pred_check_branch
        %969 = sbr.rel (%p967) target = $region137
      $region136: #{custom-call.2} parent=132 // pred_region
        %s970 = sshra.s32 1, 3
        %p971 = scmp.gt.s32.totalorder %s970, 0
        // Predicated region
        $region138: #{custom-call.2} parent=136 // pred_check
          %p972 = pneg %p971
        $region139: #{custom-call.2} parent=136 // pred_check_branch
          %974 = sbr.rel (%p972) target = $region141
        $region140: #{custom-call.2} parent=136 // pred_region
          %s975 = ssub.s32 %s970, 1
          %s976 = smul.u32 %s975, 128
          %s977 = sshra.s32 %s976, 4
          %s978 = scalar_lea.vmem [#allocation7], %s977
          %v979 = vld [vmem:[#allocation7] sm:$0xff]
          // While loop
          $region142: #{custom-call.2} parent=140 // loop_pre_header
            _
          $region143: #{custom-call.2} parent=140 // loop_header
            %s980 = sphi [#allocation7], %s1002
            %s981 = sphi %s5, %s1003
            %v982 = vphi %v979, %v1004
            %s983 = ssub.s32 %s978, 64
            %p984 = scmp.gt.s32.totalorder %s980, %s983
          $region144: #{custom-call.2} parent=140 // loop_header_branch
            %986 = sbr.rel (%p984) target = $region148
          $region145: #{custom-call.2} parent=140 // loop_body
            %987 = vst [vmem:[%s981] sm:$0xff] %v982
            %v988 = vld [vmem:[%s980 + $0x8] sm:$0xff]
            %989 = vst [vmem:[%s981 + $0x8] sm:$0xff] %v988
            %v990 = vld [vmem:[%s980 + $0x10] sm:$0xff]
            %991 = vst [vmem:[%s981 + $0x10] sm:$0xff] %v990
            %v992 = vld [vmem:[%s980 + $0x18] sm:$0xff]
            %993 = vst [vmem:[%s981 + $0x18] sm:$0xff] %v992
            %v994 = vld [vmem:[%s980 + $0x20] sm:$0xff]
            %995 = vst [vmem:[%s981 + $0x20] sm:$0xff] %v994
            %v996 = vld [vmem:[%s980 + $0x28] sm:$0xff]
            %997 = vst [vmem:[%s981 + $0x28] sm:$0xff] %v996
            %v998 = vld [vmem:[%s980 + $0x30] sm:$0xff]
            %999 = vst [vmem:[%s981 + $0x30] sm:$0xff] %v998
            %v1000 = vld [vmem:[%s980 + $0x38] sm:$0xff]
            %1001 = vst [vmem:[%s981 + $0x38] sm:$0xff] %v1000
          $region146: #{custom-call.2} parent=140 // loop_footer
            %s1002 = scalar_lea.vmem %s980, 64
            %s1003 = scalar_lea.vmem %s981, 64
            %v1004 = vld [vmem:[%s980 + $0x40] sm:$0xff]
          $region147: #{custom-call.2} parent=140 // loop_footer_branch
            %1005 = sbr.rel target = $region143
          $region148: #{custom-call.2} parent=140 // loop_exit
            _
          // While loop
          $region149: #{custom-call.2} parent=140 // loop_pre_header
            _
          $region150: #{custom-call.2} parent=140 // loop_header
            %s1006 = sphi %s980, %s1014
            %s1007 = sphi %s981, %s1015
            %v1008 = vphi %v982, %v1008
            %p1009 = scmp.gt.s32.totalorder %s1006, %s978
          $region151: #{custom-call.2} parent=140 // loop_header_branch
            %1011 = sbr.rel (%p1009) target = $region155
          $region152: #{custom-call.2} parent=140 // loop_body
            %v1012 = vld [vmem:[%s1006] sm:$0xff]
            %1013 = vst [vmem:[%s1007] sm:$0xff] %v1012
          $region153: #{custom-call.2} parent=140 // loop_footer
            %s1014 = scalar_lea.vmem %s1006, 8
            %s1015 = scalar_lea.vmem %s1007, 8
          $region154: #{custom-call.2} parent=140 // loop_footer_branch
            %1016 = sbr.rel target = $region150
          $region155: #{custom-call.2} parent=140 // loop_exit
            _
        $region141: #{custom-call.2} parent=136 // pred_fallthru
          _
        %s1017 = sand.u32 1, 7
        %s1018 = sshllo.u32 0, %s1017
        %s1019 = smul.u32 %s970, 128
        %s1020 = sshra.s32 %s1019, 4
        %s1021 = scalar_lea.vmem %s5, %s1020
        %s1022 = smul.u32 %s970, 128
        %s1023 = sshra.s32 %s1022, 4
        %s1024 = scalar_lea.vmem [#allocation7], %s1023
        %v1025 = vld [vmem:[%s1024] sm:%s1018]
        %1026 = vst [vmem:[%s1021] sm:%s1018] %v1025
      $region137: #{custom-call.2} parent=132 // pred_fallthru
        _
    $region133: #{custom-call.2} parent=1 // pred_fallthru
      _
    %p1028 = scmp.gt.s32.totalorder 8, 0
    // Predicated region
    $region156: #{custom-call.2} parent=1 // pred_check
      %p1029 = pneg %p1028
    $region157: #{custom-call.2} parent=1 // pred_check_branch
      %1031 = sbr.rel (%p1029) target = $region159
    $region158: #{custom-call.2} parent=1 // pred_region
      %s1032 = sshra.s32 8, 3
      %p1033 = scmp.gt.s32.totalorder %s1032, 0
      // Predicated region
      $region160: #{custom-call.2} parent=158 // pred_check
        %p1034 = pneg %p1033
      $region161: #{custom-call.2} parent=158 // pred_check_branch
        %1036 = sbr.rel (%p1034) target = $region163
      $region162: #{custom-call.2} parent=158 // pred_region
        %s1037 = ssub.s32 %s1032, 1
        %s1038 = smul.u32 %s1037, 128
        %s1039 = sshra.s32 %s1038, 4
        %s1040 = scalar_lea.vmem [#allocation8], %s1039
        %v1041 = vld [vmem:[#allocation8] sm:$0xff]
        // While loop
        $region164: #{custom-call.2} parent=162 // loop_pre_header
          _
        $region165: #{custom-call.2} parent=162 // loop_header
          %s1042 = sphi [#allocation8], %s1064
          %s1043 = sphi %s6, %s1065
          %v1044 = vphi %v1041, %v1066
          %s1045 = ssub.s32 %s1040, 64
          %p1046 = scmp.gt.s32.totalorder %s1042, %s1045
        $region166: #{custom-call.2} parent=162 // loop_header_branch
          %1048 = sbr.rel (%p1046) target = $region170
        $region167: #{custom-call.2} parent=162 // loop_body
          %1049 = vst [vmem:[%s1043] sm:$0xff] %v1044
          %v1050 = vld [vmem:[%s1042 + $0x8] sm:$0xff]
          %1051 = vst [vmem:[%s1043 + $0x8] sm:$0xff] %v1050
          %v1052 = vld [vmem:[%s1042 + $0x10] sm:$0xff]
          %1053 = vst [vmem:[%s1043 + $0x10] sm:$0xff] %v1052
          %v1054 = vld [vmem:[%s1042 + $0x18] sm:$0xff]
          %1055 = vst [vmem:[%s1043 + $0x18] sm:$0xff] %v1054
          %v1056 = vld [vmem:[%s1042 + $0x20] sm:$0xff]
          %1057 = vst [vmem:[%s1043 + $0x20] sm:$0xff] %v1056
          %v1058 = vld [vmem:[%s1042 + $0x28] sm:$0xff]
          %1059 = vst [vmem:[%s1043 + $0x28] sm:$0xff] %v1058
          %v1060 = vld [vmem:[%s1042 + $0x30] sm:$0xff]
          %1061 = vst [vmem:[%s1043 + $0x30] sm:$0xff] %v1060
          %v1062 = vld [vmem:[%s1042 + $0x38] sm:$0xff]
          %1063 = vst [vmem:[%s1043 + $0x38] sm:$0xff] %v1062
        $region168: #{custom-call.2} parent=162 // loop_footer
          %s1064 = scalar_lea.vmem %s1042, 64
          %s1065 = scalar_lea.vmem %s1043, 64
          %v1066 = vld [vmem:[%s1042 + $0x40] sm:$0xff]
        $region169: #{custom-call.2} parent=162 // loop_footer_branch
          %1067 = sbr.rel target = $region165
        $region170: #{custom-call.2} parent=162 // loop_exit
          _
        // While loop
        $region171: #{custom-call.2} parent=162 // loop_pre_header
          _
        $region172: #{custom-call.2} parent=162 // loop_header
          %s1068 = sphi %s1042, %s1076
          %s1069 = sphi %s1043, %s1077
          %v1070 = vphi %v1044, %v1070
          %p1071 = scmp.gt.s32.totalorder %s1068, %s1040
        $region173: #{custom-call.2} parent=162 // loop_header_branch
          %1073 = sbr.rel (%p1071) target = $region177
        $region174: #{custom-call.2} parent=162 // loop_body
          %v1074 = vld [vmem:[%s1068] sm:$0xff]
          %1075 = vst [vmem:[%s1069] sm:$0xff] %v1074
        $region175: #{custom-call.2} parent=162 // loop_footer
          %s1076 = scalar_lea.vmem %s1068, 8
          %s1077 = scalar_lea.vmem %s1069, 8
        $region176: #{custom-call.2} parent=162 // loop_footer_branch
          %1078 = sbr.rel target = $region172
        $region177: #{custom-call.2} parent=162 // loop_exit
          _
      $region163: #{custom-call.2} parent=158 // pred_fallthru
        _
      %s1079 = sand.u32 8, 7
      %s1080 = sshllo.u32 0, %s1079
      %s1081 = smul.u32 %s1032, 128
      %s1082 = sshra.s32 %s1081, 4
      %s1083 = scalar_lea.vmem %s6, %s1082
      %s1084 = smul.u32 %s1032, 128
      %s1085 = sshra.s32 %s1084, 4
      %s1086 = scalar_lea.vmem [#allocation8], %s1085
      %v1087 = vld [vmem:[%s1086] sm:%s1080]
      %1088 = vst [vmem:[%s1083] sm:%s1080] %v1087
    $region159: #{custom-call.2} parent=1 // pred_fallthru
      _
    %p1090 = scmp.gt.s32.totalorder 8, 0
    // Predicated region
    $region178: #{custom-call.2} parent=1 // pred_check
      %p1091 = pneg %p1090
    $region179: #{custom-call.2} parent=1 // pred_check_branch
      %1093 = sbr.rel (%p1091) target = $region181
    $region180: #{custom-call.2} parent=1 // pred_region
      %s1094 = sshra.s32 8, 3
      %p1095 = scmp.gt.s32.totalorder %s1094, 0
      // Predicated region
      $region182: #{custom-call.2} parent=180 // pred_check
        %p1096 = pneg %p1095
      $region183: #{custom-call.2} parent=180 // pred_check_branch
        %1098 = sbr.rel (%p1096) target = $region185
      $region184: #{custom-call.2} parent=180 // pred_region
        %s1099 = ssub.s32 %s1094, 1
        %s1100 = smul.u32 %s1099, 128
        %s1101 = sshra.s32 %s1100, 4
        %s1102 = scalar_lea.vmem [#allocation9], %s1101
        %v1103 = vld [vmem:[#allocation9] sm:$0xff]
        // While loop
        $region186: #{custom-call.2} parent=184 // loop_pre_header
          _
        $region187: #{custom-call.2} parent=184 // loop_header
          %s1104 = sphi [#allocation9], %s1126
          %s1105 = sphi %s7, %s1127
          %v1106 = vphi %v1103, %v1128
          %s1107 = ssub.s32 %s1102, 64
          %p1108 = scmp.gt.s32.totalorder %s1104, %s1107
        $region188: #{custom-call.2} parent=184 // loop_header_branch
          %1110 = sbr.rel (%p1108) target = $region192
        $region189: #{custom-call.2} parent=184 // loop_body
          %1111 = vst [vmem:[%s1105] sm:$0xff] %v1106
          %v1112 = vld [vmem:[%s1104 + $0x8] sm:$0xff]
          %1113 = vst [vmem:[%s1105 + $0x8] sm:$0xff] %v1112
          %v1114 = vld [vmem:[%s1104 + $0x10] sm:$0xff]
          %1115 = vst [vmem:[%s1105 + $0x10] sm:$0xff] %v1114
          %v1116 = vld [vmem:[%s1104 + $0x18] sm:$0xff]
          %1117 = vst [vmem:[%s1105 + $0x18] sm:$0xff] %v1116
          %v1118 = vld [vmem:[%s1104 + $0x20] sm:$0xff]
          %1119 = vst [vmem:[%s1105 + $0x20] sm:$0xff] %v1118
          %v1120 = vld [vmem:[%s1104 + $0x28] sm:$0xff]
          %1121 = vst [vmem:[%s1105 + $0x28] sm:$0xff] %v1120
          %v1122 = vld [vmem:[%s1104 + $0x30] sm:$0xff]
          %1123 = vst [vmem:[%s1105 + $0x30] sm:$0xff] %v1122
          %v1124 = vld [vmem:[%s1104 + $0x38] sm:$0xff]
          %1125 = vst [vmem:[%s1105 + $0x38] sm:$0xff] %v1124
        $region190: #{custom-call.2} parent=184 // loop_footer
          %s1126 = scalar_lea.vmem %s1104, 64
          %s1127 = scalar_lea.vmem %s1105, 64
          %v1128 = vld [vmem:[%s1104 + $0x40] sm:$0xff]
        $region191: #{custom-call.2} parent=184 // loop_footer_branch
          %1129 = sbr.rel target = $region187
        $region192: #{custom-call.2} parent=184 // loop_exit
          _
        // While loop
        $region193: #{custom-call.2} parent=184 // loop_pre_header
          _
        $region194: #{custom-call.2} parent=184 // loop_header
          %s1130 = sphi %s1104, %s1138
          %s1131 = sphi %s1105, %s1139
          %v1132 = vphi %v1106, %v1132
          %p1133 = scmp.gt.s32.totalorder %s1130, %s1102
        $region195: #{custom-call.2} parent=184 // loop_header_branch
          %1135 = sbr.rel (%p1133) target = $region199
        $region196: #{custom-call.2} parent=184 // loop_body
          %v1136 = vld [vmem:[%s1130] sm:$0xff]
          %1137 = vst [vmem:[%s1131] sm:$0xff] %v1136
        $region197: #{custom-call.2} parent=184 // loop_footer
          %s1138 = scalar_lea.vmem %s1130, 8
          %s1139 = scalar_lea.vmem %s1131, 8
        $region198: #{custom-call.2} parent=184 // loop_footer_branch
          %1140 = sbr.rel target = $region194
        $region199: #{custom-call.2} parent=184 // loop_exit
          _
      $region185: #{custom-call.2} parent=180 // pred_fallthru
        _
      %s1141 = sand.u32 8, 7
      %s1142 = sshllo.u32 0, %s1141
      %s1143 = smul.u32 %s1094, 128
      %s1144 = sshra.s32 %s1143, 4
      %s1145 = scalar_lea.vmem %s7, %s1144
      %s1146 = smul.u32 %s1094, 128
      %s1147 = sshra.s32 %s1146, 4
      %s1148 = scalar_lea.vmem [#allocation9], %s1147
      %v1149 = vld [vmem:[%s1148] sm:%s1142]
      %1150 = vst [vmem:[%s1145] sm:%s1142] %v1149
    $region181: #{custom-call.2} parent=1 // pred_fallthru
      _
    %p1152 = scmp.gt.s32.totalorder 8, 0
    // Predicated region
    $region200: #{custom-call.2} parent=1 // pred_check
      %p1153 = pneg %p1152
    $region201: #{custom-call.2} parent=1 // pred_check_branch
      %1155 = sbr.rel (%p1153) target = $region203
    $region202: #{custom-call.2} parent=1 // pred_region
      %s1156 = sshra.s32 8, 3
      %p1157 = scmp.gt.s32.totalorder %s1156, 0
      // Predicated region
      $region204: #{custom-call.2} parent=202 // pred_check
        %p1158 = pneg %p1157
      $region205: #{custom-call.2} parent=202 // pred_check_branch
        %1160 = sbr.rel (%p1158) target = $region207
      $region206: #{custom-call.2} parent=202 // pred_region
        %s1161 = ssub.s32 %s1156, 1
        %s1162 = smul.u32 %s1161, 128
        %s1163 = sshra.s32 %s1162, 4
        %s1164 = scalar_lea.vmem [#allocation10], %s1163
        %v1165 = vld [vmem:[#allocation10] sm:$0xff]
        // While loop
        $region208: #{custom-call.2} parent=206 // loop_pre_header
          _
        $region209: #{custom-call.2} parent=206 // loop_header
          %s1166 = sphi [#allocation10], %s1188
          %s1167 = sphi %s8, %s1189
          %v1168 = vphi %v1165, %v1190
          %s1169 = ssub.s32 %s1164, 64
          %p1170 = scmp.gt.s32.totalorder %s1166, %s1169
        $region210: #{custom-call.2} parent=206 // loop_header_branch
          %1172 = sbr.rel (%p1170) target = $region214
        $region211: #{custom-call.2} parent=206 // loop_body
          %1173 = vst [vmem:[%s1167] sm:$0xff] %v1168
          %v1174 = vld [vmem:[%s1166 + $0x8] sm:$0xff]
          %1175 = vst [vmem:[%s1167 + $0x8] sm:$0xff] %v1174
          %v1176 = vld [vmem:[%s1166 + $0x10] sm:$0xff]
          %1177 = vst [vmem:[%s1167 + $0x10] sm:$0xff] %v1176
          %v1178 = vld [vmem:[%s1166 + $0x18] sm:$0xff]
          %1179 = vst [vmem:[%s1167 + $0x18] sm:$0xff] %v1178
          %v1180 = vld [vmem:[%s1166 + $0x20] sm:$0xff]
          %1181 = vst [vmem:[%s1167 + $0x20] sm:$0xff] %v1180
          %v1182 = vld [vmem:[%s1166 + $0x28] sm:$0xff]
          %1183 = vst [vmem:[%s1167 + $0x28] sm:$0xff] %v1182
          %v1184 = vld [vmem:[%s1166 + $0x30] sm:$0xff]
          %1185 = vst [vmem:[%s1167 + $0x30] sm:$0xff] %v1184
          %v1186 = vld [vmem:[%s1166 + $0x38] sm:$0xff]
          %1187 = vst [vmem:[%s1167 + $0x38] sm:$0xff] %v1186
        $region212: #{custom-call.2} parent=206 // loop_footer
          %s1188 = scalar_lea.vmem %s1166, 64
          %s1189 = scalar_lea.vmem %s1167, 64
          %v1190 = vld [vmem:[%s1166 + $0x40] sm:$0xff]
        $region213: #{custom-call.2} parent=206 // loop_footer_branch
          %1191 = sbr.rel target = $region209
        $region214: #{custom-call.2} parent=206 // loop_exit
          _
        // While loop
        $region215: #{custom-call.2} parent=206 // loop_pre_header
          _
        $region216: #{custom-call.2} parent=206 // loop_header
          %s1192 = sphi %s1166, %s1200
          %s1193 = sphi %s1167, %s1201
          %v1194 = vphi %v1168, %v1194
          %p1195 = scmp.gt.s32.totalorder %s1192, %s1164
        $region217: #{custom-call.2} parent=206 // loop_header_branch
          %1197 = sbr.rel (%p1195) target = $region221
        $region218: #{custom-call.2} parent=206 // loop_body
          %v1198 = vld [vmem:[%s1192] sm:$0xff]
          %1199 = vst [vmem:[%s1193] sm:$0xff] %v1198
        $region219: #{custom-call.2} parent=206 // loop_footer
          %s1200 = scalar_lea.vmem %s1192, 8
          %s1201 = scalar_lea.vmem %s1193, 8
        $region220: #{custom-call.2} parent=206 // loop_footer_branch
          %1202 = sbr.rel target = $region216
        $region221: #{custom-call.2} parent=206 // loop_exit
          _
      $region207: #{custom-call.2} parent=202 // pred_fallthru
        _
      %s1203 = sand.u32 8, 7
      %s1204 = sshllo.u32 0, %s1203
      %s1205 = smul.u32 %s1156, 128
      %s1206 = sshra.s32 %s1205, 4
      %s1207 = scalar_lea.vmem %s8, %s1206
      %s1208 = smul.u32 %s1156, 128
      %s1209 = sshra.s32 %s1208, 4
      %s1210 = scalar_lea.vmem [#allocation10], %s1209
      %v1211 = vld [vmem:[%s1210] sm:%s1204]
      %1212 = vst [vmem:[%s1207] sm:%s1204] %v1211
    $region203: #{custom-call.2} parent=1 // pred_fallthru
      _
    %p1214 = scmp.gt.s32.totalorder 8, 0
    // Predicated region
    $region222: #{custom-call.2} parent=1 // pred_check
      %p1215 = pneg %p1214
    $region223: #{custom-call.2} parent=1 // pred_check_branch
      %1217 = sbr.rel (%p1215) target = $region225
    $region224: #{custom-call.2} parent=1 // pred_region
      %s1218 = sshra.s32 8, 3
      %p1219 = scmp.gt.s32.totalorder %s1218, 0
      // Predicated region
      $region226: #{custom-call.2} parent=224 // pred_check
        %p1220 = pneg %p1219
      $region227: #{custom-call.2} parent=224 // pred_check_branch
        %1222 = sbr.rel (%p1220) target = $region229
      $region228: #{custom-call.2} parent=224 // pred_region
        %s1223 = ssub.s32 %s1218, 1
        %s1224 = smul.u32 %s1223, 128
        %s1225 = sshra.s32 %s1224, 4
        %s1226 = scalar_lea.vmem [#allocation11], %s1225
        %v1227 = vld [vmem:[#allocation11] sm:$0xff]
        // While loop
        $region230: #{custom-call.2} parent=228 // loop_pre_header
          _
        $region231: #{custom-call.2} parent=228 // loop_header
          %s1228 = sphi [#allocation11], %s1250
          %s1229 = sphi %s9, %s1251
          %v1230 = vphi %v1227, %v1252
          %s1231 = ssub.s32 %s1226, 64
          %p1232 = scmp.gt.s32.totalorder %s1228, %s1231
        $region232: #{custom-call.2} parent=228 // loop_header_branch
          %1234 = sbr.rel (%p1232) target = $region236
        $region233: #{custom-call.2} parent=228 // loop_body
          %1235 = vst [vmem:[%s1229] sm:$0xff] %v1230
          %v1236 = vld [vmem:[%s1228 + $0x8] sm:$0xff]
          %1237 = vst [vmem:[%s1229 + $0x8] sm:$0xff] %v1236
          %v1238 = vld [vmem:[%s1228 + $0x10] sm:$0xff]
          %1239 = vst [vmem:[%s1229 + $0x10] sm:$0xff] %v1238
          %v1240 = vld [vmem:[%s1228 + $0x18] sm:$0xff]
          %1241 = vst [vmem:[%s1229 + $0x18] sm:$0xff] %v1240
          %v1242 = vld [vmem:[%s1228 + $0x20] sm:$0xff]
          %1243 = vst [vmem:[%s1229 + $0x20] sm:$0xff] %v1242
          %v1244 = vld [vmem:[%s1228 + $0x28] sm:$0xff]
          %1245 = vst [vmem:[%s1229 + $0x28] sm:$0xff] %v1244
          %v1246 = vld [vmem:[%s1228 + $0x30] sm:$0xff]
          %1247 = vst [vmem:[%s1229 + $0x30] sm:$0xff] %v1246
          %v1248 = vld [vmem:[%s1228 + $0x38] sm:$0xff]
          %1249 = vst [vmem:[%s1229 + $0x38] sm:$0xff] %v1248
        $region234: #{custom-call.2} parent=228 // loop_footer
          %s1250 = scalar_lea.vmem %s1228, 64
          %s1251 = scalar_lea.vmem %s1229, 64
          %v1252 = vld [vmem:[%s1228 + $0x40] sm:$0xff]
        $region235: #{custom-call.2} parent=228 // loop_footer_branch
          %1253 = sbr.rel target = $region231
        $region236: #{custom-call.2} parent=228 // loop_exit
          _
        // While loop
        $region237: #{custom-call.2} parent=228 // loop_pre_header
          _
        $region238: #{custom-call.2} parent=228 // loop_header
          %s1254 = sphi %s1228, %s1262
          %s1255 = sphi %s1229, %s1263
          %v1256 = vphi %v1230, %v1256
          %p1257 = scmp.gt.s32.totalorder %s1254, %s1226
        $region239: #{custom-call.2} parent=228 // loop_header_branch
          %1259 = sbr.rel (%p1257) target = $region243
        $region240: #{custom-call.2} parent=228 // loop_body
          %v1260 = vld [vmem:[%s1254] sm:$0xff]
          %1261 = vst [vmem:[%s1255] sm:$0xff] %v1260
        $region241: #{custom-call.2} parent=228 // loop_footer
          %s1262 = scalar_lea.vmem %s1254, 8
          %s1263 = scalar_lea.vmem %s1255, 8
        $region242: #{custom-call.2} parent=228 // loop_footer_branch
          %1264 = sbr.rel target = $region238
        $region243: #{custom-call.2} parent=228 // loop_exit
          _
      $region229: #{custom-call.2} parent=224 // pred_fallthru
        _
      %s1265 = sand.u32 8, 7
      %s1266 = sshllo.u32 0, %s1265
      %s1267 = smul.u32 %s1218, 128
      %s1268 = sshra.s32 %s1267, 4
      %s1269 = scalar_lea.vmem %s9, %s1268
      %s1270 = smul.u32 %s1218, 128
      %s1271 = sshra.s32 %s1270, 4
      %s1272 = scalar_lea.vmem [#allocation11], %s1271
      %v1273 = vld [vmem:[%s1272] sm:%s1266]
      %1274 = vst [vmem:[%s1269] sm:%s1266] %v1273
    $region225: #{custom-call.2} parent=1 // pred_fallthru
      _
    // Predicated region
    $region244: #{custom-call.2} parent=1 // pred_check
      _
    $region245: #{custom-call.2} parent=1 // pred_check_branch
      %1276 = sbr.rel (0) target = $region247
    $region246: #{custom-call.2} parent=1 // pred_region
      _
    $region247: #{custom-call.2} parent=1 // pred_fallthru
      _
    // Predicated region
    $region248: #{custom-call.2} parent=1 // pred_check
      _
    $region249: #{custom-call.2} parent=1 // pred_check_branch
      %1278 = sbr.rel (0) target = $region251
    $region250: #{custom-call.2} parent=1 // pred_region
      _
    $region251: #{custom-call.2} parent=1 // pred_fallthru
      _

// kernel: iwas_agsrnet_forward.3
$region0: #{iwas_agsrnet_forward.3}
  #allocation0 [shape = 'u32[]', space=smem, size = 0x4, offset = 0x4, fixed_abs, tag = 'smem constant byte address 0x4 - core index']
  #allocation1 [shape = 'u32[144,128]{1,0:T(1,128)}', space=vmem, size = 0x12000, scoped, tag = 'internal scratch']
  %s0 = inlined_call_operand.vmem [shape: f32[32,32], index: 0, kind: input, shape index: {}]
  %s1 = inlined_call_operand.vmem [shape: f32[16,16], index: 1, kind: input, shape index: {}]
  %s2 = inlined_call_operand.vmem [shape: f32[16,32], index: 2, kind: input, shape index: {}]
  %s3 = inlined_call_operand.vmem [shape: f32[32,16], index: 3, kind: input, shape index: {}]
  %s4 = inlined_call_operand.vmem [shape: f32[16,32], index: 4, kind: input, shape index: {}]
  %s5 = inlined_call_operand.vmem [shape: f32[32,32], index: 5, kind: input, shape index: {}]
  %s6 = inlined_call_operand.vmem [shape: f32[1,32], index: 6, kind: input, shape index: {}]
  %s7 = inlined_call_operand.vmem [shape: f32[32,32], index: 7, kind: input, shape index: {}]
  %s8 = inlined_call_operand.vmem [shape: f32[1,32], index: 8, kind: input, shape index: {}]
  %s9 = inlined_call_operand.hbm [shape: f32[32,32], index: 9, kind: output, shape index: {}]
  %s10 = sld [smem:[#allocation0]]
  $region46: #{iwas_agsrnet_forward.3} parent=0
    _
  %s12 = ssub.s32 1, %s10
  %s13 = scalar_select 0, %s12, %s10
  $region1: #{iwas_agsrnet_forward.3} parent=0
    #allocation2 [shape = 'u8[16384]{0}', space=vmem, size = 0x4000, scoped, tag = 'output window, operand 0, single buffered']
    #allocation3 [shape = 's32[1]{0}', space=sflag, size = 0x4, scoped, tag = 'scoped memory for iwas_agsrnet_forward.3']
    %14 = vsyncpa [#allocation3], 0
    // Predicated region
    $region2: #{iwas_agsrnet_forward.3} parent=1 // pred_check
      _
    $region3: #{iwas_agsrnet_forward.3} parent=1 // pred_check_branch
      %16 = sbr.rel (0) target = $region5
    $region4: #{iwas_agsrnet_forward.3} parent=1 // pred_region
      _
    $region5: #{iwas_agsrnet_forward.3} parent=1 // pred_fallthru
      _
    // Predicated region
    $region6: #{iwas_agsrnet_forward.3} parent=1 // pred_check
      _
    $region7: #{iwas_agsrnet_forward.3} parent=1 // pred_check_branch
      %18 = sbr.rel (0) target = $region9
    $region8: #{iwas_agsrnet_forward.3} parent=1 // pred_region
      _
    $region9: #{iwas_agsrnet_forward.3} parent=1 // pred_fallthru
      _
    // Predicated region
    $region10: #{iwas_agsrnet_forward.3} parent=1 // pred_check
      _
    $region11: #{iwas_agsrnet_forward.3} parent=1 // pred_check_branch
      %20 = sbr.rel (0) target = $region13
    $region12: #{iwas_agsrnet_forward.3} parent=1 // pred_region
      _
    $region13: #{iwas_agsrnet_forward.3} parent=1 // pred_fallthru
      _
    // Predicated region
    $region14: #{iwas_agsrnet_forward.3} parent=1 // pred_check
      _
    $region15: #{iwas_agsrnet_forward.3} parent=1 // pred_check_branch
      %22 = sbr.rel (0) target = $region17
    $region16: #{iwas_agsrnet_forward.3} parent=1 // pred_region
      _
    $region17: #{iwas_agsrnet_forward.3} parent=1 // pred_fallthru
      _
    // Predicated region
    $region18: #{iwas_agsrnet_forward.3} parent=1 // pred_check
      _
    $region19: #{iwas_agsrnet_forward.3} parent=1 // pred_check_branch
      %24 = sbr.rel (0) target = $region21
    $region20: #{iwas_agsrnet_forward.3} parent=1 // pred_region
      _
    $region21: #{iwas_agsrnet_forward.3} parent=1 // pred_fallthru
      _
    // Predicated region
    $region22: #{iwas_agsrnet_forward.3} parent=1 // pred_check
      _
    $region23: #{iwas_agsrnet_forward.3} parent=1 // pred_check_branch
      %26 = sbr.rel (0) target = $region25
    $region24: #{iwas_agsrnet_forward.3} parent=1 // pred_region
      _
    $region25: #{iwas_agsrnet_forward.3} parent=1 // pred_fallthru
      _
    // Predicated region
    $region26: #{iwas_agsrnet_forward.3} parent=1 // pred_check
      _
    $region27: #{iwas_agsrnet_forward.3} parent=1 // pred_check_branch
      %28 = sbr.rel (0) target = $region29
    $region28: #{iwas_agsrnet_forward.3} parent=1 // pred_region
      _
    $region29: #{iwas_agsrnet_forward.3} parent=1 // pred_fallthru
      _
    // Predicated region
    $region30: #{iwas_agsrnet_forward.3} parent=1 // pred_check
      _
    $region31: #{iwas_agsrnet_forward.3} parent=1 // pred_check_branch
      %30 = sbr.rel (0) target = $region33
    $region32: #{iwas_agsrnet_forward.3} parent=1 // pred_region
      _
    $region33: #{iwas_agsrnet_forward.3} parent=1 // pred_fallthru
      _
    // Predicated region
    $region34: #{iwas_agsrnet_forward.3} parent=1 // pred_check
      _
    $region35: #{iwas_agsrnet_forward.3} parent=1 // pred_check_branch
      %32 = sbr.rel (0) target = $region37
    $region36: #{iwas_agsrnet_forward.3} parent=1 // pred_region
      _
    $region37: #{iwas_agsrnet_forward.3} parent=1 // pred_fallthru
      _
    %v33 = vlaneseq
    %v34 = vshrl.u32 %v33, 7
    %v35 = vadd.s32 %v34, 8
    %v36 = vadd.s32 %v34, 16
    %v37 = vadd.s32 %v34, 24
    %v38 = vlaneseq
    %v39 = vand.u32 %v38, 127
    %vm40 = vcmp.eq.s32.totalorder %v34, %v39
    %vm41 = vcmp.eq.s32.totalorder %v35, %v39
    %vm42 = vcmp.eq.s32.totalorder %v36, %v39
    %vm43 = vcmp.eq.s32.totalorder %v37, %v39
    %v44 = vsel %vm40, 1.0, 0.0
    %v45 = vsel %vm41, 1.0, 0.0
    %v46 = vsel %vm42, 1.0, 0.0
    %v47 = vsel %vm43, 1.0, 0.0
    %v48 = vadd.s32 %v39, 16
    %vm49 = vcmp.eq.s32.totalorder %v34, %v48
    %vm50 = vcmp.eq.s32.totalorder %v35, %v48
    %vm51 = vcmp.eq.s32.totalorder %v36, %v48
    %vm52 = vcmp.eq.s32.totalorder %v37, %v48
    %vm53 = vmor %vm40, %vm49
    %vm54 = vmor %vm41, %vm50
    %vm55 = vmor %vm42, %vm51
    %vm56 = vmor %vm43, %vm52
    %v57 = vsel %vm53, 1.0, 0.0
    %v58 = vsel %vm54, 1.0, 0.0
    %v59 = vsel %vm55, 1.0, 0.0
    %v60 = vsel %vm56, 1.0, 0.0
    %v61 = vld [vmem:[%s0] sm:$0xff]
    %v62 = vld [vmem:[%s0 + $0x8] sm:$0xff]
    %v63 = vld [vmem:[%s0 + $0x10] sm:$0xff]
    %v64 = vld [vmem:[%s0 + $0x18] sm:$0xff]
    %vm65 = vcmask 261120
    %v67 = vsel %vm65, %v61, 0
    %v70 = vsel %vm65, %v62, 0
    %v73 = vsel %vm65, %v63, 0
    %v76 = vsel %vm65, %v64, 0
    %78 = vmatprep.subr.mxu0 0.0
    %79 = vmatpush1.msra.mxu0 %v57
    %80 = vmatprep.subr.mxu0 0.0
    %81 = vmatpush1.msra.mxu0 %v58
    %82 = vmatprep.subr.mxu0 0.0
    %83 = vmatpush1.msra.mxu0 %v59
    %84 = vmatprep.subr.mxu0 0.0
    %85 = vmatpush1.msra.mxu0 %v60
    %86 = vmatprep.subr.mxu0 0.0
    %87 = vmatpush1.msra.mxu0 0.0
    %88 = vmatprep.subr.mxu0 0.0
    %89 = vmatpush1.msra.mxu0 0.0
    %90 = vmatprep.subr.mxu0 0.0
    %91 = vmatpush1.msra.mxu0 0.0
    %92 = vmatprep.subr.mxu0 0.0
    %93 = vmatpush1.msra.mxu0 0.0
    %94 = vmatprep.subr.mxu0 0.0
    %95 = vmatpush1.msra.mxu0 0.0
    %96 = vmatprep.subr.mxu0 0.0
    %97 = vmatpush1.msra.mxu0 0.0
    %98 = vmatprep.subr.mxu0 0.0
    %99 = vmatpush1.msra.mxu0 0.0
    %100 = vmatprep.subr.mxu0 0.0
    %101 = vmatpush1.msra.mxu0 0.0
    %102 = vmatprep.subr.mxu0 0.0
    %103 = vmatpush1.msra.mxu0 0.0
    %104 = vmatprep.subr.mxu0 0.0
    %105 = vmatpush1.msra.mxu0 0.0
    %106 = vmatprep.subr.mxu0 0.0
    %107 = vmatpush1.msra.mxu0 0.0
    %108 = vmatprep.subr.mxu0 0.0
    %109 = vmatpush1.msra.mxu0 0.0
    %110 = vmatprep.subr.mxu0 0.0
    %111 = vmatpush1.msra.mxu0 0.0
    %112 = vmatprep.subr.mxu0 0.0
    %113 = vmatpush1.msra.mxu0 0.0
    %114 = vmatprep.subr.mxu0 0.0
    %115 = vmatpush1.msra.mxu0 0.0
    %116 = vmatprep.subr.mxu0 0.0
    %117 = vmatpush1.msra.mxu0 0.0
    %118 = vmatprep.subr.mxu0 0.0
    %119 = vmatpush1.msra.mxu0 0.0
    %120 = vmatprep.subr.mxu0 0.0
    %121 = vmatpush1.msra.mxu0 0.0
    %122 = vmatprep.subr.mxu0 0.0
    %123 = vmatpush1.msra.mxu0 0.0
    %124 = vmatprep.subr.mxu0 0.0
    %125 = vmatpush1.msra.mxu0 0.0
    %126 = vmatprep.subr.mxu0 0.0
    %127 = vmatpush1.msra.mxu0 0.0
    %128 = vmatprep.subr.mxu0 0.0
    %129 = vmatpush1.msra.mxu0 0.0
    %130 = vmatprep.subr.mxu0 0.0
    %131 = vmatpush1.msra.mxu0 0.0
    %132 = vmatprep.subr.mxu0 0.0
    %133 = vmatpush1.msra.mxu0 0.0
    %134 = vmatprep.subr.mxu0 0.0
    %135 = vmatpush1.msra.mxu0 0.0
    %136 = vmatprep.subr.mxu0 0.0
    %137 = vmatpush1.msra.mxu0 0.0
    %138 = vmatprep.subr.mxu0 0.0
    %139 = vmatpush1.msra.mxu0 0.0
    %140 = vmatprep.subr.mxu0 0.0
    %141 = vmatpush1.msra.mxu0 0.0
    %142 = vmatprep.mubr.f32.mxu0 0.0
    %143 = vmatmul.mubr.f32.gmra.mrb[0].mxu0 %v67
    %v144 = vpop.f32.mrb[0].mxu0
    %v145 = vadd.f32 0.0, %v144
    %v146 = vpop.f32.mrb[0].mxu0
    %147 = vmatprep.mubr.f32.mxu0 0.0
    %148 = vmatmul.mubr.f32.gmra.mrb[0].mxu0 %v70
    %v149 = vpop.f32.mrb[0].mxu0
    %v150 = vadd.f32 0.0, %v149
    %v151 = vpop.f32.mrb[0].mxu0
    %152 = vmatprep.mubr.f32.mxu0 0.0
    %153 = vmatmul.mubr.f32.gmra.mrb[0].mxu0 %v73
    %v154 = vpop.f32.mrb[0].mxu0
    %v155 = vadd.f32 0.0, %v154
    %v156 = vpop.f32.mrb[0].mxu0
    %157 = vmatprep.mubr.f32.mxu0 0.0
    %158 = vmatmul.mubr.f32.gmra.mrb[0].mxu0 %v76
    %v159 = vpop.f32.mrb[0].mxu0
    %v160 = vadd.f32 0.0, %v159
    %v161 = vpop.f32.mrb[0].mxu0
    %162 = vdwg.mxu0
    %v163 = vld [vmem:[%s1] sm:$0xff]
    %v164 = vld [vmem:[%s1 + $0x8] sm:$0xff]
    %vm165 = vcmask 130048
    %v167 = vsel %vm165, %v145, 0
    %v170 = vsel %vm165, %v150, 0
    %v173 = vsel %vm165, %v155, 0
    %v176 = vsel %vm165, %v160, 0
    %v179 = vsel %vm165, %v163, 0
    %v182 = vsel %vm165, %v164, 0
    %184 = vmatprep.subr.mxu0 0.0
    %185 = vmatpush1.xpose.msra.mxu0 %v179
    %186 = vmatprep.subr.mxu0 0.0
    %187 = vmatpush1.xpose.msra.mxu0 %v182
    %188 = vmatprep.subr.mxu0 0.0
    %189 = vmatpush1.xpose.msra.mxu0 0.0
    %190 = vmatprep.subr.mxu0 0.0
    %191 = vmatpush1.xpose.msra.mxu0 0.0
    %192 = vmatprep.subr.mxu0 0.0
    %193 = vmatpush1.xpose.msra.mxu0 0.0
    %194 = vmatprep.subr.mxu0 0.0
    %195 = vmatpush1.xpose.msra.mxu0 0.0
    %196 = vmatprep.subr.mxu0 0.0
    %197 = vmatpush1.xpose.msra.mxu0 0.0
    %198 = vmatprep.subr.mxu0 0.0
    %199 = vmatpush1.xpose.msra.mxu0 0.0
    %200 = vmatprep.subr.mxu0 0.0
    %201 = vmatpush1.xpose.msra.mxu0 0.0
    %202 = vmatprep.subr.mxu0 0.0
    %203 = vmatpush1.xpose.msra.mxu0 0.0
    %204 = vmatprep.subr.mxu0 0.0
    %205 = vmatpush1.xpose.msra.mxu0 0.0
    %206 = vmatprep.subr.mxu0 0.0
    %207 = vmatpush1.xpose.msra.mxu0 0.0
    %208 = vmatprep.subr.mxu0 0.0
    %209 = vmatpush1.xpose.msra.mxu0 0.0
    %210 = vmatprep.subr.mxu0 0.0
    %211 = vmatpush1.xpose.msra.mxu0 0.0
    %212 = vmatprep.subr.mxu0 0.0
    %213 = vmatpush1.xpose.msra.mxu0 0.0
    %214 = vmatprep.subr.mxu0 0.0
    %215 = vmatpush1.xpose.msra.mxu0 0.0
    %216 = vmatprep.subr.mxu0 0.0
    %217 = vmatpush1.xpose.msra.mxu0 0.0
    %218 = vmatprep.subr.mxu0 0.0
    %219 = vmatpush1.xpose.msra.mxu0 0.0
    %220 = vmatprep.subr.mxu0 0.0
    %221 = vmatpush1.xpose.msra.mxu0 0.0
    %222 = vmatprep.subr.mxu0 0.0
    %223 = vmatpush1.xpose.msra.mxu0 0.0
    %224 = vmatprep.subr.mxu0 0.0
    %225 = vmatpush1.xpose.msra.mxu0 0.0
    %226 = vmatprep.subr.mxu0 0.0
    %227 = vmatpush1.xpose.msra.mxu0 0.0
    %228 = vmatprep.subr.mxu0 0.0
    %229 = vmatpush1.xpose.msra.mxu0 0.0
    %230 = vmatprep.subr.mxu0 0.0
    %231 = vmatpush1.xpose.msra.mxu0 0.0
    %232 = vmatprep.subr.mxu0 0.0
    %233 = vmatpush1.xpose.msra.mxu0 0.0
    %234 = vmatprep.subr.mxu0 0.0
    %235 = vmatpush1.xpose.msra.mxu0 0.0
    %236 = vmatprep.subr.mxu0 0.0
    %237 = vmatpush1.xpose.msra.mxu0 0.0
    %238 = vmatprep.subr.mxu0 0.0
    %239 = vmatpush1.xpose.msra.mxu0 0.0
    %240 = vmatprep.subr.mxu0 0.0
    %241 = vmatpush1.xpose.msra.mxu0 0.0
    %242 = vmatprep.subr.mxu0 0.0
    %243 = vmatpush1.xpose.msra.mxu0 0.0
    %244 = vmatprep.subr.mxu0 0.0
    %245 = vmatpush1.xpose.msra.mxu0 0.0
    %246 = vmatprep.subr.mxu0 0.0
    %247 = vmatpush1.xpose.msra.mxu0 0.0
    %248 = vmatprep.mubr.f32.mxu0 0.0
    %249 = vmatmul.mubr.f32.gmra.mrb[0].mxu0 %v167
    %v250 = vpop.f32.mrb[0].mxu0
    %v251 = vadd.f32 0.0, %v250
    %v252 = vpop.f32.mrb[0].mxu0
    %253 = vmatprep.mubr.f32.mxu0 0.0
    %254 = vmatmul.mubr.f32.gmra.mrb[0].mxu0 %v170
    %v255 = vpop.f32.mrb[0].mxu0
    %v256 = vadd.f32 0.0, %v255
    %v257 = vpop.f32.mrb[0].mxu0
    %258 = vmatprep.mubr.f32.mxu0 0.0
    %259 = vmatmul.mubr.f32.gmra.mrb[0].mxu0 %v173
    %v260 = vpop.f32.mrb[0].mxu0
    %v261 = vadd.f32 0.0, %v260
    %v262 = vpop.f32.mrb[0].mxu0
    %263 = vmatprep.mubr.f32.mxu0 0.0
    %264 = vmatmul.mubr.f32.gmra.mrb[0].mxu0 %v176
    %v265 = vpop.f32.mrb[0].mxu0
    %v266 = vadd.f32 0.0, %v265
    %v267 = vpop.f32.mrb[0].mxu0
    %268 = vdwg.mxu0
    %v269 = vld [vmem:[%s2] sm:$0xff]
    %v270 = vld [vmem:[%s2 + $0x8] sm:$0xff]
    %v272 = vsel %vm165, %v251, 0
    %v275 = vsel %vm165, %v256, 0
    %v278 = vsel %vm165, %v261, 0
    %v281 = vsel %vm165, %v266, 0
    %283 = vmatprep.subr.mxu0 0.0
    %284 = vmatpush1.msra.mxu0 %v269
    %285 = vmatprep.subr.mxu0 0.0
    %286 = vmatpush1.msra.mxu0 %v270
    %287 = vmatprep.subr.mxu0 0.0
    %288 = vmatpush1.msra.mxu0 0.0
    %289 = vmatprep.subr.mxu0 0.0
    %290 = vmatpush1.msra.mxu0 0.0
    %291 = vmatprep.subr.mxu0 0.0
    %292 = vmatpush1.msra.mxu0 0.0
    %293 = vmatprep.subr.mxu0 0.0
    %294 = vmatpush1.msra.mxu0 0.0
    %295 = vmatprep.subr.mxu0 0.0
    %296 = vmatpush1.msra.mxu0 0.0
    %297 = vmatprep.subr.mxu0 0.0
    %298 = vmatpush1.msra.mxu0 0.0
    %299 = vmatprep.subr.mxu0 0.0
    %300 = vmatpush1.msra.mxu0 0.0
    %301 = vmatprep.subr.mxu0 0.0
    %302 = vmatpush1.msra.mxu0 0.0
    %303 = vmatprep.subr.mxu0 0.0
    %304 = vmatpush1.msra.mxu0 0.0
    %305 = vmatprep.subr.mxu0 0.0
    %306 = vmatpush1.msra.mxu0 0.0
    %307 = vmatprep.subr.mxu0 0.0
    %308 = vmatpush1.msra.mxu0 0.0
    %309 = vmatprep.subr.mxu0 0.0
    %310 = vmatpush1.msra.mxu0 0.0
    %311 = vmatprep.subr.mxu0 0.0
    %312 = vmatpush1.msra.mxu0 0.0
    %313 = vmatprep.subr.mxu0 0.0
    %314 = vmatpush1.msra.mxu0 0.0
    %315 = vmatprep.subr.mxu0 0.0
    %316 = vmatpush1.msra.mxu0 0.0
    %317 = vmatprep.subr.mxu0 0.0
    %318 = vmatpush1.msra.mxu0 0.0
    %319 = vmatprep.subr.mxu0 0.0
    %320 = vmatpush1.msra.mxu0 0.0
    %321 = vmatprep.subr.mxu0 0.0
    %322 = vmatpush1.msra.mxu0 0.0
    %323 = vmatprep.subr.mxu0 0.0
    %324 = vmatpush1.msra.mxu0 0.0
    %325 = vmatprep.subr.mxu0 0.0
    %326 = vmatpush1.msra.mxu0 0.0
    %327 = vmatprep.subr.mxu0 0.0
    %328 = vmatpush1.msra.mxu0 0.0
    %329 = vmatprep.subr.mxu0 0.0
    %330 = vmatpush1.msra.mxu0 0.0
    %331 = vmatprep.subr.mxu0 0.0
    %332 = vmatpush1.msra.mxu0 0.0
    %333 = vmatprep.subr.mxu0 0.0
    %334 = vmatpush1.msra.mxu0 0.0
    %335 = vmatprep.subr.mxu0 0.0
    %336 = vmatpush1.msra.mxu0 0.0
    %337 = vmatprep.subr.mxu0 0.0
    %338 = vmatpush1.msra.mxu0 0.0
    %339 = vmatprep.subr.mxu0 0.0
    %340 = vmatpush1.msra.mxu0 0.0
    %341 = vmatprep.subr.mxu0 0.0
    %342 = vmatpush1.msra.mxu0 0.0
    %343 = vmatprep.subr.mxu0 0.0
    %344 = vmatpush1.msra.mxu0 0.0
    %345 = vmatprep.subr.mxu0 0.0
    %346 = vmatpush1.msra.mxu0 0.0
    %347 = vmatprep.mubr.f32.mxu0 0.0
    %348 = vmatmul.mubr.f32.gmra.mrb[0].mxu0 %v272
    %v349 = vpop.f32.mrb[0].mxu0
    %v350 = vadd.f32 0.0, %v349
    %v351 = vpop.f32.mrb[0].mxu0
    %352 = vmatprep.mubr.f32.mxu0 0.0
    %353 = vmatmul.mubr.f32.gmra.mrb[0].mxu0 %v275
    %v354 = vpop.f32.mrb[0].mxu0
    %v355 = vadd.f32 0.0, %v354
    %v356 = vpop.f32.mrb[0].mxu0
    %357 = vmatprep.mubr.f32.mxu0 0.0
    %358 = vmatmul.mubr.f32.gmra.mrb[0].mxu0 %v278
    %v359 = vpop.f32.mrb[0].mxu0
    %v360 = vadd.f32 0.0, %v359
    %v361 = vpop.f32.mrb[0].mxu0
    %362 = vmatprep.mubr.f32.mxu0 0.0
    %363 = vmatmul.mubr.f32.gmra.mrb[0].mxu0 %v281
    %v364 = vpop.f32.mrb[0].mxu0
    %v365 = vadd.f32 0.0, %v364
    %v366 = vpop.f32.mrb[0].mxu0
    %367 = vdwg.mxu0
    %v368 = vand.u32 2147483647, %v350
    %v369 = vand.u32 2147483647, %v355
    %v370 = vand.u32 2147483647, %v360
    %v371 = vand.u32 2147483647, %v365
    %v372 = vsel %vm40, 1.0, %v368
    %v373 = vsel %vm41, 1.0, %v369
    %v374 = vsel %vm42, 1.0, %v370
    %v375 = vsel %vm43, 1.0, %v371
    %v377 = vsel %vm65, %v372, 0
    %v380 = vsel %vm65, %v373, 0
    %v383 = vsel %vm65, %v374, 0
    %v386 = vsel %vm65, %v375, 0
    %388 = vmatprep.subr.mxu0 0.0
    %389 = vmatpush1.xpose.msra.mxu0 %v377
    %390 = vmatprep.subr.mxu0 0.0
    %391 = vmatpush1.xpose.msra.mxu0 %v380
    %392 = vmatprep.subr.mxu0 0.0
    %393 = vmatpush1.xpose.msra.mxu0 %v383
    %394 = vmatprep.subr.mxu0 0.0
    %395 = vmatpush1.xpose.msra.mxu0 %v386
    %396 = vmatprep.subr.mxu0 0.0
    %397 = vmatpush1.xpose.msra.mxu0 0.0
    %398 = vmatprep.subr.mxu0 0.0
    %399 = vmatpush1.xpose.msra.mxu0 0.0
    %400 = vmatprep.subr.mxu0 0.0
    %401 = vmatpush1.xpose.msra.mxu0 0.0
    %402 = vmatprep.subr.mxu0 0.0
    %403 = vmatpush1.xpose.msra.mxu0 0.0
    %404 = vmatprep.subr.mxu0 0.0
    %405 = vmatpush1.xpose.msra.mxu0 0.0
    %406 = vmatprep.subr.mxu0 0.0
    %407 = vmatpush1.xpose.msra.mxu0 0.0
    %408 = vmatprep.subr.mxu0 0.0
    %409 = vmatpush1.xpose.msra.mxu0 0.0
    %410 = vmatprep.subr.mxu0 0.0
    %411 = vmatpush1.xpose.msra.mxu0 0.0
    %412 = vmatprep.subr.mxu0 0.0
    %413 = vmatpush1.xpose.msra.mxu0 0.0
    %414 = vmatprep.subr.mxu0 0.0
    %415 = vmatpush1.xpose.msra.mxu0 0.0
    %416 = vmatprep.subr.mxu0 0.0
    %417 = vmatpush1.xpose.msra.mxu0 0.0
    %418 = vmatprep.subr.mxu0 0.0
    %419 = vmatpush1.xpose.msra.mxu0 0.0
    %420 = vmatprep.subr.mxu0 0.0
    %421 = vmatpush1.xpose.msra.mxu0 0.0
    %422 = vmatprep.subr.mxu0 0.0
    %423 = vmatpush1.xpose.msra.mxu0 0.0
    %424 = vmatprep.subr.mxu0 0.0
    %425 = vmatpush1.xpose.msra.mxu0 0.0
    %426 = vmatprep.subr.mxu0 0.0
    %427 = vmatpush1.xpose.msra.mxu0 0.0
    %428 = vmatprep.subr.mxu0 0.0
    %429 = vmatpush1.xpose.msra.mxu0 0.0
    %430 = vmatprep.subr.mxu0 0.0
    %431 = vmatpush1.xpose.msra.mxu0 0.0
    %432 = vmatprep.subr.mxu0 0.0
    %433 = vmatpush1.xpose.msra.mxu0 0.0
    %434 = vmatprep.subr.mxu0 0.0
    %435 = vmatpush1.xpose.msra.mxu0 0.0
    %436 = vmatprep.subr.mxu0 0.0
    %437 = vmatpush1.xpose.msra.mxu0 0.0
    %438 = vmatprep.subr.mxu0 0.0
    %439 = vmatpush1.xpose.msra.mxu0 0.0
    %440 = vmatprep.subr.mxu0 0.0
    %441 = vmatpush1.xpose.msra.mxu0 0.0
    %442 = vmatprep.subr.mxu0 0.0
    %443 = vmatpush1.xpose.msra.mxu0 0.0
    %444 = vmatprep.subr.mxu0 0.0
    %445 = vmatpush1.xpose.msra.mxu0 0.0
    %446 = vmatprep.subr.mxu0 0.0
    %447 = vmatpush1.xpose.msra.mxu0 0.0
    %448 = vmatprep.subr.mxu0 0.0
    %449 = vmatpush1.xpose.msra.mxu0 0.0
    %450 = vmatprep.subr.mxu0 0.0
    %451 = vmatpush1.xpose.msra.mxu0 0.0
    %452 = vmatprep.mubr.f32.mxu0 0.0
    %453 = vmatmul.mubr.f32.gmra.mrb[0].mxu0 %v377
    %v454 = vpop.f32.mrb[0].mxu0
    %v455 = vadd.f32 0.0, %v454
    %v456 = vpop.f32.mrb[0].mxu0
    %457 = vmatprep.mubr.f32.mxu0 0.0
    %458 = vmatmul.mubr.f32.gmra.mrb[0].mxu0 %v380
    %v459 = vpop.f32.mrb[0].mxu0
    %v460 = vadd.f32 0.0, %v459
    %v461 = vpop.f32.mrb[0].mxu0
    %462 = vmatprep.mubr.f32.mxu0 0.0
    %463 = vmatmul.mubr.f32.gmra.mrb[0].mxu0 %v383
    %v464 = vpop.f32.mrb[0].mxu0
    %v465 = vadd.f32 0.0, %v464
    %v466 = vpop.f32.mrb[0].mxu0
    %467 = vmatprep.mubr.f32.mxu0 0.0
    %468 = vmatmul.mubr.f32.gmra.mrb[0].mxu0 %v386
    %v469 = vpop.f32.mrb[0].mxu0
    %v470 = vadd.f32 0.0, %v469
    %v471 = vpop.f32.mrb[0].mxu0
    %472 = vdwg.mxu0
    %v473 = vsel %vm40, 1.0, %v455
    %v474 = vsel %vm41, 1.0, %v460
    %v475 = vsel %vm42, 1.0, %v465
    %v476 = vsel %vm43, 1.0, %v470
    %v477 = vand.u32 2147483647, %v473
    %v478 = vand.u32 2147483647, %v474
    %v479 = vand.u32 2147483647, %v475
    %v480 = vand.u32 2147483647, %v476
    %v481 = vld [vmem:[%s3] sm:$0xff]
    %v482 = vld [vmem:[%s3 + $0x8] sm:$0xff]
    %v483 = vld [vmem:[%s3 + $0x10] sm:$0xff]
    %v484 = vld [vmem:[%s3 + $0x18] sm:$0xff]
    %v486 = vsel %vm65, %v477, 0
    %v489 = vsel %vm65, %v478, 0
    %v492 = vsel %vm65, %v479, 0
    %v495 = vsel %vm65, %v480, 0
    %497 = vmatprep.subr.mxu0 0.0
    %498 = vmatpush1.msra.mxu0 %v481
    %499 = vmatprep.subr.mxu0 0.0
    %500 = vmatpush1.msra.mxu0 %v482
    %501 = vmatprep.subr.mxu0 0.0
    %502 = vmatpush1.msra.mxu0 %v483
    %503 = vmatprep.subr.mxu0 0.0
    %504 = vmatpush1.msra.mxu0 %v484
    %505 = vmatprep.subr.mxu0 0.0
    %506 = vmatpush1.msra.mxu0 0.0
    %507 = vmatprep.subr.mxu0 0.0
    %508 = vmatpush1.msra.mxu0 0.0
    %509 = vmatprep.subr.mxu0 0.0
    %510 = vmatpush1.msra.mxu0 0.0
    %511 = vmatprep.subr.mxu0 0.0
    %512 = vmatpush1.msra.mxu0 0.0
    %513 = vmatprep.subr.mxu0 0.0
    %514 = vmatpush1.msra.mxu0 0.0
    %515 = vmatprep.subr.mxu0 0.0
    %516 = vmatpush1.msra.mxu0 0.0
    %517 = vmatprep.subr.mxu0 0.0
    %518 = vmatpush1.msra.mxu0 0.0
    %519 = vmatprep.subr.mxu0 0.0
    %520 = vmatpush1.msra.mxu0 0.0
    %521 = vmatprep.subr.mxu0 0.0
    %522 = vmatpush1.msra.mxu0 0.0
    %523 = vmatprep.subr.mxu0 0.0
    %524 = vmatpush1.msra.mxu0 0.0
    %525 = vmatprep.subr.mxu0 0.0
    %526 = vmatpush1.msra.mxu0 0.0
    %527 = vmatprep.subr.mxu0 0.0
    %528 = vmatpush1.msra.mxu0 0.0
    %529 = vmatprep.subr.mxu0 0.0
    %530 = vmatpush1.msra.mxu0 0.0
    %531 = vmatprep.subr.mxu0 0.0
    %532 = vmatpush1.msra.mxu0 0.0
    %533 = vmatprep.subr.mxu0 0.0
    %534 = vmatpush1.msra.mxu0 0.0
    %535 = vmatprep.subr.mxu0 0.0
    %536 = vmatpush1.msra.mxu0 0.0
    %537 = vmatprep.subr.mxu0 0.0
    %538 = vmatpush1.msra.mxu0 0.0
    %539 = vmatprep.subr.mxu0 0.0
    %540 = vmatpush1.msra.mxu0 0.0
    %541 = vmatprep.subr.mxu0 0.0
    %542 = vmatpush1.msra.mxu0 0.0
    %543 = vmatprep.subr.mxu0 0.0
    %544 = vmatpush1.msra.mxu0 0.0
    %545 = vmatprep.subr.mxu0 0.0
    %546 = vmatpush1.msra.mxu0 0.0
    %547 = vmatprep.subr.mxu0 0.0
    %548 = vmatpush1.msra.mxu0 0.0
    %549 = vmatprep.subr.mxu0 0.0
    %550 = vmatpush1.msra.mxu0 0.0
    %551 = vmatprep.subr.mxu0 0.0
    %552 = vmatpush1.msra.mxu0 0.0
    %553 = vmatprep.subr.mxu0 0.0
    %554 = vmatpush1.msra.mxu0 0.0
    %555 = vmatprep.subr.mxu0 0.0
    %556 = vmatpush1.msra.mxu0 0.0
    %557 = vmatprep.subr.mxu0 0.0
    %558 = vmatpush1.msra.mxu0 0.0
    %559 = vmatprep.subr.mxu0 0.0
    %560 = vmatpush1.msra.mxu0 0.0
    %561 = vmatprep.mubr.f32.mxu0 0.0
    %562 = vmatmul.mubr.f32.gmra.mrb[0].mxu0 %v486
    %v563 = vpop.f32.mrb[0].mxu0
    %v564 = vadd.f32 0.0, %v563
    %v565 = vpop.f32.mrb[0].mxu0
    %566 = vmatprep.mubr.f32.mxu0 0.0
    %567 = vmatmul.mubr.f32.gmra.mrb[0].mxu0 %v489
    %v568 = vpop.f32.mrb[0].mxu0
    %v569 = vadd.f32 0.0, %v568
    %v570 = vpop.f32.mrb[0].mxu0
    %571 = vmatprep.mubr.f32.mxu0 0.0
    %572 = vmatmul.mubr.f32.gmra.mrb[0].mxu0 %v492
    %v573 = vpop.f32.mrb[0].mxu0
    %v574 = vadd.f32 0.0, %v573
    %v575 = vpop.f32.mrb[0].mxu0
    %576 = vmatprep.mubr.f32.mxu0 0.0
    %577 = vmatmul.mubr.f32.gmra.mrb[0].mxu0 %v495
    %v578 = vpop.f32.mrb[0].mxu0
    %v579 = vadd.f32 0.0, %v578
    %v580 = vpop.f32.mrb[0].mxu0
    %581 = vdwg.mxu0
    %582 = vmatprep.subr.mxu0 0.0
    %583 = vmatpush1.msra.mxu0 %v564
    %584 = vmatprep.subr.mxu0 0.0
    %585 = vmatpush1.msra.mxu0 %v569
    %586 = vmatprep.subr.mxu0 0.0
    %587 = vmatpush1.msra.mxu0 %v574
    %588 = vmatprep.subr.mxu0 0.0
    %589 = vmatpush1.msra.mxu0 %v579
    %590 = vmatprep.subr.mxu0 0.0
    %591 = vmatpush1.msra.mxu0 0.0
    %592 = vmatprep.subr.mxu0 0.0
    %593 = vmatpush1.msra.mxu0 0.0
    %594 = vmatprep.subr.mxu0 0.0
    %595 = vmatpush1.msra.mxu0 0.0
    %596 = vmatprep.subr.mxu0 0.0
    %597 = vmatpush1.msra.mxu0 0.0
    %598 = vmatprep.subr.mxu0 0.0
    %599 = vmatpush1.msra.mxu0 0.0
    %600 = vmatprep.subr.mxu0 0.0
    %601 = vmatpush1.msra.mxu0 0.0
    %602 = vmatprep.subr.mxu0 0.0
    %603 = vmatpush1.msra.mxu0 0.0
    %604 = vmatprep.subr.mxu0 0.0
    %605 = vmatpush1.msra.mxu0 0.0
    %606 = vmatprep.subr.mxu0 0.0
    %607 = vmatpush1.msra.mxu0 0.0
    %608 = vmatprep.subr.mxu0 0.0
    %609 = vmatpush1.msra.mxu0 0.0
    %610 = vmatprep.subr.mxu0 0.0
    %611 = vmatpush1.msra.mxu0 0.0
    %612 = vmatprep.subr.mxu0 0.0
    %613 = vmatpush1.msra.mxu0 0.0
    %614 = vmatprep.subr.mxu0 0.0
    %615 = vmatpush1.msra.mxu0 0.0
    %616 = vmatprep.subr.mxu0 0.0
    %617 = vmatpush1.msra.mxu0 0.0
    %618 = vmatprep.subr.mxu0 0.0
    %619 = vmatpush1.msra.mxu0 0.0
    %620 = vmatprep.subr.mxu0 0.0
    %621 = vmatpush1.msra.mxu0 0.0
    %622 = vmatprep.subr.mxu0 0.0
    %623 = vmatpush1.msra.mxu0 0.0
    %624 = vmatprep.subr.mxu0 0.0
    %625 = vmatpush1.msra.mxu0 0.0
    %626 = vmatprep.subr.mxu0 0.0
    %627 = vmatpush1.msra.mxu0 0.0
    %628 = vmatprep.subr.mxu0 0.0
    %629 = vmatpush1.msra.mxu0 0.0
    %630 = vmatprep.subr.mxu0 0.0
    %631 = vmatpush1.msra.mxu0 0.0
    %632 = vmatprep.subr.mxu0 0.0
    %633 = vmatpush1.msra.mxu0 0.0
    %634 = vmatprep.subr.mxu0 0.0
    %635 = vmatpush1.msra.mxu0 0.0
    %636 = vmatprep.subr.mxu0 0.0
    %637 = vmatpush1.msra.mxu0 0.0
    %638 = vmatprep.subr.mxu0 0.0
    %639 = vmatpush1.msra.mxu0 0.0
    %640 = vmatprep.subr.mxu0 0.0
    %641 = vmatpush1.msra.mxu0 0.0
    %642 = vmatprep.subr.mxu0 0.0
    %643 = vmatpush1.msra.mxu0 0.0
    %644 = vmatprep.subr.mxu0 0.0
    %645 = vmatpush1.msra.mxu0 0.0
    %646 = vmatprep.mubr.f32.mxu0 0.0
    %647 = vmatmul.mubr.f32.gmra.mrb[0].mxu0 %v377
    %v648 = vpop.f32.mrb[0].mxu0
    %v649 = vadd.f32 0.0, %v648
    %v650 = vpop.f32.mrb[0].mxu0
    %651 = vmatprep.mubr.f32.mxu0 0.0
    %652 = vmatmul.mubr.f32.gmra.mrb[0].mxu0 %v380
    %v653 = vpop.f32.mrb[0].mxu0
    %v654 = vadd.f32 0.0, %v653
    %v655 = vpop.f32.mrb[0].mxu0
    %656 = vmatprep.mubr.f32.mxu0 0.0
    %657 = vmatmul.mubr.f32.gmra.mrb[0].mxu0 %v383
    %v658 = vpop.f32.mrb[0].mxu0
    %v659 = vadd.f32 0.0, %v658
    %v660 = vpop.f32.mrb[0].mxu0
    %661 = vmatprep.mubr.f32.mxu0 0.0
    %662 = vmatmul.mubr.f32.gmra.mrb[0].mxu0 %v386
    %v663 = vpop.f32.mrb[0].mxu0
    %v664 = vadd.f32 0.0, %v663
    %v665 = vpop.f32.mrb[0].mxu0
    %666 = vdwg.mxu0
    %v667 = vmax.f32 %v649, 0.0
    %v668 = vmax.f32 %v654, 0.0
    %v669 = vmax.f32 %v659, 0.0
    %v670 = vmax.f32 %v664, 0.0
    %v671 = vld [vmem:[%s4] sm:$0xff]
    %v672 = vld [vmem:[%s4 + $0x8] sm:$0xff]
    %v674 = vsel %vm165, %v667, 0
    %v677 = vsel %vm165, %v668, 0
    %v680 = vsel %vm165, %v669, 0
    %v683 = vsel %vm165, %v670, 0
    %685 = vmatprep.subr.mxu0 0.0
    %686 = vmatpush1.msra.mxu0 %v671
    %687 = vmatprep.subr.mxu0 0.0
    %688 = vmatpush1.msra.mxu0 %v672
    %689 = vmatprep.subr.mxu0 0.0
    %690 = vmatpush1.msra.mxu0 0.0
    %691 = vmatprep.subr.mxu0 0.0
    %692 = vmatpush1.msra.mxu0 0.0
    %693 = vmatprep.subr.mxu0 0.0
    %694 = vmatpush1.msra.mxu0 0.0
    %695 = vmatprep.subr.mxu0 0.0
    %696 = vmatpush1.msra.mxu0 0.0
    %697 = vmatprep.subr.mxu0 0.0
    %698 = vmatpush1.msra.mxu0 0.0
    %699 = vmatprep.subr.mxu0 0.0
    %700 = vmatpush1.msra.mxu0 0.0
    %701 = vmatprep.subr.mxu0 0.0
    %702 = vmatpush1.msra.mxu0 0.0
    %703 = vmatprep.subr.mxu0 0.0
    %704 = vmatpush1.msra.mxu0 0.0
    %705 = vmatprep.subr.mxu0 0.0
    %706 = vmatpush1.msra.mxu0 0.0
    %707 = vmatprep.subr.mxu0 0.0
    %708 = vmatpush1.msra.mxu0 0.0
    %709 = vmatprep.subr.mxu0 0.0
    %710 = vmatpush1.msra.mxu0 0.0
    %711 = vmatprep.subr.mxu0 0.0
    %712 = vmatpush1.msra.mxu0 0.0
    %713 = vmatprep.subr.mxu0 0.0
    %714 = vmatpush1.msra.mxu0 0.0
    %715 = vmatprep.subr.mxu0 0.0
    %716 = vmatpush1.msra.mxu0 0.0
    %717 = vmatprep.subr.mxu0 0.0
    %718 = vmatpush1.msra.mxu0 0.0
    %719 = vmatprep.subr.mxu0 0.0
    %720 = vmatpush1.msra.mxu0 0.0
    %721 = vmatprep.subr.mxu0 0.0
    %722 = vmatpush1.msra.mxu0 0.0
    %723 = vmatprep.subr.mxu0 0.0
    %724 = vmatpush1.msra.mxu0 0.0
    %725 = vmatprep.subr.mxu0 0.0
    %726 = vmatpush1.msra.mxu0 0.0
    %727 = vmatprep.subr.mxu0 0.0
    %728 = vmatpush1.msra.mxu0 0.0
    %729 = vmatprep.subr.mxu0 0.0
    %730 = vmatpush1.msra.mxu0 0.0
    %731 = vmatprep.subr.mxu0 0.0
    %732 = vmatpush1.msra.mxu0 0.0
    %733 = vmatprep.subr.mxu0 0.0
    %734 = vmatpush1.msra.mxu0 0.0
    %735 = vmatprep.subr.mxu0 0.0
    %736 = vmatpush1.msra.mxu0 0.0
    %737 = vmatprep.subr.mxu0 0.0
    %738 = vmatpush1.msra.mxu0 0.0
    %739 = vmatprep.subr.mxu0 0.0
    %740 = vmatpush1.msra.mxu0 0.0
    %741 = vmatprep.subr.mxu0 0.0
    %742 = vmatpush1.msra.mxu0 0.0
    %743 = vmatprep.subr.mxu0 0.0
    %744 = vmatpush1.msra.mxu0 0.0
    %745 = vmatprep.subr.mxu0 0.0
    %746 = vmatpush1.msra.mxu0 0.0
    %747 = vmatprep.subr.mxu0 0.0
    %748 = vmatpush1.msra.mxu0 0.0
    %749 = vmatprep.mubr.f32.mxu0 0.0
    %750 = vmatmul.mubr.f32.gmra.mrb[0].mxu0 %v674
    %v751 = vpop.f32.mrb[0].mxu0
    %v752 = vadd.f32 0.0, %v751
    %v753 = vpop.f32.mrb[0].mxu0
    %754 = vmatprep.mubr.f32.mxu0 0.0
    %755 = vmatmul.mubr.f32.gmra.mrb[0].mxu0 %v677
    %v756 = vpop.f32.mrb[0].mxu0
    %v757 = vadd.f32 0.0, %v756
    %v758 = vpop.f32.mrb[0].mxu0
    %759 = vmatprep.mubr.f32.mxu0 0.0
    %760 = vmatmul.mubr.f32.gmra.mrb[0].mxu0 %v680
    %v761 = vpop.f32.mrb[0].mxu0
    %v762 = vadd.f32 0.0, %v761
    %v763 = vpop.f32.mrb[0].mxu0
    %764 = vmatprep.mubr.f32.mxu0 0.0
    %765 = vmatmul.mubr.f32.gmra.mrb[0].mxu0 %v683
    %v766 = vpop.f32.mrb[0].mxu0
    %v767 = vadd.f32 0.0, %v766
    %v768 = vpop.f32.mrb[0].mxu0
    %769 = vdwg.mxu0
    %770 = vmatprep.subr.mxu0 0.0
    %771 = vmatpush1.msra.mxu0 %v752
    %772 = vmatprep.subr.mxu0 0.0
    %773 = vmatpush1.msra.mxu0 %v757
    %774 = vmatprep.subr.mxu0 0.0
    %775 = vmatpush1.msra.mxu0 %v762
    %776 = vmatprep.subr.mxu0 0.0
    %777 = vmatpush1.msra.mxu0 %v767
    %778 = vmatprep.subr.mxu0 0.0
    %779 = vmatpush1.msra.mxu0 0.0
    %780 = vmatprep.subr.mxu0 0.0
    %781 = vmatpush1.msra.mxu0 0.0
    %782 = vmatprep.subr.mxu0 0.0
    %783 = vmatpush1.msra.mxu0 0.0
    %784 = vmatprep.subr.mxu0 0.0
    %785 = vmatpush1.msra.mxu0 0.0
    %786 = vmatprep.subr.mxu0 0.0
    %787 = vmatpush1.msra.mxu0 0.0
    %788 = vmatprep.subr.mxu0 0.0
    %789 = vmatpush1.msra.mxu0 0.0
    %790 = vmatprep.subr.mxu0 0.0
    %791 = vmatpush1.msra.mxu0 0.0
    %792 = vmatprep.subr.mxu0 0.0
    %793 = vmatpush1.msra.mxu0 0.0
    %794 = vmatprep.subr.mxu0 0.0
    %795 = vmatpush1.msra.mxu0 0.0
    %796 = vmatprep.subr.mxu0 0.0
    %797 = vmatpush1.msra.mxu0 0.0
    %798 = vmatprep.subr.mxu0 0.0
    %799 = vmatpush1.msra.mxu0 0.0
    %800 = vmatprep.subr.mxu0 0.0
    %801 = vmatpush1.msra.mxu0 0.0
    %802 = vmatprep.subr.mxu0 0.0
    %803 = vmatpush1.msra.mxu0 0.0
    %804 = vmatprep.subr.mxu0 0.0
    %805 = vmatpush1.msra.mxu0 0.0
    %806 = vmatprep.subr.mxu0 0.0
    %807 = vmatpush1.msra.mxu0 0.0
    %808 = vmatprep.subr.mxu0 0.0
    %809 = vmatpush1.msra.mxu0 0.0
    %810 = vmatprep.subr.mxu0 0.0
    %811 = vmatpush1.msra.mxu0 0.0
    %812 = vmatprep.subr.mxu0 0.0
    %813 = vmatpush1.msra.mxu0 0.0
    %814 = vmatprep.subr.mxu0 0.0
    %815 = vmatpush1.msra.mxu0 0.0
    %816 = vmatprep.subr.mxu0 0.0
    %817 = vmatpush1.msra.mxu0 0.0
    %818 = vmatprep.subr.mxu0 0.0
    %819 = vmatpush1.msra.mxu0 0.0
    %820 = vmatprep.subr.mxu0 0.0
    %821 = vmatpush1.msra.mxu0 0.0
    %822 = vmatprep.subr.mxu0 0.0
    %823 = vmatpush1.msra.mxu0 0.0
    %824 = vmatprep.subr.mxu0 0.0
    %825 = vmatpush1.msra.mxu0 0.0
    %826 = vmatprep.subr.mxu0 0.0
    %827 = vmatpush1.msra.mxu0 0.0
    %828 = vmatprep.subr.mxu0 0.0
    %829 = vmatpush1.msra.mxu0 0.0
    %830 = vmatprep.subr.mxu0 0.0
    %831 = vmatpush1.msra.mxu0 0.0
    %832 = vmatprep.subr.mxu0 0.0
    %833 = vmatpush1.msra.mxu0 0.0
    %834 = vmatprep.mubr.f32.mxu0 0.0
    %835 = vmatmul.mubr.f32.gmra.mrb[0].mxu0 %v377
    %v836 = vpop.f32.mrb[0].mxu0
    %v837 = vadd.f32 0.0, %v836
    %v838 = vpop.f32.mrb[0].mxu0
    %839 = vmatprep.mubr.f32.mxu0 0.0
    %840 = vmatmul.mubr.f32.gmra.mrb[0].mxu0 %v380
    %v841 = vpop.f32.mrb[0].mxu0
    %v842 = vadd.f32 0.0, %v841
    %v843 = vpop.f32.mrb[0].mxu0
    %844 = vmatprep.mubr.f32.mxu0 0.0
    %845 = vmatmul.mubr.f32.gmra.mrb[0].mxu0 %v383
    %v846 = vpop.f32.mrb[0].mxu0
    %v847 = vadd.f32 0.0, %v846
    %v848 = vpop.f32.mrb[0].mxu0
    %849 = vmatprep.mubr.f32.mxu0 0.0
    %850 = vmatmul.mubr.f32.gmra.mrb[0].mxu0 %v386
    %v851 = vpop.f32.mrb[0].mxu0
    %v852 = vadd.f32 0.0, %v851
    %v853 = vpop.f32.mrb[0].mxu0
    %854 = vdwg.mxu0
    %v855 = vmax.f32 %v837, 0.0
    %v856 = vmax.f32 %v842, 0.0
    %v857 = vmax.f32 %v847, 0.0
    %v858 = vmax.f32 %v852, 0.0
    %859 = vmatprep.subr.mxu0 0.0
    %860 = vmatpush1.msra.mxu0 %v855
    %861 = vmatprep.subr.mxu0 0.0
    %862 = vmatpush1.msra.mxu0 %v856
    %863 = vmatprep.subr.mxu0 0.0
    %864 = vmatpush1.msra.mxu0 %v857
    %865 = vmatprep.subr.mxu0 0.0
    %866 = vmatpush1.msra.mxu0 %v858
    %867 = vmatprep.subr.mxu0 0.0
    %868 = vmatpush1.msra.mxu0 0.0
    %869 = vmatprep.subr.mxu0 0.0
    %870 = vmatpush1.msra.mxu0 0.0
    %871 = vmatprep.subr.mxu0 0.0
    %872 = vmatpush1.msra.mxu0 0.0
    %873 = vmatprep.subr.mxu0 0.0
    %874 = vmatpush1.msra.mxu0 0.0
    %875 = vmatprep.subr.mxu0 0.0
    %876 = vmatpush1.msra.mxu0 0.0
    %877 = vmatprep.subr.mxu0 0.0
    %878 = vmatpush1.msra.mxu0 0.0
    %879 = vmatprep.subr.mxu0 0.0
    %880 = vmatpush1.msra.mxu0 0.0
    %881 = vmatprep.subr.mxu0 0.0
    %882 = vmatpush1.msra.mxu0 0.0
    %883 = vmatprep.subr.mxu0 0.0
    %884 = vmatpush1.msra.mxu0 0.0
    %885 = vmatprep.subr.mxu0 0.0
    %886 = vmatpush1.msra.mxu0 0.0
    %887 = vmatprep.subr.mxu0 0.0
    %888 = vmatpush1.msra.mxu0 0.0
    %889 = vmatprep.subr.mxu0 0.0
    %890 = vmatpush1.msra.mxu0 0.0
    %891 = vmatprep.subr.mxu0 0.0
    %892 = vmatpush1.msra.mxu0 0.0
    %893 = vmatprep.subr.mxu0 0.0
    %894 = vmatpush1.msra.mxu0 0.0
    %895 = vmatprep.subr.mxu0 0.0
    %896 = vmatpush1.msra.mxu0 0.0
    %897 = vmatprep.subr.mxu0 0.0
    %898 = vmatpush1.msra.mxu0 0.0
    %899 = vmatprep.subr.mxu0 0.0
    %900 = vmatpush1.msra.mxu0 0.0
    %901 = vmatprep.subr.mxu0 0.0
    %902 = vmatpush1.msra.mxu0 0.0
    %903 = vmatprep.subr.mxu0 0.0
    %904 = vmatpush1.msra.mxu0 0.0
    %905 = vmatprep.subr.mxu0 0.0
    %906 = vmatpush1.msra.mxu0 0.0
    %907 = vmatprep.subr.mxu0 0.0
    %908 = vmatpush1.msra.mxu0 0.0
    %909 = vmatprep.subr.mxu0 0.0
    %910 = vmatpush1.msra.mxu0 0.0
    %911 = vmatprep.subr.mxu0 0.0
    %912 = vmatpush1.msra.mxu0 0.0
    %913 = vmatprep.subr.mxu0 0.0
    %914 = vmatpush1.msra.mxu0 0.0
    %915 = vmatprep.subr.mxu0 0.0
    %916 = vmatpush1.msra.mxu0 0.0
    %917 = vmatprep.subr.mxu0 0.0
    %918 = vmatpush1.msra.mxu0 0.0
    %919 = vmatprep.subr.mxu0 0.0
    %920 = vmatpush1.msra.mxu0 0.0
    %921 = vmatprep.subr.mxu0 0.0
    %922 = vmatpush1.msra.mxu0 0.0
    %923 = vmatprep.mubr.f32.mxu0 0.0
    %924 = vmatmul.mubr.f32.gmra.mrb[0].mxu0 %v377
    %v925 = vpop.f32.mrb[0].mxu0
    %v926 = vadd.f32 0.0, %v925
    %v927 = vpop.f32.mrb[0].mxu0
    %928 = vmatprep.mubr.f32.mxu0 0.0
    %929 = vmatmul.mubr.f32.gmra.mrb[0].mxu0 %v380
    %v930 = vpop.f32.mrb[0].mxu0
    %v931 = vadd.f32 0.0, %v930
    %v932 = vpop.f32.mrb[0].mxu0
    %933 = vmatprep.mubr.f32.mxu0 0.0
    %934 = vmatmul.mubr.f32.gmra.mrb[0].mxu0 %v383
    %v935 = vpop.f32.mrb[0].mxu0
    %v936 = vadd.f32 0.0, %v935
    %v937 = vpop.f32.mrb[0].mxu0
    %938 = vmatprep.mubr.f32.mxu0 0.0
    %939 = vmatmul.mubr.f32.gmra.mrb[0].mxu0 %v386
    %v940 = vpop.f32.mrb[0].mxu0
    %v941 = vadd.f32 0.0, %v940
    %v942 = vpop.f32.mrb[0].mxu0
    %943 = vdwg.mxu0
    %v944 = vadd.f32 %v855, %v926
    %v945 = vadd.f32 %v856, %v931
    %v946 = vadd.f32 %v857, %v936
    %v947 = vadd.f32 %v858, %v941
    %v948 = vld [vmem:[%s5] sm:$0xff]
    %v949 = vld [vmem:[%s5 + $0x8] sm:$0xff]
    %v950 = vld [vmem:[%s5 + $0x10] sm:$0xff]
    %v951 = vld [vmem:[%s5 + $0x18] sm:$0xff]
    %v952 = vld [vmem:[%s6] sm:$0x1]
    %v954 = vlaneseq
    %v955 = vshrl.u32 %v954, 7
    %v956 = vsub.s32 0, %v955
    %v957 = vrot.slane %v952, %v956
    %v960 = vsel %vm65, %v944, 0
    %v963 = vsel %vm65, %v945, 0
    %v966 = vsel %vm65, %v946, 0
    %v969 = vsel %vm65, %v947, 0
    %971 = vmatprep.subr.mxu0 0.0
    %972 = vmatpush1.msra.mxu0 %v948
    %973 = vmatprep.subr.mxu0 0.0
    %974 = vmatpush1.msra.mxu0 %v949
    %975 = vmatprep.subr.mxu0 0.0
    %976 = vmatpush1.msra.mxu0 %v950
    %977 = vmatprep.subr.mxu0 0.0
    %978 = vmatpush1.msra.mxu0 %v951
    %979 = vmatprep.subr.mxu0 0.0
    %980 = vmatpush1.msra.mxu0 0.0
    %981 = vmatprep.subr.mxu0 0.0
    %982 = vmatpush1.msra.mxu0 0.0
    %983 = vmatprep.subr.mxu0 0.0
    %984 = vmatpush1.msra.mxu0 0.0
    %985 = vmatprep.subr.mxu0 0.0
    %986 = vmatpush1.msra.mxu0 0.0
    %987 = vmatprep.subr.mxu0 0.0
    %988 = vmatpush1.msra.mxu0 0.0
    %989 = vmatprep.subr.mxu0 0.0
    %990 = vmatpush1.msra.mxu0 0.0
    %991 = vmatprep.subr.mxu0 0.0
    %992 = vmatpush1.msra.mxu0 0.0
    %993 = vmatprep.subr.mxu0 0.0
    %994 = vmatpush1.msra.mxu0 0.0
    %995 = vmatprep.subr.mxu0 0.0
    %996 = vmatpush1.msra.mxu0 0.0
    %997 = vmatprep.subr.mxu0 0.0
    %998 = vmatpush1.msra.mxu0 0.0
    %999 = vmatprep.subr.mxu0 0.0
    %1000 = vmatpush1.msra.mxu0 0.0
    %1001 = vmatprep.subr.mxu0 0.0
    %1002 = vmatpush1.msra.mxu0 0.0
    %1003 = vmatprep.subr.mxu0 0.0
    %1004 = vmatpush1.msra.mxu0 0.0
    %1005 = vmatprep.subr.mxu0 0.0
    %1006 = vmatpush1.msra.mxu0 0.0
    %1007 = vmatprep.subr.mxu0 0.0
    %1008 = vmatpush1.msra.mxu0 0.0
    %1009 = vmatprep.subr.mxu0 0.0
    %1010 = vmatpush1.msra.mxu0 0.0
    %1011 = vmatprep.subr.mxu0 0.0
    %1012 = vmatpush1.msra.mxu0 0.0
    %1013 = vmatprep.subr.mxu0 0.0
    %1014 = vmatpush1.msra.mxu0 0.0
    %1015 = vmatprep.subr.mxu0 0.0
    %1016 = vmatpush1.msra.mxu0 0.0
    %1017 = vmatprep.subr.mxu0 0.0
    %1018 = vmatpush1.msra.mxu0 0.0
    %1019 = vmatprep.subr.mxu0 0.0
    %1020 = vmatpush1.msra.mxu0 0.0
    %1021 = vmatprep.subr.mxu0 0.0
    %1022 = vmatpush1.msra.mxu0 0.0
    %1023 = vmatprep.subr.mxu0 0.0
    %1024 = vmatpush1.msra.mxu0 0.0
    %1025 = vmatprep.subr.mxu0 0.0
    %1026 = vmatpush1.msra.mxu0 0.0
    %1027 = vmatprep.subr.mxu0 0.0
    %1028 = vmatpush1.msra.mxu0 0.0
    %1029 = vmatprep.subr.mxu0 0.0
    %1030 = vmatpush1.msra.mxu0 0.0
    %1031 = vmatprep.subr.mxu0 0.0
    %1032 = vmatpush1.msra.mxu0 0.0
    %1033 = vmatprep.subr.mxu0 0.0
    %1034 = vmatpush1.msra.mxu0 0.0
    %1035 = vmatprep.mubr.f32.mxu0 0.0
    %1036 = vmatmul.mubr.f32.gmra.mrb[0].mxu0 %v960
    %v1037 = vpop.f32.mrb[0].mxu0
    %v1038 = vadd.f32 %v957, %v1037
    %v1039 = vpop.f32.mrb[0].mxu0
    %1040 = vmatprep.mubr.f32.mxu0 0.0
    %1041 = vmatmul.mubr.f32.gmra.mrb[0].mxu0 %v963
    %v1042 = vpop.f32.mrb[0].mxu0
    %v1043 = vadd.f32 %v957, %v1042
    %v1044 = vpop.f32.mrb[0].mxu0
    %1045 = vmatprep.mubr.f32.mxu0 0.0
    %1046 = vmatmul.mubr.f32.gmra.mrb[0].mxu0 %v966
    %v1047 = vpop.f32.mrb[0].mxu0
    %v1048 = vadd.f32 %v957, %v1047
    %v1049 = vpop.f32.mrb[0].mxu0
    %1050 = vmatprep.mubr.f32.mxu0 0.0
    %1051 = vmatmul.mubr.f32.gmra.mrb[0].mxu0 %v969
    %v1052 = vpop.f32.mrb[0].mxu0
    %v1053 = vadd.f32 %v957, %v1052
    %v1054 = vpop.f32.mrb[0].mxu0
    %1055 = vdwg.mxu0
    %v1056 = vmax.f32 %v1038, 0.0
    %v1057 = vmax.f32 %v1043, 0.0
    %v1058 = vmax.f32 %v1048, 0.0
    %v1059 = vmax.f32 %v1053, 0.0
    %v1060 = vld [vmem:[%s7] sm:$0xff]
    %v1061 = vld [vmem:[%s7 + $0x8] sm:$0xff]
    %v1062 = vld [vmem:[%s7 + $0x10] sm:$0xff]
    %v1063 = vld [vmem:[%s7 + $0x18] sm:$0xff]
    %v1064 = vld [vmem:[%s8] sm:$0x1]
    %v1066 = vlaneseq
    %v1067 = vshrl.u32 %v1066, 7
    %v1068 = vsub.s32 0, %v1067
    %v1069 = vrot.slane %v1064, %v1068
    %v1072 = vsel %vm65, %v1056, 0
    %v1075 = vsel %vm65, %v1057, 0
    %v1078 = vsel %vm65, %v1058, 0
    %v1081 = vsel %vm65, %v1059, 0
    %1083 = vmatprep.subr.mxu0 0.0
    %1084 = vmatpush1.msra.mxu0 %v1060
    %1085 = vmatprep.subr.mxu0 0.0
    %1086 = vmatpush1.msra.mxu0 %v1061
    %1087 = vmatprep.subr.mxu0 0.0
    %1088 = vmatpush1.msra.mxu0 %v1062
    %1089 = vmatprep.subr.mxu0 0.0
    %1090 = vmatpush1.msra.mxu0 %v1063
    %1091 = vmatprep.subr.mxu0 0.0
    %1092 = vmatpush1.msra.mxu0 0.0
    %1093 = vmatprep.subr.mxu0 0.0
    %1094 = vmatpush1.msra.mxu0 0.0
    %1095 = vmatprep.subr.mxu0 0.0
    %1096 = vmatpush1.msra.mxu0 0.0
    %1097 = vmatprep.subr.mxu0 0.0
    %1098 = vmatpush1.msra.mxu0 0.0
    %1099 = vmatprep.subr.mxu0 0.0
    %1100 = vmatpush1.msra.mxu0 0.0
    %1101 = vmatprep.subr.mxu0 0.0
    %1102 = vmatpush1.msra.mxu0 0.0
    %1103 = vmatprep.subr.mxu0 0.0
    %1104 = vmatpush1.msra.mxu0 0.0
    %1105 = vmatprep.subr.mxu0 0.0
    %1106 = vmatpush1.msra.mxu0 0.0
    %1107 = vmatprep.subr.mxu0 0.0
    %1108 = vmatpush1.msra.mxu0 0.0
    %1109 = vmatprep.subr.mxu0 0.0
    %1110 = vmatpush1.msra.mxu0 0.0
    %1111 = vmatprep.subr.mxu0 0.0
    %1112 = vmatpush1.msra.mxu0 0.0
    %1113 = vmatprep.subr.mxu0 0.0
    %1114 = vmatpush1.msra.mxu0 0.0
    %1115 = vmatprep.subr.mxu0 0.0
    %1116 = vmatpush1.msra.mxu0 0.0
    %1117 = vmatprep.subr.mxu0 0.0
    %1118 = vmatpush1.msra.mxu0 0.0
    %1119 = vmatprep.subr.mxu0 0.0
    %1120 = vmatpush1.msra.mxu0 0.0
    %1121 = vmatprep.subr.mxu0 0.0
    %1122 = vmatpush1.msra.mxu0 0.0
    %1123 = vmatprep.subr.mxu0 0.0
    %1124 = vmatpush1.msra.mxu0 0.0
    %1125 = vmatprep.subr.mxu0 0.0
    %1126 = vmatpush1.msra.mxu0 0.0
    %1127 = vmatprep.subr.mxu0 0.0
    %1128 = vmatpush1.msra.mxu0 0.0
    %1129 = vmatprep.subr.mxu0 0.0
    %1130 = vmatpush1.msra.mxu0 0.0
    %1131 = vmatprep.subr.mxu0 0.0
    %1132 = vmatpush1.msra.mxu0 0.0
    %1133 = vmatprep.subr.mxu0 0.0
    %1134 = vmatpush1.msra.mxu0 0.0
    %1135 = vmatprep.subr.mxu0 0.0
    %1136 = vmatpush1.msra.mxu0 0.0
    %1137 = vmatprep.subr.mxu0 0.0
    %1138 = vmatpush1.msra.mxu0 0.0
    %1139 = vmatprep.subr.mxu0 0.0
    %1140 = vmatpush1.msra.mxu0 0.0
    %1141 = vmatprep.subr.mxu0 0.0
    %1142 = vmatpush1.msra.mxu0 0.0
    %1143 = vmatprep.subr.mxu0 0.0
    %1144 = vmatpush1.msra.mxu0 0.0
    %1145 = vmatprep.subr.mxu0 0.0
    %1146 = vmatpush1.msra.mxu0 0.0
    %1147 = vmatprep.mubr.f32.mxu0 0.0
    %1148 = vmatmul.mubr.f32.gmra.mrb[0].mxu0 %v1072
    %v1149 = vpop.f32.mrb[0].mxu0
    %v1150 = vadd.f32 %v1069, %v1149
    %v1151 = vpop.f32.mrb[0].mxu0
    %1152 = vmatprep.mubr.f32.mxu0 0.0
    %1153 = vmatmul.mubr.f32.gmra.mrb[0].mxu0 %v1075
    %v1154 = vpop.f32.mrb[0].mxu0
    %v1155 = vadd.f32 %v1069, %v1154
    %v1156 = vpop.f32.mrb[0].mxu0
    %1157 = vmatprep.mubr.f32.mxu0 0.0
    %1158 = vmatmul.mubr.f32.gmra.mrb[0].mxu0 %v1078
    %v1159 = vpop.f32.mrb[0].mxu0
    %v1160 = vadd.f32 %v1069, %v1159
    %v1161 = vpop.f32.mrb[0].mxu0
    %1162 = vmatprep.mubr.f32.mxu0 0.0
    %1163 = vmatmul.mubr.f32.gmra.mrb[0].mxu0 %v1081
    %v1164 = vpop.f32.mrb[0].mxu0
    %v1165 = vadd.f32 %v1069, %v1164
    %v1166 = vpop.f32.mrb[0].mxu0
    %1167 = vdwg.mxu0
    %v1169 = vsel %vm65, %v44, 0
    %v1172 = vsel %vm65, %v45, 0
    %v1175 = vsel %vm65, %v46, 0
    %v1178 = vsel %vm65, %v47, 0
    %v1181 = vsel %vm65, %v1150, 0
    %v1184 = vsel %vm65, %v1155, 0
    %v1187 = vsel %vm65, %v1160, 0
    %v1190 = vsel %vm65, %v1165, 0
    %1192 = vmatprep.subr.mxu0 0.0
    %1193 = vmatpush1.xpose.msra.mxu0 %v1181
    %1194 = vmatprep.subr.mxu0 0.0
    %1195 = vmatpush1.xpose.msra.mxu0 %v1184
    %1196 = vmatprep.subr.mxu0 0.0
    %1197 = vmatpush1.xpose.msra.mxu0 %v1187
    %1198 = vmatprep.subr.mxu0 0.0
    %1199 = vmatpush1.xpose.msra.mxu0 %v1190
    %1200 = vmatprep.subr.mxu0 0.0
    %1201 = vmatpush1.xpose.msra.mxu0 0.0
    %1202 = vmatprep.subr.mxu0 0.0
    %1203 = vmatpush1.xpose.msra.mxu0 0.0
    %1204 = vmatprep.subr.mxu0 0.0
    %1205 = vmatpush1.xpose.msra.mxu0 0.0
    %1206 = vmatprep.subr.mxu0 0.0
    %1207 = vmatpush1.xpose.msra.mxu0 0.0
    %1208 = vmatprep.subr.mxu0 0.0
    %1209 = vmatpush1.xpose.msra.mxu0 0.0
    %1210 = vmatprep.subr.mxu0 0.0
    %1211 = vmatpush1.xpose.msra.mxu0 0.0
    %1212 = vmatprep.subr.mxu0 0.0
    %1213 = vmatpush1.xpose.msra.mxu0 0.0
    %1214 = vmatprep.subr.mxu0 0.0
    %1215 = vmatpush1.xpose.msra.mxu0 0.0
    %1216 = vmatprep.subr.mxu0 0.0
    %1217 = vmatpush1.xpose.msra.mxu0 0.0
    %1218 = vmatprep.subr.mxu0 0.0
    %1219 = vmatpush1.xpose.msra.mxu0 0.0
    %1220 = vmatprep.subr.mxu0 0.0
    %1221 = vmatpush1.xpose.msra.mxu0 0.0
    %1222 = vmatprep.subr.mxu0 0.0
    %1223 = vmatpush1.xpose.msra.mxu0 0.0
    %1224 = vmatprep.subr.mxu0 0.0
    %1225 = vmatpush1.xpose.msra.mxu0 0.0
    %1226 = vmatprep.subr.mxu0 0.0
    %1227 = vmatpush1.xpose.msra.mxu0 0.0
    %1228 = vmatprep.subr.mxu0 0.0
    %1229 = vmatpush1.xpose.msra.mxu0 0.0
    %1230 = vmatprep.subr.mxu0 0.0
    %1231 = vmatpush1.xpose.msra.mxu0 0.0
    %1232 = vmatprep.subr.mxu0 0.0
    %1233 = vmatpush1.xpose.msra.mxu0 0.0
    %1234 = vmatprep.subr.mxu0 0.0
    %1235 = vmatpush1.xpose.msra.mxu0 0.0
    %1236 = vmatprep.subr.mxu0 0.0
    %1237 = vmatpush1.xpose.msra.mxu0 0.0
    %1238 = vmatprep.subr.mxu0 0.0
    %1239 = vmatpush1.xpose.msra.mxu0 0.0
    %1240 = vmatprep.subr.mxu0 0.0
    %1241 = vmatpush1.xpose.msra.mxu0 0.0
    %1242 = vmatprep.subr.mxu0 0.0
    %1243 = vmatpush1.xpose.msra.mxu0 0.0
    %1244 = vmatprep.subr.mxu0 0.0
    %1245 = vmatpush1.xpose.msra.mxu0 0.0
    %1246 = vmatprep.subr.mxu0 0.0
    %1247 = vmatpush1.xpose.msra.mxu0 0.0
    %1248 = vmatprep.subr.mxu0 0.0
    %1249 = vmatpush1.xpose.msra.mxu0 0.0
    %1250 = vmatprep.subr.mxu0 0.0
    %1251 = vmatpush1.xpose.msra.mxu0 0.0
    %1252 = vmatprep.subr.mxu0 0.0
    %1253 = vmatpush1.xpose.msra.mxu0 0.0
    %1254 = vmatprep.subr.mxu0 0.0
    %1255 = vmatpush1.xpose.msra.mxu0 0.0
    %1256 = vmatprep.mubr.f32.mxu0 0.0
    %1257 = vmatmul.mubr.f32.gmra.mrb[0].mxu0 %v1169
    %v1258 = vpop.f32.mrb[0].mxu0
    %v1259 = vadd.f32 0.0, %v1258
    %v1260 = vpop.f32.mrb[0].mxu0
    %1261 = vmatprep.mubr.f32.mxu0 0.0
    %1262 = vmatmul.mubr.f32.gmra.mrb[0].mxu0 %v1172
    %v1263 = vpop.f32.mrb[0].mxu0
    %v1264 = vadd.f32 0.0, %v1263
    %v1265 = vpop.f32.mrb[0].mxu0
    %1266 = vmatprep.mubr.f32.mxu0 0.0
    %1267 = vmatmul.mubr.f32.gmra.mrb[0].mxu0 %v1175
    %v1268 = vpop.f32.mrb[0].mxu0
    %v1269 = vadd.f32 0.0, %v1268
    %v1270 = vpop.f32.mrb[0].mxu0
    %1271 = vmatprep.mubr.f32.mxu0 0.0
    %1272 = vmatmul.mubr.f32.gmra.mrb[0].mxu0 %v1178
    %v1273 = vpop.f32.mrb[0].mxu0
    %v1274 = vadd.f32 0.0, %v1273
    %v1275 = vpop.f32.mrb[0].mxu0
    %1276 = vdwg.mxu0
    %v1277 = vadd.f32 %v1150, %v1259
    %v1278 = vadd.f32 %v1155, %v1264
    %v1279 = vadd.f32 %v1160, %v1269
    %v1280 = vadd.f32 %v1165, %v1274
    %v1281 = vmul.f32 %v1277, 0.5
    %v1282 = vmul.f32 %v1278, 0.5
    %v1283 = vmul.f32 %v1279, 0.5
    %v1284 = vmul.f32 %v1280, 0.5
    %v1285 = vsel %vm40, 1.0, %v1281
    %v1286 = vsel %vm41, 1.0, %v1282
    %v1287 = vsel %vm42, 1.0, %v1283
    %v1288 = vsel %vm43, 1.0, %v1284
    %v1289 = vand.u32 2147483647, %v1285
    %v1290 = vand.u32 2147483647, %v1286
    %v1291 = vand.u32 2147483647, %v1287
    %v1292 = vand.u32 2147483647, %v1288
    %1293 = vst.msk [vmem:[#allocation2] sm:$0xff] %vm65, %v1289
    %1294 = vst.msk [vmem:[#allocation2 + $0x8] sm:$0xff] %vm65, %v1290
    %1295 = vst.msk [vmem:[#allocation2 + $0x10] sm:$0xff] %vm65, %v1291
    %1296 = vst.msk [vmem:[#allocation2 + $0x18] sm:$0xff] %vm65, %v1292
    // Predicated region
    $region38: #{iwas_agsrnet_forward.3} parent=1 // pred_check
      _
    $region39: #{iwas_agsrnet_forward.3} parent=1 // pred_check_branch
      %1298 = sbr.rel (0) target = $region41
    $region40: #{iwas_agsrnet_forward.3} parent=1 // pred_region
      %s1300 = ssub.s32 512, 512
      %1301 = vsyncadd [#allocation3], %s1300
      %s1302 = sshll.u32 [#allocation2], 4
      %s1303 = int_to_ptr.vmem [resolvable:$true] %s1302
      %1308 = dma.vmem_to_hbm [thread:$0]  %s1303, 512, %s9, [#allocation3], 128, 128, 8
    $region41: #{iwas_agsrnet_forward.3} parent=1 // pred_fallthru
      _
    // Predicated region
    $region42: #{iwas_agsrnet_forward.3} parent=1 // pred_check
      _
    $region43: #{iwas_agsrnet_forward.3} parent=1 // pred_check_branch
      %1310 = sbr.rel (0) target = $region45
    $region44: #{iwas_agsrnet_forward.3} parent=1 // pred_region
      %1311 = dma.done [#allocation3], 512
    $region45: #{iwas_agsrnet_forward.3} parent=1 // pred_fallthru
      _
    %1312 = vsyncpa [#allocation3], 1

// kernel: iwas_agsrnet_forward.2
$region0: #{iwas_agsrnet_forward.2}
  #allocation0 [shape = 'u32[]', space=smem, size = 0x4, offset = 0x4, fixed_abs, tag = 'smem constant byte address 0x4 - core index']
  #allocation1 [shape = 'u32[144,128]{1,0:T(1,128)}', space=vmem, size = 0x12000, scoped, tag = 'internal scratch']
  #allocation2 [shape = 'f32[1,1]{1,0:T(1,128)S(1)}', space=vmem, size = 0x200, scoped, tag = 'scoped memory for iwas_agsrnet_forward.2']
  %s0 = inlined_call_operand.vmem [shape: f32[16,16], index: 0, kind: input, shape index: {}]
  %s1 = inlined_call_operand.vmem [shape: f32[16,32], index: 1, kind: input, shape index: {}]
  %s2 = inlined_call_operand.vmem [shape: f32[1,32], index: 2, kind: input, shape index: {}]
  %s3 = inlined_call_operand.vmem [shape: f32[1,32], index: 3, kind: input, shape index: {}]
  %s4 = inlined_call_operand.vmem [shape: f32[32,32], index: 4, kind: input, shape index: {}]
  %s5 = inlined_call_operand.vmem [shape: f32[1,32], index: 5, kind: input, shape index: {}]
  %s6 = inlined_call_operand.vmem [shape: f32[1,32], index: 6, kind: input, shape index: {}]
  %s7 = inlined_call_operand.vmem [shape: f32[64,32], index: 7, kind: input, shape index: {}]
  %s8 = inlined_call_operand.vmem [shape: f32[1,32], index: 8, kind: input, shape index: {}]
  %s9 = inlined_call_operand.vmem [shape: f32[1,32], index: 9, kind: input, shape index: {}]
  %s10 = inlined_call_operand.vmem [shape: f32[32,32], index: 10, kind: input, shape index: {}]
  %s11 = inlined_call_operand.vmem [shape: f32[1,32], index: 11, kind: input, shape index: {}]
  %s12 = inlined_call_operand.vmem [shape: f32[32,1], index: 12, kind: input, shape index: {}]
  %s13 = inlined_call_operand.<no memory space> [shape: f32[1,1], index: 13, kind: input, shape index: {}]
  %s14 = inlined_call_operand.vmem [shape: f32[32,32], index: 14, kind: input, shape index: {}]
  %s15 = inlined_call_operand.vmem [shape: f32[1,32], index: 15, kind: input, shape index: {}]
  %s16 = inlined_call_operand.vmem [shape: f32[16,16], index: 16, kind: output, shape index: {0}]
  %s17 = inlined_call_operand.vmem [shape: f32[16,32], index: 17, kind: output, shape index: {1}]
  %s18 = inlined_call_operand.hbm [shape: f32[16,32], index: 18, kind: output, shape index: {2}]
  %19 = xla_tuple %s16, %s17, %s18
  %s20 = sld [smem:[#allocation0]]
  $region90: #{iwas_agsrnet_forward.2} parent=0
    _
  %s22 = ssub.s32 1, %s20
  %s23 = scalar_select 0, %s22, %s20
  %v24 = vstv %s13
  %25 = vst [vmem:[#allocation2] sm:$0x1] %v24
  $region1: #{iwas_agsrnet_forward.2} parent=0
    #allocation3 [shape = 'u8[8192]{0}', space=vmem, size = 0x2000, scoped, tag = 'output window, operand 2, single buffered']
    #allocation4 [shape = 's32[1]{0}', space=sflag, size = 0x4, scoped, tag = 'scoped memory for iwas_agsrnet_forward.2']
    %26 = vsyncpa [#allocation4], 0
    // Predicated region
    $region2: #{iwas_agsrnet_forward.2} parent=1 // pred_check
      _
    $region3: #{iwas_agsrnet_forward.2} parent=1 // pred_check_branch
      %28 = sbr.rel (0) target = $region5
    $region4: #{iwas_agsrnet_forward.2} parent=1 // pred_region
      _
    $region5: #{iwas_agsrnet_forward.2} parent=1 // pred_fallthru
      _
    // Predicated region
    $region6: #{iwas_agsrnet_forward.2} parent=1 // pred_check
      _
    $region7: #{iwas_agsrnet_forward.2} parent=1 // pred_check_branch
      %30 = sbr.rel (0) target = $region9
    $region8: #{iwas_agsrnet_forward.2} parent=1 // pred_region
      _
    $region9: #{iwas_agsrnet_forward.2} parent=1 // pred_fallthru
      _
    // Predicated region
    $region10: #{iwas_agsrnet_forward.2} parent=1 // pred_check
      _
    $region11: #{iwas_agsrnet_forward.2} parent=1 // pred_check_branch
      %32 = sbr.rel (0) target = $region13
    $region12: #{iwas_agsrnet_forward.2} parent=1 // pred_region
      _
    $region13: #{iwas_agsrnet_forward.2} parent=1 // pred_fallthru
      _
    // Predicated region
    $region14: #{iwas_agsrnet_forward.2} parent=1 // pred_check
      _
    $region15: #{iwas_agsrnet_forward.2} parent=1 // pred_check_branch
      %34 = sbr.rel (0) target = $region17
    $region16: #{iwas_agsrnet_forward.2} parent=1 // pred_region
      _
    $region17: #{iwas_agsrnet_forward.2} parent=1 // pred_fallthru
      _
    // Predicated region
    $region18: #{iwas_agsrnet_forward.2} parent=1 // pred_check
      _
    $region19: #{iwas_agsrnet_forward.2} parent=1 // pred_check_branch
      %36 = sbr.rel (0) target = $region21
    $region20: #{iwas_agsrnet_forward.2} parent=1 // pred_region
      _
    $region21: #{iwas_agsrnet_forward.2} parent=1 // pred_fallthru
      _
    // Predicated region
    $region22: #{iwas_agsrnet_forward.2} parent=1 // pred_check
      _
    $region23: #{iwas_agsrnet_forward.2} parent=1 // pred_check_branch
      %38 = sbr.rel (0) target = $region25
    $region24: #{iwas_agsrnet_forward.2} parent=1 // pred_region
      _
    $region25: #{iwas_agsrnet_forward.2} parent=1 // pred_fallthru
      _
    // Predicated region
    $region26: #{iwas_agsrnet_forward.2} parent=1 // pred_check
      _
    $region27: #{iwas_agsrnet_forward.2} parent=1 // pred_check_branch
      %40 = sbr.rel (0) target = $region29
    $region28: #{iwas_agsrnet_forward.2} parent=1 // pred_region
      _
    $region29: #{iwas_agsrnet_forward.2} parent=1 // pred_fallthru
      _
    // Predicated region
    $region30: #{iwas_agsrnet_forward.2} parent=1 // pred_check
      _
    $region31: #{iwas_agsrnet_forward.2} parent=1 // pred_check_branch
      %42 = sbr.rel (0) target = $region33
    $region32: #{iwas_agsrnet_forward.2} parent=1 // pred_region
      _
    $region33: #{iwas_agsrnet_forward.2} parent=1 // pred_fallthru
      _
    // Predicated region
    $region34: #{iwas_agsrnet_forward.2} parent=1 // pred_check
      _
    $region35: #{iwas_agsrnet_forward.2} parent=1 // pred_check_branch
      %44 = sbr.rel (0) target = $region37
    $region36: #{iwas_agsrnet_forward.2} parent=1 // pred_region
      _
    $region37: #{iwas_agsrnet_forward.2} parent=1 // pred_fallthru
      _
    // Predicated region
    $region38: #{iwas_agsrnet_forward.2} parent=1 // pred_check
      _
    $region39: #{iwas_agsrnet_forward.2} parent=1 // pred_check_branch
      %46 = sbr.rel (0) target = $region41
    $region40: #{iwas_agsrnet_forward.2} parent=1 // pred_region
      _
    $region41: #{iwas_agsrnet_forward.2} parent=1 // pred_fallthru
      _
    // Predicated region
    $region42: #{iwas_agsrnet_forward.2} parent=1 // pred_check
      _
    $region43: #{iwas_agsrnet_forward.2} parent=1 // pred_check_branch
      %48 = sbr.rel (0) target = $region45
    $region44: #{iwas_agsrnet_forward.2} parent=1 // pred_region
      _
    $region45: #{iwas_agsrnet_forward.2} parent=1 // pred_fallthru
      _
    // Predicated region
    $region46: #{iwas_agsrnet_forward.2} parent=1 // pred_check
      _
    $region47: #{iwas_agsrnet_forward.2} parent=1 // pred_check_branch
      %50 = sbr.rel (0) target = $region49
    $region48: #{iwas_agsrnet_forward.2} parent=1 // pred_region
      _
    $region49: #{iwas_agsrnet_forward.2} parent=1 // pred_fallthru
      _
    // Predicated region
    $region50: #{iwas_agsrnet_forward.2} parent=1 // pred_check
      _
    $region51: #{iwas_agsrnet_forward.2} parent=1 // pred_check_branch
      %52 = sbr.rel (0) target = $region53
    $region52: #{iwas_agsrnet_forward.2} parent=1 // pred_region
      _
    $region53: #{iwas_agsrnet_forward.2} parent=1 // pred_fallthru
      _
    // Predicated region
    $region54: #{iwas_agsrnet_forward.2} parent=1 // pred_check
      _
    $region55: #{iwas_agsrnet_forward.2} parent=1 // pred_check_branch
      %54 = sbr.rel (0) target = $region57
    $region56: #{iwas_agsrnet_forward.2} parent=1 // pred_region
      _
    $region57: #{iwas_agsrnet_forward.2} parent=1 // pred_fallthru
      _
    // Predicated region
    $region58: #{iwas_agsrnet_forward.2} parent=1 // pred_check
      _
    $region59: #{iwas_agsrnet_forward.2} parent=1 // pred_check_branch
      %56 = sbr.rel (0) target = $region61
    $region60: #{iwas_agsrnet_forward.2} parent=1 // pred_region
      _
    $region61: #{iwas_agsrnet_forward.2} parent=1 // pred_fallthru
      _
    // Predicated region
    $region62: #{iwas_agsrnet_forward.2} parent=1 // pred_check
      _
    $region63: #{iwas_agsrnet_forward.2} parent=1 // pred_check_branch
      %58 = sbr.rel (0) target = $region65
    $region64: #{iwas_agsrnet_forward.2} parent=1 // pred_region
      _
    $region65: #{iwas_agsrnet_forward.2} parent=1 // pred_fallthru
      _
    %v59 = vld [vmem:[%s0] sm:$0xff]
    %v60 = vld [vmem:[%s0 + $0x8] sm:$0xff]
    %v61 = vld [vmem:[%s1] sm:$0xff]
    %v62 = vld [vmem:[%s1 + $0x8] sm:$0xff]
    %v63 = vld [vmem:[%s2] sm:$0x1]
    %v64 = vld [vmem:[%s3] sm:$0x1]
    %v65 = vld [vmem:[%s4] sm:$0xff]
    %v66 = vld [vmem:[%s4 + $0x8] sm:$0xff]
    %v67 = vld [vmem:[%s4 + $0x10] sm:$0xff]
    %v68 = vld [vmem:[%s4 + $0x18] sm:$0xff]
    %v69 = vld [vmem:[%s5] sm:$0x1]
    %v70 = vld [vmem:[%s6] sm:$0x1]
    %v71 = vld [vmem:[%s7] sm:$0xff]
    %v72 = vld [vmem:[%s7 + $0x8] sm:$0xff]
    %v73 = vld [vmem:[%s7 + $0x10] sm:$0xff]
    %v74 = vld [vmem:[%s7 + $0x18] sm:$0xff]
    %v75 = vld [vmem:[%s7 + $0x20] sm:$0xff]
    %v76 = vld [vmem:[%s7 + $0x28] sm:$0xff]
    %v77 = vld [vmem:[%s7 + $0x30] sm:$0xff]
    %v78 = vld [vmem:[%s7 + $0x38] sm:$0xff]
    %v79 = vld [vmem:[%s8] sm:$0x1]
    %v80 = vld [vmem:[%s9] sm:$0x1]
    %v81 = vld [vmem:[%s10] sm:$0xff]
    %v82 = vld [vmem:[%s10 + $0x8] sm:$0xff]
    %v83 = vld [vmem:[%s10 + $0x10] sm:$0xff]
    %v84 = vld [vmem:[%s10 + $0x18] sm:$0xff]
    %v85 = vld [vmem:[%s11] sm:$0x1]
    %v86 = vld [vmem:[%s12] sm:$0xff]
    %v87 = vld [vmem:[%s12 + $0x8] sm:$0xff]
    %v88 = vld [vmem:[%s12 + $0x10] sm:$0xff]
    %v89 = vld [vmem:[%s12 + $0x18] sm:$0xff]
    %v90 = vld [vmem:[#allocation2] sm:$0x1]
    %v91 = vld [vmem:[%s14] sm:$0xff]
    %v92 = vld [vmem:[%s14 + $0x8] sm:$0xff]
    %v93 = vld [vmem:[%s14 + $0x10] sm:$0xff]
    %v94 = vld [vmem:[%s14 + $0x18] sm:$0xff]
    %v95 = vld [vmem:[%s15] sm:$0x1]
    %v96 = vlaneseq
    %v97 = vshrl.u32 %v96, 7
    %v98 = vadd.s32 %v97, 8
    %v99 = vlaneseq
    %v100 = vand.u32 %v99, 127
    %vm101 = vcmp.eq.s32.totalorder %v97, %v100
    %vm102 = vcmp.eq.s32.totalorder %v98, %v100
    %v103 = vsel %vm101, 1.0, 0.0
    %v104 = vsel %vm102, 1.0, 0.0
    %vm105 = vcmask 130048
    %v106 = vsel %vm105, %v59, 0.0
    %107 = vadd.xlane.f32.xlu0 %v106
    %v108 = vpop.xlane.xlu0 %107
    %v109 = vsel %vm105, %v60, 0.0
    %110 = vadd.xlane.f32.xlu0 %v109
    %v111 = vpop.xlane.xlu0 %110
    %vm112 = vcmp.gt.f32.partialorder %v108, 0.0
    %vm113 = vcmp.gt.f32.partialorder %v111, 0.0
    %v114 = vrsqrt.pop %v108
    %v115 = vrsqrt.pop %v111
    %v116 = vsel %vm112, %v114, 0.0
    %v117 = vsel %vm113, %v115, 0.0
    %v118 = vmul.f32 %v59, %v116
    %v119 = vmul.f32 %v60, %v117
    %v121 = vsel %vm105, %v103, 0
    %v124 = vsel %vm105, %v104, 0
    %v127 = vsel %vm105, %v118, 0
    %v130 = vsel %vm105, %v119, 0
    %132 = vmatprep.subr.mxu0 0.0
    %133 = vmatpush1.xpose.msra.mxu0 %v127
    %134 = vmatprep.subr.mxu0 0.0
    %135 = vmatpush1.xpose.msra.mxu0 %v130
    %136 = vmatprep.subr.mxu0 0.0
    %137 = vmatpush1.xpose.msra.mxu0 0.0
    %138 = vmatprep.subr.mxu0 0.0
    %139 = vmatpush1.xpose.msra.mxu0 0.0
    %140 = vmatprep.subr.mxu0 0.0
    %141 = vmatpush1.xpose.msra.mxu0 0.0
    %142 = vmatprep.subr.mxu0 0.0
    %143 = vmatpush1.xpose.msra.mxu0 0.0
    %144 = vmatprep.subr.mxu0 0.0
    %145 = vmatpush1.xpose.msra.mxu0 0.0
    %146 = vmatprep.subr.mxu0 0.0
    %147 = vmatpush1.xpose.msra.mxu0 0.0
    %148 = vmatprep.subr.mxu0 0.0
    %149 = vmatpush1.xpose.msra.mxu0 0.0
    %150 = vmatprep.subr.mxu0 0.0
    %151 = vmatpush1.xpose.msra.mxu0 0.0
    %152 = vmatprep.subr.mxu0 0.0
    %153 = vmatpush1.xpose.msra.mxu0 0.0
    %154 = vmatprep.subr.mxu0 0.0
    %155 = vmatpush1.xpose.msra.mxu0 0.0
    %156 = vmatprep.subr.mxu0 0.0
    %157 = vmatpush1.xpose.msra.mxu0 0.0
    %158 = vmatprep.subr.mxu0 0.0
    %159 = vmatpush1.xpose.msra.mxu0 0.0
    %160 = vmatprep.subr.mxu0 0.0
    %161 = vmatpush1.xpose.msra.mxu0 0.0
    %162 = vmatprep.subr.mxu0 0.0
    %163 = vmatpush1.xpose.msra.mxu0 0.0
    %164 = vmatprep.subr.mxu0 0.0
    %165 = vmatpush1.xpose.msra.mxu0 0.0
    %166 = vmatprep.subr.mxu0 0.0
    %167 = vmatpush1.xpose.msra.mxu0 0.0
    %168 = vmatprep.subr.mxu0 0.0
    %169 = vmatpush1.xpose.msra.mxu0 0.0
    %170 = vmatprep.subr.mxu0 0.0
    %171 = vmatpush1.xpose.msra.mxu0 0.0
    %172 = vmatprep.subr.mxu0 0.0
    %173 = vmatpush1.xpose.msra.mxu0 0.0
    %174 = vmatprep.subr.mxu0 0.0
    %175 = vmatpush1.xpose.msra.mxu0 0.0
    %176 = vmatprep.subr.mxu0 0.0
    %177 = vmatpush1.xpose.msra.mxu0 0.0
    %178 = vmatprep.subr.mxu0 0.0
    %179 = vmatpush1.xpose.msra.mxu0 0.0
    %180 = vmatprep.subr.mxu0 0.0
    %181 = vmatpush1.xpose.msra.mxu0 0.0
    %182 = vmatprep.subr.mxu0 0.0
    %183 = vmatpush1.xpose.msra.mxu0 0.0
    %184 = vmatprep.subr.mxu0 0.0
    %185 = vmatpush1.xpose.msra.mxu0 0.0
    %186 = vmatprep.subr.mxu0 0.0
    %187 = vmatpush1.xpose.msra.mxu0 0.0
    %188 = vmatprep.subr.mxu0 0.0
    %189 = vmatpush1.xpose.msra.mxu0 0.0
    %190 = vmatprep.subr.mxu0 0.0
    %191 = vmatpush1.xpose.msra.mxu0 0.0
    %192 = vmatprep.subr.mxu0 0.0
    %193 = vmatpush1.xpose.msra.mxu0 0.0
    %194 = vmatprep.subr.mxu0 0.0
    %195 = vmatpush1.xpose.msra.mxu0 0.0
    %196 = vmatprep.mubr.f32.mxu0 0.0
    %197 = vmatmul.mubr.f32.gmra.mrb[0].mxu0 %v121
    %v198 = vpop.f32.mrb[0].mxu0
    %v199 = vadd.f32 0.0, %v198
    %v200 = vpop.f32.mrb[0].mxu0
    %201 = vmatprep.mubr.f32.mxu0 0.0
    %202 = vmatmul.mubr.f32.gmra.mrb[0].mxu0 %v124
    %v203 = vpop.f32.mrb[0].mxu0
    %v204 = vadd.f32 0.0, %v203
    %v205 = vpop.f32.mrb[0].mxu0
    %206 = vdwg.mxu0
    %v207 = vmul.f32 %v116, %v199
    %v208 = vmul.f32 %v117, %v204
    %209 = vst.msk [vmem:[%s16] sm:$0xff] %vm105, %v207
    %210 = vst.msk [vmem:[%s16 + $0x8] sm:$0xff] %vm105, %v208
    %v212 = vlaneseq
    %v213 = vshrl.u32 %v212, 7
    %v214 = vsub.s32 0, %v213
    %v215 = vrot.slane %v63, %v214
    %v217 = vmul.f32 %v61, %v215
    %v218 = vmul.f32 %v62, %v215
    %vm219 = vcmask 261120
    %v220 = vsel %vm219, %v217, 0.0
    %221 = vadd.xlane.f32.xlu0 %v220
    %v222 = vpop.xlane.xlu0 %221
    %v223 = vsel %vm219, %v218, 0.0
    %224 = vadd.xlane.f32.xlu0 %v223
    %v225 = vpop.xlane.xlu0 %224
    %v227 = vsel %vm219, %v64, 0
    %v230 = vsel %vm219, %v61, 0
    %v233 = vsel %vm219, %v62, 0
    %235 = vmatprep.subr.mxu0 0.0
    %236 = vmatpush1.xpose.msra.mxu0 %v230
    %237 = vmatprep.subr.mxu0 0.0
    %238 = vmatpush1.xpose.msra.mxu0 %v233
    %239 = vmatprep.subr.mxu0 0.0
    %240 = vmatpush1.xpose.msra.mxu0 0.0
    %241 = vmatprep.subr.mxu0 0.0
    %242 = vmatpush1.xpose.msra.mxu0 0.0
    %243 = vmatprep.subr.mxu0 0.0
    %244 = vmatpush1.xpose.msra.mxu0 0.0
    %245 = vmatprep.subr.mxu0 0.0
    %246 = vmatpush1.xpose.msra.mxu0 0.0
    %247 = vmatprep.subr.mxu0 0.0
    %248 = vmatpush1.xpose.msra.mxu0 0.0
    %249 = vmatprep.subr.mxu0 0.0
    %250 = vmatpush1.xpose.msra.mxu0 0.0
    %251 = vmatprep.subr.mxu0 0.0
    %252 = vmatpush1.xpose.msra.mxu0 0.0
    %253 = vmatprep.subr.mxu0 0.0
    %254 = vmatpush1.xpose.msra.mxu0 0.0
    %255 = vmatprep.subr.mxu0 0.0
    %256 = vmatpush1.xpose.msra.mxu0 0.0
    %257 = vmatprep.subr.mxu0 0.0
    %258 = vmatpush1.xpose.msra.mxu0 0.0
    %259 = vmatprep.subr.mxu0 0.0
    %260 = vmatpush1.xpose.msra.mxu0 0.0
    %261 = vmatprep.subr.mxu0 0.0
    %262 = vmatpush1.xpose.msra.mxu0 0.0
    %263 = vmatprep.subr.mxu0 0.0
    %264 = vmatpush1.xpose.msra.mxu0 0.0
    %265 = vmatprep.subr.mxu0 0.0
    %266 = vmatpush1.xpose.msra.mxu0 0.0
    %267 = vmatprep.subr.mxu0 0.0
    %268 = vmatpush1.xpose.msra.mxu0 0.0
    %269 = vmatprep.subr.mxu0 0.0
    %270 = vmatpush1.xpose.msra.mxu0 0.0
    %271 = vmatprep.subr.mxu0 0.0
    %272 = vmatpush1.xpose.msra.mxu0 0.0
    %273 = vmatprep.subr.mxu0 0.0
    %274 = vmatpush1.xpose.msra.mxu0 0.0
    %275 = vmatprep.subr.mxu0 0.0
    %276 = vmatpush1.xpose.msra.mxu0 0.0
    %277 = vmatprep.subr.mxu0 0.0
    %278 = vmatpush1.xpose.msra.mxu0 0.0
    %279 = vmatprep.subr.mxu0 0.0
    %280 = vmatpush1.xpose.msra.mxu0 0.0
    %281 = vmatprep.subr.mxu0 0.0
    %282 = vmatpush1.xpose.msra.mxu0 0.0
    %283 = vmatprep.subr.mxu0 0.0
    %284 = vmatpush1.xpose.msra.mxu0 0.0
    %285 = vmatprep.subr.mxu0 0.0
    %286 = vmatpush1.xpose.msra.mxu0 0.0
    %287 = vmatprep.subr.mxu0 0.0
    %288 = vmatpush1.xpose.msra.mxu0 0.0
    %289 = vmatprep.subr.mxu0 0.0
    %290 = vmatpush1.xpose.msra.mxu0 0.0
    %291 = vmatprep.subr.mxu0 0.0
    %292 = vmatpush1.xpose.msra.mxu0 0.0
    %293 = vmatprep.subr.mxu0 0.0
    %294 = vmatpush1.xpose.msra.mxu0 0.0
    %295 = vmatprep.subr.mxu0 0.0
    %296 = vmatpush1.xpose.msra.mxu0 0.0
    %297 = vmatprep.subr.mxu0 0.0
    %298 = vmatpush1.xpose.msra.mxu0 0.0
    %299 = vmatprep.mubr.f32.mxu0 0.0
    %300 = vmatmul.mubr.f32.gmra.mrb[0].mxu0 %v227
    %v301 = vpop.f32.mrb[0].mxu0
    %v302 = vadd.f32 0.0, %v301
    %v303 = vpop.f32.mrb[0].mxu0
    %304 = vdwg.mxu0
    %v305 = vlaneseq
    %v306 = vshrl.u32 %v305, 7
    %v307 = vsub.s32 0, %v306
    %v308 = vrot.slane %v302, %v307
    %v309 = vadd.f32 %v222, %v308
    %v310 = vadd.f32 %v225, %v308
    %vm311 = vcmp.gt.f32.partialorder %v309, 0.0
    %vm312 = vcmp.gt.f32.partialorder %v310, 0.0
    %v313 = vmul.f32 %v309, 0.2
    %v314 = vmul.f32 %v310, 0.2
    %v315 = vsel %vm311, %v309, %v313
    %v316 = vsel %vm312, %v310, %v314
    %vm317 = vcmp.gt.f32.partialorder %v207, 0.0
    %vm318 = vcmp.gt.f32.partialorder %v208, 0.0
    %v319 = vsel %vm317, %v315, -9e+15
    %v320 = vsel %vm318, %v316, -9e+15
    %v321 = vsel %vm105, %v319, -inf
    %322 = vmax.xlane.f32.xlu0 %v321
    %v323 = vpop.xlane.xlu0 %322
    %v324 = vsel %vm105, %v320, -inf
    %325 = vmax.xlane.f32.xlu0 %v324
    %v326 = vpop.xlane.xlu0 %325
    %v327 = vsub.f32 %v319, %v323
    %v328 = vsub.f32 %v320, %v326
    %v329 = vmul.f32 %v327, 1.442695
    %v330 = vpow.pop %v329
    %v331 = vmul.f32 %v328, 1.442695
    %v332 = vpow.pop %v331
    %v333 = vsel %vm105, %v330, 0.0
    %334 = vadd.xlane.f32.xlu0 %v333
    %v335 = vpop.xlane.xlu0 %334
    %v336 = vsel %vm105, %v332, 0.0
    %337 = vadd.xlane.f32.xlu0 %v336
    %v338 = vpop.xlane.xlu0 %337
    %v339 = vrcp.pop %v335
    %v340 = vrcp.pop %v338
    %v341 = vmul.f32 %v330, %v339
    %v342 = vmul.f32 %v332, %v340
    %v344 = vsel %vm105, %v341, 0
    %v347 = vsel %vm105, %v342, 0
    %349 = vmatprep.subr.mxu0 0.0
    %350 = vmatpush1.msra.mxu0 %v61
    %351 = vmatprep.subr.mxu0 0.0
    %352 = vmatpush1.msra.mxu0 %v62
    %353 = vmatprep.subr.mxu0 0.0
    %354 = vmatpush1.msra.mxu0 0.0
    %355 = vmatprep.subr.mxu0 0.0
    %356 = vmatpush1.msra.mxu0 0.0
    %357 = vmatprep.subr.mxu0 0.0
    %358 = vmatpush1.msra.mxu0 0.0
    %359 = vmatprep.subr.mxu0 0.0
    %360 = vmatpush1.msra.mxu0 0.0
    %361 = vmatprep.subr.mxu0 0.0
    %362 = vmatpush1.msra.mxu0 0.0
    %363 = vmatprep.subr.mxu0 0.0
    %364 = vmatpush1.msra.mxu0 0.0
    %365 = vmatprep.subr.mxu0 0.0
    %366 = vmatpush1.msra.mxu0 0.0
    %367 = vmatprep.subr.mxu0 0.0
    %368 = vmatpush1.msra.mxu0 0.0
    %369 = vmatprep.subr.mxu0 0.0
    %370 = vmatpush1.msra.mxu0 0.0
    %371 = vmatprep.subr.mxu0 0.0
    %372 = vmatpush1.msra.mxu0 0.0
    %373 = vmatprep.subr.mxu0 0.0
    %374 = vmatpush1.msra.mxu0 0.0
    %375 = vmatprep.subr.mxu0 0.0
    %376 = vmatpush1.msra.mxu0 0.0
    %377 = vmatprep.subr.mxu0 0.0
    %378 = vmatpush1.msra.mxu0 0.0
    %379 = vmatprep.subr.mxu0 0.0
    %380 = vmatpush1.msra.mxu0 0.0
    %381 = vmatprep.subr.mxu0 0.0
    %382 = vmatpush1.msra.mxu0 0.0
    %383 = vmatprep.subr.mxu0 0.0
    %384 = vmatpush1.msra.mxu0 0.0
    %385 = vmatprep.subr.mxu0 0.0
    %386 = vmatpush1.msra.mxu0 0.0
    %387 = vmatprep.subr.mxu0 0.0
    %388 = vmatpush1.msra.mxu0 0.0
    %389 = vmatprep.subr.mxu0 0.0
    %390 = vmatpush1.msra.mxu0 0.0
    %391 = vmatprep.subr.mxu0 0.0
    %392 = vmatpush1.msra.mxu0 0.0
    %393 = vmatprep.subr.mxu0 0.0
    %394 = vmatpush1.msra.mxu0 0.0
    %395 = vmatprep.subr.mxu0 0.0
    %396 = vmatpush1.msra.mxu0 0.0
    %397 = vmatprep.subr.mxu0 0.0
    %398 = vmatpush1.msra.mxu0 0.0
    %399 = vmatprep.subr.mxu0 0.0
    %400 = vmatpush1.msra.mxu0 0.0
    %401 = vmatprep.subr.mxu0 0.0
    %402 = vmatpush1.msra.mxu0 0.0
    %403 = vmatprep.subr.mxu0 0.0
    %404 = vmatpush1.msra.mxu0 0.0
    %405 = vmatprep.subr.mxu0 0.0
    %406 = vmatpush1.msra.mxu0 0.0
    %407 = vmatprep.subr.mxu0 0.0
    %408 = vmatpush1.msra.mxu0 0.0
    %409 = vmatprep.subr.mxu0 0.0
    %410 = vmatpush1.msra.mxu0 0.0
    %411 = vmatprep.subr.mxu0 0.0
    %412 = vmatpush1.msra.mxu0 0.0
    %413 = vmatprep.mubr.f32.mxu0 0.0
    %414 = vmatmul.mubr.f32.gmra.mrb[0].mxu0 %v344
    %v415 = vpop.f32.mrb[0].mxu0
    %v416 = vadd.f32 0.0, %v415
    %v417 = vpop.f32.mrb[0].mxu0
    %418 = vmatprep.mubr.f32.mxu0 0.0
    %419 = vmatmul.mubr.f32.gmra.mrb[0].mxu0 %v347
    %v420 = vpop.f32.mrb[0].mxu0
    %v421 = vadd.f32 0.0, %v420
    %v422 = vpop.f32.mrb[0].mxu0
    %423 = vdwg.mxu0
    %vm424 = vcmp.gt.f32.partialorder %v416, 0.0
    %vm425 = vcmp.gt.f32.partialorder %v421, 0.0
    %v426 = vmin.f32 %v416, 0.0
    %v427 = vmin.f32 %v421, 0.0
    %v428 = vmul.f32 %v426, 1.442695
    %v429 = vpow.pop %v428
    %v430 = vmul.f32 %v427, 1.442695
    %v431 = vpow.pop %v430
    %v432 = vsub.f32 %v429, 1.0
    %v433 = vsub.f32 %v431, 1.0
    %v434 = vsel %vm424, %v416, %v432
    %v435 = vsel %vm425, %v421, %v433
    %436 = vst.msk [vmem:[#allocation3] sm:$0xff] %vm219, %v434
    %437 = vst.msk [vmem:[#allocation3 + $0x8] sm:$0xff] %vm219, %v435
    %v439 = vsel %vm105, %v207, 0
    %v442 = vsel %vm105, %v208, 0
    %444 = vmatprep.subr.mxu0 0.0
    %445 = vmatpush1.msra.mxu0 %v434
    %446 = vmatprep.subr.mxu0 0.0
    %447 = vmatpush1.msra.mxu0 %v435
    %448 = vmatprep.subr.mxu0 0.0
    %449 = vmatpush1.msra.mxu0 0.0
    %450 = vmatprep.subr.mxu0 0.0
    %451 = vmatpush1.msra.mxu0 0.0
    %452 = vmatprep.subr.mxu0 0.0
    %453 = vmatpush1.msra.mxu0 0.0
    %454 = vmatprep.subr.mxu0 0.0
    %455 = vmatpush1.msra.mxu0 0.0
    %456 = vmatprep.subr.mxu0 0.0
    %457 = vmatpush1.msra.mxu0 0.0
    %458 = vmatprep.subr.mxu0 0.0
    %459 = vmatpush1.msra.mxu0 0.0
    %460 = vmatprep.subr.mxu0 0.0
    %461 = vmatpush1.msra.mxu0 0.0
    %462 = vmatprep.subr.mxu0 0.0
    %463 = vmatpush1.msra.mxu0 0.0
    %464 = vmatprep.subr.mxu0 0.0
    %465 = vmatpush1.msra.mxu0 0.0
    %466 = vmatprep.subr.mxu0 0.0
    %467 = vmatpush1.msra.mxu0 0.0
    %468 = vmatprep.subr.mxu0 0.0
    %469 = vmatpush1.msra.mxu0 0.0
    %470 = vmatprep.subr.mxu0 0.0
    %471 = vmatpush1.msra.mxu0 0.0
    %472 = vmatprep.subr.mxu0 0.0
    %473 = vmatpush1.msra.mxu0 0.0
    %474 = vmatprep.subr.mxu0 0.0
    %475 = vmatpush1.msra.mxu0 0.0
    %476 = vmatprep.subr.mxu0 0.0
    %477 = vmatpush1.msra.mxu0 0.0
    %478 = vmatprep.subr.mxu0 0.0
    %479 = vmatpush1.msra.mxu0 0.0
    %480 = vmatprep.subr.mxu0 0.0
    %481 = vmatpush1.msra.mxu0 0.0
    %482 = vmatprep.subr.mxu0 0.0
    %483 = vmatpush1.msra.mxu0 0.0
    %484 = vmatprep.subr.mxu0 0.0
    %485 = vmatpush1.msra.mxu0 0.0
    %486 = vmatprep.subr.mxu0 0.0
    %487 = vmatpush1.msra.mxu0 0.0
    %488 = vmatprep.subr.mxu0 0.0
    %489 = vmatpush1.msra.mxu0 0.0
    %490 = vmatprep.subr.mxu0 0.0
    %491 = vmatpush1.msra.mxu0 0.0
    %492 = vmatprep.subr.mxu0 0.0
    %493 = vmatpush1.msra.mxu0 0.0
    %494 = vmatprep.subr.mxu0 0.0
    %495 = vmatpush1.msra.mxu0 0.0
    %496 = vmatprep.subr.mxu0 0.0
    %497 = vmatpush1.msra.mxu0 0.0
    %498 = vmatprep.subr.mxu0 0.0
    %499 = vmatpush1.msra.mxu0 0.0
    %500 = vmatprep.subr.mxu0 0.0
    %501 = vmatpush1.msra.mxu0 0.0
    %502 = vmatprep.subr.mxu0 0.0
    %503 = vmatpush1.msra.mxu0 0.0
    %504 = vmatprep.subr.mxu0 0.0
    %505 = vmatpush1.msra.mxu0 0.0
    %506 = vmatprep.subr.mxu0 0.0
    %507 = vmatpush1.msra.mxu0 0.0
    %508 = vmatprep.mubr.f32.mxu0 0.0
    %509 = vmatmul.mubr.f32.gmra.mrb[0].mxu0 %v439
    %v510 = vpop.f32.mrb[0].mxu0
    %v511 = vadd.f32 0.0, %v510
    %v512 = vpop.f32.mrb[0].mxu0
    %513 = vmatprep.mubr.f32.mxu0 0.0
    %514 = vmatmul.mubr.f32.gmra.mrb[0].mxu0 %v442
    %v515 = vpop.f32.mrb[0].mxu0
    %v516 = vadd.f32 0.0, %v515
    %v517 = vpop.f32.mrb[0].mxu0
    %518 = vdwg.mxu0
    %v520 = vlaneseq
    %v521 = vshrl.u32 %v520, 7
    %v522 = vsub.s32 0, %v521
    %v523 = vrot.slane %v85, %v522
    %v526 = vsel %vm219, %v511, 0
    %v529 = vsel %vm219, %v516, 0
    %531 = vmatprep.subr.mxu0 0.0
    %532 = vmatpush1.msra.mxu0 %v81
    %533 = vmatprep.subr.mxu0 0.0
    %534 = vmatpush1.msra.mxu0 %v82
    %535 = vmatprep.subr.mxu0 0.0
    %536 = vmatpush1.msra.mxu0 %v83
    %537 = vmatprep.subr.mxu0 0.0
    %538 = vmatpush1.msra.mxu0 %v84
    %539 = vmatprep.subr.mxu0 0.0
    %540 = vmatpush1.msra.mxu0 0.0
    %541 = vmatprep.subr.mxu0 0.0
    %542 = vmatpush1.msra.mxu0 0.0
    %543 = vmatprep.subr.mxu0 0.0
    %544 = vmatpush1.msra.mxu0 0.0
    %545 = vmatprep.subr.mxu0 0.0
    %546 = vmatpush1.msra.mxu0 0.0
    %547 = vmatprep.subr.mxu0 0.0
    %548 = vmatpush1.msra.mxu0 0.0
    %549 = vmatprep.subr.mxu0 0.0
    %550 = vmatpush1.msra.mxu0 0.0
    %551 = vmatprep.subr.mxu0 0.0
    %552 = vmatpush1.msra.mxu0 0.0
    %553 = vmatprep.subr.mxu0 0.0
    %554 = vmatpush1.msra.mxu0 0.0
    %555 = vmatprep.subr.mxu0 0.0
    %556 = vmatpush1.msra.mxu0 0.0
    %557 = vmatprep.subr.mxu0 0.0
    %558 = vmatpush1.msra.mxu0 0.0
    %559 = vmatprep.subr.mxu0 0.0
    %560 = vmatpush1.msra.mxu0 0.0
    %561 = vmatprep.subr.mxu0 0.0
    %562 = vmatpush1.msra.mxu0 0.0
    %563 = vmatprep.subr.mxu0 0.0
    %564 = vmatpush1.msra.mxu0 0.0
    %565 = vmatprep.subr.mxu0 0.0
    %566 = vmatpush1.msra.mxu0 0.0
    %567 = vmatprep.subr.mxu0 0.0
    %568 = vmatpush1.msra.mxu0 0.0
    %569 = vmatprep.subr.mxu0 0.0
    %570 = vmatpush1.msra.mxu0 0.0
    %571 = vmatprep.subr.mxu0 0.0
    %572 = vmatpush1.msra.mxu0 0.0
    %573 = vmatprep.subr.mxu0 0.0
    %574 = vmatpush1.msra.mxu0 0.0
    %575 = vmatprep.subr.mxu0 0.0
    %576 = vmatpush1.msra.mxu0 0.0
    %577 = vmatprep.subr.mxu0 0.0
    %578 = vmatpush1.msra.mxu0 0.0
    %579 = vmatprep.subr.mxu0 0.0
    %580 = vmatpush1.msra.mxu0 0.0
    %581 = vmatprep.subr.mxu0 0.0
    %582 = vmatpush1.msra.mxu0 0.0
    %583 = vmatprep.subr.mxu0 0.0
    %584 = vmatpush1.msra.mxu0 0.0
    %585 = vmatprep.subr.mxu0 0.0
    %586 = vmatpush1.msra.mxu0 0.0
    %587 = vmatprep.subr.mxu0 0.0
    %588 = vmatpush1.msra.mxu0 0.0
    %589 = vmatprep.subr.mxu0 0.0
    %590 = vmatpush1.msra.mxu0 0.0
    %591 = vmatprep.subr.mxu0 0.0
    %592 = vmatpush1.msra.mxu0 0.0
    %593 = vmatprep.subr.mxu0 0.0
    %594 = vmatpush1.msra.mxu0 0.0
    %595 = vmatprep.mubr.f32.mxu0 0.0
    %596 = vmatmul.mubr.f32.gmra.mrb[0].mxu0 %v526
    %v597 = vpop.f32.mrb[0].mxu0
    %v598 = vadd.f32 %v523, %v597
    %v599 = vpop.f32.mrb[0].mxu0
    %600 = vmatprep.mubr.f32.mxu0 0.0
    %601 = vmatmul.mubr.f32.gmra.mrb[0].mxu0 %v529
    %v602 = vpop.f32.mrb[0].mxu0
    %v603 = vadd.f32 %v523, %v602
    %v604 = vpop.f32.mrb[0].mxu0
    %605 = vdwg.mxu0
    %v607 = vlaneseq
    %v608 = vshrl.u32 %v607, 7
    %v609 = vsub.s32 0, %v608
    %v610 = vrot.slane %v90, %v609
    %v613 = vsel %vm219, %v598, 0
    %v616 = vsel %vm219, %v603, 0
    %618 = vmatprep.subr.mxu0 0.0
    %619 = vmatpush1.msra.mxu0 %v86
    %620 = vmatprep.subr.mxu0 0.0
    %621 = vmatpush1.msra.mxu0 %v87
    %622 = vmatprep.subr.mxu0 0.0
    %623 = vmatpush1.msra.mxu0 %v88
    %624 = vmatprep.subr.mxu0 0.0
    %625 = vmatpush1.msra.mxu0 %v89
    %626 = vmatprep.subr.mxu0 0.0
    %627 = vmatpush1.msra.mxu0 0.0
    %628 = vmatprep.subr.mxu0 0.0
    %629 = vmatpush1.msra.mxu0 0.0
    %630 = vmatprep.subr.mxu0 0.0
    %631 = vmatpush1.msra.mxu0 0.0
    %632 = vmatprep.subr.mxu0 0.0
    %633 = vmatpush1.msra.mxu0 0.0
    %634 = vmatprep.subr.mxu0 0.0
    %635 = vmatpush1.msra.mxu0 0.0
    %636 = vmatprep.subr.mxu0 0.0
    %637 = vmatpush1.msra.mxu0 0.0
    %638 = vmatprep.subr.mxu0 0.0
    %639 = vmatpush1.msra.mxu0 0.0
    %640 = vmatprep.subr.mxu0 0.0
    %641 = vmatpush1.msra.mxu0 0.0
    %642 = vmatprep.subr.mxu0 0.0
    %643 = vmatpush1.msra.mxu0 0.0
    %644 = vmatprep.subr.mxu0 0.0
    %645 = vmatpush1.msra.mxu0 0.0
    %646 = vmatprep.subr.mxu0 0.0
    %647 = vmatpush1.msra.mxu0 0.0
    %648 = vmatprep.subr.mxu0 0.0
    %649 = vmatpush1.msra.mxu0 0.0
    %650 = vmatprep.subr.mxu0 0.0
    %651 = vmatpush1.msra.mxu0 0.0
    %652 = vmatprep.subr.mxu0 0.0
    %653 = vmatpush1.msra.mxu0 0.0
    %654 = vmatprep.subr.mxu0 0.0
    %655 = vmatpush1.msra.mxu0 0.0
    %656 = vmatprep.subr.mxu0 0.0
    %657 = vmatpush1.msra.mxu0 0.0
    %658 = vmatprep.subr.mxu0 0.0
    %659 = vmatpush1.msra.mxu0 0.0
    %660 = vmatprep.subr.mxu0 0.0
    %661 = vmatpush1.msra.mxu0 0.0
    %662 = vmatprep.subr.mxu0 0.0
    %663 = vmatpush1.msra.mxu0 0.0
    %664 = vmatprep.subr.mxu0 0.0
    %665 = vmatpush1.msra.mxu0 0.0
    %666 = vmatprep.subr.mxu0 0.0
    %667 = vmatpush1.msra.mxu0 0.0
    %668 = vmatprep.subr.mxu0 0.0
    %669 = vmatpush1.msra.mxu0 0.0
    %670 = vmatprep.subr.mxu0 0.0
    %671 = vmatpush1.msra.mxu0 0.0
    %672 = vmatprep.subr.mxu0 0.0
    %673 = vmatpush1.msra.mxu0 0.0
    %674 = vmatprep.subr.mxu0 0.0
    %675 = vmatpush1.msra.mxu0 0.0
    %676 = vmatprep.subr.mxu0 0.0
    %677 = vmatpush1.msra.mxu0 0.0
    %678 = vmatprep.subr.mxu0 0.0
    %679 = vmatpush1.msra.mxu0 0.0
    %680 = vmatprep.subr.mxu0 0.0
    %681 = vmatpush1.msra.mxu0 0.0
    %682 = vmatprep.mubr.f32.mxu0 0.0
    %683 = vmatmul.mubr.f32.gmra.mrb[0].mxu0 %v613
    %v684 = vpop.f32.mrb[0].mxu0
    %v685 = vadd.f32 %v610, %v684
    %v686 = vpop.f32.mrb[0].mxu0
    %687 = vmatprep.mubr.f32.mxu0 0.0
    %688 = vmatmul.mubr.f32.gmra.mrb[0].mxu0 %v616
    %v689 = vpop.f32.mrb[0].mxu0
    %v690 = vadd.f32 %v610, %v689
    %v691 = vpop.f32.mrb[0].mxu0
    %692 = vdwg.mxu0
    %v693 = vmul.f32 %v685, 0.01
    %v694 = vmul.f32 %v690, 0.01
    %v695 = vcvt.s32.f32 %v97
    %v696 = vcvt.s32.f32 %v98
    %v697 = vcvt.s32.f32 %v100
    %vm698 = vcmask 7168
    %v699 = vsel %vm698, %v693, -inf
    %v700 = vsel %vm698, %v694, -inf
    %v701 = vmax.f32 %v699, %v700
    %v702 = vrot.slane %v701, 4
    %v703 = vmax.f32 %v701, %v702
    %v704 = vrot.slane %v703, 2
    %v705 = vmax.f32 %v703, %v704
    %v706 = vrot.slane %v705, 1
    %v707 = vmax.f32 %v705, %v706
    %vm708 = vcmp.eq.f32.partialorder %v693, %v707
    %vm709 = vcmp.eq.f32.partialorder %v694, %v707
    %v710 = vsel %vm708, %v695, 16.0
    %v711 = vsel %vm709, %v696, 16.0
    %v712 = vsel %vm698, %v710, inf
    %v713 = vsel %vm698, %v711, inf
    %v714 = vmin.f32 %v712, %v713
    %v715 = vrot.slane %v714, 4
    %v716 = vmin.f32 %v714, %v715
    %v717 = vrot.slane %v716, 2
    %v718 = vmin.f32 %v716, %v717
    %v719 = vrot.slane %v718, 1
    %v720 = vmin.f32 %v718, %v719
    %722 = vset.pattern.permute.xlu0 0
    %723 = vperm.xlu0 %722, %v720
    %v724 = vpop.permute.xlu0 %723
    %vm726 = vcmp.eq.f32.partialorder %v697, %v724
    %vm727 = vcmp.eq.s32.totalorder %v97, 0
    %v728 = vsel %vm726, 1, 0
    %vm729 = vcmp.eq.s32.totalorder %v728, 1
    %vm730 = vmand %vm729, %vm727
    %v731 = vsel %vm730, 1.0, 0.0
    %vm732 = vcmp.eq.f32.partialorder %v695, %v720
    %vm733 = vcmp.eq.f32.partialorder %v696, %v720
    %vm734 = vcmp.eq.s32.totalorder %v100, 0
    %v735 = vsel %vm732, 1, 0
    %v736 = vsel %vm733, 1, 0
    %737 = vset.pattern.permute.xlu0 0
    %738 = vperm.xlu0 %737, %v735
    %v739 = vpop.permute.xlu0 %738
    %740 = vset.pattern.permute.xlu0 0
    %741 = vperm.xlu0 %740, %v736
    %v742 = vpop.permute.xlu0 %741
    %vm743 = vcmp.eq.s32.totalorder %v739, 1
    %vm744 = vcmp.eq.s32.totalorder %v742, 1
    %vm745 = vmand %vm743, %vm734
    %vm746 = vmand %vm744, %vm734
    %v747 = vsel %vm745, 1.0, 0.0
    %v748 = vsel %vm746, 1.0, 0.0
    %v749 = vsel %vm732, -1e+30, %v693
    %v750 = vsel %vm733, -1e+30, %v694
    %v751 = vsel %vm698, %v749, -inf
    %v752 = vsel %vm698, %v750, -inf
    %v753 = vmax.f32 %v751, %v752
    %v754 = vrot.slane %v753, 4
    %v755 = vmax.f32 %v753, %v754
    %v756 = vrot.slane %v755, 2
    %v757 = vmax.f32 %v755, %v756
    %v758 = vrot.slane %v757, 1
    %v759 = vmax.f32 %v757, %v758
    %vm760 = vcmp.eq.f32.partialorder %v749, %v759
    %vm761 = vcmp.eq.f32.partialorder %v750, %v759
    %v762 = vsel %vm760, %v695, 16.0
    %v763 = vsel %vm761, %v696, 16.0
    %v764 = vsel %vm698, %v762, inf
    %v765 = vsel %vm698, %v763, inf
    %v766 = vmin.f32 %v764, %v765
    %v767 = vrot.slane %v766, 4
    %v768 = vmin.f32 %v766, %v767
    %v769 = vrot.slane %v768, 2
    %v770 = vmin.f32 %v768, %v769
    %v771 = vrot.slane %v770, 1
    %v772 = vmin.f32 %v770, %v771
    %774 = vset.pattern.permute.xlu0 0
    %775 = vperm.xlu0 %774, %v772
    %v776 = vpop.permute.xlu0 %775
    %vm778 = vcmp.eq.f32.partialorder %v697, %v776
    %vm779 = vcmp.eq.s32.totalorder %v97, 1
    %v780 = vsel %vm778, 1, 0
    %vm781 = vcmp.eq.s32.totalorder %v780, 1
    %vm782 = vmand %vm781, %vm779
    %v783 = vsel %vm782, 1.0, %v731
    %vm784 = vcmp.eq.f32.partialorder %v695, %v772
    %vm785 = vcmp.eq.f32.partialorder %v696, %v772
    %vm786 = vcmp.eq.s32.totalorder %v100, 1
    %v787 = vsel %vm784, 1, 0
    %v788 = vsel %vm785, 1, 0
    %789 = vset.pattern.permute.xlu0 0
    %790 = vperm.xlu0 %789, %v787
    %v791 = vpop.permute.xlu0 %790
    %792 = vset.pattern.permute.xlu0 0
    %793 = vperm.xlu0 %792, %v788
    %v794 = vpop.permute.xlu0 %793
    %vm795 = vcmp.eq.s32.totalorder %v791, 1
    %vm796 = vcmp.eq.s32.totalorder %v794, 1
    %vm797 = vmand %vm795, %vm786
    %vm798 = vmand %vm796, %vm786
    %v799 = vsel %vm797, 1.0, %v747
    %v800 = vsel %vm798, 1.0, %v748
    %v801 = vsel %vm784, -1e+30, %v749
    %v802 = vsel %vm785, -1e+30, %v750
    %v803 = vsel %vm698, %v801, -inf
    %v804 = vsel %vm698, %v802, -inf
    %v805 = vmax.f32 %v803, %v804
    %v806 = vrot.slane %v805, 4
    %v807 = vmax.f32 %v805, %v806
    %v808 = vrot.slane %v807, 2
    %v809 = vmax.f32 %v807, %v808
    %v810 = vrot.slane %v809, 1
    %v811 = vmax.f32 %v809, %v810
    %vm812 = vcmp.eq.f32.partialorder %v801, %v811
    %vm813 = vcmp.eq.f32.partialorder %v802, %v811
    %v814 = vsel %vm812, %v695, 16.0
    %v815 = vsel %vm813, %v696, 16.0
    %v816 = vsel %vm698, %v814, inf
    %v817 = vsel %vm698, %v815, inf
    %v818 = vmin.f32 %v816, %v817
    %v819 = vrot.slane %v818, 4
    %v820 = vmin.f32 %v818, %v819
    %v821 = vrot.slane %v820, 2
    %v822 = vmin.f32 %v820, %v821
    %v823 = vrot.slane %v822, 1
    %v824 = vmin.f32 %v822, %v823
    %826 = vset.pattern.permute.xlu0 0
    %827 = vperm.xlu0 %826, %v824
    %v828 = vpop.permute.xlu0 %827
    %vm830 = vcmp.eq.f32.partialorder %v697, %v828
    %vm831 = vcmp.eq.s32.totalorder %v97, 2
    %v832 = vsel %vm830, 1, 0
    %vm833 = vcmp.eq.s32.totalorder %v832, 1
    %vm834 = vmand %vm833, %vm831
    %v835 = vsel %vm834, 1.0, %v783
    %vm836 = vcmp.eq.f32.partialorder %v695, %v824
    %vm837 = vcmp.eq.f32.partialorder %v696, %v824
    %vm838 = vcmp.eq.s32.totalorder %v100, 2
    %v839 = vsel %vm836, 1, 0
    %v840 = vsel %vm837, 1, 0
    %841 = vset.pattern.permute.xlu0 0
    %842 = vperm.xlu0 %841, %v839
    %v843 = vpop.permute.xlu0 %842
    %844 = vset.pattern.permute.xlu0 0
    %845 = vperm.xlu0 %844, %v840
    %v846 = vpop.permute.xlu0 %845
    %vm847 = vcmp.eq.s32.totalorder %v843, 1
    %vm848 = vcmp.eq.s32.totalorder %v846, 1
    %vm849 = vmand %vm847, %vm838
    %vm850 = vmand %vm848, %vm838
    %v851 = vsel %vm849, 1.0, %v799
    %v852 = vsel %vm850, 1.0, %v800
    %v853 = vsel %vm836, -1e+30, %v801
    %v854 = vsel %vm837, -1e+30, %v802
    %v855 = vsel %vm698, %v853, -inf
    %v856 = vsel %vm698, %v854, -inf
    %v857 = vmax.f32 %v855, %v856
    %v858 = vrot.slane %v857, 4
    %v859 = vmax.f32 %v857, %v858
    %v860 = vrot.slane %v859, 2
    %v861 = vmax.f32 %v859, %v860
    %v862 = vrot.slane %v861, 1
    %v863 = vmax.f32 %v861, %v862
    %vm864 = vcmp.eq.f32.partialorder %v853, %v863
    %vm865 = vcmp.eq.f32.partialorder %v854, %v863
    %v866 = vsel %vm864, %v695, 16.0
    %v867 = vsel %vm865, %v696, 16.0
    %v868 = vsel %vm698, %v866, inf
    %v869 = vsel %vm698, %v867, inf
    %v870 = vmin.f32 %v868, %v869
    %v871 = vrot.slane %v870, 4
    %v872 = vmin.f32 %v870, %v871
    %v873 = vrot.slane %v872, 2
    %v874 = vmin.f32 %v872, %v873
    %v875 = vrot.slane %v874, 1
    %v876 = vmin.f32 %v874, %v875
    %878 = vset.pattern.permute.xlu0 0
    %879 = vperm.xlu0 %878, %v876
    %v880 = vpop.permute.xlu0 %879
    %vm882 = vcmp.eq.f32.partialorder %v697, %v880
    %vm883 = vcmp.eq.s32.totalorder %v97, 3
    %v884 = vsel %vm882, 1, 0
    %vm885 = vcmp.eq.s32.totalorder %v884, 1
    %vm886 = vmand %vm885, %vm883
    %v887 = vsel %vm886, 1.0, %v835
    %vm888 = vcmp.eq.f32.partialorder %v695, %v876
    %vm889 = vcmp.eq.f32.partialorder %v696, %v876
    %vm890 = vcmp.eq.s32.totalorder %v100, 3
    %v891 = vsel %vm888, 1, 0
    %v892 = vsel %vm889, 1, 0
    %893 = vset.pattern.permute.xlu0 0
    %894 = vperm.xlu0 %893, %v891
    %v895 = vpop.permute.xlu0 %894
    %896 = vset.pattern.permute.xlu0 0
    %897 = vperm.xlu0 %896, %v892
    %v898 = vpop.permute.xlu0 %897
    %vm899 = vcmp.eq.s32.totalorder %v895, 1
    %vm900 = vcmp.eq.s32.totalorder %v898, 1
    %vm901 = vmand %vm899, %vm890
    %vm902 = vmand %vm900, %vm890
    %v903 = vsel %vm901, 1.0, %v851
    %v904 = vsel %vm902, 1.0, %v852
    %v905 = vsel %vm888, -1e+30, %v853
    %v906 = vsel %vm889, -1e+30, %v854
    %v907 = vsel %vm698, %v905, -inf
    %v908 = vsel %vm698, %v906, -inf
    %v909 = vmax.f32 %v907, %v908
    %v910 = vrot.slane %v909, 4
    %v911 = vmax.f32 %v909, %v910
    %v912 = vrot.slane %v911, 2
    %v913 = vmax.f32 %v911, %v912
    %v914 = vrot.slane %v913, 1
    %v915 = vmax.f32 %v913, %v914
    %vm916 = vcmp.eq.f32.partialorder %v905, %v915
    %vm917 = vcmp.eq.f32.partialorder %v906, %v915
    %v918 = vsel %vm916, %v695, 16.0
    %v919 = vsel %vm917, %v696, 16.0
    %v920 = vsel %vm698, %v918, inf
    %v921 = vsel %vm698, %v919, inf
    %v922 = vmin.f32 %v920, %v921
    %v923 = vrot.slane %v922, 4
    %v924 = vmin.f32 %v922, %v923
    %v925 = vrot.slane %v924, 2
    %v926 = vmin.f32 %v924, %v925
    %v927 = vrot.slane %v926, 1
    %v928 = vmin.f32 %v926, %v927
    %930 = vset.pattern.permute.xlu0 0
    %931 = vperm.xlu0 %930, %v928
    %v932 = vpop.permute.xlu0 %931
    %vm934 = vcmp.eq.f32.partialorder %v697, %v932
    %vm935 = vcmp.eq.s32.totalorder %v97, 4
    %v936 = vsel %vm934, 1, 0
    %vm937 = vcmp.eq.s32.totalorder %v936, 1
    %vm938 = vmand %vm937, %vm935
    %v939 = vsel %vm938, 1.0, %v887
    %vm940 = vcmp.eq.f32.partialorder %v695, %v928
    %vm941 = vcmp.eq.f32.partialorder %v696, %v928
    %vm942 = vcmp.eq.s32.totalorder %v100, 4
    %v943 = vsel %vm940, 1, 0
    %v944 = vsel %vm941, 1, 0
    %945 = vset.pattern.permute.xlu0 0
    %946 = vperm.xlu0 %945, %v943
    %v947 = vpop.permute.xlu0 %946
    %948 = vset.pattern.permute.xlu0 0
    %949 = vperm.xlu0 %948, %v944
    %v950 = vpop.permute.xlu0 %949
    %vm951 = vcmp.eq.s32.totalorder %v947, 1
    %vm952 = vcmp.eq.s32.totalorder %v950, 1
    %vm953 = vmand %vm951, %vm942
    %vm954 = vmand %vm952, %vm942
    %v955 = vsel %vm953, 1.0, %v903
    %v956 = vsel %vm954, 1.0, %v904
    %v957 = vsel %vm940, -1e+30, %v905
    %v958 = vsel %vm941, -1e+30, %v906
    %v959 = vsel %vm698, %v957, -inf
    %v960 = vsel %vm698, %v958, -inf
    %v961 = vmax.f32 %v959, %v960
    %v962 = vrot.slane %v961, 4
    %v963 = vmax.f32 %v961, %v962
    %v964 = vrot.slane %v963, 2
    %v965 = vmax.f32 %v963, %v964
    %v966 = vrot.slane %v965, 1
    %v967 = vmax.f32 %v965, %v966
    %vm968 = vcmp.eq.f32.partialorder %v957, %v967
    %vm969 = vcmp.eq.f32.partialorder %v958, %v967
    %v970 = vsel %vm968, %v695, 16.0
    %v971 = vsel %vm969, %v696, 16.0
    %v972 = vsel %vm698, %v970, inf
    %v973 = vsel %vm698, %v971, inf
    %v974 = vmin.f32 %v972, %v973
    %v975 = vrot.slane %v974, 4
    %v976 = vmin.f32 %v974, %v975
    %v977 = vrot.slane %v976, 2
    %v978 = vmin.f32 %v976, %v977
    %v979 = vrot.slane %v978, 1
    %v980 = vmin.f32 %v978, %v979
    %982 = vset.pattern.permute.xlu0 0
    %983 = vperm.xlu0 %982, %v980
    %v984 = vpop.permute.xlu0 %983
    %vm986 = vcmp.eq.f32.partialorder %v697, %v984
    %vm987 = vcmp.eq.s32.totalorder %v97, 5
    %v988 = vsel %vm986, 1, 0
    %vm989 = vcmp.eq.s32.totalorder %v988, 1
    %vm990 = vmand %vm989, %vm987
    %v991 = vsel %vm990, 1.0, %v939
    %vm992 = vcmp.eq.f32.partialorder %v695, %v980
    %vm993 = vcmp.eq.f32.partialorder %v696, %v980
    %vm994 = vcmp.eq.s32.totalorder %v100, 5
    %v995 = vsel %vm992, 1, 0
    %v996 = vsel %vm993, 1, 0
    %997 = vset.pattern.permute.xlu0 0
    %998 = vperm.xlu0 %997, %v995
    %v999 = vpop.permute.xlu0 %998
    %1000 = vset.pattern.permute.xlu0 0
    %1001 = vperm.xlu0 %1000, %v996
    %v1002 = vpop.permute.xlu0 %1001
    %vm1003 = vcmp.eq.s32.totalorder %v999, 1
    %vm1004 = vcmp.eq.s32.totalorder %v1002, 1
    %vm1005 = vmand %vm1003, %vm994
    %vm1006 = vmand %vm1004, %vm994
    %v1007 = vsel %vm1005, 1.0, %v955
    %v1008 = vsel %vm1006, 1.0, %v956
    %v1009 = vsel %vm992, -1e+30, %v957
    %v1010 = vsel %vm993, -1e+30, %v958
    %v1011 = vsel %vm698, %v1009, -inf
    %v1012 = vsel %vm698, %v1010, -inf
    %v1013 = vmax.f32 %v1011, %v1012
    %v1014 = vrot.slane %v1013, 4
    %v1015 = vmax.f32 %v1013, %v1014
    %v1016 = vrot.slane %v1015, 2
    %v1017 = vmax.f32 %v1015, %v1016
    %v1018 = vrot.slane %v1017, 1
    %v1019 = vmax.f32 %v1017, %v1018
    %vm1020 = vcmp.eq.f32.partialorder %v1009, %v1019
    %vm1021 = vcmp.eq.f32.partialorder %v1010, %v1019
    %v1022 = vsel %vm1020, %v695, 16.0
    %v1023 = vsel %vm1021, %v696, 16.0
    %v1024 = vsel %vm698, %v1022, inf
    %v1025 = vsel %vm698, %v1023, inf
    %v1026 = vmin.f32 %v1024, %v1025
    %v1027 = vrot.slane %v1026, 4
    %v1028 = vmin.f32 %v1026, %v1027
    %v1029 = vrot.slane %v1028, 2
    %v1030 = vmin.f32 %v1028, %v1029
    %v1031 = vrot.slane %v1030, 1
    %v1032 = vmin.f32 %v1030, %v1031
    %1034 = vset.pattern.permute.xlu0 0
    %1035 = vperm.xlu0 %1034, %v1032
    %v1036 = vpop.permute.xlu0 %1035
    %vm1038 = vcmp.eq.f32.partialorder %v697, %v1036
    %vm1039 = vcmp.eq.s32.totalorder %v97, 6
    %v1040 = vsel %vm1038, 1, 0
    %vm1041 = vcmp.eq.s32.totalorder %v1040, 1
    %vm1042 = vmand %vm1041, %vm1039
    %v1043 = vsel %vm1042, 1.0, %v991
    %vm1044 = vcmp.eq.f32.partialorder %v695, %v1032
    %vm1045 = vcmp.eq.f32.partialorder %v696, %v1032
    %vm1046 = vcmp.eq.s32.totalorder %v100, 6
    %v1047 = vsel %vm1044, 1, 0
    %v1048 = vsel %vm1045, 1, 0
    %1049 = vset.pattern.permute.xlu0 0
    %1050 = vperm.xlu0 %1049, %v1047
    %v1051 = vpop.permute.xlu0 %1050
    %1052 = vset.pattern.permute.xlu0 0
    %1053 = vperm.xlu0 %1052, %v1048
    %v1054 = vpop.permute.xlu0 %1053
    %vm1055 = vcmp.eq.s32.totalorder %v1051, 1
    %vm1056 = vcmp.eq.s32.totalorder %v1054, 1
    %vm1057 = vmand %vm1055, %vm1046
    %vm1058 = vmand %vm1056, %vm1046
    %v1059 = vsel %vm1057, 1.0, %v1007
    %v1060 = vsel %vm1058, 1.0, %v1008
    %v1061 = vsel %vm1044, -1e+30, %v1009
    %v1062 = vsel %vm1045, -1e+30, %v1010
    %v1063 = vsel %vm698, %v1061, -inf
    %v1064 = vsel %vm698, %v1062, -inf
    %v1065 = vmax.f32 %v1063, %v1064
    %v1066 = vrot.slane %v1065, 4
    %v1067 = vmax.f32 %v1065, %v1066
    %v1068 = vrot.slane %v1067, 2
    %v1069 = vmax.f32 %v1067, %v1068
    %v1070 = vrot.slane %v1069, 1
    %v1071 = vmax.f32 %v1069, %v1070
    %vm1072 = vcmp.eq.f32.partialorder %v1061, %v1071
    %vm1073 = vcmp.eq.f32.partialorder %v1062, %v1071
    %v1074 = vsel %vm1072, %v695, 16.0
    %v1075 = vsel %vm1073, %v696, 16.0
    %v1076 = vsel %vm698, %v1074, inf
    %v1077 = vsel %vm698, %v1075, inf
    %v1078 = vmin.f32 %v1076, %v1077
    %v1079 = vrot.slane %v1078, 4
    %v1080 = vmin.f32 %v1078, %v1079
    %v1081 = vrot.slane %v1080, 2
    %v1082 = vmin.f32 %v1080, %v1081
    %v1083 = vrot.slane %v1082, 1
    %v1084 = vmin.f32 %v1082, %v1083
    %1086 = vset.pattern.permute.xlu0 0
    %1087 = vperm.xlu0 %1086, %v1084
    %v1088 = vpop.permute.xlu0 %1087
    %vm1090 = vcmp.eq.f32.partialorder %v697, %v1088
    %vm1091 = vcmp.eq.s32.totalorder %v97, 7
    %v1092 = vsel %vm1090, 1, 0
    %vm1093 = vcmp.eq.s32.totalorder %v1092, 1
    %vm1094 = vmand %vm1093, %vm1091
    %v1095 = vsel %vm1094, 1.0, %v1043
    %vm1096 = vcmp.eq.f32.partialorder %v695, %v1084
    %vm1097 = vcmp.eq.f32.partialorder %v696, %v1084
    %vm1098 = vcmp.eq.s32.totalorder %v100, 7
    %v1099 = vsel %vm1096, 1, 0
    %v1100 = vsel %vm1097, 1, 0
    %1101 = vset.pattern.permute.xlu0 0
    %1102 = vperm.xlu0 %1101, %v1099
    %v1103 = vpop.permute.xlu0 %1102
    %1104 = vset.pattern.permute.xlu0 0
    %1105 = vperm.xlu0 %1104, %v1100
    %v1106 = vpop.permute.xlu0 %1105
    %vm1107 = vcmp.eq.s32.totalorder %v1103, 1
    %vm1108 = vcmp.eq.s32.totalorder %v1106, 1
    %vm1109 = vmand %vm1107, %vm1098
    %vm1110 = vmand %vm1108, %vm1098
    %v1111 = vsel %vm1109, 1.0, %v1059
    %v1112 = vsel %vm1110, 1.0, %v1060
    %v1113 = vsub.f32 0.0, %v693
    %v1114 = vsub.f32 0.0, %v694
    %v1115 = vmul.f32 %v1113, 1.442695
    %v1116 = vpow.pop %v1115
    %v1117 = vmul.f32 %v1114, 1.442695
    %v1118 = vpow.pop %v1117
    %v1119 = vadd.f32 %v1116, 1.0
    %v1120 = vadd.f32 %v1118, 1.0
    %v1121 = vrcp.pop %v1119
    %v1122 = vrcp.pop %v1120
    %v1124 = vsel %vm105, %v1095, 0
    %1126 = vmatprep.subr.mxu0 0.0
    %1127 = vmatpush1.msra.mxu0 %v1121
    %1128 = vmatprep.subr.mxu0 0.0
    %1129 = vmatpush1.msra.mxu0 %v1122
    %1130 = vmatprep.subr.mxu0 0.0
    %1131 = vmatpush1.msra.mxu0 0.0
    %1132 = vmatprep.subr.mxu0 0.0
    %1133 = vmatpush1.msra.mxu0 0.0
    %1134 = vmatprep.subr.mxu0 0.0
    %1135 = vmatpush1.msra.mxu0 0.0
    %1136 = vmatprep.subr.mxu0 0.0
    %1137 = vmatpush1.msra.mxu0 0.0
    %1138 = vmatprep.subr.mxu0 0.0
    %1139 = vmatpush1.msra.mxu0 0.0
    %1140 = vmatprep.subr.mxu0 0.0
    %1141 = vmatpush1.msra.mxu0 0.0
    %1142 = vmatprep.subr.mxu0 0.0
    %1143 = vmatpush1.msra.mxu0 0.0
    %1144 = vmatprep.subr.mxu0 0.0
    %1145 = vmatpush1.msra.mxu0 0.0
    %1146 = vmatprep.subr.mxu0 0.0
    %1147 = vmatpush1.msra.mxu0 0.0
    %1148 = vmatprep.subr.mxu0 0.0
    %1149 = vmatpush1.msra.mxu0 0.0
    %1150 = vmatprep.subr.mxu0 0.0
    %1151 = vmatpush1.msra.mxu0 0.0
    %1152 = vmatprep.subr.mxu0 0.0
    %1153 = vmatpush1.msra.mxu0 0.0
    %1154 = vmatprep.subr.mxu0 0.0
    %1155 = vmatpush1.msra.mxu0 0.0
    %1156 = vmatprep.subr.mxu0 0.0
    %1157 = vmatpush1.msra.mxu0 0.0
    %1158 = vmatprep.subr.mxu0 0.0
    %1159 = vmatpush1.msra.mxu0 0.0
    %1160 = vmatprep.subr.mxu0 0.0
    %1161 = vmatpush1.msra.mxu0 0.0
    %1162 = vmatprep.subr.mxu0 0.0
    %1163 = vmatpush1.msra.mxu0 0.0
    %1164 = vmatprep.subr.mxu0 0.0
    %1165 = vmatpush1.msra.mxu0 0.0
    %1166 = vmatprep.subr.mxu0 0.0
    %1167 = vmatpush1.msra.mxu0 0.0
    %1168 = vmatprep.subr.mxu0 0.0
    %1169 = vmatpush1.msra.mxu0 0.0
    %1170 = vmatprep.subr.mxu0 0.0
    %1171 = vmatpush1.msra.mxu0 0.0
    %1172 = vmatprep.subr.mxu0 0.0
    %1173 = vmatpush1.msra.mxu0 0.0
    %1174 = vmatprep.subr.mxu0 0.0
    %1175 = vmatpush1.msra.mxu0 0.0
    %1176 = vmatprep.subr.mxu0 0.0
    %1177 = vmatpush1.msra.mxu0 0.0
    %1178 = vmatprep.subr.mxu0 0.0
    %1179 = vmatpush1.msra.mxu0 0.0
    %1180 = vmatprep.subr.mxu0 0.0
    %1181 = vmatpush1.msra.mxu0 0.0
    %1182 = vmatprep.subr.mxu0 0.0
    %1183 = vmatpush1.msra.mxu0 0.0
    %1184 = vmatprep.subr.mxu0 0.0
    %1185 = vmatpush1.msra.mxu0 0.0
    %1186 = vmatprep.subr.mxu0 0.0
    %1187 = vmatpush1.msra.mxu0 0.0
    %1188 = vmatprep.subr.mxu0 0.0
    %1189 = vmatpush1.msra.mxu0 0.0
    %1190 = vmatprep.mubr.f32.mxu0 0.0
    %1191 = vmatmul.mubr.f32.gmra.mrb[0].mxu0 %v1124
    %v1192 = vpop.f32.mrb[0].mxu0
    %v1193 = vadd.f32 0.0, %v1192
    %v1194 = vpop.f32.mrb[0].mxu0
    %1195 = vdwg.mxu0
    %1196 = vmatprep.subr.mxu0 0.0
    %1197 = vmatpush1.msra.mxu0 %v598
    %1198 = vmatprep.subr.mxu0 0.0
    %1199 = vmatpush1.msra.mxu0 %v603
    %1200 = vmatprep.subr.mxu0 0.0
    %1201 = vmatpush1.msra.mxu0 0.0
    %1202 = vmatprep.subr.mxu0 0.0
    %1203 = vmatpush1.msra.mxu0 0.0
    %1204 = vmatprep.subr.mxu0 0.0
    %1205 = vmatpush1.msra.mxu0 0.0
    %1206 = vmatprep.subr.mxu0 0.0
    %1207 = vmatpush1.msra.mxu0 0.0
    %1208 = vmatprep.subr.mxu0 0.0
    %1209 = vmatpush1.msra.mxu0 0.0
    %1210 = vmatprep.subr.mxu0 0.0
    %1211 = vmatpush1.msra.mxu0 0.0
    %1212 = vmatprep.subr.mxu0 0.0
    %1213 = vmatpush1.msra.mxu0 0.0
    %1214 = vmatprep.subr.mxu0 0.0
    %1215 = vmatpush1.msra.mxu0 0.0
    %1216 = vmatprep.subr.mxu0 0.0
    %1217 = vmatpush1.msra.mxu0 0.0
    %1218 = vmatprep.subr.mxu0 0.0
    %1219 = vmatpush1.msra.mxu0 0.0
    %1220 = vmatprep.subr.mxu0 0.0
    %1221 = vmatpush1.msra.mxu0 0.0
    %1222 = vmatprep.subr.mxu0 0.0
    %1223 = vmatpush1.msra.mxu0 0.0
    %1224 = vmatprep.subr.mxu0 0.0
    %1225 = vmatpush1.msra.mxu0 0.0
    %1226 = vmatprep.subr.mxu0 0.0
    %1227 = vmatpush1.msra.mxu0 0.0
    %1228 = vmatprep.subr.mxu0 0.0
    %1229 = vmatpush1.msra.mxu0 0.0
    %1230 = vmatprep.subr.mxu0 0.0
    %1231 = vmatpush1.msra.mxu0 0.0
    %1232 = vmatprep.subr.mxu0 0.0
    %1233 = vmatpush1.msra.mxu0 0.0
    %1234 = vmatprep.subr.mxu0 0.0
    %1235 = vmatpush1.msra.mxu0 0.0
    %1236 = vmatprep.subr.mxu0 0.0
    %1237 = vmatpush1.msra.mxu0 0.0
    %1238 = vmatprep.subr.mxu0 0.0
    %1239 = vmatpush1.msra.mxu0 0.0
    %1240 = vmatprep.subr.mxu0 0.0
    %1241 = vmatpush1.msra.mxu0 0.0
    %1242 = vmatprep.subr.mxu0 0.0
    %1243 = vmatpush1.msra.mxu0 0.0
    %1244 = vmatprep.subr.mxu0 0.0
    %1245 = vmatpush1.msra.mxu0 0.0
    %1246 = vmatprep.subr.mxu0 0.0
    %1247 = vmatpush1.msra.mxu0 0.0
    %1248 = vmatprep.subr.mxu0 0.0
    %1249 = vmatpush1.msra.mxu0 0.0
    %1250 = vmatprep.subr.mxu0 0.0
    %1251 = vmatpush1.msra.mxu0 0.0
    %1252 = vmatprep.subr.mxu0 0.0
    %1253 = vmatpush1.msra.mxu0 0.0
    %1254 = vmatprep.subr.mxu0 0.0
    %1255 = vmatpush1.msra.mxu0 0.0
    %1256 = vmatprep.subr.mxu0 0.0
    %1257 = vmatpush1.msra.mxu0 0.0
    %1258 = vmatprep.subr.mxu0 0.0
    %1259 = vmatpush1.msra.mxu0 0.0
    %1260 = vmatprep.mubr.f32.mxu0 0.0
    %1261 = vmatmul.mubr.f32.gmra.mrb[0].mxu0 %v1124
    %v1262 = vpop.f32.mrb[0].mxu0
    %v1263 = vadd.f32 0.0, %v1262
    %v1264 = vpop.f32.mrb[0].mxu0
    %1265 = vdwg.mxu0
    %1267 = vset.pattern.permute.xlu0 0
    %1268 = vperm.xlu0 %1267, %v1193
    %v1269 = vpop.permute.xlu0 %1268
    %v1271 = vmul.f32 %v1263, %v1269
    %1272 = vmatprep.subr.mxu0 0.0
    %1273 = vmatpush1.xpose.msra.mxu0 %v1124
    %1274 = vmatprep.subr.mxu0 0.0
    %1275 = vmatpush1.xpose.msra.mxu0 0.0
    %1276 = vmatprep.subr.mxu0 0.0
    %1277 = vmatpush1.xpose.msra.mxu0 0.0
    %1278 = vmatprep.subr.mxu0 0.0
    %1279 = vmatpush1.xpose.msra.mxu0 0.0
    %1280 = vmatprep.subr.mxu0 0.0
    %1281 = vmatpush1.xpose.msra.mxu0 0.0
    %1282 = vmatprep.subr.mxu0 0.0
    %1283 = vmatpush1.xpose.msra.mxu0 0.0
    %1284 = vmatprep.subr.mxu0 0.0
    %1285 = vmatpush1.xpose.msra.mxu0 0.0
    %1286 = vmatprep.subr.mxu0 0.0
    %1287 = vmatpush1.xpose.msra.mxu0 0.0
    %1288 = vmatprep.subr.mxu0 0.0
    %1289 = vmatpush1.xpose.msra.mxu0 0.0
    %1290 = vmatprep.subr.mxu0 0.0
    %1291 = vmatpush1.xpose.msra.mxu0 0.0
    %1292 = vmatprep.subr.mxu0 0.0
    %1293 = vmatpush1.xpose.msra.mxu0 0.0
    %1294 = vmatprep.subr.mxu0 0.0
    %1295 = vmatpush1.xpose.msra.mxu0 0.0
    %1296 = vmatprep.subr.mxu0 0.0
    %1297 = vmatpush1.xpose.msra.mxu0 0.0
    %1298 = vmatprep.subr.mxu0 0.0
    %1299 = vmatpush1.xpose.msra.mxu0 0.0
    %1300 = vmatprep.subr.mxu0 0.0
    %1301 = vmatpush1.xpose.msra.mxu0 0.0
    %1302 = vmatprep.subr.mxu0 0.0
    %1303 = vmatpush1.xpose.msra.mxu0 0.0
    %1304 = vmatprep.subr.mxu0 0.0
    %1305 = vmatpush1.xpose.msra.mxu0 0.0
    %1306 = vmatprep.subr.mxu0 0.0
    %1307 = vmatpush1.xpose.msra.mxu0 0.0
    %1308 = vmatprep.subr.mxu0 0.0
    %1309 = vmatpush1.xpose.msra.mxu0 0.0
    %1310 = vmatprep.subr.mxu0 0.0
    %1311 = vmatpush1.xpose.msra.mxu0 0.0
    %1312 = vmatprep.subr.mxu0 0.0
    %1313 = vmatpush1.xpose.msra.mxu0 0.0
    %1314 = vmatprep.subr.mxu0 0.0
    %1315 = vmatpush1.xpose.msra.mxu0 0.0
    %1316 = vmatprep.subr.mxu0 0.0
    %1317 = vmatpush1.xpose.msra.mxu0 0.0
    %1318 = vmatprep.subr.mxu0 0.0
    %1319 = vmatpush1.xpose.msra.mxu0 0.0
    %1320 = vmatprep.subr.mxu0 0.0
    %1321 = vmatpush1.xpose.msra.mxu0 0.0
    %1322 = vmatprep.subr.mxu0 0.0
    %1323 = vmatpush1.xpose.msra.mxu0 0.0
    %1324 = vmatprep.subr.mxu0 0.0
    %1325 = vmatpush1.xpose.msra.mxu0 0.0
    %1326 = vmatprep.subr.mxu0 0.0
    %1327 = vmatpush1.xpose.msra.mxu0 0.0
    %1328 = vmatprep.subr.mxu0 0.0
    %1329 = vmatpush1.xpose.msra.mxu0 0.0
    %1330 = vmatprep.subr.mxu0 0.0
    %1331 = vmatpush1.xpose.msra.mxu0 0.0
    %1332 = vmatprep.subr.mxu0 0.0
    %1333 = vmatpush1.xpose.msra.mxu0 0.0
    %1334 = vmatprep.subr.mxu0 0.0
    %1335 = vmatpush1.xpose.msra.mxu0 0.0
    %1336 = vmatprep.mubr.f32.mxu0 0.0
    %1337 = vmatmul.mubr.f32.gmra.mrb[0].mxu0 %v439
    %v1338 = vpop.f32.mrb[0].mxu0
    %v1339 = vadd.f32 0.0, %v1338
    %v1340 = vpop.f32.mrb[0].mxu0
    %1341 = vmatprep.mubr.f32.mxu0 0.0
    %1342 = vmatmul.mubr.f32.gmra.mrb[0].mxu0 %v442
    %v1343 = vpop.f32.mrb[0].mxu0
    %v1344 = vadd.f32 0.0, %v1343
    %v1345 = vpop.f32.mrb[0].mxu0
    %1346 = vdwg.mxu0
    %1347 = vmatprep.subr.mxu0 0.0
    %1348 = vmatpush1.msra.mxu0 %v1339
    %1349 = vmatprep.subr.mxu0 0.0
    %1350 = vmatpush1.msra.mxu0 %v1344
    %1351 = vmatprep.subr.mxu0 0.0
    %1352 = vmatpush1.msra.mxu0 0.0
    %1353 = vmatprep.subr.mxu0 0.0
    %1354 = vmatpush1.msra.mxu0 0.0
    %1355 = vmatprep.subr.mxu0 0.0
    %1356 = vmatpush1.msra.mxu0 0.0
    %1357 = vmatprep.subr.mxu0 0.0
    %1358 = vmatpush1.msra.mxu0 0.0
    %1359 = vmatprep.subr.mxu0 0.0
    %1360 = vmatpush1.msra.mxu0 0.0
    %1361 = vmatprep.subr.mxu0 0.0
    %1362 = vmatpush1.msra.mxu0 0.0
    %1363 = vmatprep.subr.mxu0 0.0
    %1364 = vmatpush1.msra.mxu0 0.0
    %1365 = vmatprep.subr.mxu0 0.0
    %1366 = vmatpush1.msra.mxu0 0.0
    %1367 = vmatprep.subr.mxu0 0.0
    %1368 = vmatpush1.msra.mxu0 0.0
    %1369 = vmatprep.subr.mxu0 0.0
    %1370 = vmatpush1.msra.mxu0 0.0
    %1371 = vmatprep.subr.mxu0 0.0
    %1372 = vmatpush1.msra.mxu0 0.0
    %1373 = vmatprep.subr.mxu0 0.0
    %1374 = vmatpush1.msra.mxu0 0.0
    %1375 = vmatprep.subr.mxu0 0.0
    %1376 = vmatpush1.msra.mxu0 0.0
    %1377 = vmatprep.subr.mxu0 0.0
    %1378 = vmatpush1.msra.mxu0 0.0
    %1379 = vmatprep.subr.mxu0 0.0
    %1380 = vmatpush1.msra.mxu0 0.0
    %1381 = vmatprep.subr.mxu0 0.0
    %1382 = vmatpush1.msra.mxu0 0.0
    %1383 = vmatprep.subr.mxu0 0.0
    %1384 = vmatpush1.msra.mxu0 0.0
    %1385 = vmatprep.subr.mxu0 0.0
    %1386 = vmatpush1.msra.mxu0 0.0
    %1387 = vmatprep.subr.mxu0 0.0
    %1388 = vmatpush1.msra.mxu0 0.0
    %1389 = vmatprep.subr.mxu0 0.0
    %1390 = vmatpush1.msra.mxu0 0.0
    %1391 = vmatprep.subr.mxu0 0.0
    %1392 = vmatpush1.msra.mxu0 0.0
    %1393 = vmatprep.subr.mxu0 0.0
    %1394 = vmatpush1.msra.mxu0 0.0
    %1395 = vmatprep.subr.mxu0 0.0
    %1396 = vmatpush1.msra.mxu0 0.0
    %1397 = vmatprep.subr.mxu0 0.0
    %1398 = vmatpush1.msra.mxu0 0.0
    %1399 = vmatprep.subr.mxu0 0.0
    %1400 = vmatpush1.msra.mxu0 0.0
    %1401 = vmatprep.subr.mxu0 0.0
    %1402 = vmatpush1.msra.mxu0 0.0
    %1403 = vmatprep.subr.mxu0 0.0
    %1404 = vmatpush1.msra.mxu0 0.0
    %1405 = vmatprep.subr.mxu0 0.0
    %1406 = vmatpush1.msra.mxu0 0.0
    %1407 = vmatprep.subr.mxu0 0.0
    %1408 = vmatpush1.msra.mxu0 0.0
    %1409 = vmatprep.subr.mxu0 0.0
    %1410 = vmatpush1.msra.mxu0 0.0
    %1411 = vmatprep.mubr.f32.mxu0 0.0
    %1412 = vmatmul.mubr.f32.gmra.mrb[0].mxu0 %v1124
    %v1413 = vpop.f32.mrb[0].mxu0
    %v1414 = vadd.f32 0.0, %v1413
    %v1415 = vpop.f32.mrb[0].mxu0
    %1416 = vdwg.mxu0
    %v1418 = vsel %vm219, %v1271, 0
    %1420 = vmatprep.subr.mxu0 0.0
    %1421 = vmatpush1.msra.mxu0 %v65
    %1422 = vmatprep.subr.mxu0 0.0
    %1423 = vmatpush1.msra.mxu0 %v66
    %1424 = vmatprep.subr.mxu0 0.0
    %1425 = vmatpush1.msra.mxu0 %v67
    %1426 = vmatprep.subr.mxu0 0.0
    %1427 = vmatpush1.msra.mxu0 %v68
    %1428 = vmatprep.subr.mxu0 0.0
    %1429 = vmatpush1.msra.mxu0 0.0
    %1430 = vmatprep.subr.mxu0 0.0
    %1431 = vmatpush1.msra.mxu0 0.0
    %1432 = vmatprep.subr.mxu0 0.0
    %1433 = vmatpush1.msra.mxu0 0.0
    %1434 = vmatprep.subr.mxu0 0.0
    %1435 = vmatpush1.msra.mxu0 0.0
    %1436 = vmatprep.subr.mxu0 0.0
    %1437 = vmatpush1.msra.mxu0 0.0
    %1438 = vmatprep.subr.mxu0 0.0
    %1439 = vmatpush1.msra.mxu0 0.0
    %1440 = vmatprep.subr.mxu0 0.0
    %1441 = vmatpush1.msra.mxu0 0.0
    %1442 = vmatprep.subr.mxu0 0.0
    %1443 = vmatpush1.msra.mxu0 0.0
    %1444 = vmatprep.subr.mxu0 0.0
    %1445 = vmatpush1.msra.mxu0 0.0
    %1446 = vmatprep.subr.mxu0 0.0
    %1447 = vmatpush1.msra.mxu0 0.0
    %1448 = vmatprep.subr.mxu0 0.0
    %1449 = vmatpush1.msra.mxu0 0.0
    %1450 = vmatprep.subr.mxu0 0.0
    %1451 = vmatpush1.msra.mxu0 0.0
    %1452 = vmatprep.subr.mxu0 0.0
    %1453 = vmatpush1.msra.mxu0 0.0
    %1454 = vmatprep.subr.mxu0 0.0
    %1455 = vmatpush1.msra.mxu0 0.0
    %1456 = vmatprep.subr.mxu0 0.0
    %1457 = vmatpush1.msra.mxu0 0.0
    %1458 = vmatprep.subr.mxu0 0.0
    %1459 = vmatpush1.msra.mxu0 0.0
    %1460 = vmatprep.subr.mxu0 0.0
    %1461 = vmatpush1.msra.mxu0 0.0
    %1462 = vmatprep.subr.mxu0 0.0
    %1463 = vmatpush1.msra.mxu0 0.0
    %1464 = vmatprep.subr.mxu0 0.0
    %1465 = vmatpush1.msra.mxu0 0.0
    %1466 = vmatprep.subr.mxu0 0.0
    %1467 = vmatpush1.msra.mxu0 0.0
    %1468 = vmatprep.subr.mxu0 0.0
    %1469 = vmatpush1.msra.mxu0 0.0
    %1470 = vmatprep.subr.mxu0 0.0
    %1471 = vmatpush1.msra.mxu0 0.0
    %1472 = vmatprep.subr.mxu0 0.0
    %1473 = vmatpush1.msra.mxu0 0.0
    %1474 = vmatprep.subr.mxu0 0.0
    %1475 = vmatpush1.msra.mxu0 0.0
    %1476 = vmatprep.subr.mxu0 0.0
    %1477 = vmatpush1.msra.mxu0 0.0
    %1478 = vmatprep.subr.mxu0 0.0
    %1479 = vmatpush1.msra.mxu0 0.0
    %1480 = vmatprep.subr.mxu0 0.0
    %1481 = vmatpush1.msra.mxu0 0.0
    %1482 = vmatprep.subr.mxu0 0.0
    %1483 = vmatpush1.msra.mxu0 0.0
    %1484 = vmatprep.mubr.f32.mxu0 0.0
    %1485 = vmatmul.mubr.f32.gmra.mrb[0].mxu0 %v1418
    %v1486 = vpop.f32.mrb[0].mxu0
    %v1487 = vadd.f32 0.0, %v1486
    %v1488 = vpop.f32.mrb[0].mxu0
    %1489 = vdwg.mxu0
    %v1491 = vlaneseq
    %v1492 = vshrl.u32 %v1491, 7
    %v1493 = vsub.s32 0, %v1492
    %v1494 = vrot.slane %v69, %v1493
    %v1496 = vmul.f32 %v1487, %v1494
    %v1497 = vsel %vm219, %v1496, 0.0
    %1498 = vadd.xlane.f32.xlu0 %v1497
    %v1499 = vpop.xlane.xlu0 %1498
    %v1501 = vsel %vm219, %v70, 0
    %v1504 = vsel %vm219, %v1487, 0
    %1506 = vmatprep.subr.mxu0 0.0
    %1507 = vmatpush1.xpose.msra.mxu0 %v1504
    %1508 = vmatprep.subr.mxu0 0.0
    %1509 = vmatpush1.xpose.msra.mxu0 0.0
    %1510 = vmatprep.subr.mxu0 0.0
    %1511 = vmatpush1.xpose.msra.mxu0 0.0
    %1512 = vmatprep.subr.mxu0 0.0
    %1513 = vmatpush1.xpose.msra.mxu0 0.0
    %1514 = vmatprep.subr.mxu0 0.0
    %1515 = vmatpush1.xpose.msra.mxu0 0.0
    %1516 = vmatprep.subr.mxu0 0.0
    %1517 = vmatpush1.xpose.msra.mxu0 0.0
    %1518 = vmatprep.subr.mxu0 0.0
    %1519 = vmatpush1.xpose.msra.mxu0 0.0
    %1520 = vmatprep.subr.mxu0 0.0
    %1521 = vmatpush1.xpose.msra.mxu0 0.0
    %1522 = vmatprep.subr.mxu0 0.0
    %1523 = vmatpush1.xpose.msra.mxu0 0.0
    %1524 = vmatprep.subr.mxu0 0.0
    %1525 = vmatpush1.xpose.msra.mxu0 0.0
    %1526 = vmatprep.subr.mxu0 0.0
    %1527 = vmatpush1.xpose.msra.mxu0 0.0
    %1528 = vmatprep.subr.mxu0 0.0
    %1529 = vmatpush1.xpose.msra.mxu0 0.0
    %1530 = vmatprep.subr.mxu0 0.0
    %1531 = vmatpush1.xpose.msra.mxu0 0.0
    %1532 = vmatprep.subr.mxu0 0.0
    %1533 = vmatpush1.xpose.msra.mxu0 0.0
    %1534 = vmatprep.subr.mxu0 0.0
    %1535 = vmatpush1.xpose.msra.mxu0 0.0
    %1536 = vmatprep.subr.mxu0 0.0
    %1537 = vmatpush1.xpose.msra.mxu0 0.0
    %1538 = vmatprep.subr.mxu0 0.0
    %1539 = vmatpush1.xpose.msra.mxu0 0.0
    %1540 = vmatprep.subr.mxu0 0.0
    %1541 = vmatpush1.xpose.msra.mxu0 0.0
    %1542 = vmatprep.subr.mxu0 0.0
    %1543 = vmatpush1.xpose.msra.mxu0 0.0
    %1544 = vmatprep.subr.mxu0 0.0
    %1545 = vmatpush1.xpose.msra.mxu0 0.0
    %1546 = vmatprep.subr.mxu0 0.0
    %1547 = vmatpush1.xpose.msra.mxu0 0.0
    %1548 = vmatprep.subr.mxu0 0.0
    %1549 = vmatpush1.xpose.msra.mxu0 0.0
    %1550 = vmatprep.subr.mxu0 0.0
    %1551 = vmatpush1.xpose.msra.mxu0 0.0
    %1552 = vmatprep.subr.mxu0 0.0
    %1553 = vmatpush1.xpose.msra.mxu0 0.0
    %1554 = vmatprep.subr.mxu0 0.0
    %1555 = vmatpush1.xpose.msra.mxu0 0.0
    %1556 = vmatprep.subr.mxu0 0.0
    %1557 = vmatpush1.xpose.msra.mxu0 0.0
    %1558 = vmatprep.subr.mxu0 0.0
    %1559 = vmatpush1.xpose.msra.mxu0 0.0
    %1560 = vmatprep.subr.mxu0 0.0
    %1561 = vmatpush1.xpose.msra.mxu0 0.0
    %1562 = vmatprep.subr.mxu0 0.0
    %1563 = vmatpush1.xpose.msra.mxu0 0.0
    %1564 = vmatprep.subr.mxu0 0.0
    %1565 = vmatpush1.xpose.msra.mxu0 0.0
    %1566 = vmatprep.subr.mxu0 0.0
    %1567 = vmatpush1.xpose.msra.mxu0 0.0
    %1568 = vmatprep.subr.mxu0 0.0
    %1569 = vmatpush1.xpose.msra.mxu0 0.0
    %1570 = vmatprep.mubr.f32.mxu0 0.0
    %1571 = vmatmul.mubr.f32.gmra.mrb[0].mxu0 %v1501
    %v1572 = vpop.f32.mrb[0].mxu0
    %v1573 = vadd.f32 0.0, %v1572
    %v1574 = vpop.f32.mrb[0].mxu0
    %1575 = vdwg.mxu0
    %v1576 = vlaneseq
    %v1577 = vshrl.u32 %v1576, 7
    %v1578 = vsub.s32 0, %v1577
    %v1579 = vrot.slane %v1573, %v1578
    %v1580 = vadd.f32 %v1499, %v1579
    %vm1581 = vcmp.gt.f32.partialorder %v1580, 0.0
    %v1582 = vmul.f32 %v1580, 0.2
    %v1583 = vsel %vm1581, %v1580, %v1582
    %vm1584 = vcmp.gt.f32.partialorder %v1414, 0.0
    %v1585 = vsel %vm1584, %v1583, -9e+15
    %vm1586 = vcmask 64512
    %v1587 = vsel %vm1586, %v1585, -inf
    %1588 = vmax.xlane.f32.xlu0 %v1587
    %v1589 = vpop.xlane.xlu0 %1588
    %v1590 = vsub.f32 %v1585, %v1589
    %v1591 = vmul.f32 %v1590, 1.442695
    %v1592 = vpow.pop %v1591
    %v1593 = vsel %vm1586, %v1592, 0.0
    %1594 = vadd.xlane.f32.xlu0 %v1593
    %v1595 = vpop.xlane.xlu0 %1594
    %v1596 = vrcp.pop %v1595
    %v1597 = vmul.f32 %v1592, %v1596
    %v1599 = vsel %vm1586, %v1597, 0
    %1601 = vmatprep.subr.mxu0 0.0
    %1602 = vmatpush1.msra.mxu0 %v1487
    %1603 = vmatprep.subr.mxu0 0.0
    %1604 = vmatpush1.msra.mxu0 0.0
    %1605 = vmatprep.subr.mxu0 0.0
    %1606 = vmatpush1.msra.mxu0 0.0
    %1607 = vmatprep.subr.mxu0 0.0
    %1608 = vmatpush1.msra.mxu0 0.0
    %1609 = vmatprep.subr.mxu0 0.0
    %1610 = vmatpush1.msra.mxu0 0.0
    %1611 = vmatprep.subr.mxu0 0.0
    %1612 = vmatpush1.msra.mxu0 0.0
    %1613 = vmatprep.subr.mxu0 0.0
    %1614 = vmatpush1.msra.mxu0 0.0
    %1615 = vmatprep.subr.mxu0 0.0
    %1616 = vmatpush1.msra.mxu0 0.0
    %1617 = vmatprep.subr.mxu0 0.0
    %1618 = vmatpush1.msra.mxu0 0.0
    %1619 = vmatprep.subr.mxu0 0.0
    %1620 = vmatpush1.msra.mxu0 0.0
    %1621 = vmatprep.subr.mxu0 0.0
    %1622 = vmatpush1.msra.mxu0 0.0
    %1623 = vmatprep.subr.mxu0 0.0
    %1624 = vmatpush1.msra.mxu0 0.0
    %1625 = vmatprep.subr.mxu0 0.0
    %1626 = vmatpush1.msra.mxu0 0.0
    %1627 = vmatprep.subr.mxu0 0.0
    %1628 = vmatpush1.msra.mxu0 0.0
    %1629 = vmatprep.subr.mxu0 0.0
    %1630 = vmatpush1.msra.mxu0 0.0
    %1631 = vmatprep.subr.mxu0 0.0
    %1632 = vmatpush1.msra.mxu0 0.0
    %1633 = vmatprep.subr.mxu0 0.0
    %1634 = vmatpush1.msra.mxu0 0.0
    %1635 = vmatprep.subr.mxu0 0.0
    %1636 = vmatpush1.msra.mxu0 0.0
    %1637 = vmatprep.subr.mxu0 0.0
    %1638 = vmatpush1.msra.mxu0 0.0
    %1639 = vmatprep.subr.mxu0 0.0
    %1640 = vmatpush1.msra.mxu0 0.0
    %1641 = vmatprep.subr.mxu0 0.0
    %1642 = vmatpush1.msra.mxu0 0.0
    %1643 = vmatprep.subr.mxu0 0.0
    %1644 = vmatpush1.msra.mxu0 0.0
    %1645 = vmatprep.subr.mxu0 0.0
    %1646 = vmatpush1.msra.mxu0 0.0
    %1647 = vmatprep.subr.mxu0 0.0
    %1648 = vmatpush1.msra.mxu0 0.0
    %1649 = vmatprep.subr.mxu0 0.0
    %1650 = vmatpush1.msra.mxu0 0.0
    %1651 = vmatprep.subr.mxu0 0.0
    %1652 = vmatpush1.msra.mxu0 0.0
    %1653 = vmatprep.subr.mxu0 0.0
    %1654 = vmatpush1.msra.mxu0 0.0
    %1655 = vmatprep.subr.mxu0 0.0
    %1656 = vmatpush1.msra.mxu0 0.0
    %1657 = vmatprep.subr.mxu0 0.0
    %1658 = vmatpush1.msra.mxu0 0.0
    %1659 = vmatprep.subr.mxu0 0.0
    %1660 = vmatpush1.msra.mxu0 0.0
    %1661 = vmatprep.subr.mxu0 0.0
    %1662 = vmatpush1.msra.mxu0 0.0
    %1663 = vmatprep.subr.mxu0 0.0
    %1664 = vmatpush1.msra.mxu0 0.0
    %1665 = vmatprep.mubr.f32.mxu0 0.0
    %1666 = vmatmul.mubr.f32.gmra.mrb[0].mxu0 %v1599
    %v1667 = vpop.f32.mrb[0].mxu0
    %v1668 = vadd.f32 0.0, %v1667
    %v1669 = vpop.f32.mrb[0].mxu0
    %1670 = vdwg.mxu0
    %vm1671 = vcmp.gt.f32.partialorder %v1668, 0.0
    %v1672 = vmin.f32 %v1668, 0.0
    %v1673 = vmul.f32 %v1672, 1.442695
    %v1674 = vpow.pop %v1673
    %v1675 = vsub.f32 %v1674, 1.0
    %v1676 = vsel %vm1671, %v1668, %v1675
    %v1678 = vsel %vm1586, %v1111, 0
    %v1681 = vsel %vm1586, %v1112, 0
    %1683 = vmatprep.subr.mxu0 0.0
    %1684 = vmatpush1.msra.mxu0 %v1676
    %1685 = vmatprep.subr.mxu0 0.0
    %1686 = vmatpush1.msra.mxu0 0.0
    %1687 = vmatprep.subr.mxu0 0.0
    %1688 = vmatpush1.msra.mxu0 0.0
    %1689 = vmatprep.subr.mxu0 0.0
    %1690 = vmatpush1.msra.mxu0 0.0
    %1691 = vmatprep.subr.mxu0 0.0
    %1692 = vmatpush1.msra.mxu0 0.0
    %1693 = vmatprep.subr.mxu0 0.0
    %1694 = vmatpush1.msra.mxu0 0.0
    %1695 = vmatprep.subr.mxu0 0.0
    %1696 = vmatpush1.msra.mxu0 0.0
    %1697 = vmatprep.subr.mxu0 0.0
    %1698 = vmatpush1.msra.mxu0 0.0
    %1699 = vmatprep.subr.mxu0 0.0
    %1700 = vmatpush1.msra.mxu0 0.0
    %1701 = vmatprep.subr.mxu0 0.0
    %1702 = vmatpush1.msra.mxu0 0.0
    %1703 = vmatprep.subr.mxu0 0.0
    %1704 = vmatpush1.msra.mxu0 0.0
    %1705 = vmatprep.subr.mxu0 0.0
    %1706 = vmatpush1.msra.mxu0 0.0
    %1707 = vmatprep.subr.mxu0 0.0
    %1708 = vmatpush1.msra.mxu0 0.0
    %1709 = vmatprep.subr.mxu0 0.0
    %1710 = vmatpush1.msra.mxu0 0.0
    %1711 = vmatprep.subr.mxu0 0.0
    %1712 = vmatpush1.msra.mxu0 0.0
    %1713 = vmatprep.subr.mxu0 0.0
    %1714 = vmatpush1.msra.mxu0 0.0
    %1715 = vmatprep.subr.mxu0 0.0
    %1716 = vmatpush1.msra.mxu0 0.0
    %1717 = vmatprep.subr.mxu0 0.0
    %1718 = vmatpush1.msra.mxu0 0.0
    %1719 = vmatprep.subr.mxu0 0.0
    %1720 = vmatpush1.msra.mxu0 0.0
    %1721 = vmatprep.subr.mxu0 0.0
    %1722 = vmatpush1.msra.mxu0 0.0
    %1723 = vmatprep.subr.mxu0 0.0
    %1724 = vmatpush1.msra.mxu0 0.0
    %1725 = vmatprep.subr.mxu0 0.0
    %1726 = vmatpush1.msra.mxu0 0.0
    %1727 = vmatprep.subr.mxu0 0.0
    %1728 = vmatpush1.msra.mxu0 0.0
    %1729 = vmatprep.subr.mxu0 0.0
    %1730 = vmatpush1.msra.mxu0 0.0
    %1731 = vmatprep.subr.mxu0 0.0
    %1732 = vmatpush1.msra.mxu0 0.0
    %1733 = vmatprep.subr.mxu0 0.0
    %1734 = vmatpush1.msra.mxu0 0.0
    %1735 = vmatprep.subr.mxu0 0.0
    %1736 = vmatpush1.msra.mxu0 0.0
    %1737 = vmatprep.subr.mxu0 0.0
    %1738 = vmatpush1.msra.mxu0 0.0
    %1739 = vmatprep.subr.mxu0 0.0
    %1740 = vmatpush1.msra.mxu0 0.0
    %1741 = vmatprep.subr.mxu0 0.0
    %1742 = vmatpush1.msra.mxu0 0.0
    %1743 = vmatprep.subr.mxu0 0.0
    %1744 = vmatpush1.msra.mxu0 0.0
    %1745 = vmatprep.subr.mxu0 0.0
    %1746 = vmatpush1.msra.mxu0 0.0
    %1747 = vmatprep.mubr.f32.mxu0 0.0
    %1748 = vmatmul.mubr.f32.gmra.mrb[0].mxu0 %v1678
    %v1749 = vpop.f32.mrb[0].mxu0
    %v1750 = vadd.f32 0.0, %v1749
    %v1751 = vpop.f32.mrb[0].mxu0
    %1752 = vmatprep.mubr.f32.mxu0 0.0
    %1753 = vmatmul.mubr.f32.gmra.mrb[0].mxu0 %v1681
    %v1754 = vpop.f32.mrb[0].mxu0
    %v1755 = vadd.f32 0.0, %v1754
    %v1756 = vpop.f32.mrb[0].mxu0
    %1757 = vdwg.mxu0
    %1758 = vmatprep.subr.mxu0 0.0
    %1759 = vmatpush1.msra.mxu0 %v1750
    %1760 = vmatprep.subr.mxu0 0.0
    %1761 = vmatpush1.msra.mxu0 %v1755
    %1762 = vmatprep.subr.mxu0 0.0
    %1763 = vmatpush1.msra.mxu0 0.0
    %1764 = vmatprep.subr.mxu0 0.0
    %1765 = vmatpush1.msra.mxu0 0.0
    %1766 = vmatprep.subr.mxu0 0.0
    %1767 = vmatpush1.msra.mxu0 0.0
    %1768 = vmatprep.subr.mxu0 0.0
    %1769 = vmatpush1.msra.mxu0 0.0
    %1770 = vmatprep.subr.mxu0 0.0
    %1771 = vmatpush1.msra.mxu0 0.0
    %1772 = vmatprep.subr.mxu0 0.0
    %1773 = vmatpush1.msra.mxu0 0.0
    %1774 = vmatprep.subr.mxu0 0.0
    %1775 = vmatpush1.msra.mxu0 0.0
    %1776 = vmatprep.subr.mxu0 0.0
    %1777 = vmatpush1.msra.mxu0 0.0
    %1778 = vmatprep.subr.mxu0 0.0
    %1779 = vmatpush1.msra.mxu0 0.0
    %1780 = vmatprep.subr.mxu0 0.0
    %1781 = vmatpush1.msra.mxu0 0.0
    %1782 = vmatprep.subr.mxu0 0.0
    %1783 = vmatpush1.msra.mxu0 0.0
    %1784 = vmatprep.subr.mxu0 0.0
    %1785 = vmatpush1.msra.mxu0 0.0
    %1786 = vmatprep.subr.mxu0 0.0
    %1787 = vmatpush1.msra.mxu0 0.0
    %1788 = vmatprep.subr.mxu0 0.0
    %1789 = vmatpush1.msra.mxu0 0.0
    %1790 = vmatprep.subr.mxu0 0.0
    %1791 = vmatpush1.msra.mxu0 0.0
    %1792 = vmatprep.subr.mxu0 0.0
    %1793 = vmatpush1.msra.mxu0 0.0
    %1794 = vmatprep.subr.mxu0 0.0
    %1795 = vmatpush1.msra.mxu0 0.0
    %1796 = vmatprep.subr.mxu0 0.0
    %1797 = vmatpush1.msra.mxu0 0.0
    %1798 = vmatprep.subr.mxu0 0.0
    %1799 = vmatpush1.msra.mxu0 0.0
    %1800 = vmatprep.subr.mxu0 0.0
    %1801 = vmatpush1.msra.mxu0 0.0
    %1802 = vmatprep.subr.mxu0 0.0
    %1803 = vmatpush1.msra.mxu0 0.0
    %1804 = vmatprep.subr.mxu0 0.0
    %1805 = vmatpush1.msra.mxu0 0.0
    %1806 = vmatprep.subr.mxu0 0.0
    %1807 = vmatpush1.msra.mxu0 0.0
    %1808 = vmatprep.subr.mxu0 0.0
    %1809 = vmatpush1.msra.mxu0 0.0
    %1810 = vmatprep.subr.mxu0 0.0
    %1811 = vmatpush1.msra.mxu0 0.0
    %1812 = vmatprep.subr.mxu0 0.0
    %1813 = vmatpush1.msra.mxu0 0.0
    %1814 = vmatprep.subr.mxu0 0.0
    %1815 = vmatpush1.msra.mxu0 0.0
    %1816 = vmatprep.subr.mxu0 0.0
    %1817 = vmatpush1.msra.mxu0 0.0
    %1818 = vmatprep.subr.mxu0 0.0
    %1819 = vmatpush1.msra.mxu0 0.0
    %1820 = vmatprep.subr.mxu0 0.0
    %1821 = vmatpush1.msra.mxu0 0.0
    %1822 = vmatprep.mubr.f32.mxu0 0.0
    %1823 = vmatmul.mubr.f32.gmra.mrb[0].mxu0 %v439
    %v1824 = vpop.f32.mrb[0].mxu0
    %v1825 = vadd.f32 0.0, %v1824
    %v1826 = vpop.f32.mrb[0].mxu0
    %1827 = vmatprep.mubr.f32.mxu0 0.0
    %1828 = vmatmul.mubr.f32.gmra.mrb[0].mxu0 %v442
    %v1829 = vpop.f32.mrb[0].mxu0
    %v1830 = vadd.f32 0.0, %v1829
    %v1831 = vpop.f32.mrb[0].mxu0
    %1832 = vdwg.mxu0
    %v1834 = vlaneseq
    %v1835 = vshrl.u32 %v1834, 7
    %v1836 = vsub.s32 0, %v1835
    %v1837 = vrot.slane %v95, %v1836
    %v1840 = vsel %vm219, %v1825, 0
    %v1843 = vsel %vm219, %v1830, 0
    %1845 = vmatprep.subr.mxu0 0.0
    %1846 = vmatpush1.msra.mxu0 %v91
    %1847 = vmatprep.subr.mxu0 0.0
    %1848 = vmatpush1.msra.mxu0 %v92
    %1849 = vmatprep.subr.mxu0 0.0
    %1850 = vmatpush1.msra.mxu0 %v93
    %1851 = vmatprep.subr.mxu0 0.0
    %1852 = vmatpush1.msra.mxu0 %v94
    %1853 = vmatprep.subr.mxu0 0.0
    %1854 = vmatpush1.msra.mxu0 0.0
    %1855 = vmatprep.subr.mxu0 0.0
    %1856 = vmatpush1.msra.mxu0 0.0
    %1857 = vmatprep.subr.mxu0 0.0
    %1858 = vmatpush1.msra.mxu0 0.0
    %1859 = vmatprep.subr.mxu0 0.0
    %1860 = vmatpush1.msra.mxu0 0.0
    %1861 = vmatprep.subr.mxu0 0.0
    %1862 = vmatpush1.msra.mxu0 0.0
    %1863 = vmatprep.subr.mxu0 0.0
    %1864 = vmatpush1.msra.mxu0 0.0
    %1865 = vmatprep.subr.mxu0 0.0
    %1866 = vmatpush1.msra.mxu0 0.0
    %1867 = vmatprep.subr.mxu0 0.0
    %1868 = vmatpush1.msra.mxu0 0.0
    %1869 = vmatprep.subr.mxu0 0.0
    %1870 = vmatpush1.msra.mxu0 0.0
    %1871 = vmatprep.subr.mxu0 0.0
    %1872 = vmatpush1.msra.mxu0 0.0
    %1873 = vmatprep.subr.mxu0 0.0
    %1874 = vmatpush1.msra.mxu0 0.0
    %1875 = vmatprep.subr.mxu0 0.0
    %1876 = vmatpush1.msra.mxu0 0.0
    %1877 = vmatprep.subr.mxu0 0.0
    %1878 = vmatpush1.msra.mxu0 0.0
    %1879 = vmatprep.subr.mxu0 0.0
    %1880 = vmatpush1.msra.mxu0 0.0
    %1881 = vmatprep.subr.mxu0 0.0
    %1882 = vmatpush1.msra.mxu0 0.0
    %1883 = vmatprep.subr.mxu0 0.0
    %1884 = vmatpush1.msra.mxu0 0.0
    %1885 = vmatprep.subr.mxu0 0.0
    %1886 = vmatpush1.msra.mxu0 0.0
    %1887 = vmatprep.subr.mxu0 0.0
    %1888 = vmatpush1.msra.mxu0 0.0
    %1889 = vmatprep.subr.mxu0 0.0
    %1890 = vmatpush1.msra.mxu0 0.0
    %1891 = vmatprep.subr.mxu0 0.0
    %1892 = vmatpush1.msra.mxu0 0.0
    %1893 = vmatprep.subr.mxu0 0.0
    %1894 = vmatpush1.msra.mxu0 0.0
    %1895 = vmatprep.subr.mxu0 0.0
    %1896 = vmatpush1.msra.mxu0 0.0
    %1897 = vmatprep.subr.mxu0 0.0
    %1898 = vmatpush1.msra.mxu0 0.0
    %1899 = vmatprep.subr.mxu0 0.0
    %1900 = vmatpush1.msra.mxu0 0.0
    %1901 = vmatprep.subr.mxu0 0.0
    %1902 = vmatpush1.msra.mxu0 0.0
    %1903 = vmatprep.subr.mxu0 0.0
    %1904 = vmatpush1.msra.mxu0 0.0
    %1905 = vmatprep.subr.mxu0 0.0
    %1906 = vmatpush1.msra.mxu0 0.0
    %1907 = vmatprep.subr.mxu0 0.0
    %1908 = vmatpush1.msra.mxu0 0.0
    %1909 = vmatprep.mubr.f32.mxu0 0.0
    %1910 = vmatmul.mubr.f32.gmra.mrb[0].mxu0 %v1840
    %v1911 = vpop.f32.mrb[0].mxu0
    %v1912 = vadd.f32 %v1837, %v1911
    %v1913 = vpop.f32.mrb[0].mxu0
    %1914 = vmatprep.mubr.f32.mxu0 0.0
    %1915 = vmatmul.mubr.f32.gmra.mrb[0].mxu0 %v1843
    %v1916 = vpop.f32.mrb[0].mxu0
    %v1917 = vadd.f32 %v1837, %v1916
    %v1918 = vpop.f32.mrb[0].mxu0
    %1919 = vdwg.mxu0
    %v1920 = vadd.f32 %v1912, %v598
    %v1921 = vadd.f32 %v1917, %v603
    %v1923 = vsel %vm219, %v434, 0
    %v1926 = vsel %vm219, %v435, 0
    %1928 = vmatprep.subr.mxu0 0.0
    %1929 = vmatpush1.msra.mxu0 %v75
    %1930 = vmatprep.subr.mxu0 0.0
    %1931 = vmatpush1.msra.mxu0 %v76
    %1932 = vmatprep.subr.mxu0 0.0
    %1933 = vmatpush1.msra.mxu0 %v77
    %1934 = vmatprep.subr.mxu0 0.0
    %1935 = vmatpush1.msra.mxu0 %v78
    %1936 = vmatprep.subr.mxu0 0.0
    %1937 = vmatpush1.msra.mxu0 0.0
    %1938 = vmatprep.subr.mxu0 0.0
    %1939 = vmatpush1.msra.mxu0 0.0
    %1940 = vmatprep.subr.mxu0 0.0
    %1941 = vmatpush1.msra.mxu0 0.0
    %1942 = vmatprep.subr.mxu0 0.0
    %1943 = vmatpush1.msra.mxu0 0.0
    %1944 = vmatprep.subr.mxu0 0.0
    %1945 = vmatpush1.msra.mxu0 0.0
    %1946 = vmatprep.subr.mxu0 0.0
    %1947 = vmatpush1.msra.mxu0 0.0
    %1948 = vmatprep.subr.mxu0 0.0
    %1949 = vmatpush1.msra.mxu0 0.0
    %1950 = vmatprep.subr.mxu0 0.0
    %1951 = vmatpush1.msra.mxu0 0.0
    %1952 = vmatprep.subr.mxu0 0.0
    %1953 = vmatpush1.msra.mxu0 0.0
    %1954 = vmatprep.subr.mxu0 0.0
    %1955 = vmatpush1.msra.mxu0 0.0
    %1956 = vmatprep.subr.mxu0 0.0
    %1957 = vmatpush1.msra.mxu0 0.0
    %1958 = vmatprep.subr.mxu0 0.0
    %1959 = vmatpush1.msra.mxu0 0.0
    %1960 = vmatprep.subr.mxu0 0.0
    %1961 = vmatpush1.msra.mxu0 0.0
    %1962 = vmatprep.subr.mxu0 0.0
    %1963 = vmatpush1.msra.mxu0 0.0
    %1964 = vmatprep.subr.mxu0 0.0
    %1965 = vmatpush1.msra.mxu0 0.0
    %1966 = vmatprep.subr.mxu0 0.0
    %1967 = vmatpush1.msra.mxu0 0.0
    %1968 = vmatprep.subr.mxu0 0.0
    %1969 = vmatpush1.msra.mxu0 0.0
    %1970 = vmatprep.subr.mxu0 0.0
    %1971 = vmatpush1.msra.mxu0 0.0
    %1972 = vmatprep.subr.mxu0 0.0
    %1973 = vmatpush1.msra.mxu0 0.0
    %1974 = vmatprep.subr.mxu0 0.0
    %1975 = vmatpush1.msra.mxu0 0.0
    %1976 = vmatprep.subr.mxu0 0.0
    %1977 = vmatpush1.msra.mxu0 0.0
    %1978 = vmatprep.subr.mxu0 0.0
    %1979 = vmatpush1.msra.mxu0 0.0
    %1980 = vmatprep.subr.mxu0 0.0
    %1981 = vmatpush1.msra.mxu0 0.0
    %1982 = vmatprep.subr.mxu0 0.0
    %1983 = vmatpush1.msra.mxu0 0.0
    %1984 = vmatprep.subr.mxu0 0.0
    %1985 = vmatpush1.msra.mxu0 0.0
    %1986 = vmatprep.subr.mxu0 0.0
    %1987 = vmatpush1.msra.mxu0 0.0
    %1988 = vmatprep.subr.mxu0 0.0
    %1989 = vmatpush1.msra.mxu0 0.0
    %1990 = vmatprep.subr.mxu0 0.0
    %1991 = vmatpush1.msra.mxu0 0.0
    %1992 = vmatprep.mubr.f32.mxu0 0.0
    %1993 = vmatmul.mubr.f32.gmra.mrb[0].mxu0 %v1923
    %v1994 = vpop.f32.mrb[0].mxu0
    %v1995 = vadd.f32 0.0, %v1994
    %v1996 = vpop.f32.mrb[0].mxu0
    %1997 = vmatprep.mubr.f32.mxu0 0.0
    %1998 = vmatmul.mubr.f32.gmra.mrb[0].mxu0 %v1926
    %v1999 = vpop.f32.mrb[0].mxu0
    %v2000 = vadd.f32 0.0, %v1999
    %v2001 = vpop.f32.mrb[0].mxu0
    %2002 = vdwg.mxu0
    %v2004 = vsel %vm219, %v1920, 0
    %v2007 = vsel %vm219, %v1921, 0
    %2009 = vmatprep.subr.mxu0 0.0
    %2010 = vmatpush1.msra.mxu0 %v71
    %2011 = vmatprep.subr.mxu0 0.0
    %2012 = vmatpush1.msra.mxu0 %v72
    %2013 = vmatprep.subr.mxu0 0.0
    %2014 = vmatpush1.msra.mxu0 %v73
    %2015 = vmatprep.subr.mxu0 0.0
    %2016 = vmatpush1.msra.mxu0 %v74
    %2017 = vmatprep.subr.mxu0 0.0
    %2018 = vmatpush1.msra.mxu0 0.0
    %2019 = vmatprep.subr.mxu0 0.0
    %2020 = vmatpush1.msra.mxu0 0.0
    %2021 = vmatprep.subr.mxu0 0.0
    %2022 = vmatpush1.msra.mxu0 0.0
    %2023 = vmatprep.subr.mxu0 0.0
    %2024 = vmatpush1.msra.mxu0 0.0
    %2025 = vmatprep.subr.mxu0 0.0
    %2026 = vmatpush1.msra.mxu0 0.0
    %2027 = vmatprep.subr.mxu0 0.0
    %2028 = vmatpush1.msra.mxu0 0.0
    %2029 = vmatprep.subr.mxu0 0.0
    %2030 = vmatpush1.msra.mxu0 0.0
    %2031 = vmatprep.subr.mxu0 0.0
    %2032 = vmatpush1.msra.mxu0 0.0
    %2033 = vmatprep.subr.mxu0 0.0
    %2034 = vmatpush1.msra.mxu0 0.0
    %2035 = vmatprep.subr.mxu0 0.0
    %2036 = vmatpush1.msra.mxu0 0.0
    %2037 = vmatprep.subr.mxu0 0.0
    %2038 = vmatpush1.msra.mxu0 0.0
    %2039 = vmatprep.subr.mxu0 0.0
    %2040 = vmatpush1.msra.mxu0 0.0
    %2041 = vmatprep.subr.mxu0 0.0
    %2042 = vmatpush1.msra.mxu0 0.0
    %2043 = vmatprep.subr.mxu0 0.0
    %2044 = vmatpush1.msra.mxu0 0.0
    %2045 = vmatprep.subr.mxu0 0.0
    %2046 = vmatpush1.msra.mxu0 0.0
    %2047 = vmatprep.subr.mxu0 0.0
    %2048 = vmatpush1.msra.mxu0 0.0
    %2049 = vmatprep.subr.mxu0 0.0
    %2050 = vmatpush1.msra.mxu0 0.0
    %2051 = vmatprep.subr.mxu0 0.0
    %2052 = vmatpush1.msra.mxu0 0.0
    %2053 = vmatprep.subr.mxu0 0.0
    %2054 = vmatpush1.msra.mxu0 0.0
    %2055 = vmatprep.subr.mxu0 0.0
    %2056 = vmatpush1.msra.mxu0 0.0
    %2057 = vmatprep.subr.mxu0 0.0
    %2058 = vmatpush1.msra.mxu0 0.0
    %2059 = vmatprep.subr.mxu0 0.0
    %2060 = vmatpush1.msra.mxu0 0.0
    %2061 = vmatprep.subr.mxu0 0.0
    %2062 = vmatpush1.msra.mxu0 0.0
    %2063 = vmatprep.subr.mxu0 0.0
    %2064 = vmatpush1.msra.mxu0 0.0
    %2065 = vmatprep.subr.mxu0 0.0
    %2066 = vmatpush1.msra.mxu0 0.0
    %2067 = vmatprep.subr.mxu0 0.0
    %2068 = vmatpush1.msra.mxu0 0.0
    %2069 = vmatprep.subr.mxu0 0.0
    %2070 = vmatpush1.msra.mxu0 0.0
    %2071 = vmatprep.subr.mxu0 0.0
    %2072 = vmatpush1.msra.mxu0 0.0
    %2073 = vmatprep.mubr.f32.mxu0 0.0
    %2074 = vmatmul.mubr.f32.gmra.mrb[0].mxu0 %v2004
    %v2075 = vpop.f32.mrb[0].mxu0
    %v2076 = vadd.f32 %v1995, %v2075
    %v2077 = vpop.f32.mrb[0].mxu0
    %2078 = vmatprep.mubr.f32.mxu0 0.0
    %2079 = vmatmul.mubr.f32.gmra.mrb[0].mxu0 %v2007
    %v2080 = vpop.f32.mrb[0].mxu0
    %v2081 = vadd.f32 %v2000, %v2080
    %v2082 = vpop.f32.mrb[0].mxu0
    %2083 = vdwg.mxu0
    %v2085 = vlaneseq
    %v2086 = vshrl.u32 %v2085, 7
    %v2087 = vsub.s32 0, %v2086
    %v2088 = vrot.slane %v79, %v2087
    %v2090 = vmul.f32 %v2076, %v2088
    %v2091 = vmul.f32 %v2081, %v2088
    %v2092 = vsel %vm219, %v2090, 0.0
    %2093 = vadd.xlane.f32.xlu0 %v2092
    %v2094 = vpop.xlane.xlu0 %2093
    %v2095 = vsel %vm219, %v2091, 0.0
    %2096 = vadd.xlane.f32.xlu0 %v2095
    %v2097 = vpop.xlane.xlu0 %2096
    %v2099 = vsel %vm219, %v80, 0
    %v2102 = vsel %vm219, %v2076, 0
    %v2105 = vsel %vm219, %v2081, 0
    %2107 = vmatprep.subr.mxu0 0.0
    %2108 = vmatpush1.xpose.msra.mxu0 %v2102
    %2109 = vmatprep.subr.mxu0 0.0
    %2110 = vmatpush1.xpose.msra.mxu0 %v2105
    %2111 = vmatprep.subr.mxu0 0.0
    %2112 = vmatpush1.xpose.msra.mxu0 0.0
    %2113 = vmatprep.subr.mxu0 0.0
    %2114 = vmatpush1.xpose.msra.mxu0 0.0
    %2115 = vmatprep.subr.mxu0 0.0
    %2116 = vmatpush1.xpose.msra.mxu0 0.0
    %2117 = vmatprep.subr.mxu0 0.0
    %2118 = vmatpush1.xpose.msra.mxu0 0.0
    %2119 = vmatprep.subr.mxu0 0.0
    %2120 = vmatpush1.xpose.msra.mxu0 0.0
    %2121 = vmatprep.subr.mxu0 0.0
    %2122 = vmatpush1.xpose.msra.mxu0 0.0
    %2123 = vmatprep.subr.mxu0 0.0
    %2124 = vmatpush1.xpose.msra.mxu0 0.0
    %2125 = vmatprep.subr.mxu0 0.0
    %2126 = vmatpush1.xpose.msra.mxu0 0.0
    %2127 = vmatprep.subr.mxu0 0.0
    %2128 = vmatpush1.xpose.msra.mxu0 0.0
    %2129 = vmatprep.subr.mxu0 0.0
    %2130 = vmatpush1.xpose.msra.mxu0 0.0
    %2131 = vmatprep.subr.mxu0 0.0
    %2132 = vmatpush1.xpose.msra.mxu0 0.0
    %2133 = vmatprep.subr.mxu0 0.0
    %2134 = vmatpush1.xpose.msra.mxu0 0.0
    %2135 = vmatprep.subr.mxu0 0.0
    %2136 = vmatpush1.xpose.msra.mxu0 0.0
    %2137 = vmatprep.subr.mxu0 0.0
    %2138 = vmatpush1.xpose.msra.mxu0 0.0
    %2139 = vmatprep.subr.mxu0 0.0
    %2140 = vmatpush1.xpose.msra.mxu0 0.0
    %2141 = vmatprep.subr.mxu0 0.0
    %2142 = vmatpush1.xpose.msra.mxu0 0.0
    %2143 = vmatprep.subr.mxu0 0.0
    %2144 = vmatpush1.xpose.msra.mxu0 0.0
    %2145 = vmatprep.subr.mxu0 0.0
    %2146 = vmatpush1.xpose.msra.mxu0 0.0
    %2147 = vmatprep.subr.mxu0 0.0
    %2148 = vmatpush1.xpose.msra.mxu0 0.0
    %2149 = vmatprep.subr.mxu0 0.0
    %2150 = vmatpush1.xpose.msra.mxu0 0.0
    %2151 = vmatprep.subr.mxu0 0.0
    %2152 = vmatpush1.xpose.msra.mxu0 0.0
    %2153 = vmatprep.subr.mxu0 0.0
    %2154 = vmatpush1.xpose.msra.mxu0 0.0
    %2155 = vmatprep.subr.mxu0 0.0
    %2156 = vmatpush1.xpose.msra.mxu0 0.0
    %2157 = vmatprep.subr.mxu0 0.0
    %2158 = vmatpush1.xpose.msra.mxu0 0.0
    %2159 = vmatprep.subr.mxu0 0.0
    %2160 = vmatpush1.xpose.msra.mxu0 0.0
    %2161 = vmatprep.subr.mxu0 0.0
    %2162 = vmatpush1.xpose.msra.mxu0 0.0
    %2163 = vmatprep.subr.mxu0 0.0
    %2164 = vmatpush1.xpose.msra.mxu0 0.0
    %2165 = vmatprep.subr.mxu0 0.0
    %2166 = vmatpush1.xpose.msra.mxu0 0.0
    %2167 = vmatprep.subr.mxu0 0.0
    %2168 = vmatpush1.xpose.msra.mxu0 0.0
    %2169 = vmatprep.subr.mxu0 0.0
    %2170 = vmatpush1.xpose.msra.mxu0 0.0
    %2171 = vmatprep.mubr.f32.mxu0 0.0
    %2172 = vmatmul.mubr.f32.gmra.mrb[0].mxu0 %v2099
    %v2173 = vpop.f32.mrb[0].mxu0
    %v2174 = vadd.f32 0.0, %v2173
    %v2175 = vpop.f32.mrb[0].mxu0
    %2176 = vdwg.mxu0
    %v2177 = vlaneseq
    %v2178 = vshrl.u32 %v2177, 7
    %v2179 = vsub.s32 0, %v2178
    %v2180 = vrot.slane %v2174, %v2179
    %v2181 = vadd.f32 %v2094, %v2180
    %v2182 = vadd.f32 %v2097, %v2180
    %vm2183 = vcmp.gt.f32.partialorder %v2181, 0.0
    %vm2184 = vcmp.gt.f32.partialorder %v2182, 0.0
    %v2185 = vmul.f32 %v2181, 0.2
    %v2186 = vmul.f32 %v2182, 0.2
    %v2187 = vsel %vm2183, %v2181, %v2185
    %v2188 = vsel %vm2184, %v2182, %v2186
    %v2189 = vsel %vm317, %v2187, -9e+15
    %v2190 = vsel %vm318, %v2188, -9e+15
    %v2191 = vsel %vm105, %v2189, -inf
    %2192 = vmax.xlane.f32.xlu0 %v2191
    %v2193 = vpop.xlane.xlu0 %2192
    %v2194 = vsel %vm105, %v2190, -inf
    %2195 = vmax.xlane.f32.xlu0 %v2194
    %v2196 = vpop.xlane.xlu0 %2195
    %v2197 = vsub.f32 %v2189, %v2193
    %v2198 = vsub.f32 %v2190, %v2196
    %v2199 = vmul.f32 %v2197, 1.442695
    %v2200 = vpow.pop %v2199
    %v2201 = vmul.f32 %v2198, 1.442695
    %v2202 = vpow.pop %v2201
    %v2203 = vsel %vm105, %v2200, 0.0
    %2204 = vadd.xlane.f32.xlu0 %v2203
    %v2205 = vpop.xlane.xlu0 %2204
    %v2206 = vsel %vm105, %v2202, 0.0
    %2207 = vadd.xlane.f32.xlu0 %v2206
    %v2208 = vpop.xlane.xlu0 %2207
    %v2209 = vrcp.pop %v2205
    %v2210 = vrcp.pop %v2208
    %v2211 = vmul.f32 %v2200, %v2209
    %v2212 = vmul.f32 %v2202, %v2210
    %v2214 = vsel %vm105, %v2211, 0
    %v2217 = vsel %vm105, %v2212, 0
    %2219 = vmatprep.subr.mxu0 0.0
    %2220 = vmatpush1.msra.mxu0 %v2076
    %2221 = vmatprep.subr.mxu0 0.0
    %2222 = vmatpush1.msra.mxu0 %v2081
    %2223 = vmatprep.subr.mxu0 0.0
    %2224 = vmatpush1.msra.mxu0 0.0
    %2225 = vmatprep.subr.mxu0 0.0
    %2226 = vmatpush1.msra.mxu0 0.0
    %2227 = vmatprep.subr.mxu0 0.0
    %2228 = vmatpush1.msra.mxu0 0.0
    %2229 = vmatprep.subr.mxu0 0.0
    %2230 = vmatpush1.msra.mxu0 0.0
    %2231 = vmatprep.subr.mxu0 0.0
    %2232 = vmatpush1.msra.mxu0 0.0
    %2233 = vmatprep.subr.mxu0 0.0
    %2234 = vmatpush1.msra.mxu0 0.0
    %2235 = vmatprep.subr.mxu0 0.0
    %2236 = vmatpush1.msra.mxu0 0.0
    %2237 = vmatprep.subr.mxu0 0.0
    %2238 = vmatpush1.msra.mxu0 0.0
    %2239 = vmatprep.subr.mxu0 0.0
    %2240 = vmatpush1.msra.mxu0 0.0
    %2241 = vmatprep.subr.mxu0 0.0
    %2242 = vmatpush1.msra.mxu0 0.0
    %2243 = vmatprep.subr.mxu0 0.0
    %2244 = vmatpush1.msra.mxu0 0.0
    %2245 = vmatprep.subr.mxu0 0.0
    %2246 = vmatpush1.msra.mxu0 0.0
    %2247 = vmatprep.subr.mxu0 0.0
    %2248 = vmatpush1.msra.mxu0 0.0
    %2249 = vmatprep.subr.mxu0 0.0
    %2250 = vmatpush1.msra.mxu0 0.0
    %2251 = vmatprep.subr.mxu0 0.0
    %2252 = vmatpush1.msra.mxu0 0.0
    %2253 = vmatprep.subr.mxu0 0.0
    %2254 = vmatpush1.msra.mxu0 0.0
    %2255 = vmatprep.subr.mxu0 0.0
    %2256 = vmatpush1.msra.mxu0 0.0
    %2257 = vmatprep.subr.mxu0 0.0
    %2258 = vmatpush1.msra.mxu0 0.0
    %2259 = vmatprep.subr.mxu0 0.0
    %2260 = vmatpush1.msra.mxu0 0.0
    %2261 = vmatprep.subr.mxu0 0.0
    %2262 = vmatpush1.msra.mxu0 0.0
    %2263 = vmatprep.subr.mxu0 0.0
    %2264 = vmatpush1.msra.mxu0 0.0
    %2265 = vmatprep.subr.mxu0 0.0
    %2266 = vmatpush1.msra.mxu0 0.0
    %2267 = vmatprep.subr.mxu0 0.0
    %2268 = vmatpush1.msra.mxu0 0.0
    %2269 = vmatprep.subr.mxu0 0.0
    %2270 = vmatpush1.msra.mxu0 0.0
    %2271 = vmatprep.subr.mxu0 0.0
    %2272 = vmatpush1.msra.mxu0 0.0
    %2273 = vmatprep.subr.mxu0 0.0
    %2274 = vmatpush1.msra.mxu0 0.0
    %2275 = vmatprep.subr.mxu0 0.0
    %2276 = vmatpush1.msra.mxu0 0.0
    %2277 = vmatprep.subr.mxu0 0.0
    %2278 = vmatpush1.msra.mxu0 0.0
    %2279 = vmatprep.subr.mxu0 0.0
    %2280 = vmatpush1.msra.mxu0 0.0
    %2281 = vmatprep.subr.mxu0 0.0
    %2282 = vmatpush1.msra.mxu0 0.0
    %2283 = vmatprep.mubr.f32.mxu0 0.0
    %2284 = vmatmul.mubr.f32.gmra.mrb[0].mxu0 %v2214
    %v2285 = vpop.f32.mrb[0].mxu0
    %v2286 = vadd.f32 0.0, %v2285
    %v2287 = vpop.f32.mrb[0].mxu0
    %2288 = vmatprep.mubr.f32.mxu0 0.0
    %2289 = vmatmul.mubr.f32.gmra.mrb[0].mxu0 %v2217
    %v2290 = vpop.f32.mrb[0].mxu0
    %v2291 = vadd.f32 0.0, %v2290
    %v2292 = vpop.f32.mrb[0].mxu0
    %2293 = vdwg.mxu0
    %vm2294 = vcmp.gt.f32.partialorder %v2286, 0.0
    %vm2295 = vcmp.gt.f32.partialorder %v2291, 0.0
    %v2296 = vmin.f32 %v2286, 0.0
    %v2297 = vmin.f32 %v2291, 0.0
    %v2298 = vmul.f32 %v2296, 1.442695
    %v2299 = vpow.pop %v2298
    %v2300 = vmul.f32 %v2297, 1.442695
    %v2301 = vpow.pop %v2300
    %v2302 = vsub.f32 %v2299, 1.0
    %v2303 = vsub.f32 %v2301, 1.0
    %v2304 = vsel %vm2294, %v2286, %v2302
    %v2305 = vsel %vm2295, %v2291, %v2303
    %2306 = vmatprep.subr.mxu0 0.0
    %2307 = vmatpush1.msra.mxu0 %v2304
    %2308 = vmatprep.subr.mxu0 0.0
    %2309 = vmatpush1.msra.mxu0 %v2305
    %2310 = vmatprep.subr.mxu0 0.0
    %2311 = vmatpush1.msra.mxu0 0.0
    %2312 = vmatprep.subr.mxu0 0.0
    %2313 = vmatpush1.msra.mxu0 0.0
    %2314 = vmatprep.subr.mxu0 0.0
    %2315 = vmatpush1.msra.mxu0 0.0
    %2316 = vmatprep.subr.mxu0 0.0
    %2317 = vmatpush1.msra.mxu0 0.0
    %2318 = vmatprep.subr.mxu0 0.0
    %2319 = vmatpush1.msra.mxu0 0.0
    %2320 = vmatprep.subr.mxu0 0.0
    %2321 = vmatpush1.msra.mxu0 0.0
    %2322 = vmatprep.subr.mxu0 0.0
    %2323 = vmatpush1.msra.mxu0 0.0
    %2324 = vmatprep.subr.mxu0 0.0
    %2325 = vmatpush1.msra.mxu0 0.0
    %2326 = vmatprep.subr.mxu0 0.0
    %2327 = vmatpush1.msra.mxu0 0.0
    %2328 = vmatprep.subr.mxu0 0.0
    %2329 = vmatpush1.msra.mxu0 0.0
    %2330 = vmatprep.subr.mxu0 0.0
    %2331 = vmatpush1.msra.mxu0 0.0
    %2332 = vmatprep.subr.mxu0 0.0
    %2333 = vmatpush1.msra.mxu0 0.0
    %2334 = vmatprep.subr.mxu0 0.0
    %2335 = vmatpush1.msra.mxu0 0.0
    %2336 = vmatprep.subr.mxu0 0.0
    %2337 = vmatpush1.msra.mxu0 0.0
    %2338 = vmatprep.subr.mxu0 0.0
    %2339 = vmatpush1.msra.mxu0 0.0
    %2340 = vmatprep.subr.mxu0 0.0
    %2341 = vmatpush1.msra.mxu0 0.0
    %2342 = vmatprep.subr.mxu0 0.0
    %2343 = vmatpush1.msra.mxu0 0.0
    %2344 = vmatprep.subr.mxu0 0.0
    %2345 = vmatpush1.msra.mxu0 0.0
    %2346 = vmatprep.subr.mxu0 0.0
    %2347 = vmatpush1.msra.mxu0 0.0
    %2348 = vmatprep.subr.mxu0 0.0
    %2349 = vmatpush1.msra.mxu0 0.0
    %2350 = vmatprep.subr.mxu0 0.0
    %2351 = vmatpush1.msra.mxu0 0.0
    %2352 = vmatprep.subr.mxu0 0.0
    %2353 = vmatpush1.msra.mxu0 0.0
    %2354 = vmatprep.subr.mxu0 0.0
    %2355 = vmatpush1.msra.mxu0 0.0
    %2356 = vmatprep.subr.mxu0 0.0
    %2357 = vmatpush1.msra.mxu0 0.0
    %2358 = vmatprep.subr.mxu0 0.0
    %2359 = vmatpush1.msra.mxu0 0.0
    %2360 = vmatprep.subr.mxu0 0.0
    %2361 = vmatpush1.msra.mxu0 0.0
    %2362 = vmatprep.subr.mxu0 0.0
    %2363 = vmatpush1.msra.mxu0 0.0
    %2364 = vmatprep.subr.mxu0 0.0
    %2365 = vmatpush1.msra.mxu0 0.0
    %2366 = vmatprep.subr.mxu0 0.0
    %2367 = vmatpush1.msra.mxu0 0.0
    %2368 = vmatprep.subr.mxu0 0.0
    %2369 = vmatpush1.msra.mxu0 0.0
    %2370 = vmatprep.mubr.f32.mxu0 0.0
    %2371 = vmatmul.mubr.f32.gmra.mrb[0].mxu0 %v439
    %v2372 = vpop.f32.mrb[0].mxu0
    %v2373 = vadd.f32 0.0, %v2372
    %v2374 = vpop.f32.mrb[0].mxu0
    %2375 = vmatprep.mubr.f32.mxu0 0.0
    %2376 = vmatmul.mubr.f32.gmra.mrb[0].mxu0 %v442
    %v2377 = vpop.f32.mrb[0].mxu0
    %v2378 = vadd.f32 0.0, %v2377
    %v2379 = vpop.f32.mrb[0].mxu0
    %2380 = vdwg.mxu0
    %v2382 = vsel %vm219, %v2373, 0
    %v2385 = vsel %vm219, %v2378, 0
    %2387 = vmatprep.subr.mxu0 0.0
    %2388 = vmatpush1.msra.mxu0 %v81
    %2389 = vmatprep.subr.mxu0 0.0
    %2390 = vmatpush1.msra.mxu0 %v82
    %2391 = vmatprep.subr.mxu0 0.0
    %2392 = vmatpush1.msra.mxu0 %v83
    %2393 = vmatprep.subr.mxu0 0.0
    %2394 = vmatpush1.msra.mxu0 %v84
    %2395 = vmatprep.subr.mxu0 0.0
    %2396 = vmatpush1.msra.mxu0 0.0
    %2397 = vmatprep.subr.mxu0 0.0
    %2398 = vmatpush1.msra.mxu0 0.0
    %2399 = vmatprep.subr.mxu0 0.0
    %2400 = vmatpush1.msra.mxu0 0.0
    %2401 = vmatprep.subr.mxu0 0.0
    %2402 = vmatpush1.msra.mxu0 0.0
    %2403 = vmatprep.subr.mxu0 0.0
    %2404 = vmatpush1.msra.mxu0 0.0
    %2405 = vmatprep.subr.mxu0 0.0
    %2406 = vmatpush1.msra.mxu0 0.0
    %2407 = vmatprep.subr.mxu0 0.0
    %2408 = vmatpush1.msra.mxu0 0.0
    %2409 = vmatprep.subr.mxu0 0.0
    %2410 = vmatpush1.msra.mxu0 0.0
    %2411 = vmatprep.subr.mxu0 0.0
    %2412 = vmatpush1.msra.mxu0 0.0
    %2413 = vmatprep.subr.mxu0 0.0
    %2414 = vmatpush1.msra.mxu0 0.0
    %2415 = vmatprep.subr.mxu0 0.0
    %2416 = vmatpush1.msra.mxu0 0.0
    %2417 = vmatprep.subr.mxu0 0.0
    %2418 = vmatpush1.msra.mxu0 0.0
    %2419 = vmatprep.subr.mxu0 0.0
    %2420 = vmatpush1.msra.mxu0 0.0
    %2421 = vmatprep.subr.mxu0 0.0
    %2422 = vmatpush1.msra.mxu0 0.0
    %2423 = vmatprep.subr.mxu0 0.0
    %2424 = vmatpush1.msra.mxu0 0.0
    %2425 = vmatprep.subr.mxu0 0.0
    %2426 = vmatpush1.msra.mxu0 0.0
    %2427 = vmatprep.subr.mxu0 0.0
    %2428 = vmatpush1.msra.mxu0 0.0
    %2429 = vmatprep.subr.mxu0 0.0
    %2430 = vmatpush1.msra.mxu0 0.0
    %2431 = vmatprep.subr.mxu0 0.0
    %2432 = vmatpush1.msra.mxu0 0.0
    %2433 = vmatprep.subr.mxu0 0.0
    %2434 = vmatpush1.msra.mxu0 0.0
    %2435 = vmatprep.subr.mxu0 0.0
    %2436 = vmatpush1.msra.mxu0 0.0
    %2437 = vmatprep.subr.mxu0 0.0
    %2438 = vmatpush1.msra.mxu0 0.0
    %2439 = vmatprep.subr.mxu0 0.0
    %2440 = vmatpush1.msra.mxu0 0.0
    %2441 = vmatprep.subr.mxu0 0.0
    %2442 = vmatpush1.msra.mxu0 0.0
    %2443 = vmatprep.subr.mxu0 0.0
    %2444 = vmatpush1.msra.mxu0 0.0
    %2445 = vmatprep.subr.mxu0 0.0
    %2446 = vmatpush1.msra.mxu0 0.0
    %2447 = vmatprep.subr.mxu0 0.0
    %2448 = vmatpush1.msra.mxu0 0.0
    %2449 = vmatprep.subr.mxu0 0.0
    %2450 = vmatpush1.msra.mxu0 0.0
    %2451 = vmatprep.mubr.f32.mxu0 0.0
    %2452 = vmatmul.mubr.f32.gmra.mrb[0].mxu0 %v2382
    %v2453 = vpop.f32.mrb[0].mxu0
    %v2454 = vadd.f32 %v523, %v2453
    %v2455 = vpop.f32.mrb[0].mxu0
    %2456 = vmatprep.mubr.f32.mxu0 0.0
    %2457 = vmatmul.mubr.f32.gmra.mrb[0].mxu0 %v2385
    %v2458 = vpop.f32.mrb[0].mxu0
    %v2459 = vadd.f32 %v523, %v2458
    %v2460 = vpop.f32.mrb[0].mxu0
    %2461 = vdwg.mxu0
    %v2463 = vsel %vm219, %v2454, 0
    %v2466 = vsel %vm219, %v2459, 0
    %2468 = vmatprep.subr.mxu0 0.0
    %2469 = vmatpush1.msra.mxu0 %v86
    %2470 = vmatprep.subr.mxu0 0.0
    %2471 = vmatpush1.msra.mxu0 %v87
    %2472 = vmatprep.subr.mxu0 0.0
    %2473 = vmatpush1.msra.mxu0 %v88
    %2474 = vmatprep.subr.mxu0 0.0
    %2475 = vmatpush1.msra.mxu0 %v89
    %2476 = vmatprep.subr.mxu0 0.0
    %2477 = vmatpush1.msra.mxu0 0.0
    %2478 = vmatprep.subr.mxu0 0.0
    %2479 = vmatpush1.msra.mxu0 0.0
    %2480 = vmatprep.subr.mxu0 0.0
    %2481 = vmatpush1.msra.mxu0 0.0
    %2482 = vmatprep.subr.mxu0 0.0
    %2483 = vmatpush1.msra.mxu0 0.0
    %2484 = vmatprep.subr.mxu0 0.0
    %2485 = vmatpush1.msra.mxu0 0.0
    %2486 = vmatprep.subr.mxu0 0.0
    %2487 = vmatpush1.msra.mxu0 0.0
    %2488 = vmatprep.subr.mxu0 0.0
    %2489 = vmatpush1.msra.mxu0 0.0
    %2490 = vmatprep.subr.mxu0 0.0
    %2491 = vmatpush1.msra.mxu0 0.0
    %2492 = vmatprep.subr.mxu0 0.0
    %2493 = vmatpush1.msra.mxu0 0.0
    %2494 = vmatprep.subr.mxu0 0.0
    %2495 = vmatpush1.msra.mxu0 0.0
    %2496 = vmatprep.subr.mxu0 0.0
    %2497 = vmatpush1.msra.mxu0 0.0
    %2498 = vmatprep.subr.mxu0 0.0
    %2499 = vmatpush1.msra.mxu0 0.0
    %2500 = vmatprep.subr.mxu0 0.0
    %2501 = vmatpush1.msra.mxu0 0.0
    %2502 = vmatprep.subr.mxu0 0.0
    %2503 = vmatpush1.msra.mxu0 0.0
    %2504 = vmatprep.subr.mxu0 0.0
    %2505 = vmatpush1.msra.mxu0 0.0
    %2506 = vmatprep.subr.mxu0 0.0
    %2507 = vmatpush1.msra.mxu0 0.0
    %2508 = vmatprep.subr.mxu0 0.0
    %2509 = vmatpush1.msra.mxu0 0.0
    %2510 = vmatprep.subr.mxu0 0.0
    %2511 = vmatpush1.msra.mxu0 0.0
    %2512 = vmatprep.subr.mxu0 0.0
    %2513 = vmatpush1.msra.mxu0 0.0
    %2514 = vmatprep.subr.mxu0 0.0
    %2515 = vmatpush1.msra.mxu0 0.0
    %2516 = vmatprep.subr.mxu0 0.0
    %2517 = vmatpush1.msra.mxu0 0.0
    %2518 = vmatprep.subr.mxu0 0.0
    %2519 = vmatpush1.msra.mxu0 0.0
    %2520 = vmatprep.subr.mxu0 0.0
    %2521 = vmatpush1.msra.mxu0 0.0
    %2522 = vmatprep.subr.mxu0 0.0
    %2523 = vmatpush1.msra.mxu0 0.0
    %2524 = vmatprep.subr.mxu0 0.0
    %2525 = vmatpush1.msra.mxu0 0.0
    %2526 = vmatprep.subr.mxu0 0.0
    %2527 = vmatpush1.msra.mxu0 0.0
    %2528 = vmatprep.subr.mxu0 0.0
    %2529 = vmatpush1.msra.mxu0 0.0
    %2530 = vmatprep.subr.mxu0 0.0
    %2531 = vmatpush1.msra.mxu0 0.0
    %2532 = vmatprep.mubr.f32.mxu0 0.0
    %2533 = vmatmul.mubr.f32.gmra.mrb[0].mxu0 %v2463
    %v2534 = vpop.f32.mrb[0].mxu0
    %v2535 = vadd.f32 %v610, %v2534
    %v2536 = vpop.f32.mrb[0].mxu0
    %2537 = vmatprep.mubr.f32.mxu0 0.0
    %2538 = vmatmul.mubr.f32.gmra.mrb[0].mxu0 %v2466
    %v2539 = vpop.f32.mrb[0].mxu0
    %v2540 = vadd.f32 %v610, %v2539
    %v2541 = vpop.f32.mrb[0].mxu0
    %2542 = vdwg.mxu0
    %v2543 = vmul.f32 %v2535, 0.01
    %v2544 = vmul.f32 %v2540, 0.01
    %v2545 = vsel %vm698, %v2543, -inf
    %v2546 = vsel %vm698, %v2544, -inf
    %v2547 = vmax.f32 %v2545, %v2546
    %v2548 = vrot.slane %v2547, 4
    %v2549 = vmax.f32 %v2547, %v2548
    %v2550 = vrot.slane %v2549, 2
    %v2551 = vmax.f32 %v2549, %v2550
    %v2552 = vrot.slane %v2551, 1
    %v2553 = vmax.f32 %v2551, %v2552
    %vm2554 = vcmp.eq.f32.partialorder %v2543, %v2553
    %vm2555 = vcmp.eq.f32.partialorder %v2544, %v2553
    %v2556 = vsel %vm2554, %v695, 16.0
    %v2557 = vsel %vm2555, %v696, 16.0
    %v2558 = vsel %vm698, %v2556, inf
    %v2559 = vsel %vm698, %v2557, inf
    %v2560 = vmin.f32 %v2558, %v2559
    %v2561 = vrot.slane %v2560, 4
    %v2562 = vmin.f32 %v2560, %v2561
    %v2563 = vrot.slane %v2562, 2
    %v2564 = vmin.f32 %v2562, %v2563
    %v2565 = vrot.slane %v2564, 1
    %v2566 = vmin.f32 %v2564, %v2565
    %2568 = vset.pattern.permute.xlu0 0
    %2569 = vperm.xlu0 %2568, %v2566
    %v2570 = vpop.permute.xlu0 %2569
    %vm2572 = vcmp.eq.f32.partialorder %v697, %v2570
    %v2573 = vsel %vm2572, 1, 0
    %vm2574 = vcmp.eq.s32.totalorder %v2573, 1
    %vm2575 = vmand %vm2574, %vm727
    %v2576 = vsel %vm2575, 1.0, 0.0
    %vm2577 = vcmp.eq.f32.partialorder %v695, %v2566
    %vm2578 = vcmp.eq.f32.partialorder %v696, %v2566
    %v2579 = vsel %vm2577, -1e+30, %v2543
    %v2580 = vsel %vm2578, -1e+30, %v2544
    %v2581 = vsel %vm698, %v2579, -inf
    %v2582 = vsel %vm698, %v2580, -inf
    %v2583 = vmax.f32 %v2581, %v2582
    %v2584 = vrot.slane %v2583, 4
    %v2585 = vmax.f32 %v2583, %v2584
    %v2586 = vrot.slane %v2585, 2
    %v2587 = vmax.f32 %v2585, %v2586
    %v2588 = vrot.slane %v2587, 1
    %v2589 = vmax.f32 %v2587, %v2588
    %vm2590 = vcmp.eq.f32.partialorder %v2579, %v2589
    %vm2591 = vcmp.eq.f32.partialorder %v2580, %v2589
    %v2592 = vsel %vm2590, %v695, 16.0
    %v2593 = vsel %vm2591, %v696, 16.0
    %v2594 = vsel %vm698, %v2592, inf
    %v2595 = vsel %vm698, %v2593, inf
    %v2596 = vmin.f32 %v2594, %v2595
    %v2597 = vrot.slane %v2596, 4
    %v2598 = vmin.f32 %v2596, %v2597
    %v2599 = vrot.slane %v2598, 2
    %v2600 = vmin.f32 %v2598, %v2599
    %v2601 = vrot.slane %v2600, 1
    %v2602 = vmin.f32 %v2600, %v2601
    %2604 = vset.pattern.permute.xlu0 0
    %2605 = vperm.xlu0 %2604, %v2602
    %v2606 = vpop.permute.xlu0 %2605
    %vm2608 = vcmp.eq.f32.partialorder %v697, %v2606
    %v2609 = vsel %vm2608, 1, 0
    %vm2610 = vcmp.eq.s32.totalorder %v2609, 1
    %vm2611 = vmand %vm2610, %vm779
    %v2612 = vsel %vm2611, 1.0, %v2576
    %vm2613 = vcmp.eq.f32.partialorder %v695, %v2602
    %vm2614 = vcmp.eq.f32.partialorder %v696, %v2602
    %v2615 = vsel %vm2613, -1e+30, %v2579
    %v2616 = vsel %vm2614, -1e+30, %v2580
    %v2617 = vsel %vm698, %v2615, -inf
    %v2618 = vsel %vm698, %v2616, -inf
    %v2619 = vmax.f32 %v2617, %v2618
    %v2620 = vrot.slane %v2619, 4
    %v2621 = vmax.f32 %v2619, %v2620
    %v2622 = vrot.slane %v2621, 2
    %v2623 = vmax.f32 %v2621, %v2622
    %v2624 = vrot.slane %v2623, 1
    %v2625 = vmax.f32 %v2623, %v2624
    %vm2626 = vcmp.eq.f32.partialorder %v2615, %v2625
    %vm2627 = vcmp.eq.f32.partialorder %v2616, %v2625
    %v2628 = vsel %vm2626, %v695, 16.0
    %v2629 = vsel %vm2627, %v696, 16.0
    %v2630 = vsel %vm698, %v2628, inf
    %v2631 = vsel %vm698, %v2629, inf
    %v2632 = vmin.f32 %v2630, %v2631
    %v2633 = vrot.slane %v2632, 4
    %v2634 = vmin.f32 %v2632, %v2633
    %v2635 = vrot.slane %v2634, 2
    %v2636 = vmin.f32 %v2634, %v2635
    %v2637 = vrot.slane %v2636, 1
    %v2638 = vmin.f32 %v2636, %v2637
    %2640 = vset.pattern.permute.xlu0 0
    %2641 = vperm.xlu0 %2640, %v2638
    %v2642 = vpop.permute.xlu0 %2641
    %vm2644 = vcmp.eq.f32.partialorder %v697, %v2642
    %v2645 = vsel %vm2644, 1, 0
    %vm2646 = vcmp.eq.s32.totalorder %v2645, 1
    %vm2647 = vmand %vm2646, %vm831
    %v2648 = vsel %vm2647, 1.0, %v2612
    %vm2649 = vcmp.eq.f32.partialorder %v695, %v2638
    %vm2650 = vcmp.eq.f32.partialorder %v696, %v2638
    %v2651 = vsel %vm2649, -1e+30, %v2615
    %v2652 = vsel %vm2650, -1e+30, %v2616
    %v2653 = vsel %vm698, %v2651, -inf
    %v2654 = vsel %vm698, %v2652, -inf
    %v2655 = vmax.f32 %v2653, %v2654
    %v2656 = vrot.slane %v2655, 4
    %v2657 = vmax.f32 %v2655, %v2656
    %v2658 = vrot.slane %v2657, 2
    %v2659 = vmax.f32 %v2657, %v2658
    %v2660 = vrot.slane %v2659, 1
    %v2661 = vmax.f32 %v2659, %v2660
    %vm2662 = vcmp.eq.f32.partialorder %v2651, %v2661
    %vm2663 = vcmp.eq.f32.partialorder %v2652, %v2661
    %v2664 = vsel %vm2662, %v695, 16.0
    %v2665 = vsel %vm2663, %v696, 16.0
    %v2666 = vsel %vm698, %v2664, inf
    %v2667 = vsel %vm698, %v2665, inf
    %v2668 = vmin.f32 %v2666, %v2667
    %v2669 = vrot.slane %v2668, 4
    %v2670 = vmin.f32 %v2668, %v2669
    %v2671 = vrot.slane %v2670, 2
    %v2672 = vmin.f32 %v2670, %v2671
    %v2673 = vrot.slane %v2672, 1
    %v2674 = vmin.f32 %v2672, %v2673
    %2676 = vset.pattern.permute.xlu0 0
    %2677 = vperm.xlu0 %2676, %v2674
    %v2678 = vpop.permute.xlu0 %2677
    %vm2680 = vcmp.eq.f32.partialorder %v697, %v2678
    %v2681 = vsel %vm2680, 1, 0
    %vm2682 = vcmp.eq.s32.totalorder %v2681, 1
    %vm2683 = vmand %vm2682, %vm883
    %v2684 = vsel %vm2683, 1.0, %v2648
    %vm2685 = vcmp.eq.f32.partialorder %v695, %v2674
    %vm2686 = vcmp.eq.f32.partialorder %v696, %v2674
    %v2687 = vsel %vm2685, -1e+30, %v2651
    %v2688 = vsel %vm2686, -1e+30, %v2652
    %v2689 = vsel %vm698, %v2687, -inf
    %v2690 = vsel %vm698, %v2688, -inf
    %v2691 = vmax.f32 %v2689, %v2690
    %v2692 = vrot.slane %v2691, 4
    %v2693 = vmax.f32 %v2691, %v2692
    %v2694 = vrot.slane %v2693, 2
    %v2695 = vmax.f32 %v2693, %v2694
    %v2696 = vrot.slane %v2695, 1
    %v2697 = vmax.f32 %v2695, %v2696
    %vm2698 = vcmp.eq.f32.partialorder %v2687, %v2697
    %vm2699 = vcmp.eq.f32.partialorder %v2688, %v2697
    %v2700 = vsel %vm2698, %v695, 16.0
    %v2701 = vsel %vm2699, %v696, 16.0
    %v2702 = vsel %vm698, %v2700, inf
    %v2703 = vsel %vm698, %v2701, inf
    %v2704 = vmin.f32 %v2702, %v2703
    %v2705 = vrot.slane %v2704, 4
    %v2706 = vmin.f32 %v2704, %v2705
    %v2707 = vrot.slane %v2706, 2
    %v2708 = vmin.f32 %v2706, %v2707
    %v2709 = vrot.slane %v2708, 1
    %v2710 = vmin.f32 %v2708, %v2709
    %2712 = vset.pattern.permute.xlu0 0
    %2713 = vperm.xlu0 %2712, %v2710
    %v2714 = vpop.permute.xlu0 %2713
    %vm2716 = vcmp.eq.f32.partialorder %v697, %v2714
    %v2717 = vsel %vm2716, 1, 0
    %vm2718 = vcmp.eq.s32.totalorder %v2717, 1
    %vm2719 = vmand %vm2718, %vm935
    %v2720 = vsel %vm2719, 1.0, %v2684
    %vm2721 = vcmp.eq.f32.partialorder %v695, %v2710
    %vm2722 = vcmp.eq.f32.partialorder %v696, %v2710
    %v2723 = vsel %vm2721, -1e+30, %v2687
    %v2724 = vsel %vm2722, -1e+30, %v2688
    %v2725 = vsel %vm698, %v2723, -inf
    %v2726 = vsel %vm698, %v2724, -inf
    %v2727 = vmax.f32 %v2725, %v2726
    %v2728 = vrot.slane %v2727, 4
    %v2729 = vmax.f32 %v2727, %v2728
    %v2730 = vrot.slane %v2729, 2
    %v2731 = vmax.f32 %v2729, %v2730
    %v2732 = vrot.slane %v2731, 1
    %v2733 = vmax.f32 %v2731, %v2732
    %vm2734 = vcmp.eq.f32.partialorder %v2723, %v2733
    %vm2735 = vcmp.eq.f32.partialorder %v2724, %v2733
    %v2736 = vsel %vm2734, %v695, 16.0
    %v2737 = vsel %vm2735, %v696, 16.0
    %v2738 = vsel %vm698, %v2736, inf
    %v2739 = vsel %vm698, %v2737, inf
    %v2740 = vmin.f32 %v2738, %v2739
    %v2741 = vrot.slane %v2740, 4
    %v2742 = vmin.f32 %v2740, %v2741
    %v2743 = vrot.slane %v2742, 2
    %v2744 = vmin.f32 %v2742, %v2743
    %v2745 = vrot.slane %v2744, 1
    %v2746 = vmin.f32 %v2744, %v2745
    %2748 = vset.pattern.permute.xlu0 0
    %2749 = vperm.xlu0 %2748, %v2746
    %v2750 = vpop.permute.xlu0 %2749
    %vm2752 = vcmp.eq.f32.partialorder %v697, %v2750
    %v2753 = vsel %vm2752, 1, 0
    %vm2754 = vcmp.eq.s32.totalorder %v2753, 1
    %vm2755 = vmand %vm2754, %vm987
    %v2756 = vsel %vm2755, 1.0, %v2720
    %vm2757 = vcmp.eq.f32.partialorder %v695, %v2746
    %vm2758 = vcmp.eq.f32.partialorder %v696, %v2746
    %v2759 = vsel %vm2757, -1e+30, %v2723
    %v2760 = vsel %vm2758, -1e+30, %v2724
    %v2761 = vsel %vm698, %v2759, -inf
    %v2762 = vsel %vm698, %v2760, -inf
    %v2763 = vmax.f32 %v2761, %v2762
    %v2764 = vrot.slane %v2763, 4
    %v2765 = vmax.f32 %v2763, %v2764
    %v2766 = vrot.slane %v2765, 2
    %v2767 = vmax.f32 %v2765, %v2766
    %v2768 = vrot.slane %v2767, 1
    %v2769 = vmax.f32 %v2767, %v2768
    %vm2770 = vcmp.eq.f32.partialorder %v2759, %v2769
    %vm2771 = vcmp.eq.f32.partialorder %v2760, %v2769
    %v2772 = vsel %vm2770, %v695, 16.0
    %v2773 = vsel %vm2771, %v696, 16.0
    %v2774 = vsel %vm698, %v2772, inf
    %v2775 = vsel %vm698, %v2773, inf
    %v2776 = vmin.f32 %v2774, %v2775
    %v2777 = vrot.slane %v2776, 4
    %v2778 = vmin.f32 %v2776, %v2777
    %v2779 = vrot.slane %v2778, 2
    %v2780 = vmin.f32 %v2778, %v2779
    %v2781 = vrot.slane %v2780, 1
    %v2782 = vmin.f32 %v2780, %v2781
    %2784 = vset.pattern.permute.xlu0 0
    %2785 = vperm.xlu0 %2784, %v2782
    %v2786 = vpop.permute.xlu0 %2785
    %vm2788 = vcmp.eq.f32.partialorder %v697, %v2786
    %v2789 = vsel %vm2788, 1, 0
    %vm2790 = vcmp.eq.s32.totalorder %v2789, 1
    %vm2791 = vmand %vm2790, %vm1039
    %v2792 = vsel %vm2791, 1.0, %v2756
    %vm2793 = vcmp.eq.f32.partialorder %v695, %v2782
    %vm2794 = vcmp.eq.f32.partialorder %v696, %v2782
    %v2795 = vsel %vm2793, -1e+30, %v2759
    %v2796 = vsel %vm2794, -1e+30, %v2760
    %v2797 = vsel %vm698, %v2795, -inf
    %v2798 = vsel %vm698, %v2796, -inf
    %v2799 = vmax.f32 %v2797, %v2798
    %v2800 = vrot.slane %v2799, 4
    %v2801 = vmax.f32 %v2799, %v2800
    %v2802 = vrot.slane %v2801, 2
    %v2803 = vmax.f32 %v2801, %v2802
    %v2804 = vrot.slane %v2803, 1
    %v2805 = vmax.f32 %v2803, %v2804
    %vm2806 = vcmp.eq.f32.partialorder %v2795, %v2805
    %vm2807 = vcmp.eq.f32.partialorder %v2796, %v2805
    %v2808 = vsel %vm2806, %v695, 16.0
    %v2809 = vsel %vm2807, %v696, 16.0
    %v2810 = vsel %vm698, %v2808, inf
    %v2811 = vsel %vm698, %v2809, inf
    %v2812 = vmin.f32 %v2810, %v2811
    %v2813 = vrot.slane %v2812, 4
    %v2814 = vmin.f32 %v2812, %v2813
    %v2815 = vrot.slane %v2814, 2
    %v2816 = vmin.f32 %v2814, %v2815
    %v2817 = vrot.slane %v2816, 1
    %v2818 = vmin.f32 %v2816, %v2817
    %2820 = vset.pattern.permute.xlu0 0
    %2821 = vperm.xlu0 %2820, %v2818
    %v2822 = vpop.permute.xlu0 %2821
    %vm2824 = vcmp.eq.f32.partialorder %v697, %v2822
    %v2825 = vsel %vm2824, 1, 0
    %vm2826 = vcmp.eq.s32.totalorder %v2825, 1
    %vm2827 = vmand %vm2826, %vm1091
    %v2828 = vsel %vm2827, 1.0, %v2792
    %v2829 = vsub.f32 0.0, %v2543
    %v2830 = vsub.f32 0.0, %v2544
    %v2831 = vmul.f32 %v2829, 1.442695
    %v2832 = vpow.pop %v2831
    %v2833 = vmul.f32 %v2830, 1.442695
    %v2834 = vpow.pop %v2833
    %v2835 = vadd.f32 %v2832, 1.0
    %v2836 = vadd.f32 %v2834, 1.0
    %v2837 = vrcp.pop %v2835
    %v2838 = vrcp.pop %v2836
    %v2840 = vsel %vm105, %v2828, 0
    %2842 = vmatprep.subr.mxu0 0.0
    %2843 = vmatpush1.msra.mxu0 %v2837
    %2844 = vmatprep.subr.mxu0 0.0
    %2845 = vmatpush1.msra.mxu0 %v2838
    %2846 = vmatprep.subr.mxu0 0.0
    %2847 = vmatpush1.msra.mxu0 0.0
    %2848 = vmatprep.subr.mxu0 0.0
    %2849 = vmatpush1.msra.mxu0 0.0
    %2850 = vmatprep.subr.mxu0 0.0
    %2851 = vmatpush1.msra.mxu0 0.0
    %2852 = vmatprep.subr.mxu0 0.0
    %2853 = vmatpush1.msra.mxu0 0.0
    %2854 = vmatprep.subr.mxu0 0.0
    %2855 = vmatpush1.msra.mxu0 0.0
    %2856 = vmatprep.subr.mxu0 0.0
    %2857 = vmatpush1.msra.mxu0 0.0
    %2858 = vmatprep.subr.mxu0 0.0
    %2859 = vmatpush1.msra.mxu0 0.0
    %2860 = vmatprep.subr.mxu0 0.0
    %2861 = vmatpush1.msra.mxu0 0.0
    %2862 = vmatprep.subr.mxu0 0.0
    %2863 = vmatpush1.msra.mxu0 0.0
    %2864 = vmatprep.subr.mxu0 0.0
    %2865 = vmatpush1.msra.mxu0 0.0
    %2866 = vmatprep.subr.mxu0 0.0
    %2867 = vmatpush1.msra.mxu0 0.0
    %2868 = vmatprep.subr.mxu0 0.0
    %2869 = vmatpush1.msra.mxu0 0.0
    %2870 = vmatprep.subr.mxu0 0.0
    %2871 = vmatpush1.msra.mxu0 0.0
    %2872 = vmatprep.subr.mxu0 0.0
    %2873 = vmatpush1.msra.mxu0 0.0
    %2874 = vmatprep.subr.mxu0 0.0
    %2875 = vmatpush1.msra.mxu0 0.0
    %2876 = vmatprep.subr.mxu0 0.0
    %2877 = vmatpush1.msra.mxu0 0.0
    %2878 = vmatprep.subr.mxu0 0.0
    %2879 = vmatpush1.msra.mxu0 0.0
    %2880 = vmatprep.subr.mxu0 0.0
    %2881 = vmatpush1.msra.mxu0 0.0
    %2882 = vmatprep.subr.mxu0 0.0
    %2883 = vmatpush1.msra.mxu0 0.0
    %2884 = vmatprep.subr.mxu0 0.0
    %2885 = vmatpush1.msra.mxu0 0.0
    %2886 = vmatprep.subr.mxu0 0.0
    %2887 = vmatpush1.msra.mxu0 0.0
    %2888 = vmatprep.subr.mxu0 0.0
    %2889 = vmatpush1.msra.mxu0 0.0
    %2890 = vmatprep.subr.mxu0 0.0
    %2891 = vmatpush1.msra.mxu0 0.0
    %2892 = vmatprep.subr.mxu0 0.0
    %2893 = vmatpush1.msra.mxu0 0.0
    %2894 = vmatprep.subr.mxu0 0.0
    %2895 = vmatpush1.msra.mxu0 0.0
    %2896 = vmatprep.subr.mxu0 0.0
    %2897 = vmatpush1.msra.mxu0 0.0
    %2898 = vmatprep.subr.mxu0 0.0
    %2899 = vmatpush1.msra.mxu0 0.0
    %2900 = vmatprep.subr.mxu0 0.0
    %2901 = vmatpush1.msra.mxu0 0.0
    %2902 = vmatprep.subr.mxu0 0.0
    %2903 = vmatpush1.msra.mxu0 0.0
    %2904 = vmatprep.subr.mxu0 0.0
    %2905 = vmatpush1.msra.mxu0 0.0
    %2906 = vmatprep.mubr.f32.mxu0 0.0
    %2907 = vmatmul.mubr.f32.gmra.mrb[0].mxu0 %v2840
    %v2908 = vpop.f32.mrb[0].mxu0
    %v2909 = vadd.f32 0.0, %v2908
    %v2910 = vpop.f32.mrb[0].mxu0
    %2911 = vdwg.mxu0
    %2912 = vmatprep.subr.mxu0 0.0
    %2913 = vmatpush1.msra.mxu0 %v2454
    %2914 = vmatprep.subr.mxu0 0.0
    %2915 = vmatpush1.msra.mxu0 %v2459
    %2916 = vmatprep.subr.mxu0 0.0
    %2917 = vmatpush1.msra.mxu0 0.0
    %2918 = vmatprep.subr.mxu0 0.0
    %2919 = vmatpush1.msra.mxu0 0.0
    %2920 = vmatprep.subr.mxu0 0.0
    %2921 = vmatpush1.msra.mxu0 0.0
    %2922 = vmatprep.subr.mxu0 0.0
    %2923 = vmatpush1.msra.mxu0 0.0
    %2924 = vmatprep.subr.mxu0 0.0
    %2925 = vmatpush1.msra.mxu0 0.0
    %2926 = vmatprep.subr.mxu0 0.0
    %2927 = vmatpush1.msra.mxu0 0.0
    %2928 = vmatprep.subr.mxu0 0.0
    %2929 = vmatpush1.msra.mxu0 0.0
    %2930 = vmatprep.subr.mxu0 0.0
    %2931 = vmatpush1.msra.mxu0 0.0
    %2932 = vmatprep.subr.mxu0 0.0
    %2933 = vmatpush1.msra.mxu0 0.0
    %2934 = vmatprep.subr.mxu0 0.0
    %2935 = vmatpush1.msra.mxu0 0.0
    %2936 = vmatprep.subr.mxu0 0.0
    %2937 = vmatpush1.msra.mxu0 0.0
    %2938 = vmatprep.subr.mxu0 0.0
    %2939 = vmatpush1.msra.mxu0 0.0
    %2940 = vmatprep.subr.mxu0 0.0
    %2941 = vmatpush1.msra.mxu0 0.0
    %2942 = vmatprep.subr.mxu0 0.0
    %2943 = vmatpush1.msra.mxu0 0.0
    %2944 = vmatprep.subr.mxu0 0.0
    %2945 = vmatpush1.msra.mxu0 0.0
    %2946 = vmatprep.subr.mxu0 0.0
    %2947 = vmatpush1.msra.mxu0 0.0
    %2948 = vmatprep.subr.mxu0 0.0
    %2949 = vmatpush1.msra.mxu0 0.0
    %2950 = vmatprep.subr.mxu0 0.0
    %2951 = vmatpush1.msra.mxu0 0.0
    %2952 = vmatprep.subr.mxu0 0.0
    %2953 = vmatpush1.msra.mxu0 0.0
    %2954 = vmatprep.subr.mxu0 0.0
    %2955 = vmatpush1.msra.mxu0 0.0
    %2956 = vmatprep.subr.mxu0 0.0
    %2957 = vmatpush1.msra.mxu0 0.0
    %2958 = vmatprep.subr.mxu0 0.0
    %2959 = vmatpush1.msra.mxu0 0.0
    %2960 = vmatprep.subr.mxu0 0.0
    %2961 = vmatpush1.msra.mxu0 0.0
    %2962 = vmatprep.subr.mxu0 0.0
    %2963 = vmatpush1.msra.mxu0 0.0
    %2964 = vmatprep.subr.mxu0 0.0
    %2965 = vmatpush1.msra.mxu0 0.0
    %2966 = vmatprep.subr.mxu0 0.0
    %2967 = vmatpush1.msra.mxu0 0.0
    %2968 = vmatprep.subr.mxu0 0.0
    %2969 = vmatpush1.msra.mxu0 0.0
    %2970 = vmatprep.subr.mxu0 0.0
    %2971 = vmatpush1.msra.mxu0 0.0
    %2972 = vmatprep.subr.mxu0 0.0
    %2973 = vmatpush1.msra.mxu0 0.0
    %2974 = vmatprep.subr.mxu0 0.0
    %2975 = vmatpush1.msra.mxu0 0.0
    %2976 = vmatprep.mubr.f32.mxu0 0.0
    %2977 = vmatmul.mubr.f32.gmra.mrb[0].mxu0 %v2840
    %v2978 = vpop.f32.mrb[0].mxu0
    %v2979 = vadd.f32 0.0, %v2978
    %v2980 = vpop.f32.mrb[0].mxu0
    %2981 = vdwg.mxu0
    %2983 = vset.pattern.permute.xlu0 0
    %2984 = vperm.xlu0 %2983, %v2909
    %v2985 = vpop.permute.xlu0 %2984
    %v2987 = vmul.f32 %v2979, %v2985
    %2988 = vmatprep.subr.mxu0 0.0
    %2989 = vmatpush1.xpose.msra.mxu0 %v2840
    %2990 = vmatprep.subr.mxu0 0.0
    %2991 = vmatpush1.xpose.msra.mxu0 0.0
    %2992 = vmatprep.subr.mxu0 0.0
    %2993 = vmatpush1.xpose.msra.mxu0 0.0
    %2994 = vmatprep.subr.mxu0 0.0
    %2995 = vmatpush1.xpose.msra.mxu0 0.0
    %2996 = vmatprep.subr.mxu0 0.0
    %2997 = vmatpush1.xpose.msra.mxu0 0.0
    %2998 = vmatprep.subr.mxu0 0.0
    %2999 = vmatpush1.xpose.msra.mxu0 0.0
    %3000 = vmatprep.subr.mxu0 0.0
    %3001 = vmatpush1.xpose.msra.mxu0 0.0
    %3002 = vmatprep.subr.mxu0 0.0
    %3003 = vmatpush1.xpose.msra.mxu0 0.0
    %3004 = vmatprep.subr.mxu0 0.0
    %3005 = vmatpush1.xpose.msra.mxu0 0.0
    %3006 = vmatprep.subr.mxu0 0.0
    %3007 = vmatpush1.xpose.msra.mxu0 0.0
    %3008 = vmatprep.subr.mxu0 0.0
    %3009 = vmatpush1.xpose.msra.mxu0 0.0
    %3010 = vmatprep.subr.mxu0 0.0
    %3011 = vmatpush1.xpose.msra.mxu0 0.0
    %3012 = vmatprep.subr.mxu0 0.0
    %3013 = vmatpush1.xpose.msra.mxu0 0.0
    %3014 = vmatprep.subr.mxu0 0.0
    %3015 = vmatpush1.xpose.msra.mxu0 0.0
    %3016 = vmatprep.subr.mxu0 0.0
    %3017 = vmatpush1.xpose.msra.mxu0 0.0
    %3018 = vmatprep.subr.mxu0 0.0
    %3019 = vmatpush1.xpose.msra.mxu0 0.0
    %3020 = vmatprep.subr.mxu0 0.0
    %3021 = vmatpush1.xpose.msra.mxu0 0.0
    %3022 = vmatprep.subr.mxu0 0.0
    %3023 = vmatpush1.xpose.msra.mxu0 0.0
    %3024 = vmatprep.subr.mxu0 0.0
    %3025 = vmatpush1.xpose.msra.mxu0 0.0
    %3026 = vmatprep.subr.mxu0 0.0
    %3027 = vmatpush1.xpose.msra.mxu0 0.0
    %3028 = vmatprep.subr.mxu0 0.0
    %3029 = vmatpush1.xpose.msra.mxu0 0.0
    %3030 = vmatprep.subr.mxu0 0.0
    %3031 = vmatpush1.xpose.msra.mxu0 0.0
    %3032 = vmatprep.subr.mxu0 0.0
    %3033 = vmatpush1.xpose.msra.mxu0 0.0
    %3034 = vmatprep.subr.mxu0 0.0
    %3035 = vmatpush1.xpose.msra.mxu0 0.0
    %3036 = vmatprep.subr.mxu0 0.0
    %3037 = vmatpush1.xpose.msra.mxu0 0.0
    %3038 = vmatprep.subr.mxu0 0.0
    %3039 = vmatpush1.xpose.msra.mxu0 0.0
    %3040 = vmatprep.subr.mxu0 0.0
    %3041 = vmatpush1.xpose.msra.mxu0 0.0
    %3042 = vmatprep.subr.mxu0 0.0
    %3043 = vmatpush1.xpose.msra.mxu0 0.0
    %3044 = vmatprep.subr.mxu0 0.0
    %3045 = vmatpush1.xpose.msra.mxu0 0.0
    %3046 = vmatprep.subr.mxu0 0.0
    %3047 = vmatpush1.xpose.msra.mxu0 0.0
    %3048 = vmatprep.subr.mxu0 0.0
    %3049 = vmatpush1.xpose.msra.mxu0 0.0
    %3050 = vmatprep.subr.mxu0 0.0
    %3051 = vmatpush1.xpose.msra.mxu0 0.0
    %3052 = vmatprep.mubr.f32.mxu0 0.0
    %3053 = vmatmul.mubr.f32.gmra.mrb[0].mxu0 %v439
    %v3054 = vpop.f32.mrb[0].mxu0
    %v3055 = vadd.f32 0.0, %v3054
    %v3056 = vpop.f32.mrb[0].mxu0
    %3057 = vmatprep.mubr.f32.mxu0 0.0
    %3058 = vmatmul.mubr.f32.gmra.mrb[0].mxu0 %v442
    %v3059 = vpop.f32.mrb[0].mxu0
    %v3060 = vadd.f32 0.0, %v3059
    %v3061 = vpop.f32.mrb[0].mxu0
    %3062 = vdwg.mxu0
    %3063 = vmatprep.subr.mxu0 0.0
    %3064 = vmatpush1.msra.mxu0 %v3055
    %3065 = vmatprep.subr.mxu0 0.0
    %3066 = vmatpush1.msra.mxu0 %v3060
    %3067 = vmatprep.subr.mxu0 0.0
    %3068 = vmatpush1.msra.mxu0 0.0
    %3069 = vmatprep.subr.mxu0 0.0
    %3070 = vmatpush1.msra.mxu0 0.0
    %3071 = vmatprep.subr.mxu0 0.0
    %3072 = vmatpush1.msra.mxu0 0.0
    %3073 = vmatprep.subr.mxu0 0.0
    %3074 = vmatpush1.msra.mxu0 0.0
    %3075 = vmatprep.subr.mxu0 0.0
    %3076 = vmatpush1.msra.mxu0 0.0
    %3077 = vmatprep.subr.mxu0 0.0
    %3078 = vmatpush1.msra.mxu0 0.0
    %3079 = vmatprep.subr.mxu0 0.0
    %3080 = vmatpush1.msra.mxu0 0.0
    %3081 = vmatprep.subr.mxu0 0.0
    %3082 = vmatpush1.msra.mxu0 0.0
    %3083 = vmatprep.subr.mxu0 0.0
    %3084 = vmatpush1.msra.mxu0 0.0
    %3085 = vmatprep.subr.mxu0 0.0
    %3086 = vmatpush1.msra.mxu0 0.0
    %3087 = vmatprep.subr.mxu0 0.0
    %3088 = vmatpush1.msra.mxu0 0.0
    %3089 = vmatprep.subr.mxu0 0.0
    %3090 = vmatpush1.msra.mxu0 0.0
    %3091 = vmatprep.subr.mxu0 0.0
    %3092 = vmatpush1.msra.mxu0 0.0
    %3093 = vmatprep.subr.mxu0 0.0
    %3094 = vmatpush1.msra.mxu0 0.0
    %3095 = vmatprep.subr.mxu0 0.0
    %3096 = vmatpush1.msra.mxu0 0.0
    %3097 = vmatprep.subr.mxu0 0.0
    %3098 = vmatpush1.msra.mxu0 0.0
    %3099 = vmatprep.subr.mxu0 0.0
    %3100 = vmatpush1.msra.mxu0 0.0
    %3101 = vmatprep.subr.mxu0 0.0
    %3102 = vmatpush1.msra.mxu0 0.0
    %3103 = vmatprep.subr.mxu0 0.0
    %3104 = vmatpush1.msra.mxu0 0.0
    %3105 = vmatprep.subr.mxu0 0.0
    %3106 = vmatpush1.msra.mxu0 0.0
    %3107 = vmatprep.subr.mxu0 0.0
    %3108 = vmatpush1.msra.mxu0 0.0
    %3109 = vmatprep.subr.mxu0 0.0
    %3110 = vmatpush1.msra.mxu0 0.0
    %3111 = vmatprep.subr.mxu0 0.0
    %3112 = vmatpush1.msra.mxu0 0.0
    %3113 = vmatprep.subr.mxu0 0.0
    %3114 = vmatpush1.msra.mxu0 0.0
    %3115 = vmatprep.subr.mxu0 0.0
    %3116 = vmatpush1.msra.mxu0 0.0
    %3117 = vmatprep.subr.mxu0 0.0
    %3118 = vmatpush1.msra.mxu0 0.0
    %3119 = vmatprep.subr.mxu0 0.0
    %3120 = vmatpush1.msra.mxu0 0.0
    %3121 = vmatprep.subr.mxu0 0.0
    %3122 = vmatpush1.msra.mxu0 0.0
    %3123 = vmatprep.subr.mxu0 0.0
    %3124 = vmatpush1.msra.mxu0 0.0
    %3125 = vmatprep.subr.mxu0 0.0
    %3126 = vmatpush1.msra.mxu0 0.0
    %3127 = vmatprep.mubr.f32.mxu0 0.0
    %3128 = vmatmul.mubr.f32.gmra.mrb[0].mxu0 %v2840
    %v3129 = vpop.f32.mrb[0].mxu0
    %v3130 = vadd.f32 0.0, %v3129
    %v3131 = vpop.f32.mrb[0].mxu0
    %3132 = vdwg.mxu0
    %v3134 = vsel %vm219, %v2987, 0
    %3136 = vmatprep.subr.mxu0 0.0
    %3137 = vmatpush1.msra.mxu0 %v65
    %3138 = vmatprep.subr.mxu0 0.0
    %3139 = vmatpush1.msra.mxu0 %v66
    %3140 = vmatprep.subr.mxu0 0.0
    %3141 = vmatpush1.msra.mxu0 %v67
    %3142 = vmatprep.subr.mxu0 0.0
    %3143 = vmatpush1.msra.mxu0 %v68
    %3144 = vmatprep.subr.mxu0 0.0
    %3145 = vmatpush1.msra.mxu0 0.0
    %3146 = vmatprep.subr.mxu0 0.0
    %3147 = vmatpush1.msra.mxu0 0.0
    %3148 = vmatprep.subr.mxu0 0.0
    %3149 = vmatpush1.msra.mxu0 0.0
    %3150 = vmatprep.subr.mxu0 0.0
    %3151 = vmatpush1.msra.mxu0 0.0
    %3152 = vmatprep.subr.mxu0 0.0
    %3153 = vmatpush1.msra.mxu0 0.0
    %3154 = vmatprep.subr.mxu0 0.0
    %3155 = vmatpush1.msra.mxu0 0.0
    %3156 = vmatprep.subr.mxu0 0.0
    %3157 = vmatpush1.msra.mxu0 0.0
    %3158 = vmatprep.subr.mxu0 0.0
    %3159 = vmatpush1.msra.mxu0 0.0
    %3160 = vmatprep.subr.mxu0 0.0
    %3161 = vmatpush1.msra.mxu0 0.0
    %3162 = vmatprep.subr.mxu0 0.0
    %3163 = vmatpush1.msra.mxu0 0.0
    %3164 = vmatprep.subr.mxu0 0.0
    %3165 = vmatpush1.msra.mxu0 0.0
    %3166 = vmatprep.subr.mxu0 0.0
    %3167 = vmatpush1.msra.mxu0 0.0
    %3168 = vmatprep.subr.mxu0 0.0
    %3169 = vmatpush1.msra.mxu0 0.0
    %3170 = vmatprep.subr.mxu0 0.0
    %3171 = vmatpush1.msra.mxu0 0.0
    %3172 = vmatprep.subr.mxu0 0.0
    %3173 = vmatpush1.msra.mxu0 0.0
    %3174 = vmatprep.subr.mxu0 0.0
    %3175 = vmatpush1.msra.mxu0 0.0
    %3176 = vmatprep.subr.mxu0 0.0
    %3177 = vmatpush1.msra.mxu0 0.0
    %3178 = vmatprep.subr.mxu0 0.0
    %3179 = vmatpush1.msra.mxu0 0.0
    %3180 = vmatprep.subr.mxu0 0.0
    %3181 = vmatpush1.msra.mxu0 0.0
    %3182 = vmatprep.subr.mxu0 0.0
    %3183 = vmatpush1.msra.mxu0 0.0
    %3184 = vmatprep.subr.mxu0 0.0
    %3185 = vmatpush1.msra.mxu0 0.0
    %3186 = vmatprep.subr.mxu0 0.0
    %3187 = vmatpush1.msra.mxu0 0.0
    %3188 = vmatprep.subr.mxu0 0.0
    %3189 = vmatpush1.msra.mxu0 0.0
    %3190 = vmatprep.subr.mxu0 0.0
    %3191 = vmatpush1.msra.mxu0 0.0
    %3192 = vmatprep.subr.mxu0 0.0
    %3193 = vmatpush1.msra.mxu0 0.0
    %3194 = vmatprep.subr.mxu0 0.0
    %3195 = vmatpush1.msra.mxu0 0.0
    %3196 = vmatprep.subr.mxu0 0.0
    %3197 = vmatpush1.msra.mxu0 0.0
    %3198 = vmatprep.subr.mxu0 0.0
    %3199 = vmatpush1.msra.mxu0 0.0
    %3200 = vmatprep.mubr.f32.mxu0 0.0
    %3201 = vmatmul.mubr.f32.gmra.mrb[0].mxu0 %v3134
    %v3202 = vpop.f32.mrb[0].mxu0
    %v3203 = vadd.f32 0.0, %v3202
    %v3204 = vpop.f32.mrb[0].mxu0
    %3205 = vdwg.mxu0
    %v3206 = vmul.f32 %v3203, %v1494
    %v3207 = vsel %vm219, %v3206, 0.0
    %3208 = vadd.xlane.f32.xlu0 %v3207
    %v3209 = vpop.xlane.xlu0 %3208
    %v3211 = vsel %vm219, %v3203, 0
    %3213 = vmatprep.subr.mxu0 0.0
    %3214 = vmatpush1.xpose.msra.mxu0 %v3211
    %3215 = vmatprep.subr.mxu0 0.0
    %3216 = vmatpush1.xpose.msra.mxu0 0.0
    %3217 = vmatprep.subr.mxu0 0.0
    %3218 = vmatpush1.xpose.msra.mxu0 0.0
    %3219 = vmatprep.subr.mxu0 0.0
    %3220 = vmatpush1.xpose.msra.mxu0 0.0
    %3221 = vmatprep.subr.mxu0 0.0
    %3222 = vmatpush1.xpose.msra.mxu0 0.0
    %3223 = vmatprep.subr.mxu0 0.0
    %3224 = vmatpush1.xpose.msra.mxu0 0.0
    %3225 = vmatprep.subr.mxu0 0.0
    %3226 = vmatpush1.xpose.msra.mxu0 0.0
    %3227 = vmatprep.subr.mxu0 0.0
    %3228 = vmatpush1.xpose.msra.mxu0 0.0
    %3229 = vmatprep.subr.mxu0 0.0
    %3230 = vmatpush1.xpose.msra.mxu0 0.0
    %3231 = vmatprep.subr.mxu0 0.0
    %3232 = vmatpush1.xpose.msra.mxu0 0.0
    %3233 = vmatprep.subr.mxu0 0.0
    %3234 = vmatpush1.xpose.msra.mxu0 0.0
    %3235 = vmatprep.subr.mxu0 0.0
    %3236 = vmatpush1.xpose.msra.mxu0 0.0
    %3237 = vmatprep.subr.mxu0 0.0
    %3238 = vmatpush1.xpose.msra.mxu0 0.0
    %3239 = vmatprep.subr.mxu0 0.0
    %3240 = vmatpush1.xpose.msra.mxu0 0.0
    %3241 = vmatprep.subr.mxu0 0.0
    %3242 = vmatpush1.xpose.msra.mxu0 0.0
    %3243 = vmatprep.subr.mxu0 0.0
    %3244 = vmatpush1.xpose.msra.mxu0 0.0
    %3245 = vmatprep.subr.mxu0 0.0
    %3246 = vmatpush1.xpose.msra.mxu0 0.0
    %3247 = vmatprep.subr.mxu0 0.0
    %3248 = vmatpush1.xpose.msra.mxu0 0.0
    %3249 = vmatprep.subr.mxu0 0.0
    %3250 = vmatpush1.xpose.msra.mxu0 0.0
    %3251 = vmatprep.subr.mxu0 0.0
    %3252 = vmatpush1.xpose.msra.mxu0 0.0
    %3253 = vmatprep.subr.mxu0 0.0
    %3254 = vmatpush1.xpose.msra.mxu0 0.0
    %3255 = vmatprep.subr.mxu0 0.0
    %3256 = vmatpush1.xpose.msra.mxu0 0.0
    %3257 = vmatprep.subr.mxu0 0.0
    %3258 = vmatpush1.xpose.msra.mxu0 0.0
    %3259 = vmatprep.subr.mxu0 0.0
    %3260 = vmatpush1.xpose.msra.mxu0 0.0
    %3261 = vmatprep.subr.mxu0 0.0
    %3262 = vmatpush1.xpose.msra.mxu0 0.0
    %3263 = vmatprep.subr.mxu0 0.0
    %3264 = vmatpush1.xpose.msra.mxu0 0.0
    %3265 = vmatprep.subr.mxu0 0.0
    %3266 = vmatpush1.xpose.msra.mxu0 0.0
    %3267 = vmatprep.subr.mxu0 0.0
    %3268 = vmatpush1.xpose.msra.mxu0 0.0
    %3269 = vmatprep.subr.mxu0 0.0
    %3270 = vmatpush1.xpose.msra.mxu0 0.0
    %3271 = vmatprep.subr.mxu0 0.0
    %3272 = vmatpush1.xpose.msra.mxu0 0.0
    %3273 = vmatprep.subr.mxu0 0.0
    %3274 = vmatpush1.xpose.msra.mxu0 0.0
    %3275 = vmatprep.subr.mxu0 0.0
    %3276 = vmatpush1.xpose.msra.mxu0 0.0
    %3277 = vmatprep.mubr.f32.mxu0 0.0
    %3278 = vmatmul.mubr.f32.gmra.mrb[0].mxu0 %v1501
    %v3279 = vpop.f32.mrb[0].mxu0
    %v3280 = vadd.f32 0.0, %v3279
    %v3281 = vpop.f32.mrb[0].mxu0
    %3282 = vdwg.mxu0
    %v3283 = vlaneseq
    %v3284 = vshrl.u32 %v3283, 7
    %v3285 = vsub.s32 0, %v3284
    %v3286 = vrot.slane %v3280, %v3285
    %v3287 = vadd.f32 %v3209, %v3286
    %vm3288 = vcmp.gt.f32.partialorder %v3287, 0.0
    %v3289 = vmul.f32 %v3287, 0.2
    %v3290 = vsel %vm3288, %v3287, %v3289
    %vm3291 = vcmp.gt.f32.partialorder %v3130, 0.0
    %v3292 = vsel %vm3291, %v3290, -9e+15
    %v3293 = vsel %vm1586, %v3292, -inf
    %3294 = vmax.xlane.f32.xlu0 %v3293
    %v3295 = vpop.xlane.xlu0 %3294
    %v3296 = vsub.f32 %v3292, %v3295
    %v3297 = vmul.f32 %v3296, 1.442695
    %v3298 = vpow.pop %v3297
    %v3299 = vsel %vm1586, %v3298, 0.0
    %3300 = vadd.xlane.f32.xlu0 %v3299
    %v3301 = vpop.xlane.xlu0 %3300
    %v3302 = vrcp.pop %v3301
    %v3303 = vmul.f32 %v3298, %v3302
    %v3305 = vsel %vm1586, %v3303, 0
    %3307 = vmatprep.subr.mxu0 0.0
    %3308 = vmatpush1.msra.mxu0 %v3203
    %3309 = vmatprep.subr.mxu0 0.0
    %3310 = vmatpush1.msra.mxu0 0.0
    %3311 = vmatprep.subr.mxu0 0.0
    %3312 = vmatpush1.msra.mxu0 0.0
    %3313 = vmatprep.subr.mxu0 0.0
    %3314 = vmatpush1.msra.mxu0 0.0
    %3315 = vmatprep.subr.mxu0 0.0
    %3316 = vmatpush1.msra.mxu0 0.0
    %3317 = vmatprep.subr.mxu0 0.0
    %3318 = vmatpush1.msra.mxu0 0.0
    %3319 = vmatprep.subr.mxu0 0.0
    %3320 = vmatpush1.msra.mxu0 0.0
    %3321 = vmatprep.subr.mxu0 0.0
    %3322 = vmatpush1.msra.mxu0 0.0
    %3323 = vmatprep.subr.mxu0 0.0
    %3324 = vmatpush1.msra.mxu0 0.0
    %3325 = vmatprep.subr.mxu0 0.0
    %3326 = vmatpush1.msra.mxu0 0.0
    %3327 = vmatprep.subr.mxu0 0.0
    %3328 = vmatpush1.msra.mxu0 0.0
    %3329 = vmatprep.subr.mxu0 0.0
    %3330 = vmatpush1.msra.mxu0 0.0
    %3331 = vmatprep.subr.mxu0 0.0
    %3332 = vmatpush1.msra.mxu0 0.0
    %3333 = vmatprep.subr.mxu0 0.0
    %3334 = vmatpush1.msra.mxu0 0.0
    %3335 = vmatprep.subr.mxu0 0.0
    %3336 = vmatpush1.msra.mxu0 0.0
    %3337 = vmatprep.subr.mxu0 0.0
    %3338 = vmatpush1.msra.mxu0 0.0
    %3339 = vmatprep.subr.mxu0 0.0
    %3340 = vmatpush1.msra.mxu0 0.0
    %3341 = vmatprep.subr.mxu0 0.0
    %3342 = vmatpush1.msra.mxu0 0.0
    %3343 = vmatprep.subr.mxu0 0.0
    %3344 = vmatpush1.msra.mxu0 0.0
    %3345 = vmatprep.subr.mxu0 0.0
    %3346 = vmatpush1.msra.mxu0 0.0
    %3347 = vmatprep.subr.mxu0 0.0
    %3348 = vmatpush1.msra.mxu0 0.0
    %3349 = vmatprep.subr.mxu0 0.0
    %3350 = vmatpush1.msra.mxu0 0.0
    %3351 = vmatprep.subr.mxu0 0.0
    %3352 = vmatpush1.msra.mxu0 0.0
    %3353 = vmatprep.subr.mxu0 0.0
    %3354 = vmatpush1.msra.mxu0 0.0
    %3355 = vmatprep.subr.mxu0 0.0
    %3356 = vmatpush1.msra.mxu0 0.0
    %3357 = vmatprep.subr.mxu0 0.0
    %3358 = vmatpush1.msra.mxu0 0.0
    %3359 = vmatprep.subr.mxu0 0.0
    %3360 = vmatpush1.msra.mxu0 0.0
    %3361 = vmatprep.subr.mxu0 0.0
    %3362 = vmatpush1.msra.mxu0 0.0
    %3363 = vmatprep.subr.mxu0 0.0
    %3364 = vmatpush1.msra.mxu0 0.0
    %3365 = vmatprep.subr.mxu0 0.0
    %3366 = vmatpush1.msra.mxu0 0.0
    %3367 = vmatprep.subr.mxu0 0.0
    %3368 = vmatpush1.msra.mxu0 0.0
    %3369 = vmatprep.subr.mxu0 0.0
    %3370 = vmatpush1.msra.mxu0 0.0
    %3371 = vmatprep.mubr.f32.mxu0 0.0
    %3372 = vmatmul.mubr.f32.gmra.mrb[0].mxu0 %v3305
    %v3373 = vpop.f32.mrb[0].mxu0
    %v3374 = vadd.f32 0.0, %v3373
    %v3375 = vpop.f32.mrb[0].mxu0
    %3376 = vdwg.mxu0
    %vm3377 = vcmp.gt.f32.partialorder %v3374, 0.0
    %v3378 = vmin.f32 %v3374, 0.0
    %v3379 = vmul.f32 %v3378, 1.442695
    %v3380 = vpow.pop %v3379
    %v3381 = vsub.f32 %v3380, 1.0
    %v3382 = vsel %vm3377, %v3374, %v3381
    %3383 = vmatprep.subr.mxu0 0.0
    %3384 = vmatpush1.msra.mxu0 %v3382
    %3385 = vmatprep.subr.mxu0 0.0
    %3386 = vmatpush1.msra.mxu0 0.0
    %3387 = vmatprep.subr.mxu0 0.0
    %3388 = vmatpush1.msra.mxu0 0.0
    %3389 = vmatprep.subr.mxu0 0.0
    %3390 = vmatpush1.msra.mxu0 0.0
    %3391 = vmatprep.subr.mxu0 0.0
    %3392 = vmatpush1.msra.mxu0 0.0
    %3393 = vmatprep.subr.mxu0 0.0
    %3394 = vmatpush1.msra.mxu0 0.0
    %3395 = vmatprep.subr.mxu0 0.0
    %3396 = vmatpush1.msra.mxu0 0.0
    %3397 = vmatprep.subr.mxu0 0.0
    %3398 = vmatpush1.msra.mxu0 0.0
    %3399 = vmatprep.subr.mxu0 0.0
    %3400 = vmatpush1.msra.mxu0 0.0
    %3401 = vmatprep.subr.mxu0 0.0
    %3402 = vmatpush1.msra.mxu0 0.0
    %3403 = vmatprep.subr.mxu0 0.0
    %3404 = vmatpush1.msra.mxu0 0.0
    %3405 = vmatprep.subr.mxu0 0.0
    %3406 = vmatpush1.msra.mxu0 0.0
    %3407 = vmatprep.subr.mxu0 0.0
    %3408 = vmatpush1.msra.mxu0 0.0
    %3409 = vmatprep.subr.mxu0 0.0
    %3410 = vmatpush1.msra.mxu0 0.0
    %3411 = vmatprep.subr.mxu0 0.0
    %3412 = vmatpush1.msra.mxu0 0.0
    %3413 = vmatprep.subr.mxu0 0.0
    %3414 = vmatpush1.msra.mxu0 0.0
    %3415 = vmatprep.subr.mxu0 0.0
    %3416 = vmatpush1.msra.mxu0 0.0
    %3417 = vmatprep.subr.mxu0 0.0
    %3418 = vmatpush1.msra.mxu0 0.0
    %3419 = vmatprep.subr.mxu0 0.0
    %3420 = vmatpush1.msra.mxu0 0.0
    %3421 = vmatprep.subr.mxu0 0.0
    %3422 = vmatpush1.msra.mxu0 0.0
    %3423 = vmatprep.subr.mxu0 0.0
    %3424 = vmatpush1.msra.mxu0 0.0
    %3425 = vmatprep.subr.mxu0 0.0
    %3426 = vmatpush1.msra.mxu0 0.0
    %3427 = vmatprep.subr.mxu0 0.0
    %3428 = vmatpush1.msra.mxu0 0.0
    %3429 = vmatprep.subr.mxu0 0.0
    %3430 = vmatpush1.msra.mxu0 0.0
    %3431 = vmatprep.subr.mxu0 0.0
    %3432 = vmatpush1.msra.mxu0 0.0
    %3433 = vmatprep.subr.mxu0 0.0
    %3434 = vmatpush1.msra.mxu0 0.0
    %3435 = vmatprep.subr.mxu0 0.0
    %3436 = vmatpush1.msra.mxu0 0.0
    %3437 = vmatprep.subr.mxu0 0.0
    %3438 = vmatpush1.msra.mxu0 0.0
    %3439 = vmatprep.subr.mxu0 0.0
    %3440 = vmatpush1.msra.mxu0 0.0
    %3441 = vmatprep.subr.mxu0 0.0
    %3442 = vmatpush1.msra.mxu0 0.0
    %3443 = vmatprep.subr.mxu0 0.0
    %3444 = vmatpush1.msra.mxu0 0.0
    %3445 = vmatprep.subr.mxu0 0.0
    %3446 = vmatpush1.msra.mxu0 0.0
    %3447 = vmatprep.mubr.f32.mxu0 0.0
    %3448 = vmatmul.mubr.f32.gmra.mrb[0].mxu0 %v1678
    %v3449 = vpop.f32.mrb[0].mxu0
    %v3450 = vadd.f32 0.0, %v3449
    %v3451 = vpop.f32.mrb[0].mxu0
    %3452 = vmatprep.mubr.f32.mxu0 0.0
    %3453 = vmatmul.mubr.f32.gmra.mrb[0].mxu0 %v1681
    %v3454 = vpop.f32.mrb[0].mxu0
    %v3455 = vadd.f32 0.0, %v3454
    %v3456 = vpop.f32.mrb[0].mxu0
    %3457 = vdwg.mxu0
    %3458 = vmatprep.subr.mxu0 0.0
    %3459 = vmatpush1.msra.mxu0 %v3450
    %3460 = vmatprep.subr.mxu0 0.0
    %3461 = vmatpush1.msra.mxu0 %v3455
    %3462 = vmatprep.subr.mxu0 0.0
    %3463 = vmatpush1.msra.mxu0 0.0
    %3464 = vmatprep.subr.mxu0 0.0
    %3465 = vmatpush1.msra.mxu0 0.0
    %3466 = vmatprep.subr.mxu0 0.0
    %3467 = vmatpush1.msra.mxu0 0.0
    %3468 = vmatprep.subr.mxu0 0.0
    %3469 = vmatpush1.msra.mxu0 0.0
    %3470 = vmatprep.subr.mxu0 0.0
    %3471 = vmatpush1.msra.mxu0 0.0
    %3472 = vmatprep.subr.mxu0 0.0
    %3473 = vmatpush1.msra.mxu0 0.0
    %3474 = vmatprep.subr.mxu0 0.0
    %3475 = vmatpush1.msra.mxu0 0.0
    %3476 = vmatprep.subr.mxu0 0.0
    %3477 = vmatpush1.msra.mxu0 0.0
    %3478 = vmatprep.subr.mxu0 0.0
    %3479 = vmatpush1.msra.mxu0 0.0
    %3480 = vmatprep.subr.mxu0 0.0
    %3481 = vmatpush1.msra.mxu0 0.0
    %3482 = vmatprep.subr.mxu0 0.0
    %3483 = vmatpush1.msra.mxu0 0.0
    %3484 = vmatprep.subr.mxu0 0.0
    %3485 = vmatpush1.msra.mxu0 0.0
    %3486 = vmatprep.subr.mxu0 0.0
    %3487 = vmatpush1.msra.mxu0 0.0
    %3488 = vmatprep.subr.mxu0 0.0
    %3489 = vmatpush1.msra.mxu0 0.0
    %3490 = vmatprep.subr.mxu0 0.0
    %3491 = vmatpush1.msra.mxu0 0.0
    %3492 = vmatprep.subr.mxu0 0.0
    %3493 = vmatpush1.msra.mxu0 0.0
    %3494 = vmatprep.subr.mxu0 0.0
    %3495 = vmatpush1.msra.mxu0 0.0
    %3496 = vmatprep.subr.mxu0 0.0
    %3497 = vmatpush1.msra.mxu0 0.0
    %3498 = vmatprep.subr.mxu0 0.0
    %3499 = vmatpush1.msra.mxu0 0.0
    %3500 = vmatprep.subr.mxu0 0.0
    %3501 = vmatpush1.msra.mxu0 0.0
    %3502 = vmatprep.subr.mxu0 0.0
    %3503 = vmatpush1.msra.mxu0 0.0
    %3504 = vmatprep.subr.mxu0 0.0
    %3505 = vmatpush1.msra.mxu0 0.0
    %3506 = vmatprep.subr.mxu0 0.0
    %3507 = vmatpush1.msra.mxu0 0.0
    %3508 = vmatprep.subr.mxu0 0.0
    %3509 = vmatpush1.msra.mxu0 0.0
    %3510 = vmatprep.subr.mxu0 0.0
    %3511 = vmatpush1.msra.mxu0 0.0
    %3512 = vmatprep.subr.mxu0 0.0
    %3513 = vmatpush1.msra.mxu0 0.0
    %3514 = vmatprep.subr.mxu0 0.0
    %3515 = vmatpush1.msra.mxu0 0.0
    %3516 = vmatprep.subr.mxu0 0.0
    %3517 = vmatpush1.msra.mxu0 0.0
    %3518 = vmatprep.subr.mxu0 0.0
    %3519 = vmatpush1.msra.mxu0 0.0
    %3520 = vmatprep.subr.mxu0 0.0
    %3521 = vmatpush1.msra.mxu0 0.0
    %3522 = vmatprep.mubr.f32.mxu0 0.0
    %3523 = vmatmul.mubr.f32.gmra.mrb[0].mxu0 %v439
    %v3524 = vpop.f32.mrb[0].mxu0
    %v3525 = vadd.f32 0.0, %v3524
    %v3526 = vpop.f32.mrb[0].mxu0
    %3527 = vmatprep.mubr.f32.mxu0 0.0
    %3528 = vmatmul.mubr.f32.gmra.mrb[0].mxu0 %v442
    %v3529 = vpop.f32.mrb[0].mxu0
    %v3530 = vadd.f32 0.0, %v3529
    %v3531 = vpop.f32.mrb[0].mxu0
    %3532 = vdwg.mxu0
    %v3534 = vsel %vm219, %v3525, 0
    %v3537 = vsel %vm219, %v3530, 0
    %3539 = vmatprep.subr.mxu0 0.0
    %3540 = vmatpush1.msra.mxu0 %v91
    %3541 = vmatprep.subr.mxu0 0.0
    %3542 = vmatpush1.msra.mxu0 %v92
    %3543 = vmatprep.subr.mxu0 0.0
    %3544 = vmatpush1.msra.mxu0 %v93
    %3545 = vmatprep.subr.mxu0 0.0
    %3546 = vmatpush1.msra.mxu0 %v94
    %3547 = vmatprep.subr.mxu0 0.0
    %3548 = vmatpush1.msra.mxu0 0.0
    %3549 = vmatprep.subr.mxu0 0.0
    %3550 = vmatpush1.msra.mxu0 0.0
    %3551 = vmatprep.subr.mxu0 0.0
    %3552 = vmatpush1.msra.mxu0 0.0
    %3553 = vmatprep.subr.mxu0 0.0
    %3554 = vmatpush1.msra.mxu0 0.0
    %3555 = vmatprep.subr.mxu0 0.0
    %3556 = vmatpush1.msra.mxu0 0.0
    %3557 = vmatprep.subr.mxu0 0.0
    %3558 = vmatpush1.msra.mxu0 0.0
    %3559 = vmatprep.subr.mxu0 0.0
    %3560 = vmatpush1.msra.mxu0 0.0
    %3561 = vmatprep.subr.mxu0 0.0
    %3562 = vmatpush1.msra.mxu0 0.0
    %3563 = vmatprep.subr.mxu0 0.0
    %3564 = vmatpush1.msra.mxu0 0.0
    %3565 = vmatprep.subr.mxu0 0.0
    %3566 = vmatpush1.msra.mxu0 0.0
    %3567 = vmatprep.subr.mxu0 0.0
    %3568 = vmatpush1.msra.mxu0 0.0
    %3569 = vmatprep.subr.mxu0 0.0
    %3570 = vmatpush1.msra.mxu0 0.0
    %3571 = vmatprep.subr.mxu0 0.0
    %3572 = vmatpush1.msra.mxu0 0.0
    %3573 = vmatprep.subr.mxu0 0.0
    %3574 = vmatpush1.msra.mxu0 0.0
    %3575 = vmatprep.subr.mxu0 0.0
    %3576 = vmatpush1.msra.mxu0 0.0
    %3577 = vmatprep.subr.mxu0 0.0
    %3578 = vmatpush1.msra.mxu0 0.0
    %3579 = vmatprep.subr.mxu0 0.0
    %3580 = vmatpush1.msra.mxu0 0.0
    %3581 = vmatprep.subr.mxu0 0.0
    %3582 = vmatpush1.msra.mxu0 0.0
    %3583 = vmatprep.subr.mxu0 0.0
    %3584 = vmatpush1.msra.mxu0 0.0
    %3585 = vmatprep.subr.mxu0 0.0
    %3586 = vmatpush1.msra.mxu0 0.0
    %3587 = vmatprep.subr.mxu0 0.0
    %3588 = vmatpush1.msra.mxu0 0.0
    %3589 = vmatprep.subr.mxu0 0.0
    %3590 = vmatpush1.msra.mxu0 0.0
    %3591 = vmatprep.subr.mxu0 0.0
    %3592 = vmatpush1.msra.mxu0 0.0
    %3593 = vmatprep.subr.mxu0 0.0
    %3594 = vmatpush1.msra.mxu0 0.0
    %3595 = vmatprep.subr.mxu0 0.0
    %3596 = vmatpush1.msra.mxu0 0.0
    %3597 = vmatprep.subr.mxu0 0.0
    %3598 = vmatpush1.msra.mxu0 0.0
    %3599 = vmatprep.subr.mxu0 0.0
    %3600 = vmatpush1.msra.mxu0 0.0
    %3601 = vmatprep.subr.mxu0 0.0
    %3602 = vmatpush1.msra.mxu0 0.0
    %3603 = vmatprep.mubr.f32.mxu0 0.0
    %3604 = vmatmul.mubr.f32.gmra.mrb[0].mxu0 %v3534
    %v3605 = vpop.f32.mrb[0].mxu0
    %v3606 = vadd.f32 %v1837, %v3605
    %v3607 = vpop.f32.mrb[0].mxu0
    %3608 = vmatprep.mubr.f32.mxu0 0.0
    %3609 = vmatmul.mubr.f32.gmra.mrb[0].mxu0 %v3537
    %v3610 = vpop.f32.mrb[0].mxu0
    %v3611 = vadd.f32 %v1837, %v3610
    %v3612 = vpop.f32.mrb[0].mxu0
    %3613 = vdwg.mxu0
    %v3614 = vadd.f32 %v3606, %v598
    %v3615 = vadd.f32 %v3611, %v603
    %v3617 = vsel %vm219, %v3614, 0
    %v3620 = vsel %vm219, %v3615, 0
    %3622 = vmatprep.subr.mxu0 0.0
    %3623 = vmatpush1.msra.mxu0 %v71
    %3624 = vmatprep.subr.mxu0 0.0
    %3625 = vmatpush1.msra.mxu0 %v72
    %3626 = vmatprep.subr.mxu0 0.0
    %3627 = vmatpush1.msra.mxu0 %v73
    %3628 = vmatprep.subr.mxu0 0.0
    %3629 = vmatpush1.msra.mxu0 %v74
    %3630 = vmatprep.subr.mxu0 0.0
    %3631 = vmatpush1.msra.mxu0 0.0
    %3632 = vmatprep.subr.mxu0 0.0
    %3633 = vmatpush1.msra.mxu0 0.0
    %3634 = vmatprep.subr.mxu0 0.0
    %3635 = vmatpush1.msra.mxu0 0.0
    %3636 = vmatprep.subr.mxu0 0.0
    %3637 = vmatpush1.msra.mxu0 0.0
    %3638 = vmatprep.subr.mxu0 0.0
    %3639 = vmatpush1.msra.mxu0 0.0
    %3640 = vmatprep.subr.mxu0 0.0
    %3641 = vmatpush1.msra.mxu0 0.0
    %3642 = vmatprep.subr.mxu0 0.0
    %3643 = vmatpush1.msra.mxu0 0.0
    %3644 = vmatprep.subr.mxu0 0.0
    %3645 = vmatpush1.msra.mxu0 0.0
    %3646 = vmatprep.subr.mxu0 0.0
    %3647 = vmatpush1.msra.mxu0 0.0
    %3648 = vmatprep.subr.mxu0 0.0
    %3649 = vmatpush1.msra.mxu0 0.0
    %3650 = vmatprep.subr.mxu0 0.0
    %3651 = vmatpush1.msra.mxu0 0.0
    %3652 = vmatprep.subr.mxu0 0.0
    %3653 = vmatpush1.msra.mxu0 0.0
    %3654 = vmatprep.subr.mxu0 0.0
    %3655 = vmatpush1.msra.mxu0 0.0
    %3656 = vmatprep.subr.mxu0 0.0
    %3657 = vmatpush1.msra.mxu0 0.0
    %3658 = vmatprep.subr.mxu0 0.0
    %3659 = vmatpush1.msra.mxu0 0.0
    %3660 = vmatprep.subr.mxu0 0.0
    %3661 = vmatpush1.msra.mxu0 0.0
    %3662 = vmatprep.subr.mxu0 0.0
    %3663 = vmatpush1.msra.mxu0 0.0
    %3664 = vmatprep.subr.mxu0 0.0
    %3665 = vmatpush1.msra.mxu0 0.0
    %3666 = vmatprep.subr.mxu0 0.0
    %3667 = vmatpush1.msra.mxu0 0.0
    %3668 = vmatprep.subr.mxu0 0.0
    %3669 = vmatpush1.msra.mxu0 0.0
    %3670 = vmatprep.subr.mxu0 0.0
    %3671 = vmatpush1.msra.mxu0 0.0
    %3672 = vmatprep.subr.mxu0 0.0
    %3673 = vmatpush1.msra.mxu0 0.0
    %3674 = vmatprep.subr.mxu0 0.0
    %3675 = vmatpush1.msra.mxu0 0.0
    %3676 = vmatprep.subr.mxu0 0.0
    %3677 = vmatpush1.msra.mxu0 0.0
    %3678 = vmatprep.subr.mxu0 0.0
    %3679 = vmatpush1.msra.mxu0 0.0
    %3680 = vmatprep.subr.mxu0 0.0
    %3681 = vmatpush1.msra.mxu0 0.0
    %3682 = vmatprep.subr.mxu0 0.0
    %3683 = vmatpush1.msra.mxu0 0.0
    %3684 = vmatprep.subr.mxu0 0.0
    %3685 = vmatpush1.msra.mxu0 0.0
    %3686 = vmatprep.mubr.f32.mxu0 0.0
    %3687 = vmatmul.mubr.f32.gmra.mrb[0].mxu0 %v3617
    %v3688 = vpop.f32.mrb[0].mxu0
    %v3689 = vadd.f32 %v1995, %v3688
    %v3690 = vpop.f32.mrb[0].mxu0
    %3691 = vmatprep.mubr.f32.mxu0 0.0
    %3692 = vmatmul.mubr.f32.gmra.mrb[0].mxu0 %v3620
    %v3693 = vpop.f32.mrb[0].mxu0
    %v3694 = vadd.f32 %v2000, %v3693
    %v3695 = vpop.f32.mrb[0].mxu0
    %3696 = vdwg.mxu0
    %v3697 = vmul.f32 %v3689, %v2088
    %v3698 = vmul.f32 %v3694, %v2088
    %v3699 = vsel %vm219, %v3697, 0.0
    %3700 = vadd.xlane.f32.xlu0 %v3699
    %v3701 = vpop.xlane.xlu0 %3700
    %v3702 = vsel %vm219, %v3698, 0.0
    %3703 = vadd.xlane.f32.xlu0 %v3702
    %v3704 = vpop.xlane.xlu0 %3703
    %v3706 = vsel %vm219, %v3689, 0
    %v3709 = vsel %vm219, %v3694, 0
    %3711 = vmatprep.subr.mxu0 0.0
    %3712 = vmatpush1.xpose.msra.mxu0 %v3706
    %3713 = vmatprep.subr.mxu0 0.0
    %3714 = vmatpush1.xpose.msra.mxu0 %v3709
    %3715 = vmatprep.subr.mxu0 0.0
    %3716 = vmatpush1.xpose.msra.mxu0 0.0
    %3717 = vmatprep.subr.mxu0 0.0
    %3718 = vmatpush1.xpose.msra.mxu0 0.0
    %3719 = vmatprep.subr.mxu0 0.0
    %3720 = vmatpush1.xpose.msra.mxu0 0.0
    %3721 = vmatprep.subr.mxu0 0.0
    %3722 = vmatpush1.xpose.msra.mxu0 0.0
    %3723 = vmatprep.subr.mxu0 0.0
    %3724 = vmatpush1.xpose.msra.mxu0 0.0
    %3725 = vmatprep.subr.mxu0 0.0
    %3726 = vmatpush1.xpose.msra.mxu0 0.0
    %3727 = vmatprep.subr.mxu0 0.0
    %3728 = vmatpush1.xpose.msra.mxu0 0.0
    %3729 = vmatprep.subr.mxu0 0.0
    %3730 = vmatpush1.xpose.msra.mxu0 0.0
    %3731 = vmatprep.subr.mxu0 0.0
    %3732 = vmatpush1.xpose.msra.mxu0 0.0
    %3733 = vmatprep.subr.mxu0 0.0
    %3734 = vmatpush1.xpose.msra.mxu0 0.0
    %3735 = vmatprep.subr.mxu0 0.0
    %3736 = vmatpush1.xpose.msra.mxu0 0.0
    %3737 = vmatprep.subr.mxu0 0.0
    %3738 = vmatpush1.xpose.msra.mxu0 0.0
    %3739 = vmatprep.subr.mxu0 0.0
    %3740 = vmatpush1.xpose.msra.mxu0 0.0
    %3741 = vmatprep.subr.mxu0 0.0
    %3742 = vmatpush1.xpose.msra.mxu0 0.0
    %3743 = vmatprep.subr.mxu0 0.0
    %3744 = vmatpush1.xpose.msra.mxu0 0.0
    %3745 = vmatprep.subr.mxu0 0.0
    %3746 = vmatpush1.xpose.msra.mxu0 0.0
    %3747 = vmatprep.subr.mxu0 0.0
    %3748 = vmatpush1.xpose.msra.mxu0 0.0
    %3749 = vmatprep.subr.mxu0 0.0
    %3750 = vmatpush1.xpose.msra.mxu0 0.0
    %3751 = vmatprep.subr.mxu0 0.0
    %3752 = vmatpush1.xpose.msra.mxu0 0.0
    %3753 = vmatprep.subr.mxu0 0.0
    %3754 = vmatpush1.xpose.msra.mxu0 0.0
    %3755 = vmatprep.subr.mxu0 0.0
    %3756 = vmatpush1.xpose.msra.mxu0 0.0
    %3757 = vmatprep.subr.mxu0 0.0
    %3758 = vmatpush1.xpose.msra.mxu0 0.0
    %3759 = vmatprep.subr.mxu0 0.0
    %3760 = vmatpush1.xpose.msra.mxu0 0.0
    %3761 = vmatprep.subr.mxu0 0.0
    %3762 = vmatpush1.xpose.msra.mxu0 0.0
    %3763 = vmatprep.subr.mxu0 0.0
    %3764 = vmatpush1.xpose.msra.mxu0 0.0
    %3765 = vmatprep.subr.mxu0 0.0
    %3766 = vmatpush1.xpose.msra.mxu0 0.0
    %3767 = vmatprep.subr.mxu0 0.0
    %3768 = vmatpush1.xpose.msra.mxu0 0.0
    %3769 = vmatprep.subr.mxu0 0.0
    %3770 = vmatpush1.xpose.msra.mxu0 0.0
    %3771 = vmatprep.subr.mxu0 0.0
    %3772 = vmatpush1.xpose.msra.mxu0 0.0
    %3773 = vmatprep.subr.mxu0 0.0
    %3774 = vmatpush1.xpose.msra.mxu0 0.0
    %3775 = vmatprep.mubr.f32.mxu0 0.0
    %3776 = vmatmul.mubr.f32.gmra.mrb[0].mxu0 %v2099
    %v3777 = vpop.f32.mrb[0].mxu0
    %v3778 = vadd.f32 0.0, %v3777
    %v3779 = vpop.f32.mrb[0].mxu0
    %3780 = vdwg.mxu0
    %v3781 = vlaneseq
    %v3782 = vshrl.u32 %v3781, 7
    %v3783 = vsub.s32 0, %v3782
    %v3784 = vrot.slane %v3778, %v3783
    %v3785 = vadd.f32 %v3701, %v3784
    %v3786 = vadd.f32 %v3704, %v3784
    %vm3787 = vcmp.gt.f32.partialorder %v3785, 0.0
    %vm3788 = vcmp.gt.f32.partialorder %v3786, 0.0
    %v3789 = vmul.f32 %v3785, 0.2
    %v3790 = vmul.f32 %v3786, 0.2
    %v3791 = vsel %vm3787, %v3785, %v3789
    %v3792 = vsel %vm3788, %v3786, %v3790
    %v3793 = vsel %vm317, %v3791, -9e+15
    %v3794 = vsel %vm318, %v3792, -9e+15
    %v3795 = vsel %vm105, %v3793, -inf
    %3796 = vmax.xlane.f32.xlu0 %v3795
    %v3797 = vpop.xlane.xlu0 %3796
    %v3798 = vsel %vm105, %v3794, -inf
    %3799 = vmax.xlane.f32.xlu0 %v3798
    %v3800 = vpop.xlane.xlu0 %3799
    %v3801 = vsub.f32 %v3793, %v3797
    %v3802 = vsub.f32 %v3794, %v3800
    %v3803 = vmul.f32 %v3801, 1.442695
    %v3804 = vpow.pop %v3803
    %v3805 = vmul.f32 %v3802, 1.442695
    %v3806 = vpow.pop %v3805
    %v3807 = vsel %vm105, %v3804, 0.0
    %3808 = vadd.xlane.f32.xlu0 %v3807
    %v3809 = vpop.xlane.xlu0 %3808
    %v3810 = vsel %vm105, %v3806, 0.0
    %3811 = vadd.xlane.f32.xlu0 %v3810
    %v3812 = vpop.xlane.xlu0 %3811
    %v3813 = vrcp.pop %v3809
    %v3814 = vrcp.pop %v3812
    %v3815 = vmul.f32 %v3804, %v3813
    %v3816 = vmul.f32 %v3806, %v3814
    %v3818 = vsel %vm105, %v3815, 0
    %v3821 = vsel %vm105, %v3816, 0
    %3823 = vmatprep.subr.mxu0 0.0
    %3824 = vmatpush1.msra.mxu0 %v3689
    %3825 = vmatprep.subr.mxu0 0.0
    %3826 = vmatpush1.msra.mxu0 %v3694
    %3827 = vmatprep.subr.mxu0 0.0
    %3828 = vmatpush1.msra.mxu0 0.0
    %3829 = vmatprep.subr.mxu0 0.0
    %3830 = vmatpush1.msra.mxu0 0.0
    %3831 = vmatprep.subr.mxu0 0.0
    %3832 = vmatpush1.msra.mxu0 0.0
    %3833 = vmatprep.subr.mxu0 0.0
    %3834 = vmatpush1.msra.mxu0 0.0
    %3835 = vmatprep.subr.mxu0 0.0
    %3836 = vmatpush1.msra.mxu0 0.0
    %3837 = vmatprep.subr.mxu0 0.0
    %3838 = vmatpush1.msra.mxu0 0.0
    %3839 = vmatprep.subr.mxu0 0.0
    %3840 = vmatpush1.msra.mxu0 0.0
    %3841 = vmatprep.subr.mxu0 0.0
    %3842 = vmatpush1.msra.mxu0 0.0
    %3843 = vmatprep.subr.mxu0 0.0
    %3844 = vmatpush1.msra.mxu0 0.0
    %3845 = vmatprep.subr.mxu0 0.0
    %3846 = vmatpush1.msra.mxu0 0.0
    %3847 = vmatprep.subr.mxu0 0.0
    %3848 = vmatpush1.msra.mxu0 0.0
    %3849 = vmatprep.subr.mxu0 0.0
    %3850 = vmatpush1.msra.mxu0 0.0
    %3851 = vmatprep.subr.mxu0 0.0
    %3852 = vmatpush1.msra.mxu0 0.0
    %3853 = vmatprep.subr.mxu0 0.0
    %3854 = vmatpush1.msra.mxu0 0.0
    %3855 = vmatprep.subr.mxu0 0.0
    %3856 = vmatpush1.msra.mxu0 0.0
    %3857 = vmatprep.subr.mxu0 0.0
    %3858 = vmatpush1.msra.mxu0 0.0
    %3859 = vmatprep.subr.mxu0 0.0
    %3860 = vmatpush1.msra.mxu0 0.0
    %3861 = vmatprep.subr.mxu0 0.0
    %3862 = vmatpush1.msra.mxu0 0.0
    %3863 = vmatprep.subr.mxu0 0.0
    %3864 = vmatpush1.msra.mxu0 0.0
    %3865 = vmatprep.subr.mxu0 0.0
    %3866 = vmatpush1.msra.mxu0 0.0
    %3867 = vmatprep.subr.mxu0 0.0
    %3868 = vmatpush1.msra.mxu0 0.0
    %3869 = vmatprep.subr.mxu0 0.0
    %3870 = vmatpush1.msra.mxu0 0.0
    %3871 = vmatprep.subr.mxu0 0.0
    %3872 = vmatpush1.msra.mxu0 0.0
    %3873 = vmatprep.subr.mxu0 0.0
    %3874 = vmatpush1.msra.mxu0 0.0
    %3875 = vmatprep.subr.mxu0 0.0
    %3876 = vmatpush1.msra.mxu0 0.0
    %3877 = vmatprep.subr.mxu0 0.0
    %3878 = vmatpush1.msra.mxu0 0.0
    %3879 = vmatprep.subr.mxu0 0.0
    %3880 = vmatpush1.msra.mxu0 0.0
    %3881 = vmatprep.subr.mxu0 0.0
    %3882 = vmatpush1.msra.mxu0 0.0
    %3883 = vmatprep.subr.mxu0 0.0
    %3884 = vmatpush1.msra.mxu0 0.0
    %3885 = vmatprep.subr.mxu0 0.0
    %3886 = vmatpush1.msra.mxu0 0.0
    %3887 = vmatprep.mubr.f32.mxu0 0.0
    %3888 = vmatmul.mubr.f32.gmra.mrb[0].mxu0 %v3818
    %v3889 = vpop.f32.mrb[0].mxu0
    %v3890 = vadd.f32 0.0, %v3889
    %v3891 = vpop.f32.mrb[0].mxu0
    %3892 = vmatprep.mubr.f32.mxu0 0.0
    %3893 = vmatmul.mubr.f32.gmra.mrb[0].mxu0 %v3821
    %v3894 = vpop.f32.mrb[0].mxu0
    %v3895 = vadd.f32 0.0, %v3894
    %v3896 = vpop.f32.mrb[0].mxu0
    %3897 = vdwg.mxu0
    %vm3898 = vcmp.gt.f32.partialorder %v3890, 0.0
    %vm3899 = vcmp.gt.f32.partialorder %v3895, 0.0
    %v3900 = vmin.f32 %v3890, 0.0
    %v3901 = vmin.f32 %v3895, 0.0
    %v3902 = vmul.f32 %v3900, 1.442695
    %v3903 = vpow.pop %v3902
    %v3904 = vmul.f32 %v3901, 1.442695
    %v3905 = vpow.pop %v3904
    %v3906 = vsub.f32 %v3903, 1.0
    %v3907 = vsub.f32 %v3905, 1.0
    %v3908 = vsel %vm3898, %v3890, %v3906
    %v3909 = vsel %vm3899, %v3895, %v3907
    %3910 = vst.msk [vmem:[%s17] sm:$0xff] %vm219, %v3908
    %3911 = vst.msk [vmem:[%s17 + $0x8] sm:$0xff] %vm219, %v3909
    // Predicated region
    $region66: #{iwas_agsrnet_forward.2} parent=1 // pred_check
      _
    $region67: #{iwas_agsrnet_forward.2} parent=1 // pred_check_branch
      %3913 = sbr.rel (0) target = $region69
    $region68: #{iwas_agsrnet_forward.2} parent=1 // pred_region
      _
    $region69: #{iwas_agsrnet_forward.2} parent=1 // pred_fallthru
      _
    // Predicated region
    $region70: #{iwas_agsrnet_forward.2} parent=1 // pred_check
      _
    $region71: #{iwas_agsrnet_forward.2} parent=1 // pred_check_branch
      %3915 = sbr.rel (0) target = $region73
    $region72: #{iwas_agsrnet_forward.2} parent=1 // pred_region
      _
    $region73: #{iwas_agsrnet_forward.2} parent=1 // pred_fallthru
      _
    // Predicated region
    $region74: #{iwas_agsrnet_forward.2} parent=1 // pred_check
      _
    $region75: #{iwas_agsrnet_forward.2} parent=1 // pred_check_branch
      %3917 = sbr.rel (0) target = $region77
    $region76: #{iwas_agsrnet_forward.2} parent=1 // pred_region
      %s3919 = ssub.s32 256, 256
      %3920 = vsyncadd [#allocation4], %s3919
      %s3921 = sshll.u32 [#allocation3], 4
      %s3922 = int_to_ptr.vmem [resolvable:$true] %s3921
      %3927 = dma.vmem_to_hbm [thread:$0]  %s3922, 256, %s18, [#allocation4], 128, 128, 8
    $region77: #{iwas_agsrnet_forward.2} parent=1 // pred_fallthru
      _
    // Predicated region
    $region78: #{iwas_agsrnet_forward.2} parent=1 // pred_check
      _
    $region79: #{iwas_agsrnet_forward.2} parent=1 // pred_check_branch
      %3929 = sbr.rel (0) target = $region81
    $region80: #{iwas_agsrnet_forward.2} parent=1 // pred_region
      _
    $region81: #{iwas_agsrnet_forward.2} parent=1 // pred_fallthru
      _
    // Predicated region
    $region82: #{iwas_agsrnet_forward.2} parent=1 // pred_check
      _
    $region83: #{iwas_agsrnet_forward.2} parent=1 // pred_check_branch
      %3931 = sbr.rel (0) target = $region85
    $region84: #{iwas_agsrnet_forward.2} parent=1 // pred_region
      _
    $region85: #{iwas_agsrnet_forward.2} parent=1 // pred_fallthru
      _
    // Predicated region
    $region86: #{iwas_agsrnet_forward.2} parent=1 // pred_check
      _
    $region87: #{iwas_agsrnet_forward.2} parent=1 // pred_check_branch
      %3933 = sbr.rel (0) target = $region89
    $region88: #{iwas_agsrnet_forward.2} parent=1 // pred_region
      %3934 = dma.done [#allocation4], 256
    $region89: #{iwas_agsrnet_forward.2} parent=1 // pred_fallthru
      _
    %3935 = vsyncpa [#allocation4], 1

</llo_original>
